<compile_context>
chip_gen: v6e
topology: v6e:2x2x1
jax: 0.10.0
libtpu: 0.0.40
codegen_flags: <defaults>
</compile_context>

<pallas_src>
import jax
import jax.numpy as jnp
from jax.experimental import pallas as pl
from jax.experimental.pallas import tpu as pltpu


# ---------------------------------------------------------------------------
# Fused per-image kernel
# ---------------------------------------------------------------------------
def _fused_cnn_kernel(x_ref, w1_ref, b1_ref, w2_ref, b2_ref,
                      fw1_ref, fb1_ref, fw2_ref, fb2_ref,
                      out_ref,
                      p1_ref, cols_ref, feat_ref):
    # ---- conv1: 3x3, 1 -> 32 channels, VPU tap accumulation (f32) ----------
    xi = x_ref[0]                                    # (28, 28, 1) f32
    w1 = w1_ref[...]                                 # (9, 32)   f32
    acc = None
    for t in range(9):
        i, j = divmod(t, 3)
        # (26,26,1) * (1,32) -> (26,26,32): lane-splat of the tap, proven pattern
        term = xi[i:i + 26, j:j + 26, :] * w1[t:t + 1, :]
        acc = term if acc is None else acc + term
    a1 = jnp.maximum(acc + b1_ref[...], 0.0)         # (26, 26, 32) f32

    # ---- pool1: 2x2 / stride 2 -> p1 scratch (13, 13, 32), all in VMEM -----
    a1p = a1.reshape(13, 2, 26, 32)                  # split leading H dim (layout no-op)
    hmax = jnp.maximum(a1p[:, 0], a1p[:, 1])         # (13, 26, 32)
    for px in range(13):
        p1_ref[:, px:px + 1, :] = jnp.maximum(hmax[:, 2 * px:2 * px + 1, :],
                                              hmax[:, 2 * px + 1:2 * px + 2, :])

    # ---- in-kernel im2col for conv2: cols scratch (11, 11, 288) f32 --------
    # cols[h, w, t*32 + c] = p1[h+i, w+j, c]  with t = i*3 + j  (matches w2 rows)
    for t in range(9):
        i, j = divmod(t, 3)
        cols_ref[:, :, t * 32:(t + 1) * 32] = p1_ref[i:i + 11, j:j + 11, :]

    # ---- conv2 rows on the MXU + bias + ReLU, fused pool2 + NHWC flatten ---
    w2 = w2_ref[...]                                 # (288, 64) bf16
    b2 = b2_ref[...]                                 # (1, 64)   f32
    feat_ref[...] = jnp.zeros(feat_ref.shape, feat_ref.dtype)
    for qy in range(5):                              # pool2 output rows (row 10 dropped)
        r0 = jnp.dot(cols_ref[2 * qy].astype(jnp.bfloat16), w2,
                     preferred_element_type=jnp.float32)       # (11, 64)
        r1 = jnp.dot(cols_ref[2 * qy + 1].astype(jnp.bfloat16), w2,
                     preferred_element_type=jnp.float32)
        r0 = jnp.maximum(r0 + b2, 0.0)
        r1 = jnp.maximum(r1 + b2, 0.0)
        h2 = jnp.maximum(r0, r1)                                # (11, 64) H-pooled
        for qx in range(5):                          # pool over W (col 10 dropped)
            v = jnp.maximum(h2[2 * qx:2 * qx + 1, :],
                            h2[2 * qx + 1:2 * qx + 2, :])       # (1, 64)
            c0 = (qy * 5 + qx) * 64                  # NHWC flatten offset
            feat_ref[0:1, c0:c0 + 64] = v

    # ---- fc1 (+ReLU) + fc2 on the MXU (rows 1..7 of feat are zero padding) -
    f = feat_ref[...].astype(jnp.bfloat16)                           # (8, 1600)
    h = jnp.dot(f, fw1_ref[...], preferred_element_type=jnp.float32)  # (8, 128)
    h = jnp.maximum(h + fb1_ref[...], 0.0)
    o = jnp.dot(h.astype(jnp.bfloat16), fw2_ref[...],
                preferred_element_type=jnp.float32)                   # (8, num_classes)
    out_ref[0] = o[0:1, :] + fb2_ref[...]


# ---------------------------------------------------------------------------
# Wrapper: one pallas_call for the whole forward pass
# ---------------------------------------------------------------------------
def simple_cnn_forward(params, x):
    """x: (B, 1, 28, 28) float32 NCHW (PyTorch convention); params from pack_params."""
    b = x.shape[0]
    assert x.shape[1:] == (1, 28, 28)
    num_classes = params["fc2_w"].shape[1]
    # NCHW with C=1 -> NHWC: metadata-only reshape (same HBM layout).
    x_nhwc = x.reshape(b, 28, 28, 1)

    out = pl.pallas_call(
        _fused_cnn_kernel,
        out_shape=jax.ShapeDtypeStruct((b, 1, num_classes), jnp.float32),
        grid=(b,),
        in_specs=[
            pl.BlockSpec((1, 28, 28, 1), lambda i: (i, 0, 0, 0)),   # image
            pl.BlockSpec((9, 32), lambda i: (0, 0)),                # conv1 w (f32)
            pl.BlockSpec((1, 32), lambda i: (0, 0)),                # conv1 b
            pl.BlockSpec((288, 64), lambda i: (0, 0)),              # conv2 w (bf16)
            pl.BlockSpec((1, 64), lambda i: (0, 0)),                # conv2 b
            pl.BlockSpec((1600, 128), lambda i: (0, 0)),            # fc1 w (bf16)
            pl.BlockSpec((1, 128), lambda i: (0, 0)),               # fc1 b
            pl.BlockSpec((128, num_classes), lambda i: (0, 0)),     # fc2 w (bf16)
            pl.BlockSpec((1, num_classes), lambda i: (0, 0)),       # fc2 b
        ],
        out_specs=pl.BlockSpec((1, 1, num_classes), lambda i: (i, 0, 0)),
        scratch_shapes=[
            pltpu.VMEM((13, 13, 32), jnp.float32),    # pooled conv1 activations
            pltpu.VMEM((11, 11, 288), jnp.float32),   # conv2 im2col columns
            pltpu.VMEM((8, 1600), jnp.float32),       # flattened features (row 0 used)
        ],
        compiler_params=pltpu.CompilerParams(
            dimension_semantics=("parallel",),
            vmem_limit_bytes=32 * 1024 * 1024,
        ),
    )(x_nhwc,
      params["conv1_w"], params["conv1_b"],
      params["conv2_w"], params["conv2_b"],
      params["fc1_w"], params["fc1_b"],
      params["fc2_w"], params["fc2_b"])
    return out.reshape(b, num_classes)                # metadata-only reshape


# ---------------------------------------------------------------------------
# Parameters: PyTorch layout at init, packed ONCE into kernel layout
# ---------------------------------------------------------------------------
def init_params(key, num_classes=10):
    """PyTorch-layout parameters with PyTorch-default-style uniform init."""
    ks = jax.random.split(key, 8)

    def u(k, shape, fan_in):
        bound = 1.0 / jnp.sqrt(jnp.float32(fan_in))
        return jax.random.uniform(k, shape, jnp.float32, -bound, bound)

    return {
        "conv1_w": u(ks[0], (32, 1, 3, 3), 1 * 3 * 3),
        "conv1_b": u(ks[1], (32,), 1 * 3 * 3),
        "conv2_w": u(ks[2], (64, 32, 3, 3), 32 * 3 * 3),
        "conv2_b": u(ks[3], (64,), 32 * 3 * 3),
        "fc1_w": u(ks[4], (128, 64 * 5 * 5), 64 * 5 * 5),
        "fc1_b": u(ks[5], (128,), 64 * 5 * 5),
        "fc2_w": u(ks[6], (num_classes, 128), 128),
        "fc2_b": u(ks[7], (num_classes,), 128),
    }


def pack_params(p):
    """One-time conversion to kernel layout (all reshapes/casts happen here):
       conv (OC,IC,KH,KW) -> (KH*KW*IC, OC); fc1 columns permuted from the
       NCHW flatten order (c,h,w) to the NHWC flatten order (h,w,c);
       biases -> (1, N) f32; MXU weights bf16, conv1 (VPU path) f32."""
    def conv_mat(w, dtype):
        oc, ic, kh, kw = w.shape
        return jnp.transpose(w, (2, 3, 1, 0)).reshape(kh * kw * ic, oc).astype(dtype)

    n1 = p["fc1_w"].shape[0]                          # 128
    fc1 = p["fc1_w"].reshape(n1, 64, 5, 5)            # (128, C, H, W)
    fc1 = jnp.transpose(fc1, (2, 3, 1, 0)).reshape(5 * 5 * 64, n1).astype(jnp.bfloat16)
    return {
        "conv1_w": conv_mat(p["conv1_w"], jnp.float32),
        "conv1_b": p["conv1_b"].reshape(1, -1).astype(jnp.float32),
        "conv2_w": conv_mat(p["conv2_w"], jnp.bfloat16),
        "conv2_b": p["conv2_b"].reshape(1, -1).astype(jnp.float32),
        "fc1_w": fc1,
        "fc1_b": p["fc1_b"].reshape(1, -1).astype(jnp.float32),
        "fc2_w": jnp.transpose(p["fc2_w"]).astype(jnp.bfloat16),
        "fc2_b": p["fc2_b"].reshape(1, -1).astype(jnp.float32),
    }


# ---------------------------------------------------------------------------
# Pure-JAX f32 reference (mirrors the PyTorch module) for tolerance testing
# ---------------------------------------------------------------------------
def _maxpool2_ref(y):
    b, c, h, w = y.shape
    h2, w2 = h // 2, w // 2
    y = y[:, :, : h2 * 2, : w2 * 2].reshape(b, c, h2, 2, w2, 2)
    return y.max(axis=(3, 5))


def reference_forward(torch_params, x):
    p = torch_params
    dn = ("NCHW", "OIHW", "NCHW")
    y = jax.lax.conv_general_dilated(x, p["conv1_w"], (1, 1), "VALID",
                                     dimension_numbers=dn)
    y = jax.nn.relu(y + p["conv1_b"][None, :, None, None])
    y = _maxpool2_ref(y)
    y = jax.lax.conv_general_dilated(y, p["conv2_w"], (1, 1), "VALID",
                                     dimension_numbers=dn)
    y = jax.nn.relu(y + p["conv2_b"][None, :, None, None])
    y = _maxpool2_ref(y)
    y = y.reshape(y.shape[0], -1)                     # NCHW flatten (c,h,w)
    y = jax.nn.relu(y @ p["fc1_w"].T + p["fc1_b"])
    return y @ p["fc2_w"].T + p["fc2_b"]


if __name__ == "__main__":
    key = jax.random.PRNGKey(0)
    pkey, xkey = jax.random.split(key)
    torch_params = init_params(pkey, num_classes=10)
    params = pack_params(torch_params)
    x = jax.random.normal(xkey, (4, 1, 28, 28), jnp.float32)

    out = jax.block_until_ready(jax.jit(simple_cnn_forward)(params, x))
    assert out.shape == (4, 10) and out.dtype == jnp.float32

    ref = reference_forward(torch_params, x)
    err = float(jnp.max(jnp.abs(out - ref)))
    assert err < 5e-2, f"max abs error vs f32 reference: {err}"
    print("KERNEL_OK")
</pallas_src>

<mosaic_0001>
module attributes {stable_mosaic.version = 11 : i64} {
  func.func @_fused_cnn_kernel(%arg0: i32, %arg1: memref<1x28x28x1xf32, #tpu.memory_space<vmem>>, %arg2: memref<9x32xf32, #tpu.memory_space<vmem>>, %arg3: memref<1x32xf32, #tpu.memory_space<vmem>>, %arg4: memref<288x64xbf16, #tpu.memory_space<vmem>>, %arg5: memref<1x64xf32, #tpu.memory_space<vmem>>, %arg6: memref<1600x128xbf16, #tpu.memory_space<vmem>>, %arg7: memref<1x128xf32, #tpu.memory_space<vmem>>, %arg8: memref<128x10xbf16, #tpu.memory_space<vmem>>, %arg9: memref<1x10xf32, #tpu.memory_space<vmem>>, %arg10: memref<1x1x10xf32, #tpu.memory_space<vmem>>, %arg11: memref<13x13x32xf32, #tpu.memory_space<vmem>>, %arg12: memref<11x11x288xf32, #tpu.memory_space<vmem>>, %arg13: memref<8x1600xf32, #tpu.memory_space<vmem>>) attributes {dimension_semantics = [#tpu.dimension_semantics<parallel>], iteration_bounds = array<i64: 4>, scalar_prefetch = 0 : i64, scratch_operands = 3 : i64, tpu.core_type = #tpu.core_type<tc>, window_params = [{transform_indices = @transform_0, window_bounds = array<i64: 1, 28, 28, 1>}, {pipeline_mode = #tpu.pipeline_mode<synchronous>, transform_indices = @transform_1, window_bounds = array<i64: 9, 32>}, {pipeline_mode = #tpu.pipeline_mode<synchronous>, transform_indices = @transform_2, window_bounds = array<i64: 1, 32>}, {pipeline_mode = #tpu.pipeline_mode<synchronous>, transform_indices = @transform_3, window_bounds = array<i64: 288, 64>}, {pipeline_mode = #tpu.pipeline_mode<synchronous>, transform_indices = @transform_4, window_bounds = array<i64: 1, 64>}, {pipeline_mode = #tpu.pipeline_mode<synchronous>, transform_indices = @transform_5, window_bounds = array<i64: 1600, 128>}, {pipeline_mode = #tpu.pipeline_mode<synchronous>, transform_indices = @transform_6, window_bounds = array<i64: 1, 128>}, {pipeline_mode = #tpu.pipeline_mode<synchronous>, transform_indices = @transform_7, window_bounds = array<i64: 128, 10>}, {pipeline_mode = #tpu.pipeline_mode<synchronous>, transform_indices = @transform_8, window_bounds = array<i64: 1, 10>}, {transform_indices = @transform_9, window_bounds = array<i64: 1, 1, 10>}]} {
    %c0 = arith.constant 0 : index
    %c0_0 = arith.constant 0 : index
    %c0_1 = arith.constant 0 : index
    %c0_2 = arith.constant 0 : index
    %0 = vector.load %arg1[%c0, %c0_0, %c0_1, %c0_2] : memref<1x28x28x1xf32, #tpu.memory_space<vmem>>, vector<1x28x28x1xf32>
    %1 = vector.shape_cast %0 : vector<1x28x28x1xf32> to vector<28x28x1xf32>
    %c0_3 = arith.constant 0 : index
    %c0_4 = arith.constant 0 : index
    %2 = vector.load %arg2[%c0_3, %c0_4] : memref<9x32xf32, #tpu.memory_space<vmem>>, vector<9x32xf32>
    %3 = vector.extract_strided_slice %1 {offsets = [0, 0, 0], sizes = [26, 26, 1], strides = [1, 1, 1]} : vector<28x28x1xf32> to vector<26x26x1xf32>
    %4 = vector.extract_strided_slice %2 {offsets = [0, 0], sizes = [1, 32], strides = [1, 1]} : vector<9x32xf32> to vector<1x32xf32>
    %5 = vector.shape_cast %4 : vector<1x32xf32> to vector<1x1x32xf32>
    %6 = vector.broadcast %3 : vector<26x26x1xf32> to vector<26x26x32xf32>
    %7 = vector.broadcast %5 : vector<1x1x32xf32> to vector<26x26x32xf32>
    %8 = arith.mulf %6, %7 : vector<26x26x32xf32>
    %9 = vector.extract_strided_slice %1 {offsets = [0, 1, 0], sizes = [26, 26, 1], strides = [1, 1, 1]} : vector<28x28x1xf32> to vector<26x26x1xf32>
    %10 = vector.extract_strided_slice %2 {offsets = [1, 0], sizes = [1, 32], strides = [1, 1]} : vector<9x32xf32> to vector<1x32xf32>
    %11 = vector.shape_cast %10 : vector<1x32xf32> to vector<1x1x32xf32>
    %12 = vector.broadcast %9 : vector<26x26x1xf32> to vector<26x26x32xf32>
    %13 = vector.broadcast %11 : vector<1x1x32xf32> to vector<26x26x32xf32>
    %14 = arith.mulf %12, %13 : vector<26x26x32xf32>
    %15 = arith.addf %8, %14 : vector<26x26x32xf32>
    %16 = vector.extract_strided_slice %1 {offsets = [0, 2, 0], sizes = [26, 26, 1], strides = [1, 1, 1]} : vector<28x28x1xf32> to vector<26x26x1xf32>
    %17 = vector.extract_strided_slice %2 {offsets = [2, 0], sizes = [1, 32], strides = [1, 1]} : vector<9x32xf32> to vector<1x32xf32>
    %18 = vector.shape_cast %17 : vector<1x32xf32> to vector<1x1x32xf32>
    %19 = vector.broadcast %16 : vector<26x26x1xf32> to vector<26x26x32xf32>
    %20 = vector.broadcast %18 : vector<1x1x32xf32> to vector<26x26x32xf32>
    %21 = arith.mulf %19, %20 : vector<26x26x32xf32>
    %22 = arith.addf %15, %21 : vector<26x26x32xf32>
    %23 = vector.extract_strided_slice %1 {offsets = [1, 0, 0], sizes = [26, 26, 1], strides = [1, 1, 1]} : vector<28x28x1xf32> to vector<26x26x1xf32>
    %24 = vector.extract_strided_slice %2 {offsets = [3, 0], sizes = [1, 32], strides = [1, 1]} : vector<9x32xf32> to vector<1x32xf32>
    %25 = vector.shape_cast %24 : vector<1x32xf32> to vector<1x1x32xf32>
    %26 = vector.broadcast %23 : vector<26x26x1xf32> to vector<26x26x32xf32>
    %27 = vector.broadcast %25 : vector<1x1x32xf32> to vector<26x26x32xf32>
    %28 = arith.mulf %26, %27 : vector<26x26x32xf32>
    %29 = arith.addf %22, %28 : vector<26x26x32xf32>
    %30 = vector.extract_strided_slice %1 {offsets = [1, 1, 0], sizes = [26, 26, 1], strides = [1, 1, 1]} : vector<28x28x1xf32> to vector<26x26x1xf32>
    %31 = vector.extract_strided_slice %2 {offsets = [4, 0], sizes = [1, 32], strides = [1, 1]} : vector<9x32xf32> to vector<1x32xf32>
    %32 = vector.shape_cast %31 : vector<1x32xf32> to vector<1x1x32xf32>
    %33 = vector.broadcast %30 : vector<26x26x1xf32> to vector<26x26x32xf32>
    %34 = vector.broadcast %32 : vector<1x1x32xf32> to vector<26x26x32xf32>
    %35 = arith.mulf %33, %34 : vector<26x26x32xf32>
    %36 = arith.addf %29, %35 : vector<26x26x32xf32>
    %37 = vector.extract_strided_slice %1 {offsets = [1, 2, 0], sizes = [26, 26, 1], strides = [1, 1, 1]} : vector<28x28x1xf32> to vector<26x26x1xf32>
    %38 = vector.extract_strided_slice %2 {offsets = [5, 0], sizes = [1, 32], strides = [1, 1]} : vector<9x32xf32> to vector<1x32xf32>
    %39 = vector.shape_cast %38 : vector<1x32xf32> to vector<1x1x32xf32>
    %40 = vector.broadcast %37 : vector<26x26x1xf32> to vector<26x26x32xf32>
    %41 = vector.broadcast %39 : vector<1x1x32xf32> to vector<26x26x32xf32>
    %42 = arith.mulf %40, %41 : vector<26x26x32xf32>
    %43 = arith.addf %36, %42 : vector<26x26x32xf32>
    %44 = vector.extract_strided_slice %1 {offsets = [2, 0, 0], sizes = [26, 26, 1], strides = [1, 1, 1]} : vector<28x28x1xf32> to vector<26x26x1xf32>
    %45 = vector.extract_strided_slice %2 {offsets = [6, 0], sizes = [1, 32], strides = [1, 1]} : vector<9x32xf32> to vector<1x32xf32>
    %46 = vector.shape_cast %45 : vector<1x32xf32> to vector<1x1x32xf32>
    %47 = vector.broadcast %44 : vector<26x26x1xf32> to vector<26x26x32xf32>
    %48 = vector.broadcast %46 : vector<1x1x32xf32> to vector<26x26x32xf32>
    %49 = arith.mulf %47, %48 : vector<26x26x32xf32>
    %50 = arith.addf %43, %49 : vector<26x26x32xf32>
    %51 = vector.extract_strided_slice %1 {offsets = [2, 1, 0], sizes = [26, 26, 1], strides = [1, 1, 1]} : vector<28x28x1xf32> to vector<26x26x1xf32>
    %52 = vector.extract_strided_slice %2 {offsets = [7, 0], sizes = [1, 32], strides = [1, 1]} : vector<9x32xf32> to vector<1x32xf32>
    %53 = vector.shape_cast %52 : vector<1x32xf32> to vector<1x1x32xf32>
    %54 = vector.broadcast %51 : vector<26x26x1xf32> to vector<26x26x32xf32>
    %55 = vector.broadcast %53 : vector<1x1x32xf32> to vector<26x26x32xf32>
    %56 = arith.mulf %54, %55 : vector<26x26x32xf32>
    %57 = arith.addf %50, %56 : vector<26x26x32xf32>
    %58 = vector.extract_strided_slice %1 {offsets = [2, 2, 0], sizes = [26, 26, 1], strides = [1, 1, 1]} : vector<28x28x1xf32> to vector<26x26x1xf32>
    %59 = vector.extract_strided_slice %2 {offsets = [8, 0], sizes = [1, 32], strides = [1, 1]} : vector<9x32xf32> to vector<1x32xf32>
    %60 = vector.shape_cast %59 : vector<1x32xf32> to vector<1x1x32xf32>
    %61 = vector.broadcast %58 : vector<26x26x1xf32> to vector<26x26x32xf32>
    %62 = vector.broadcast %60 : vector<1x1x32xf32> to vector<26x26x32xf32>
    %63 = arith.mulf %61, %62 : vector<26x26x32xf32>
    %64 = arith.addf %57, %63 : vector<26x26x32xf32>
    %c0_5 = arith.constant 0 : index
    %c0_6 = arith.constant 0 : index
    %65 = vector.load %arg3[%c0_5, %c0_6] : memref<1x32xf32, #tpu.memory_space<vmem>>, vector<1x32xf32>
    %66 = vector.shape_cast %65 : vector<1x32xf32> to vector<1x1x32xf32>
    %67 = vector.broadcast %66 : vector<1x1x32xf32> to vector<26x26x32xf32>
    %68 = arith.addf %64, %67 : vector<26x26x32xf32>
    %cst = arith.constant 0.000000e+00 : f32
    %69 = vector.broadcast %cst : f32 to vector<26x26x32xf32>
    %70 = arith.maximumf %68, %69 : vector<26x26x32xf32>
    %71 = vector.shape_cast %70 : vector<26x26x32xf32> to vector<13x2x26x32xf32>
    %72 = vector.extract_strided_slice %71 {offsets = [0, 0, 0, 0], sizes = [13, 1, 26, 32], strides = [1, 1, 1, 1]} : vector<13x2x26x32xf32> to vector<13x1x26x32xf32>
    %73 = vector.shape_cast %72 : vector<13x1x26x32xf32> to vector<13x26x32xf32>
    %74 = vector.extract_strided_slice %71 {offsets = [0, 1, 0, 0], sizes = [13, 1, 26, 32], strides = [1, 1, 1, 1]} : vector<13x2x26x32xf32> to vector<13x1x26x32xf32>
    %75 = vector.shape_cast %74 : vector<13x1x26x32xf32> to vector<13x26x32xf32>
    %76 = arith.maximumf %73, %75 : vector<13x26x32xf32>
    %77 = vector.extract_strided_slice %76 {offsets = [0, 0, 0], sizes = [13, 1, 32], strides = [1, 1, 1]} : vector<13x26x32xf32> to vector<13x1x32xf32>
    %78 = vector.extract_strided_slice %76 {offsets = [0, 1, 0], sizes = [13, 1, 32], strides = [1, 1, 1]} : vector<13x26x32xf32> to vector<13x1x32xf32>
    %79 = arith.maximumf %77, %78 : vector<13x1x32xf32>
    %c0_7 = arith.constant 0 : index
    %c0_8 = arith.constant 0 : index
    %c0_9 = arith.constant 0 : index
    %80 = vector.load %arg11[%c0_7, %c0_8, %c0_9] : memref<13x13x32xf32, #tpu.memory_space<vmem>>, vector<13x1x32xf32>
    tpu.vector_store %arg11[%c0_7, %c0_8, %c0_9], %79 {strides = array<i32>} : memref<13x13x32xf32, #tpu.memory_space<vmem>>, vector<13x1x32xf32>,
    %81 = vector.extract_strided_slice %76 {offsets = [0, 2, 0], sizes = [13, 1, 32], strides = [1, 1, 1]} : vector<13x26x32xf32> to vector<13x1x32xf32>
    %82 = vector.extract_strided_slice %76 {offsets = [0, 3, 0], sizes = [13, 1, 32], strides = [1, 1, 1]} : vector<13x26x32xf32> to vector<13x1x32xf32>
    %83 = arith.maximumf %81, %82 : vector<13x1x32xf32>
    %c0_10 = arith.constant 0 : index
    %c1 = arith.constant 1 : index
    %c0_11 = arith.constant 0 : index
    %84 = vector.load %arg11[%c0_10, %c1, %c0_11] : memref<13x13x32xf32, #tpu.memory_space<vmem>>, vector<13x1x32xf32>
    tpu.vector_store %arg11[%c0_10, %c1, %c0_11], %83 {strides = array<i32>} : memref<13x13x32xf32, #tpu.memory_space<vmem>>, vector<13x1x32xf32>,
    %85 = vector.extract_strided_slice %76 {offsets = [0, 4, 0], sizes = [13, 1, 32], strides = [1, 1, 1]} : vector<13x26x32xf32> to vector<13x1x32xf32>
    %86 = vector.extract_strided_slice %76 {offsets = [0, 5, 0], sizes = [13, 1, 32], strides = [1, 1, 1]} : vector<13x26x32xf32> to vector<13x1x32xf32>
    %87 = arith.maximumf %85, %86 : vector<13x1x32xf32>
    %c0_12 = arith.constant 0 : index
    %c2 = arith.constant 2 : index
    %c0_13 = arith.constant 0 : index
    %88 = vector.load %arg11[%c0_12, %c2, %c0_13] : memref<13x13x32xf32, #tpu.memory_space<vmem>>, vector<13x1x32xf32>
    tpu.vector_store %arg11[%c0_12, %c2, %c0_13], %87 {strides = array<i32>} : memref<13x13x32xf32, #tpu.memory_space<vmem>>, vector<13x1x32xf32>,
    %89 = vector.extract_strided_slice %76 {offsets = [0, 6, 0], sizes = [13, 1, 32], strides = [1, 1, 1]} : vector<13x26x32xf32> to vector<13x1x32xf32>
    %90 = vector.extract_strided_slice %76 {offsets = [0, 7, 0], sizes = [13, 1, 32], strides = [1, 1, 1]} : vector<13x26x32xf32> to vector<13x1x32xf32>
    %91 = arith.maximumf %89, %90 : vector<13x1x32xf32>
    %c0_14 = arith.constant 0 : index
    %c3 = arith.constant 3 : index
    %c0_15 = arith.constant 0 : index
    %92 = vector.load %arg11[%c0_14, %c3, %c0_15] : memref<13x13x32xf32, #tpu.memory_space<vmem>>, vector<13x1x32xf32>
    tpu.vector_store %arg11[%c0_14, %c3, %c0_15], %91 {strides = array<i32>} : memref<13x13x32xf32, #tpu.memory_space<vmem>>, vector<13x1x32xf32>,
    %93 = vector.extract_strided_slice %76 {offsets = [0, 8, 0], sizes = [13, 1, 32], strides = [1, 1, 1]} : vector<13x26x32xf32> to vector<13x1x32xf32>
    %94 = vector.extract_strided_slice %76 {offsets = [0, 9, 0], sizes = [13, 1, 32], strides = [1, 1, 1]} : vector<13x26x32xf32> to vector<13x1x32xf32>
    %95 = arith.maximumf %93, %94 : vector<13x1x32xf32>
    %c0_16 = arith.constant 0 : index
    %c4 = arith.constant 4 : index
    %c0_17 = arith.constant 0 : index
    %96 = vector.load %arg11[%c0_16, %c4, %c0_17] : memref<13x13x32xf32, #tpu.memory_space<vmem>>, vector<13x1x32xf32>
    tpu.vector_store %arg11[%c0_16, %c4, %c0_17], %95 {strides = array<i32>} : memref<13x13x32xf32, #tpu.memory_space<vmem>>, vector<13x1x32xf32>,
    %97 = vector.extract_strided_slice %76 {offsets = [0, 10, 0], sizes = [13, 1, 32], strides = [1, 1, 1]} : vector<13x26x32xf32> to vector<13x1x32xf32>
    %98 = vector.extract_strided_slice %76 {offsets = [0, 11, 0], sizes = [13, 1, 32], strides = [1, 1, 1]} : vector<13x26x32xf32> to vector<13x1x32xf32>
    %99 = arith.maximumf %97, %98 : vector<13x1x32xf32>
    %c0_18 = arith.constant 0 : index
    %c5 = arith.constant 5 : index
    %c0_19 = arith.constant 0 : index
    %100 = vector.load %arg11[%c0_18, %c5, %c0_19] : memref<13x13x32xf32, #tpu.memory_space<vmem>>, vector<13x1x32xf32>
    tpu.vector_store %arg11[%c0_18, %c5, %c0_19], %99 {strides = array<i32>} : memref<13x13x32xf32, #tpu.memory_space<vmem>>, vector<13x1x32xf32>,
    %101 = vector.extract_strided_slice %76 {offsets = [0, 12, 0], sizes = [13, 1, 32], strides = [1, 1, 1]} : vector<13x26x32xf32> to vector<13x1x32xf32>
    %102 = vector.extract_strided_slice %76 {offsets = [0, 13, 0], sizes = [13, 1, 32], strides = [1, 1, 1]} : vector<13x26x32xf32> to vector<13x1x32xf32>
    %103 = arith.maximumf %101, %102 : vector<13x1x32xf32>
    %c0_20 = arith.constant 0 : index
    %c6 = arith.constant 6 : index
    %c0_21 = arith.constant 0 : index
    %104 = vector.load %arg11[%c0_20, %c6, %c0_21] : memref<13x13x32xf32, #tpu.memory_space<vmem>>, vector<13x1x32xf32>
    tpu.vector_store %arg11[%c0_20, %c6, %c0_21], %103 {strides = array<i32>} : memref<13x13x32xf32, #tpu.memory_space<vmem>>, vector<13x1x32xf32>,
    %105 = vector.extract_strided_slice %76 {offsets = [0, 14, 0], sizes = [13, 1, 32], strides = [1, 1, 1]} : vector<13x26x32xf32> to vector<13x1x32xf32>
    %106 = vector.extract_strided_slice %76 {offsets = [0, 15, 0], sizes = [13, 1, 32], strides = [1, 1, 1]} : vector<13x26x32xf32> to vector<13x1x32xf32>
    %107 = arith.maximumf %105, %106 : vector<13x1x32xf32>
    %c0_22 = arith.constant 0 : index
    %c7 = arith.constant 7 : index
    %c0_23 = arith.constant 0 : index
    %108 = vector.load %arg11[%c0_22, %c7, %c0_23] : memref<13x13x32xf32, #tpu.memory_space<vmem>>, vector<13x1x32xf32>
    tpu.vector_store %arg11[%c0_22, %c7, %c0_23], %107 {strides = array<i32>} : memref<13x13x32xf32, #tpu.memory_space<vmem>>, vector<13x1x32xf32>,
    %109 = vector.extract_strided_slice %76 {offsets = [0, 16, 0], sizes = [13, 1, 32], strides = [1, 1, 1]} : vector<13x26x32xf32> to vector<13x1x32xf32>
    %110 = vector.extract_strided_slice %76 {offsets = [0, 17, 0], sizes = [13, 1, 32], strides = [1, 1, 1]} : vector<13x26x32xf32> to vector<13x1x32xf32>
    %111 = arith.maximumf %109, %110 : vector<13x1x32xf32>
    %c0_24 = arith.constant 0 : index
    %c8 = arith.constant 8 : index
    %c0_25 = arith.constant 0 : index
    %112 = vector.load %arg11[%c0_24, %c8, %c0_25] : memref<13x13x32xf32, #tpu.memory_space<vmem>>, vector<13x1x32xf32>
    tpu.vector_store %arg11[%c0_24, %c8, %c0_25], %111 {strides = array<i32>} : memref<13x13x32xf32, #tpu.memory_space<vmem>>, vector<13x1x32xf32>,
    %113 = vector.extract_strided_slice %76 {offsets = [0, 18, 0], sizes = [13, 1, 32], strides = [1, 1, 1]} : vector<13x26x32xf32> to vector<13x1x32xf32>
    %114 = vector.extract_strided_slice %76 {offsets = [0, 19, 0], sizes = [13, 1, 32], strides = [1, 1, 1]} : vector<13x26x32xf32> to vector<13x1x32xf32>
    %115 = arith.maximumf %113, %114 : vector<13x1x32xf32>
    %c0_26 = arith.constant 0 : index
    %c9 = arith.constant 9 : index
    %c0_27 = arith.constant 0 : index
    %116 = vector.load %arg11[%c0_26, %c9, %c0_27] : memref<13x13x32xf32, #tpu.memory_space<vmem>>, vector<13x1x32xf32>
    tpu.vector_store %arg11[%c0_26, %c9, %c0_27], %115 {strides = array<i32>} : memref<13x13x32xf32, #tpu.memory_space<vmem>>, vector<13x1x32xf32>,
    %117 = vector.extract_strided_slice %76 {offsets = [0, 20, 0], sizes = [13, 1, 32], strides = [1, 1, 1]} : vector<13x26x32xf32> to vector<13x1x32xf32>
    %118 = vector.extract_strided_slice %76 {offsets = [0, 21, 0], sizes = [13, 1, 32], strides = [1, 1, 1]} : vector<13x26x32xf32> to vector<13x1x32xf32>
    %119 = arith.maximumf %117, %118 : vector<13x1x32xf32>
    %c0_28 = arith.constant 0 : index
    %c10 = arith.constant 10 : index
    %c0_29 = arith.constant 0 : index
    %120 = vector.load %arg11[%c0_28, %c10, %c0_29] : memref<13x13x32xf32, #tpu.memory_space<vmem>>, vector<13x1x32xf32>
    tpu.vector_store %arg11[%c0_28, %c10, %c0_29], %119 {strides = array<i32>} : memref<13x13x32xf32, #tpu.memory_space<vmem>>, vector<13x1x32xf32>,
    %121 = vector.extract_strided_slice %76 {offsets = [0, 22, 0], sizes = [13, 1, 32], strides = [1, 1, 1]} : vector<13x26x32xf32> to vector<13x1x32xf32>
    %122 = vector.extract_strided_slice %76 {offsets = [0, 23, 0], sizes = [13, 1, 32], strides = [1, 1, 1]} : vector<13x26x32xf32> to vector<13x1x32xf32>
    %123 = arith.maximumf %121, %122 : vector<13x1x32xf32>
    %c0_30 = arith.constant 0 : index
    %c11 = arith.constant 11 : index
    %c0_31 = arith.constant 0 : index
    %124 = vector.load %arg11[%c0_30, %c11, %c0_31] : memref<13x13x32xf32, #tpu.memory_space<vmem>>, vector<13x1x32xf32>
    tpu.vector_store %arg11[%c0_30, %c11, %c0_31], %123 {strides = array<i32>} : memref<13x13x32xf32, #tpu.memory_space<vmem>>, vector<13x1x32xf32>,
    %125 = vector.extract_strided_slice %76 {offsets = [0, 24, 0], sizes = [13, 1, 32], strides = [1, 1, 1]} : vector<13x26x32xf32> to vector<13x1x32xf32>
    %126 = vector.extract_strided_slice %76 {offsets = [0, 25, 0], sizes = [13, 1, 32], strides = [1, 1, 1]} : vector<13x26x32xf32> to vector<13x1x32xf32>
    %127 = arith.maximumf %125, %126 : vector<13x1x32xf32>
    %c0_32 = arith.constant 0 : index
    %c12 = arith.constant 12 : index
    %c0_33 = arith.constant 0 : index
    %128 = vector.load %arg11[%c0_32, %c12, %c0_33] : memref<13x13x32xf32, #tpu.memory_space<vmem>>, vector<13x1x32xf32>
    tpu.vector_store %arg11[%c0_32, %c12, %c0_33], %127 {strides = array<i32>} : memref<13x13x32xf32, #tpu.memory_space<vmem>>, vector<13x1x32xf32>,
    %c0_34 = arith.constant 0 : index
    %c0_35 = arith.constant 0 : index
    %c0_36 = arith.constant 0 : index
    %129 = vector.load %arg11[%c0_34, %c0_35, %c0_36] : memref<13x13x32xf32, #tpu.memory_space<vmem>>, vector<11x11x32xf32>
    %c0_37 = arith.constant 0 : index
    %c0_38 = arith.constant 0 : index
    %c0_39 = arith.constant 0 : index
    %130 = vector.load %arg12[%c0_37, %c0_38, %c0_39] : memref<11x11x288xf32, #tpu.memory_space<vmem>>, vector<11x11x32xf32>
    tpu.vector_store %arg12[%c0_37, %c0_38, %c0_39], %129 {strides = array<i32>} : memref<11x11x288xf32, #tpu.memory_space<vmem>>, vector<11x11x32xf32>,
    %c0_40 = arith.constant 0 : index
    %c1_41 = arith.constant 1 : index
    %c0_42 = arith.constant 0 : index
    %131 = vector.load %arg11[%c0_40, %c1_41, %c0_42] : memref<13x13x32xf32, #tpu.memory_space<vmem>>, vector<11x11x32xf32>
    %c0_43 = arith.constant 0 : index
    %c0_44 = arith.constant 0 : index
    %c32 = arith.constant 32 : index
    %132 = vector.load %arg12[%c0_43, %c0_44, %c32] : memref<11x11x288xf32, #tpu.memory_space<vmem>>, vector<11x11x32xf32>
    tpu.vector_store %arg12[%c0_43, %c0_44, %c32], %131 {strides = array<i32>} : memref<11x11x288xf32, #tpu.memory_space<vmem>>, vector<11x11x32xf32>,
    %c0_45 = arith.constant 0 : index
    %c2_46 = arith.constant 2 : index
    %c0_47 = arith.constant 0 : index
    %133 = vector.load %arg11[%c0_45, %c2_46, %c0_47] : memref<13x13x32xf32, #tpu.memory_space<vmem>>, vector<11x11x32xf32>
    %c0_48 = arith.constant 0 : index
    %c0_49 = arith.constant 0 : index
    %c64 = arith.constant 64 : index
    %134 = vector.load %arg12[%c0_48, %c0_49, %c64] : memref<11x11x288xf32, #tpu.memory_space<vmem>>, vector<11x11x32xf32>
    tpu.vector_store %arg12[%c0_48, %c0_49, %c64], %133 {strides = array<i32>} : memref<11x11x288xf32, #tpu.memory_space<vmem>>, vector<11x11x32xf32>,
    %c1_50 = arith.constant 1 : index
    %c0_51 = arith.constant 0 : index
    %c0_52 = arith.constant 0 : index
    %135 = vector.load %arg11[%c1_50, %c0_51, %c0_52] : memref<13x13x32xf32, #tpu.memory_space<vmem>>, vector<11x11x32xf32>
    %c0_53 = arith.constant 0 : index
    %c0_54 = arith.constant 0 : index
    %c96 = arith.constant 96 : index
    %136 = vector.load %arg12[%c0_53, %c0_54, %c96] : memref<11x11x288xf32, #tpu.memory_space<vmem>>, vector<11x11x32xf32>
    tpu.vector_store %arg12[%c0_53, %c0_54, %c96], %135 {strides = array<i32>} : memref<11x11x288xf32, #tpu.memory_space<vmem>>, vector<11x11x32xf32>,
    %c1_55 = arith.constant 1 : index
    %c1_56 = arith.constant 1 : index
    %c0_57 = arith.constant 0 : index
    %137 = vector.load %arg11[%c1_55, %c1_56, %c0_57] : memref<13x13x32xf32, #tpu.memory_space<vmem>>, vector<11x11x32xf32>
    %c0_58 = arith.constant 0 : index
    %c0_59 = arith.constant 0 : index
    %c128 = arith.constant 128 : index
    %138 = vector.load %arg12[%c0_58, %c0_59, %c128] : memref<11x11x288xf32, #tpu.memory_space<vmem>>, vector<11x11x32xf32>
    tpu.vector_store %arg12[%c0_58, %c0_59, %c128], %137 {strides = array<i32>} : memref<11x11x288xf32, #tpu.memory_space<vmem>>, vector<11x11x32xf32>,
    %c1_60 = arith.constant 1 : index
    %c2_61 = arith.constant 2 : index
    %c0_62 = arith.constant 0 : index
    %139 = vector.load %arg11[%c1_60, %c2_61, %c0_62] : memref<13x13x32xf32, #tpu.memory_space<vmem>>, vector<11x11x32xf32>
    %c0_63 = arith.constant 0 : index
    %c0_64 = arith.constant 0 : index
    %c160 = arith.constant 160 : index
    %140 = vector.load %arg12[%c0_63, %c0_64, %c160] : memref<11x11x288xf32, #tpu.memory_space<vmem>>, vector<11x11x32xf32>
    tpu.vector_store %arg12[%c0_63, %c0_64, %c160], %139 {strides = array<i32>} : memref<11x11x288xf32, #tpu.memory_space<vmem>>, vector<11x11x32xf32>,
    %c2_65 = arith.constant 2 : index
    %c0_66 = arith.constant 0 : index
    %c0_67 = arith.constant 0 : index
    %141 = vector.load %arg11[%c2_65, %c0_66, %c0_67] : memref<13x13x32xf32, #tpu.memory_space<vmem>>, vector<11x11x32xf32>
    %c0_68 = arith.constant 0 : index
    %c0_69 = arith.constant 0 : index
    %c192 = arith.constant 192 : index
    %142 = vector.load %arg12[%c0_68, %c0_69, %c192] : memref<11x11x288xf32, #tpu.memory_space<vmem>>, vector<11x11x32xf32>
    tpu.vector_store %arg12[%c0_68, %c0_69, %c192], %141 {strides = array<i32>} : memref<11x11x288xf32, #tpu.memory_space<vmem>>, vector<11x11x32xf32>,
    %c2_70 = arith.constant 2 : index
    %c1_71 = arith.constant 1 : index
    %c0_72 = arith.constant 0 : index
    %143 = vector.load %arg11[%c2_70, %c1_71, %c0_72] : memref<13x13x32xf32, #tpu.memory_space<vmem>>, vector<11x11x32xf32>
    %c0_73 = arith.constant 0 : index
    %c0_74 = arith.constant 0 : index
    %c224 = arith.constant 224 : index
    %144 = vector.load %arg12[%c0_73, %c0_74, %c224] : memref<11x11x288xf32, #tpu.memory_space<vmem>>, vector<11x11x32xf32>
    tpu.vector_store %arg12[%c0_73, %c0_74, %c224], %143 {strides = array<i32>} : memref<11x11x288xf32, #tpu.memory_space<vmem>>, vector<11x11x32xf32>,
    %c2_75 = arith.constant 2 : index
    %c2_76 = arith.constant 2 : index
    %c0_77 = arith.constant 0 : index
    %145 = vector.load %arg11[%c2_75, %c2_76, %c0_77] : memref<13x13x32xf32, #tpu.memory_space<vmem>>, vector<11x11x32xf32>
    %c0_78 = arith.constant 0 : index
    %c0_79 = arith.constant 0 : index
    %c256 = arith.constant 256 : index
    %146 = vector.load %arg12[%c0_78, %c0_79, %c256] : memref<11x11x288xf32, #tpu.memory_space<vmem>>, vector<11x11x32xf32>
    tpu.vector_store %arg12[%c0_78, %c0_79, %c256], %145 {strides = array<i32>} : memref<11x11x288xf32, #tpu.memory_space<vmem>>, vector<11x11x32xf32>,
    %c0_80 = arith.constant 0 : index
    %c0_81 = arith.constant 0 : index
    %147 = vector.load %arg4[%c0_80, %c0_81] : memref<288x64xbf16, #tpu.memory_space<vmem>>, vector<288x64xbf16>
    %c0_82 = arith.constant 0 : index
    %c0_83 = arith.constant 0 : index
    %148 = vector.load %arg5[%c0_82, %c0_83] : memref<1x64xf32, #tpu.memory_space<vmem>>, vector<1x64xf32>
    %cst_84 = arith.constant 0.000000e+00 : f32
    %149 = vector.broadcast %cst_84 : f32 to vector<8x1600xf32>
    %c0_85 = arith.constant 0 : index
    %c0_86 = arith.constant 0 : index
    %150 = vector.load %arg13[%c0_85, %c0_86] : memref<8x1600xf32, #tpu.memory_space<vmem>>, vector<8x1600xf32>
    tpu.vector_store %arg13[%c0_85, %c0_86], %149 {strides = array<i32>} : memref<8x1600xf32, #tpu.memory_space<vmem>>, vector<8x1600xf32>,
    %c0_87 = arith.constant 0 : index
    %c0_88 = arith.constant 0 : index
    %c0_89 = arith.constant 0 : index
    %151 = vector.load %arg12[%c0_87, %c0_88, %c0_89] : memref<11x11x288xf32, #tpu.memory_space<vmem>>, vector<1x11x288xf32>
    %152 = vector.shape_cast %151 : vector<1x11x288xf32> to vector<11x288xf32>
    %153 = arith.truncf %152 : vector<11x288xf32> to vector<11x288xbf16>
    %cst_90 = arith.constant dense<0.000000e+00> : vector<11x64xf32>
    %154 = tpu.matmul %153, %147, %cst_90 {dimension_numbers = #tpu.dot_dimension_numbers<[1], [0], [0], [1], [0, 0, 1, 1], [], []>} : vector<11x288xbf16>, vector<288x64xbf16>, vector<11x64xf32> -> vector<11x64xf32>
    %c1_91 = arith.constant 1 : index
    %c0_92 = arith.constant 0 : index
    %c0_93 = arith.constant 0 : index
    %155 = vector.load %arg12[%c1_91, %c0_92, %c0_93] : memref<11x11x288xf32, #tpu.memory_space<vmem>>, vector<1x11x288xf32>
    %156 = vector.shape_cast %155 : vector<1x11x288xf32> to vector<11x288xf32>
    %157 = arith.truncf %156 : vector<11x288xf32> to vector<11x288xbf16>
    %cst_94 = arith.constant dense<0.000000e+00> : vector<11x64xf32>
    %158 = tpu.matmul %157, %147, %cst_94 {dimension_numbers = #tpu.dot_dimension_numbers<[1], [0], [0], [1], [0, 0, 1, 1], [], []>} : vector<11x288xbf16>, vector<288x64xbf16>, vector<11x64xf32> -> vector<11x64xf32>
    %159 = vector.broadcast %148 : vector<1x64xf32> to vector<11x64xf32>
    %160 = arith.addf %154, %159 : vector<11x64xf32>
    %cst_95 = arith.constant 0.000000e+00 : f32
    %161 = vector.broadcast %cst_95 : f32 to vector<11x64xf32>
    %162 = arith.maximumf %160, %161 : vector<11x64xf32>
    %163 = vector.broadcast %148 : vector<1x64xf32> to vector<11x64xf32>
    %164 = arith.addf %158, %163 : vector<11x64xf32>
    %cst_96 = arith.constant 0.000000e+00 : f32
    %165 = vector.broadcast %cst_96 : f32 to vector<11x64xf32>
    %166 = arith.maximumf %164, %165 : vector<11x64xf32>
    %167 = arith.maximumf %162, %166 : vector<11x64xf32>
    %168 = vector.extract_strided_slice %167 {offsets = [0, 0], sizes = [1, 64], strides = [1, 1]} : vector<11x64xf32> to vector<1x64xf32>
    %169 = vector.extract_strided_slice %167 {offsets = [1, 0], sizes = [1, 64], strides = [1, 1]} : vector<11x64xf32> to vector<1x64xf32>
    %170 = arith.maximumf %168, %169 : vector<1x64xf32>
    %c0_97 = arith.constant 0 : index
    %c0_98 = arith.constant 0 : index
    %171 = vector.load %arg13[%c0_97, %c0_98] : memref<8x1600xf32, #tpu.memory_space<vmem>>, vector<1x64xf32>
    tpu.vector_store %arg13[%c0_97, %c0_98], %170 {strides = array<i32>} : memref<8x1600xf32, #tpu.memory_space<vmem>>, vector<1x64xf32>,
    %172 = vector.extract_strided_slice %167 {offsets = [2, 0], sizes = [1, 64], strides = [1, 1]} : vector<11x64xf32> to vector<1x64xf32>
    %173 = vector.extract_strided_slice %167 {offsets = [3, 0], sizes = [1, 64], strides = [1, 1]} : vector<11x64xf32> to vector<1x64xf32>
    %174 = arith.maximumf %172, %173 : vector<1x64xf32>
    %c0_99 = arith.constant 0 : index
    %c64_100 = arith.constant 64 : index
    %175 = vector.load %arg13[%c0_99, %c64_100] : memref<8x1600xf32, #tpu.memory_space<vmem>>, vector<1x64xf32>
    tpu.vector_store %arg13[%c0_99, %c64_100], %174 {strides = array<i32>} : memref<8x1600xf32, #tpu.memory_space<vmem>>, vector<1x64xf32>,
    %176 = vector.extract_strided_slice %167 {offsets = [4, 0], sizes = [1, 64], strides = [1, 1]} : vector<11x64xf32> to vector<1x64xf32>
    %177 = vector.extract_strided_slice %167 {offsets = [5, 0], sizes = [1, 64], strides = [1, 1]} : vector<11x64xf32> to vector<1x64xf32>
    %178 = arith.maximumf %176, %177 : vector<1x64xf32>
    %c0_101 = arith.constant 0 : index
    %c128_102 = arith.constant 128 : index
    %179 = vector.load %arg13[%c0_101, %c128_102] : memref<8x1600xf32, #tpu.memory_space<vmem>>, vector<1x64xf32>
    tpu.vector_store %arg13[%c0_101, %c128_102], %178 {strides = array<i32>} : memref<8x1600xf32, #tpu.memory_space<vmem>>, vector<1x64xf32>,
    %180 = vector.extract_strided_slice %167 {offsets = [6, 0], sizes = [1, 64], strides = [1, 1]} : vector<11x64xf32> to vector<1x64xf32>
    %181 = vector.extract_strided_slice %167 {offsets = [7, 0], sizes = [1, 64], strides = [1, 1]} : vector<11x64xf32> to vector<1x64xf32>
    %182 = arith.maximumf %180, %181 : vector<1x64xf32>
    %c0_103 = arith.constant 0 : index
    %c192_104 = arith.constant 192 : index
    %183 = vector.load %arg13[%c0_103, %c192_104] : memref<8x1600xf32, #tpu.memory_space<vmem>>, vector<1x64xf32>
    tpu.vector_store %arg13[%c0_103, %c192_104], %182 {strides = array<i32>} : memref<8x1600xf32, #tpu.memory_space<vmem>>, vector<1x64xf32>,
    %184 = vector.extract_strided_slice %167 {offsets = [8, 0], sizes = [1, 64], strides = [1, 1]} : vector<11x64xf32> to vector<1x64xf32>
    %185 = vector.extract_strided_slice %167 {offsets = [9, 0], sizes = [1, 64], strides = [1, 1]} : vector<11x64xf32> to vector<1x64xf32>
    %186 = arith.maximumf %184, %185 : vector<1x64xf32>
    %c0_105 = arith.constant 0 : index
    %c256_106 = arith.constant 256 : index
    %187 = vector.load %arg13[%c0_105, %c256_106] : memref<8x1600xf32, #tpu.memory_space<vmem>>, vector<1x64xf32>
    tpu.vector_store %arg13[%c0_105, %c256_106], %186 {strides = array<i32>} : memref<8x1600xf32, #tpu.memory_space<vmem>>, vector<1x64xf32>,
    %c2_107 = arith.constant 2 : index
    %c0_108 = arith.constant 0 : index
    %c0_109 = arith.constant 0 : index
    %188 = vector.load %arg12[%c2_107, %c0_108, %c0_109] : memref<11x11x288xf32, #tpu.memory_space<vmem>>, vector<1x11x288xf32>
    %189 = vector.shape_cast %188 : vector<1x11x288xf32> to vector<11x288xf32>
    %190 = arith.truncf %189 : vector<11x288xf32> to vector<11x288xbf16>
    %cst_110 = arith.constant dense<0.000000e+00> : vector<11x64xf32>
    %191 = tpu.matmul %190, %147, %cst_110 {dimension_numbers = #tpu.dot_dimension_numbers<[1], [0], [0], [1], [0, 0, 1, 1], [], []>} : vector<11x288xbf16>, vector<288x64xbf16>, vector<11x64xf32> -> vector<11x64xf32>
    %c3_111 = arith.constant 3 : index
    %c0_112 = arith.constant 0 : index
    %c0_113 = arith.constant 0 : index
    %192 = vector.load %arg12[%c3_111, %c0_112, %c0_113] : memref<11x11x288xf32, #tpu.memory_space<vmem>>, vector<1x11x288xf32>
    %193 = vector.shape_cast %192 : vector<1x11x288xf32> to vector<11x288xf32>
    %194 = arith.truncf %193 : vector<11x288xf32> to vector<11x288xbf16>
    %cst_114 = arith.constant dense<0.000000e+00> : vector<11x64xf32>
    %195 = tpu.matmul %194, %147, %cst_114 {dimension_numbers = #tpu.dot_dimension_numbers<[1], [0], [0], [1], [0, 0, 1, 1], [], []>} : vector<11x288xbf16>, vector<288x64xbf16>, vector<11x64xf32> -> vector<11x64xf32>
    %196 = vector.broadcast %148 : vector<1x64xf32> to vector<11x64xf32>
    %197 = arith.addf %191, %196 : vector<11x64xf32>
    %cst_115 = arith.constant 0.000000e+00 : f32
    %198 = vector.broadcast %cst_115 : f32 to vector<11x64xf32>
    %199 = arith.maximumf %197, %198 : vector<11x64xf32>
    %200 = vector.broadcast %148 : vector<1x64xf32> to vector<11x64xf32>
    %201 = arith.addf %195, %200 : vector<11x64xf32>
    %cst_116 = arith.constant 0.000000e+00 : f32
    %202 = vector.broadcast %cst_116 : f32 to vector<11x64xf32>
    %203 = arith.maximumf %201, %202 : vector<11x64xf32>
    %204 = arith.maximumf %199, %203 : vector<11x64xf32>
    %205 = vector.extract_strided_slice %204 {offsets = [0, 0], sizes = [1, 64], strides = [1, 1]} : vector<11x64xf32> to vector<1x64xf32>
    %206 = vector.extract_strided_slice %204 {offsets = [1, 0], sizes = [1, 64], strides = [1, 1]} : vector<11x64xf32> to vector<1x64xf32>
    %207 = arith.maximumf %205, %206 : vector<1x64xf32>
    %c0_117 = arith.constant 0 : index
    %c320 = arith.constant 320 : index
    %208 = vector.load %arg13[%c0_117, %c320] : memref<8x1600xf32, #tpu.memory_space<vmem>>, vector<1x64xf32>
    tpu.vector_store %arg13[%c0_117, %c320], %207 {strides = array<i32>} : memref<8x1600xf32, #tpu.memory_space<vmem>>, vector<1x64xf32>,
    %209 = vector.extract_strided_slice %204 {offsets = [2, 0], sizes = [1, 64], strides = [1, 1]} : vector<11x64xf32> to vector<1x64xf32>
    %210 = vector.extract_strided_slice %204 {offsets = [3, 0], sizes = [1, 64], strides = [1, 1]} : vector<11x64xf32> to vector<1x64xf32>
    %211 = arith.maximumf %209, %210 : vector<1x64xf32>
    %c0_118 = arith.constant 0 : index
    %c384 = arith.constant 384 : index
    %212 = vector.load %arg13[%c0_118, %c384] : memref<8x1600xf32, #tpu.memory_space<vmem>>, vector<1x64xf32>
    tpu.vector_store %arg13[%c0_118, %c384], %211 {strides = array<i32>} : memref<8x1600xf32, #tpu.memory_space<vmem>>, vector<1x64xf32>,
    %213 = vector.extract_strided_slice %204 {offsets = [4, 0], sizes = [1, 64], strides = [1, 1]} : vector<11x64xf32> to vector<1x64xf32>
    %214 = vector.extract_strided_slice %204 {offsets = [5, 0], sizes = [1, 64], strides = [1, 1]} : vector<11x64xf32> to vector<1x64xf32>
    %215 = arith.maximumf %213, %214 : vector<1x64xf32>
    %c0_119 = arith.constant 0 : index
    %c448 = arith.constant 448 : index
    %216 = vector.load %arg13[%c0_119, %c448] : memref<8x1600xf32, #tpu.memory_space<vmem>>, vector<1x64xf32>
    tpu.vector_store %arg13[%c0_119, %c448], %215 {strides = array<i32>} : memref<8x1600xf32, #tpu.memory_space<vmem>>, vector<1x64xf32>,
    %217 = vector.extract_strided_slice %204 {offsets = [6, 0], sizes = [1, 64], strides = [1, 1]} : vector<11x64xf32> to vector<1x64xf32>
    %218 = vector.extract_strided_slice %204 {offsets = [7, 0], sizes = [1, 64], strides = [1, 1]} : vector<11x64xf32> to vector<1x64xf32>
    %219 = arith.maximumf %217, %218 : vector<1x64xf32>
    %c0_120 = arith.constant 0 : index
    %c512 = arith.constant 512 : index
    %220 = vector.load %arg13[%c0_120, %c512] : memref<8x1600xf32, #tpu.memory_space<vmem>>, vector<1x64xf32>
    tpu.vector_store %arg13[%c0_120, %c512], %219 {strides = array<i32>} : memref<8x1600xf32, #tpu.memory_space<vmem>>, vector<1x64xf32>,
    %221 = vector.extract_strided_slice %204 {offsets = [8, 0], sizes = [1, 64], strides = [1, 1]} : vector<11x64xf32> to vector<1x64xf32>
    %222 = vector.extract_strided_slice %204 {offsets = [9, 0], sizes = [1, 64], strides = [1, 1]} : vector<11x64xf32> to vector<1x64xf32>
    %223 = arith.maximumf %221, %222 : vector<1x64xf32>
    %c0_121 = arith.constant 0 : index
    %c576 = arith.constant 576 : index
    %224 = vector.load %arg13[%c0_121, %c576] : memref<8x1600xf32, #tpu.memory_space<vmem>>, vector<1x64xf32>
    tpu.vector_store %arg13[%c0_121, %c576], %223 {strides = array<i32>} : memref<8x1600xf32, #tpu.memory_space<vmem>>, vector<1x64xf32>,
    %c4_122 = arith.constant 4 : index
    %c0_123 = arith.constant 0 : index
    %c0_124 = arith.constant 0 : index
    %225 = vector.load %arg12[%c4_122, %c0_123, %c0_124] : memref<11x11x288xf32, #tpu.memory_space<vmem>>, vector<1x11x288xf32>
    %226 = vector.shape_cast %225 : vector<1x11x288xf32> to vector<11x288xf32>
    %227 = arith.truncf %226 : vector<11x288xf32> to vector<11x288xbf16>
    %cst_125 = arith.constant dense<0.000000e+00> : vector<11x64xf32>
    %228 = tpu.matmul %227, %147, %cst_125 {dimension_numbers = #tpu.dot_dimension_numbers<[1], [0], [0], [1], [0, 0, 1, 1], [], []>} : vector<11x288xbf16>, vector<288x64xbf16>, vector<11x64xf32> -> vector<11x64xf32>
    %c5_126 = arith.constant 5 : index
    %c0_127 = arith.constant 0 : index
    %c0_128 = arith.constant 0 : index
    %229 = vector.load %arg12[%c5_126, %c0_127, %c0_128] : memref<11x11x288xf32, #tpu.memory_space<vmem>>, vector<1x11x288xf32>
    %230 = vector.shape_cast %229 : vector<1x11x288xf32> to vector<11x288xf32>
    %231 = arith.truncf %230 : vector<11x288xf32> to vector<11x288xbf16>
    %cst_129 = arith.constant dense<0.000000e+00> : vector<11x64xf32>
    %232 = tpu.matmul %231, %147, %cst_129 {dimension_numbers = #tpu.dot_dimension_numbers<[1], [0], [0], [1], [0, 0, 1, 1], [], []>} : vector<11x288xbf16>, vector<288x64xbf16>, vector<11x64xf32> -> vector<11x64xf32>
    %233 = vector.broadcast %148 : vector<1x64xf32> to vector<11x64xf32>
    %234 = arith.addf %228, %233 : vector<11x64xf32>
    %cst_130 = arith.constant 0.000000e+00 : f32
    %235 = vector.broadcast %cst_130 : f32 to vector<11x64xf32>
    %236 = arith.maximumf %234, %235 : vector<11x64xf32>
    %237 = vector.broadcast %148 : vector<1x64xf32> to vector<11x64xf32>
    %238 = arith.addf %232, %237 : vector<11x64xf32>
    %cst_131 = arith.constant 0.000000e+00 : f32
    %239 = vector.broadcast %cst_131 : f32 to vector<11x64xf32>
    %240 = arith.maximumf %238, %239 : vector<11x64xf32>
    %241 = arith.maximumf %236, %240 : vector<11x64xf32>
    %242 = vector.extract_strided_slice %241 {offsets = [0, 0], sizes = [1, 64], strides = [1, 1]} : vector<11x64xf32> to vector<1x64xf32>
    %243 = vector.extract_strided_slice %241 {offsets = [1, 0], sizes = [1, 64], strides = [1, 1]} : vector<11x64xf32> to vector<1x64xf32>
    %244 = arith.maximumf %242, %243 : vector<1x64xf32>
    %c0_132 = arith.constant 0 : index
    %c640 = arith.constant 640 : index
    %245 = vector.load %arg13[%c0_132, %c640] : memref<8x1600xf32, #tpu.memory_space<vmem>>, vector<1x64xf32>
    tpu.vector_store %arg13[%c0_132, %c640], %244 {strides = array<i32>} : memref<8x1600xf32, #tpu.memory_space<vmem>>, vector<1x64xf32>,
    %246 = vector.extract_strided_slice %241 {offsets = [2, 0], sizes = [1, 64], strides = [1, 1]} : vector<11x64xf32> to vector<1x64xf32>
    %247 = vector.extract_strided_slice %241 {offsets = [3, 0], sizes = [1, 64], strides = [1, 1]} : vector<11x64xf32> to vector<1x64xf32>
    %248 = arith.maximumf %246, %247 : vector<1x64xf32>
    %c0_133 = arith.constant 0 : index
    %c704 = arith.constant 704 : index
    %249 = vector.load %arg13[%c0_133, %c704] : memref<8x1600xf32, #tpu.memory_space<vmem>>, vector<1x64xf32>
    tpu.vector_store %arg13[%c0_133, %c704], %248 {strides = array<i32>} : memref<8x1600xf32, #tpu.memory_space<vmem>>, vector<1x64xf32>,
    %250 = vector.extract_strided_slice %241 {offsets = [4, 0], sizes = [1, 64], strides = [1, 1]} : vector<11x64xf32> to vector<1x64xf32>
    %251 = vector.extract_strided_slice %241 {offsets = [5, 0], sizes = [1, 64], strides = [1, 1]} : vector<11x64xf32> to vector<1x64xf32>
    %252 = arith.maximumf %250, %251 : vector<1x64xf32>
    %c0_134 = arith.constant 0 : index
    %c768 = arith.constant 768 : index
    %253 = vector.load %arg13[%c0_134, %c768] : memref<8x1600xf32, #tpu.memory_space<vmem>>, vector<1x64xf32>
    tpu.vector_store %arg13[%c0_134, %c768], %252 {strides = array<i32>} : memref<8x1600xf32, #tpu.memory_space<vmem>>, vector<1x64xf32>,
    %254 = vector.extract_strided_slice %241 {offsets = [6, 0], sizes = [1, 64], strides = [1, 1]} : vector<11x64xf32> to vector<1x64xf32>
    %255 = vector.extract_strided_slice %241 {offsets = [7, 0], sizes = [1, 64], strides = [1, 1]} : vector<11x64xf32> to vector<1x64xf32>
    %256 = arith.maximumf %254, %255 : vector<1x64xf32>
    %c0_135 = arith.constant 0 : index
    %c832 = arith.constant 832 : index
    %257 = vector.load %arg13[%c0_135, %c832] : memref<8x1600xf32, #tpu.memory_space<vmem>>, vector<1x64xf32>
    tpu.vector_store %arg13[%c0_135, %c832], %256 {strides = array<i32>} : memref<8x1600xf32, #tpu.memory_space<vmem>>, vector<1x64xf32>,
    %258 = vector.extract_strided_slice %241 {offsets = [8, 0], sizes = [1, 64], strides = [1, 1]} : vector<11x64xf32> to vector<1x64xf32>
    %259 = vector.extract_strided_slice %241 {offsets = [9, 0], sizes = [1, 64], strides = [1, 1]} : vector<11x64xf32> to vector<1x64xf32>
    %260 = arith.maximumf %258, %259 : vector<1x64xf32>
    %c0_136 = arith.constant 0 : index
    %c896 = arith.constant 896 : index
    %261 = vector.load %arg13[%c0_136, %c896] : memref<8x1600xf32, #tpu.memory_space<vmem>>, vector<1x64xf32>
    tpu.vector_store %arg13[%c0_136, %c896], %260 {strides = array<i32>} : memref<8x1600xf32, #tpu.memory_space<vmem>>, vector<1x64xf32>,
    %c6_137 = arith.constant 6 : index
    %c0_138 = arith.constant 0 : index
    %c0_139 = arith.constant 0 : index
    %262 = vector.load %arg12[%c6_137, %c0_138, %c0_139] : memref<11x11x288xf32, #tpu.memory_space<vmem>>, vector<1x11x288xf32>
    %263 = vector.shape_cast %262 : vector<1x11x288xf32> to vector<11x288xf32>
    %264 = arith.truncf %263 : vector<11x288xf32> to vector<11x288xbf16>
    %cst_140 = arith.constant dense<0.000000e+00> : vector<11x64xf32>
    %265 = tpu.matmul %264, %147, %cst_140 {dimension_numbers = #tpu.dot_dimension_numbers<[1], [0], [0], [1], [0, 0, 1, 1], [], []>} : vector<11x288xbf16>, vector<288x64xbf16>, vector<11x64xf32> -> vector<11x64xf32>
    %c7_141 = arith.constant 7 : index
    %c0_142 = arith.constant 0 : index
    %c0_143 = arith.constant 0 : index
    %266 = vector.load %arg12[%c7_141, %c0_142, %c0_143] : memref<11x11x288xf32, #tpu.memory_space<vmem>>, vector<1x11x288xf32>
    %267 = vector.shape_cast %266 : vector<1x11x288xf32> to vector<11x288xf32>
    %268 = arith.truncf %267 : vector<11x288xf32> to vector<11x288xbf16>
    %cst_144 = arith.constant dense<0.000000e+00> : vector<11x64xf32>
    %269 = tpu.matmul %268, %147, %cst_144 {dimension_numbers = #tpu.dot_dimension_numbers<[1], [0], [0], [1], [0, 0, 1, 1], [], []>} : vector<11x288xbf16>, vector<288x64xbf16>, vector<11x64xf32> -> vector<11x64xf32>
    %270 = vector.broadcast %148 : vector<1x64xf32> to vector<11x64xf32>
    %271 = arith.addf %265, %270 : vector<11x64xf32>
    %cst_145 = arith.constant 0.000000e+00 : f32
    %272 = vector.broadcast %cst_145 : f32 to vector<11x64xf32>
    %273 = arith.maximumf %271, %272 : vector<11x64xf32>
    %274 = vector.broadcast %148 : vector<1x64xf32> to vector<11x64xf32>
    %275 = arith.addf %269, %274 : vector<11x64xf32>
    %cst_146 = arith.constant 0.000000e+00 : f32
    %276 = vector.broadcast %cst_146 : f32 to vector<11x64xf32>
    %277 = arith.maximumf %275, %276 : vector<11x64xf32>
    %278 = arith.maximumf %273, %277 : vector<11x64xf32>
    %279 = vector.extract_strided_slice %278 {offsets = [0, 0], sizes = [1, 64], strides = [1, 1]} : vector<11x64xf32> to vector<1x64xf32>
    %280 = vector.extract_strided_slice %278 {offsets = [1, 0], sizes = [1, 64], strides = [1, 1]} : vector<11x64xf32> to vector<1x64xf32>
    %281 = arith.maximumf %279, %280 : vector<1x64xf32>
    %c0_147 = arith.constant 0 : index
    %c960 = arith.constant 960 : index
    %282 = vector.load %arg13[%c0_147, %c960] : memref<8x1600xf32, #tpu.memory_space<vmem>>, vector<1x64xf32>
    tpu.vector_store %arg13[%c0_147, %c960], %281 {strides = array<i32>} : memref<8x1600xf32, #tpu.memory_space<vmem>>, vector<1x64xf32>,
    %283 = vector.extract_strided_slice %278 {offsets = [2, 0], sizes = [1, 64], strides = [1, 1]} : vector<11x64xf32> to vector<1x64xf32>
    %284 = vector.extract_strided_slice %278 {offsets = [3, 0], sizes = [1, 64], strides = [1, 1]} : vector<11x64xf32> to vector<1x64xf32>
    %285 = arith.maximumf %283, %284 : vector<1x64xf32>
    %c0_148 = arith.constant 0 : index
    %c1024 = arith.constant 1024 : index
    %286 = vector.load %arg13[%c0_148, %c1024] : memref<8x1600xf32, #tpu.memory_space<vmem>>, vector<1x64xf32>
    tpu.vector_store %arg13[%c0_148, %c1024], %285 {strides = array<i32>} : memref<8x1600xf32, #tpu.memory_space<vmem>>, vector<1x64xf32>,
    %287 = vector.extract_strided_slice %278 {offsets = [4, 0], sizes = [1, 64], strides = [1, 1]} : vector<11x64xf32> to vector<1x64xf32>
    %288 = vector.extract_strided_slice %278 {offsets = [5, 0], sizes = [1, 64], strides = [1, 1]} : vector<11x64xf32> to vector<1x64xf32>
    %289 = arith.maximumf %287, %288 : vector<1x64xf32>
    %c0_149 = arith.constant 0 : index
    %c1088 = arith.constant 1088 : index
    %290 = vector.load %arg13[%c0_149, %c1088] : memref<8x1600xf32, #tpu.memory_space<vmem>>, vector<1x64xf32>
    tpu.vector_store %arg13[%c0_149, %c1088], %289 {strides = array<i32>} : memref<8x1600xf32, #tpu.memory_space<vmem>>, vector<1x64xf32>,
    %291 = vector.extract_strided_slice %278 {offsets = [6, 0], sizes = [1, 64], strides = [1, 1]} : vector<11x64xf32> to vector<1x64xf32>
    %292 = vector.extract_strided_slice %278 {offsets = [7, 0], sizes = [1, 64], strides = [1, 1]} : vector<11x64xf32> to vector<1x64xf32>
    %293 = arith.maximumf %291, %292 : vector<1x64xf32>
    %c0_150 = arith.constant 0 : index
    %c1152 = arith.constant 1152 : index
    %294 = vector.load %arg13[%c0_150, %c1152] : memref<8x1600xf32, #tpu.memory_space<vmem>>, vector<1x64xf32>
    tpu.vector_store %arg13[%c0_150, %c1152], %293 {strides = array<i32>} : memref<8x1600xf32, #tpu.memory_space<vmem>>, vector<1x64xf32>,
    %295 = vector.extract_strided_slice %278 {offsets = [8, 0], sizes = [1, 64], strides = [1, 1]} : vector<11x64xf32> to vector<1x64xf32>
    %296 = vector.extract_strided_slice %278 {offsets = [9, 0], sizes = [1, 64], strides = [1, 1]} : vector<11x64xf32> to vector<1x64xf32>
    %297 = arith.maximumf %295, %296 : vector<1x64xf32>
    %c0_151 = arith.constant 0 : index
    %c1216 = arith.constant 1216 : index
    %298 = vector.load %arg13[%c0_151, %c1216] : memref<8x1600xf32, #tpu.memory_space<vmem>>, vector<1x64xf32>
    tpu.vector_store %arg13[%c0_151, %c1216], %297 {strides = array<i32>} : memref<8x1600xf32, #tpu.memory_space<vmem>>, vector<1x64xf32>,
    %c8_152 = arith.constant 8 : index
    %c0_153 = arith.constant 0 : index
    %c0_154 = arith.constant 0 : index
    %299 = vector.load %arg12[%c8_152, %c0_153, %c0_154] : memref<11x11x288xf32, #tpu.memory_space<vmem>>, vector<1x11x288xf32>
    %300 = vector.shape_cast %299 : vector<1x11x288xf32> to vector<11x288xf32>
    %301 = arith.truncf %300 : vector<11x288xf32> to vector<11x288xbf16>
    %cst_155 = arith.constant dense<0.000000e+00> : vector<11x64xf32>
    %302 = tpu.matmul %301, %147, %cst_155 {dimension_numbers = #tpu.dot_dimension_numbers<[1], [0], [0], [1], [0, 0, 1, 1], [], []>} : vector<11x288xbf16>, vector<288x64xbf16>, vector<11x64xf32> -> vector<11x64xf32>
    %c9_156 = arith.constant 9 : index
    %c0_157 = arith.constant 0 : index
    %c0_158 = arith.constant 0 : index
    %303 = vector.load %arg12[%c9_156, %c0_157, %c0_158] : memref<11x11x288xf32, #tpu.memory_space<vmem>>, vector<1x11x288xf32>
    %304 = vector.shape_cast %303 : vector<1x11x288xf32> to vector<11x288xf32>
    %305 = arith.truncf %304 : vector<11x288xf32> to vector<11x288xbf16>
    %cst_159 = arith.constant dense<0.000000e+00> : vector<11x64xf32>
    %306 = tpu.matmul %305, %147, %cst_159 {dimension_numbers = #tpu.dot_dimension_numbers<[1], [0], [0], [1], [0, 0, 1, 1], [], []>} : vector<11x288xbf16>, vector<288x64xbf16>, vector<11x64xf32> -> vector<11x64xf32>
    %307 = vector.broadcast %148 : vector<1x64xf32> to vector<11x64xf32>
    %308 = arith.addf %302, %307 : vector<11x64xf32>
    %cst_160 = arith.constant 0.000000e+00 : f32
    %309 = vector.broadcast %cst_160 : f32 to vector<11x64xf32>
    %310 = arith.maximumf %308, %309 : vector<11x64xf32>
    %311 = vector.broadcast %148 : vector<1x64xf32> to vector<11x64xf32>
    %312 = arith.addf %306, %311 : vector<11x64xf32>
    %cst_161 = arith.constant 0.000000e+00 : f32
    %313 = vector.broadcast %cst_161 : f32 to vector<11x64xf32>
    %314 = arith.maximumf %312, %313 : vector<11x64xf32>
    %315 = arith.maximumf %310, %314 : vector<11x64xf32>
    %316 = vector.extract_strided_slice %315 {offsets = [0, 0], sizes = [1, 64], strides = [1, 1]} : vector<11x64xf32> to vector<1x64xf32>
    %317 = vector.extract_strided_slice %315 {offsets = [1, 0], sizes = [1, 64], strides = [1, 1]} : vector<11x64xf32> to vector<1x64xf32>
    %318 = arith.maximumf %316, %317 : vector<1x64xf32>
    %c0_162 = arith.constant 0 : index
    %c1280 = arith.constant 1280 : index
    %319 = vector.load %arg13[%c0_162, %c1280] : memref<8x1600xf32, #tpu.memory_space<vmem>>, vector<1x64xf32>
    tpu.vector_store %arg13[%c0_162, %c1280], %318 {strides = array<i32>} : memref<8x1600xf32, #tpu.memory_space<vmem>>, vector<1x64xf32>,
    %320 = vector.extract_strided_slice %315 {offsets = [2, 0], sizes = [1, 64], strides = [1, 1]} : vector<11x64xf32> to vector<1x64xf32>
    %321 = vector.extract_strided_slice %315 {offsets = [3, 0], sizes = [1, 64], strides = [1, 1]} : vector<11x64xf32> to vector<1x64xf32>
    %322 = arith.maximumf %320, %321 : vector<1x64xf32>
    %c0_163 = arith.constant 0 : index
    %c1344 = arith.constant 1344 : index
    %323 = vector.load %arg13[%c0_163, %c1344] : memref<8x1600xf32, #tpu.memory_space<vmem>>, vector<1x64xf32>
    tpu.vector_store %arg13[%c0_163, %c1344], %322 {strides = array<i32>} : memref<8x1600xf32, #tpu.memory_space<vmem>>, vector<1x64xf32>,
    %324 = vector.extract_strided_slice %315 {offsets = [4, 0], sizes = [1, 64], strides = [1, 1]} : vector<11x64xf32> to vector<1x64xf32>
    %325 = vector.extract_strided_slice %315 {offsets = [5, 0], sizes = [1, 64], strides = [1, 1]} : vector<11x64xf32> to vector<1x64xf32>
    %326 = arith.maximumf %324, %325 : vector<1x64xf32>
    %c0_164 = arith.constant 0 : index
    %c1408 = arith.constant 1408 : index
    %327 = vector.load %arg13[%c0_164, %c1408] : memref<8x1600xf32, #tpu.memory_space<vmem>>, vector<1x64xf32>
    tpu.vector_store %arg13[%c0_164, %c1408], %326 {strides = array<i32>} : memref<8x1600xf32, #tpu.memory_space<vmem>>, vector<1x64xf32>,
    %328 = vector.extract_strided_slice %315 {offsets = [6, 0], sizes = [1, 64], strides = [1, 1]} : vector<11x64xf32> to vector<1x64xf32>
    %329 = vector.extract_strided_slice %315 {offsets = [7, 0], sizes = [1, 64], strides = [1, 1]} : vector<11x64xf32> to vector<1x64xf32>
    %330 = arith.maximumf %328, %329 : vector<1x64xf32>
    %c0_165 = arith.constant 0 : index
    %c1472 = arith.constant 1472 : index
    %331 = vector.load %arg13[%c0_165, %c1472] : memref<8x1600xf32, #tpu.memory_space<vmem>>, vector<1x64xf32>
    tpu.vector_store %arg13[%c0_165, %c1472], %330 {strides = array<i32>} : memref<8x1600xf32, #tpu.memory_space<vmem>>, vector<1x64xf32>,
    %332 = vector.extract_strided_slice %315 {offsets = [8, 0], sizes = [1, 64], strides = [1, 1]} : vector<11x64xf32> to vector<1x64xf32>
    %333 = vector.extract_strided_slice %315 {offsets = [9, 0], sizes = [1, 64], strides = [1, 1]} : vector<11x64xf32> to vector<1x64xf32>
    %334 = arith.maximumf %332, %333 : vector<1x64xf32>
    %c0_166 = arith.constant 0 : index
    %c1536 = arith.constant 1536 : index
    %335 = vector.load %arg13[%c0_166, %c1536] : memref<8x1600xf32, #tpu.memory_space<vmem>>, vector<1x64xf32>
    tpu.vector_store %arg13[%c0_166, %c1536], %334 {strides = array<i32>} : memref<8x1600xf32, #tpu.memory_space<vmem>>, vector<1x64xf32>,
    %c0_167 = arith.constant 0 : index
    %c0_168 = arith.constant 0 : index
    %336 = vector.load %arg13[%c0_167, %c0_168] : memref<8x1600xf32, #tpu.memory_space<vmem>>, vector<8x1600xf32>
    %337 = arith.truncf %336 : vector<8x1600xf32> to vector<8x1600xbf16>
    %c0_169 = arith.constant 0 : index
    %c0_170 = arith.constant 0 : index
    %338 = vector.load %arg6[%c0_169, %c0_170] : memref<1600x128xbf16, #tpu.memory_space<vmem>>, vector<1600x128xbf16>
    %cst_171 = arith.constant dense<0.000000e+00> : vector<8x128xf32>
    %339 = tpu.matmul %337, %338, %cst_171 {dimension_numbers = #tpu.dot_dimension_numbers<[1], [0], [0], [1], [0, 0, 1, 1], [], []>} : vector<8x1600xbf16>, vector<1600x128xbf16>, vector<8x128xf32> -> vector<8x128xf32>
    %c0_172 = arith.constant 0 : index
    %c0_173 = arith.constant 0 : index
    %340 = vector.load %arg7[%c0_172, %c0_173] : memref<1x128xf32, #tpu.memory_space<vmem>>, vector<1x128xf32>
    %341 = vector.broadcast %340 : vector<1x128xf32> to vector<8x128xf32>
    %342 = arith.addf %339, %341 : vector<8x128xf32>
    %cst_174 = arith.constant 0.000000e+00 : f32
    %343 = vector.broadcast %cst_174 : f32 to vector<8x128xf32>
    %344 = arith.maximumf %342, %343 : vector<8x128xf32>
    %345 = arith.truncf %344 : vector<8x128xf32> to vector<8x128xbf16>
    %c0_175 = arith.constant 0 : index
    %c0_176 = arith.constant 0 : index
    %346 = vector.load %arg8[%c0_175, %c0_176] : memref<128x10xbf16, #tpu.memory_space<vmem>>, vector<128x10xbf16>
    %cst_177 = arith.constant dense<0.000000e+00> : vector<8x10xf32>
    %347 = tpu.matmul %345, %346, %cst_177 {dimension_numbers = #tpu.dot_dimension_numbers<[1], [0], [0], [1], [0, 0, 1, 1], [], []>} : vector<8x128xbf16>, vector<128x10xbf16>, vector<8x10xf32> -> vector<8x10xf32>
    %348 = vector.extract_strided_slice %347 {offsets = [0, 0], sizes = [1, 10], strides = [1, 1]} : vector<8x10xf32> to vector<1x10xf32>
    %c0_178 = arith.constant 0 : index
    %c0_179 = arith.constant 0 : index
    %349 = vector.load %arg9[%c0_178, %c0_179] : memref<1x10xf32, #tpu.memory_space<vmem>>, vector<1x10xf32>
    %350 = arith.addf %348, %349 : vector<1x10xf32>
    %c0_180 = arith.constant 0 : index
    %c0_181 = arith.constant 0 : index
    %c0_182 = arith.constant 0 : index
    %351 = vector.load %arg10[%c0_180, %c0_181, %c0_182] : memref<1x1x10xf32, #tpu.memory_space<vmem>>, vector<1x1x10xf32>
    %352 = vector.shape_cast %351 : vector<1x1x10xf32> to vector<1x10xf32>
    %353 = vector.shape_cast %350 : vector<1x10xf32> to vector<1x1x10xf32>
    tpu.vector_store %arg10[%c0_180, %c0_181, %c0_182], %353 {strides = array<i32>} : memref<1x1x10xf32, #tpu.memory_space<vmem>>, vector<1x1x10xf32>,
    return
  }
  func.func @transform_0(%arg0: i32) -> (i32, i32, i32, i32) {
    %c0_i32 = arith.constant 0 : i32
    %c0_i32_0 = arith.constant 0 : i32
    %c0_i32_1 = arith.constant 0 : i32
    %c0_i32_2 = arith.constant 0 : i32
    return %arg0, %c0_i32, %c0_i32_0, %c0_i32_1 : i32, i32, i32, i32
  }
  func.func @transform_1(%arg0: i32) -> (i32, i32) {
    %c0_i32 = arith.constant 0 : i32
    %c0_i32_0 = arith.constant 0 : i32
    %c0_i32_1 = arith.constant 0 : i32
    return %c0_i32, %c0_i32_0 : i32, i32
  }
  func.func @transform_2(%arg0: i32) -> (i32, i32) {
    %c0_i32 = arith.constant 0 : i32
    %c0_i32_0 = arith.constant 0 : i32
    %c0_i32_1 = arith.constant 0 : i32
    return %c0_i32, %c0_i32_0 : i32, i32
  }
  func.func @transform_3(%arg0: i32) -> (i32, i32) {
    %c0_i32 = arith.constant 0 : i32
    %c0_i32_0 = arith.constant 0 : i32
    %c0_i32_1 = arith.constant 0 : i32
    return %c0_i32, %c0_i32_0 : i32, i32
  }
  func.func @transform_4(%arg0: i32) -> (i32, i32) {
    %c0_i32 = arith.constant 0 : i32
    %c0_i32_0 = arith.constant 0 : i32
    %c0_i32_1 = arith.constant 0 : i32
    return %c0_i32, %c0_i32_0 : i32, i32
  }
  func.func @transform_5(%arg0: i32) -> (i32, i32) {
    %c0_i32 = arith.constant 0 : i32
    %c0_i32_0 = arith.constant 0 : i32
    %c0_i32_1 = arith.constant 0 : i32
    return %c0_i32, %c0_i32_0 : i32, i32
  }
  func.func @transform_6(%arg0: i32) -> (i32, i32) {
    %c0_i32 = arith.constant 0 : i32
    %c0_i32_0 = arith.constant 0 : i32
    %c0_i32_1 = arith.constant 0 : i32
    return %c0_i32, %c0_i32_0 : i32, i32
  }
  func.func @transform_7(%arg0: i32) -> (i32, i32) {
    %c0_i32 = arith.constant 0 : i32
    %c0_i32_0 = arith.constant 0 : i32
    %c0_i32_1 = arith.constant 0 : i32
    return %c0_i32, %c0_i32_0 : i32, i32
  }
  func.func @transform_8(%arg0: i32) -> (i32, i32) {
    %c0_i32 = arith.constant 0 : i32
    %c0_i32_0 = arith.constant 0 : i32
    %c0_i32_1 = arith.constant 0 : i32
    return %c0_i32, %c0_i32_0 : i32, i32
  }
  func.func @transform_9(%arg0: i32) -> (i32, i32, i32) {
    %c0_i32 = arith.constant 0 : i32
    %c0_i32_0 = arith.constant 0 : i32
    %c0_i32_1 = arith.constant 0 : i32
    return %arg0, %c0_i32, %c0_i32_0 : i32, i32, i32
  }
}

</mosaic_0001>

<llo_original>
// kernel: simple_cnn_forward.1
$region0: #{simple_cnn_forward.1}
  #allocation0 [shape = 'u32[]', space=smem, size = 0x4, offset = 0x4, fixed_abs, tag = 'smem constant byte address 0x4 - core index']
  #allocation1 [shape = 'u32[144,128]{1,0:T(1,128)}', space=vmem, size = 0x12000, scoped, tag = 'internal scratch']
  #allocation2 [shape = 'f32[13,13,32]{2,1,0:T(8,128)}', space=vmem, size = 0x1a000, scoped, tag = 'scratch operand']
  #allocation3 [shape = 'f32[11,11,288]{2,1,0:T(8,128)}', space=vmem, size = 0x42000, scoped, tag = 'scratch operand']
  #allocation4 [shape = 'f32[8,1600]{1,0:T(8,128)}', space=vmem, size = 0xd000, scoped, tag = 'scratch operand']
  %s0 = inlined_call_operand.vmem [shape: f32[4,28,28,1], index: 0, kind: input, shape index: {}]
  %s1 = inlined_call_operand.vmem [shape: f32[9,32], index: 1, kind: input, shape index: {}]
  %s2 = inlined_call_operand.vmem [shape: f32[1,32], index: 2, kind: input, shape index: {}]
  %s3 = inlined_call_operand.vmem [shape: bf16[288,64], index: 3, kind: input, shape index: {}]
  %s4 = inlined_call_operand.vmem [shape: f32[1,64], index: 4, kind: input, shape index: {}]
  %s5 = inlined_call_operand.vmem [shape: bf16[1600,128], index: 5, kind: input, shape index: {}]
  %s6 = inlined_call_operand.vmem [shape: f32[1,128], index: 6, kind: input, shape index: {}]
  %s7 = inlined_call_operand.vmem [shape: bf16[128,10], index: 7, kind: input, shape index: {}]
  %s8 = inlined_call_operand.vmem [shape: f32[1,10], index: 8, kind: input, shape index: {}]
  %s9 = inlined_call_operand.hbm [shape: f32[4,1,10], index: 9, kind: output, shape index: {}]
  %s10 = sld [smem:[#allocation0]]
  $region69: #{simple_cnn_forward.1} parent=0
    _
  %s12 = ssub.s32 1, %s10
  %s13 = scalar_select 0, %s12, %s10
  $region1: #{simple_cnn_forward.1} parent=0
    #allocation5 [shape = 'u8[1024]{0}', space=vmem, size = 0x400, scoped, tag = 'output window, operand 0']
    #allocation6 [shape = 's32[2]{0}', space=sflag, size = 0x8, scoped, tag = 'scoped memory for simple_cnn_forward.1']
    %14 = vsyncpa [#allocation6], 0
    %s15 = scalar_lea.sflag [#allocation6], 1
    %16 = vsyncpa %s15, 0
    loop: start=0, step=1, limit=6
    $region2: #{simple_cnn_forward.1} parent=1 // loop_pre_header
      _
    $region3: #{simple_cnn_forward.1} parent=1 // loop_header
      %s18 = sphi 0, %s22
      %p19 = scmp.ge.s32.totalorder %s18, 6
      %s28 = sphi 0, %s30
      %s31 = sphi 0, %s28
      %s32 = sphi 0, %s31
      %s48 = sphi 0, %s32
      %s52 = sphi 0, %s52
      %s54 = sphi 0, %s52
      %s55 = sphi 0, %s54
      %s69 = sphi 0, %s55
      %s73 = sphi 0, %s73
      %s75 = sphi 0, %s73
      %s76 = sphi 0, %s75
      %s90 = sphi 0, %s76
      %s94 = sphi 0, %s94
      %s96 = sphi 0, %s94
      %s97 = sphi 0, %s96
      %s111 = sphi 0, %s97
      %s115 = sphi 0, %s115
      %s117 = sphi 0, %s115
      %s118 = sphi 0, %s117
      %s132 = sphi 0, %s118
      %s136 = sphi 0, %s136
      %s138 = sphi 0, %s136
      %s139 = sphi 0, %s138
      %s153 = sphi 0, %s139
      %s157 = sphi 0, %s157
      %s159 = sphi 0, %s157
      %s160 = sphi 0, %s159
      %s174 = sphi 0, %s160
      %s178 = sphi 0, %s178
      %s180 = sphi 0, %s178
      %s181 = sphi 0, %s180
      %s195 = sphi 0, %s181
      %s199 = sphi 0, %s199
      %s201 = sphi 0, %s199
      %s202 = sphi 0, %s201
      %s216 = sphi 0, %s202
      %s222 = sphi 0, %s224
      %s225 = sphi 0, %s222
      %s226 = sphi 0, %s225
      %s242 = sphi 0, %s226
    $region4: #{simple_cnn_forward.1} parent=1 // loop_header_branch
      %21 = sbr.rel (%p19) target = $region8
    $region5: #{simple_cnn_forward.1} parent=1 // loop_body
      %s23 = ssub.s32 %s18, 1
      %s24 = ssub.s32 %s18, 2
      %s25 = sadd.s32 %s18, 1
      %s26 = ssub.s32 %s18, %s25
      %p27 = scmp.eq.s32.totalorder %s26, 0
      %s29 = sadd.s32 %s28, 1
      %s30 = scalar_select %p27, %s28, %s29
      %p33 = pneg %p27
      %p34 = scmp.eq.s32.totalorder %s18, 3
      %p35 = por %p33, %p34
      %p36 = scmp.ne.s32.totalorder %s28, %s31
      %p37 = scmp.eq.s32.totalorder %s18, 0
      %p38 = por %p36, %p37
      %p39 = scmp.ne.s32.totalorder %s28, %s31
      %p40 = scmp.eq.s32.totalorder %s23, 3
      %p41 = por %p39, %p40
      %p42 = scmp.ne.s32.totalorder %s31, %s32
      %p43 = scmp.eq.s32.totalorder %s23, 0
      %p44 = por %p42, %p43
      %p45 = scmp.ne.s32.totalorder %s31, %s32
      %p46 = scmp.eq.s32.totalorder %s24, 3
      %p47 = por %p45, %p46
      %p49 = scmp.ne.s32.totalorder %s32, %s48
      %p50 = scmp.eq.s32.totalorder %s24, 0
      %p51 = por %p49, %p50
      %s53 = sadd.s32 %s52, 1
      %p56 = scmp.eq.s32.totalorder %s18, 3
      %p57 = scmp.ne.s32.totalorder %s52, %s54
      %p58 = scmp.eq.s32.totalorder %s18, 0
      %p59 = por %p57, %p58
      %p60 = scmp.ne.s32.totalorder %s52, %s54
      %p61 = scmp.eq.s32.totalorder %s23, 3
      %p62 = por %p60, %p61
      %p63 = scmp.ne.s32.totalorder %s54, %s55
      %p64 = scmp.eq.s32.totalorder %s23, 0
      %p65 = por %p63, %p64
      %p66 = scmp.ne.s32.totalorder %s54, %s55
      %p67 = scmp.eq.s32.totalorder %s24, 3
      %p68 = por %p66, %p67
      %p70 = scmp.ne.s32.totalorder %s55, %s69
      %p71 = scmp.eq.s32.totalorder %s24, 0
      %p72 = por %p70, %p71
      %s74 = sadd.s32 %s73, 1
      %p77 = scmp.eq.s32.totalorder %s18, 3
      %p78 = scmp.ne.s32.totalorder %s73, %s75
      %p79 = scmp.eq.s32.totalorder %s18, 0
      %p80 = por %p78, %p79
      %p81 = scmp.ne.s32.totalorder %s73, %s75
      %p82 = scmp.eq.s32.totalorder %s23, 3
      %p83 = por %p81, %p82
      %p84 = scmp.ne.s32.totalorder %s75, %s76
      %p85 = scmp.eq.s32.totalorder %s23, 0
      %p86 = por %p84, %p85
      %p87 = scmp.ne.s32.totalorder %s75, %s76
      %p88 = scmp.eq.s32.totalorder %s24, 3
      %p89 = por %p87, %p88
      %p91 = scmp.ne.s32.totalorder %s76, %s90
      %p92 = scmp.eq.s32.totalorder %s24, 0
      %p93 = por %p91, %p92
      %s95 = sadd.s32 %s94, 1
      %p98 = scmp.eq.s32.totalorder %s18, 3
      %p99 = scmp.ne.s32.totalorder %s94, %s96
      %p100 = scmp.eq.s32.totalorder %s18, 0
      %p101 = por %p99, %p100
      %p102 = scmp.ne.s32.totalorder %s94, %s96
      %p103 = scmp.eq.s32.totalorder %s23, 3
      %p104 = por %p102, %p103
      %p105 = scmp.ne.s32.totalorder %s96, %s97
      %p106 = scmp.eq.s32.totalorder %s23, 0
      %p107 = por %p105, %p106
      %p108 = scmp.ne.s32.totalorder %s96, %s97
      %p109 = scmp.eq.s32.totalorder %s24, 3
      %p110 = por %p108, %p109
      %p112 = scmp.ne.s32.totalorder %s97, %s111
      %p113 = scmp.eq.s32.totalorder %s24, 0
      %p114 = por %p112, %p113
      %s116 = sadd.s32 %s115, 1
      %p119 = scmp.eq.s32.totalorder %s18, 3
      %p120 = scmp.ne.s32.totalorder %s115, %s117
      %p121 = scmp.eq.s32.totalorder %s18, 0
      %p122 = por %p120, %p121
      %p123 = scmp.ne.s32.totalorder %s115, %s117
      %p124 = scmp.eq.s32.totalorder %s23, 3
      %p125 = por %p123, %p124
      %p126 = scmp.ne.s32.totalorder %s117, %s118
      %p127 = scmp.eq.s32.totalorder %s23, 0
      %p128 = por %p126, %p127
      %p129 = scmp.ne.s32.totalorder %s117, %s118
      %p130 = scmp.eq.s32.totalorder %s24, 3
      %p131 = por %p129, %p130
      %p133 = scmp.ne.s32.totalorder %s118, %s132
      %p134 = scmp.eq.s32.totalorder %s24, 0
      %p135 = por %p133, %p134
      %s137 = sadd.s32 %s136, 1
      %p140 = scmp.eq.s32.totalorder %s18, 3
      %p141 = scmp.ne.s32.totalorder %s136, %s138
      %p142 = scmp.eq.s32.totalorder %s18, 0
      %p143 = por %p141, %p142
      %p144 = scmp.ne.s32.totalorder %s136, %s138
      %p145 = scmp.eq.s32.totalorder %s23, 3
      %p146 = por %p144, %p145
      %p147 = scmp.ne.s32.totalorder %s138, %s139
      %p148 = scmp.eq.s32.totalorder %s23, 0
      %p149 = por %p147, %p148
      %p150 = scmp.ne.s32.totalorder %s138, %s139
      %p151 = scmp.eq.s32.totalorder %s24, 3
      %p152 = por %p150, %p151
      %p154 = scmp.ne.s32.totalorder %s139, %s153
      %p155 = scmp.eq.s32.totalorder %s24, 0
      %p156 = por %p154, %p155
      %s158 = sadd.s32 %s157, 1
      %p161 = scmp.eq.s32.totalorder %s18, 3
      %p162 = scmp.ne.s32.totalorder %s157, %s159
      %p163 = scmp.eq.s32.totalorder %s18, 0
      %p164 = por %p162, %p163
      %p165 = scmp.ne.s32.totalorder %s157, %s159
      %p166 = scmp.eq.s32.totalorder %s23, 3
      %p167 = por %p165, %p166
      %p168 = scmp.ne.s32.totalorder %s159, %s160
      %p169 = scmp.eq.s32.totalorder %s23, 0
      %p170 = por %p168, %p169
      %p171 = scmp.ne.s32.totalorder %s159, %s160
      %p172 = scmp.eq.s32.totalorder %s24, 3
      %p173 = por %p171, %p172
      %p175 = scmp.ne.s32.totalorder %s160, %s174
      %p176 = scmp.eq.s32.totalorder %s24, 0
      %p177 = por %p175, %p176
      %s179 = sadd.s32 %s178, 1
      %p182 = scmp.eq.s32.totalorder %s18, 3
      %p183 = scmp.ne.s32.totalorder %s178, %s180
      %p184 = scmp.eq.s32.totalorder %s18, 0
      %p185 = por %p183, %p184
      %p186 = scmp.ne.s32.totalorder %s178, %s180
      %p187 = scmp.eq.s32.totalorder %s23, 3
      %p188 = por %p186, %p187
      %p189 = scmp.ne.s32.totalorder %s180, %s181
      %p190 = scmp.eq.s32.totalorder %s23, 0
      %p191 = por %p189, %p190
      %p192 = scmp.ne.s32.totalorder %s180, %s181
      %p193 = scmp.eq.s32.totalorder %s24, 3
      %p194 = por %p192, %p193
      %p196 = scmp.ne.s32.totalorder %s181, %s195
      %p197 = scmp.eq.s32.totalorder %s24, 0
      %p198 = por %p196, %p197
      %s200 = sadd.s32 %s199, 1
      %p203 = scmp.eq.s32.totalorder %s18, 3
      %p204 = scmp.ne.s32.totalorder %s199, %s201
      %p205 = scmp.eq.s32.totalorder %s18, 0
      %p206 = por %p204, %p205
      %p207 = scmp.ne.s32.totalorder %s199, %s201
      %p208 = scmp.eq.s32.totalorder %s23, 3
      %p209 = por %p207, %p208
      %p210 = scmp.ne.s32.totalorder %s201, %s202
      %p211 = scmp.eq.s32.totalorder %s23, 0
      %p212 = por %p210, %p211
      %p213 = scmp.ne.s32.totalorder %s201, %s202
      %p214 = scmp.eq.s32.totalorder %s24, 3
      %p215 = por %p213, %p214
      %p217 = scmp.ne.s32.totalorder %s202, %s216
      %p218 = scmp.eq.s32.totalorder %s24, 0
      %p219 = por %p217, %p218
      %s220 = ssub.s32 %s18, %s25
      %p221 = scmp.eq.s32.totalorder %s220, 0
      %s223 = sadd.s32 %s222, 1
      %s224 = scalar_select %p221, %s222, %s223
      %p227 = pneg %p221
      %p228 = scmp.eq.s32.totalorder %s18, 3
      %p229 = por %p227, %p228
      %p230 = scmp.ne.s32.totalorder %s222, %s225
      %p231 = scmp.eq.s32.totalorder %s18, 0
      %p232 = por %p230, %p231
      %p233 = scmp.ne.s32.totalorder %s222, %s225
      %p234 = scmp.eq.s32.totalorder %s23, 3
      %p235 = por %p233, %p234
      %p236 = scmp.ne.s32.totalorder %s225, %s226
      %p237 = scmp.eq.s32.totalorder %s23, 0
      %p238 = por %p236, %p237
      %p239 = scmp.ne.s32.totalorder %s225, %s226
      %p240 = scmp.eq.s32.totalorder %s24, 3
      %p241 = por %p239, %p240
      %p243 = scmp.ne.s32.totalorder %s226, %s242
      %p244 = scmp.eq.s32.totalorder %s24, 0
      %p245 = por %p243, %p244
      %p246 = scmp.le.s32.totalorder 1, %s18
      %p247 = scmp.lt.s32.totalorder %s18, 5
      %p248 = pnand %p246, %p247
      %p249 = pneg %p248
      // Predicated region
      $region9: #{simple_cnn_forward.1} parent=5 // pred_check
        _
      $region10: #{simple_cnn_forward.1} parent=5 // pred_check_branch
        %251 = sbr.rel (%p248) target = $region12
      $region11: #{simple_cnn_forward.1} parent=5 // pred_region
        %s252 = ssub.s32 %s18, 1
        // Predicated region
        $region13: #{simple_cnn_forward.1} parent=11 // pred_check
          %p253 = pneg %p65
        $region14: #{simple_cnn_forward.1} parent=11 // pred_check_branch
          %255 = sbr.rel (%p253) target = $region16
        $region15: #{simple_cnn_forward.1} parent=11 // pred_region
          _
        $region16: #{simple_cnn_forward.1} parent=11 // pred_fallthru
          _
        // Predicated region
        $region17: #{simple_cnn_forward.1} parent=11 // pred_check
          %p256 = pneg %p86
        $region18: #{simple_cnn_forward.1} parent=11 // pred_check_branch
          %258 = sbr.rel (%p256) target = $region20
        $region19: #{simple_cnn_forward.1} parent=11 // pred_region
          _
        $region20: #{simple_cnn_forward.1} parent=11 // pred_fallthru
          _
        // Predicated region
        $region21: #{simple_cnn_forward.1} parent=11 // pred_check
          %p259 = pneg %p107
        $region22: #{simple_cnn_forward.1} parent=11 // pred_check_branch
          %261 = sbr.rel (%p259) target = $region24
        $region23: #{simple_cnn_forward.1} parent=11 // pred_region
          _
        $region24: #{simple_cnn_forward.1} parent=11 // pred_fallthru
          _
        // Predicated region
        $region25: #{simple_cnn_forward.1} parent=11 // pred_check
          %p262 = pneg %p128
        $region26: #{simple_cnn_forward.1} parent=11 // pred_check_branch
          %264 = sbr.rel (%p262) target = $region28
        $region27: #{simple_cnn_forward.1} parent=11 // pred_region
          _
        $region28: #{simple_cnn_forward.1} parent=11 // pred_fallthru
          _
        // Predicated region
        $region29: #{simple_cnn_forward.1} parent=11 // pred_check
          %p265 = pneg %p149
        $region30: #{simple_cnn_forward.1} parent=11 // pred_check_branch
          %267 = sbr.rel (%p265) target = $region32
        $region31: #{simple_cnn_forward.1} parent=11 // pred_region
          _
        $region32: #{simple_cnn_forward.1} parent=11 // pred_fallthru
          _
        // Predicated region
        $region33: #{simple_cnn_forward.1} parent=11 // pred_check
          %p268 = pneg %p170
        $region34: #{simple_cnn_forward.1} parent=11 // pred_check_branch
          %270 = sbr.rel (%p268) target = $region36
        $region35: #{simple_cnn_forward.1} parent=11 // pred_region
          _
        $region36: #{simple_cnn_forward.1} parent=11 // pred_fallthru
          _
        // Predicated region
        $region37: #{simple_cnn_forward.1} parent=11 // pred_check
          %p271 = pneg %p191
        $region38: #{simple_cnn_forward.1} parent=11 // pred_check_branch
          %273 = sbr.rel (%p271) target = $region40
        $region39: #{simple_cnn_forward.1} parent=11 // pred_region
          _
        $region40: #{simple_cnn_forward.1} parent=11 // pred_fallthru
          _
        // Predicated region
        $region41: #{simple_cnn_forward.1} parent=11 // pred_check
          %p274 = pneg %p212
        $region42: #{simple_cnn_forward.1} parent=11 // pred_check_branch
          %276 = sbr.rel (%p274) target = $region44
        $region43: #{simple_cnn_forward.1} parent=11 // pred_region
          _
        $region44: #{simple_cnn_forward.1} parent=11 // pred_fallthru
          _
      $region12: #{simple_cnn_forward.1} parent=5 // pred_fallthru
        _
      %p277 = scmp.lt.s32.totalorder %s18, 4
      // Predicated region
      $region45: #{simple_cnn_forward.1} parent=5 // pred_check
        %p278 = pneg %p277
      $region46: #{simple_cnn_forward.1} parent=5 // pred_check_branch
        %280 = sbr.rel (%p278) target = $region48
      $region47: #{simple_cnn_forward.1} parent=5 // pred_region
        // Predicated region
        $region49: #{simple_cnn_forward.1} parent=47 // pred_check
          %p281 = pneg %p38
        $region50: #{simple_cnn_forward.1} parent=47 // pred_check_branch
          %283 = sbr.rel (%p281) target = $region52
        $region51: #{simple_cnn_forward.1} parent=47 // pred_region
          %p284 = scmp.lt.s32.totalorder %s18, 3
          %s285 = scalar_select %p284, %s18, 3
          %s286 = smul.addr %s285, 112
          %s287 = smul.addr %s286, 8
          %s288 = scalar_lea.vmem %s0, %s287
        $region52: #{simple_cnn_forward.1} parent=47 // pred_fallthru
          _
      $region48: #{simple_cnn_forward.1} parent=5 // pred_fallthru
        _
      %p289 = scmp.le.s32.totalorder 1, %s18
      %p290 = scmp.lt.s32.totalorder %s18, 5
      %p291 = pnand %p289, %p290
      %p292 = pneg %p291
      // Predicated region
      $region53: #{simple_cnn_forward.1} parent=5 // pred_check
        _
      $region54: #{simple_cnn_forward.1} parent=5 // pred_check_branch
        %294 = sbr.rel (%p291) target = $region56
      $region55: #{simple_cnn_forward.1} parent=5 // pred_region
        %s295 = ssub.s32 %s18, 1
        %p296 = scmp.lt.s32.totalorder %s23, 3
        %s297 = scalar_select %p296, %s23, 3
        %s298 = smul.addr %s297, 112
        %s299 = smul.addr %s298, 8
        %s300 = scalar_lea.vmem %s0, %s299
        %p301 = pneg %p44
        %p302 = pneg %p41
        %p303 = pneg %p65
        %p304 = pneg %p62
        %p305 = pneg %p86
        %p306 = pneg %p83
        %p307 = pneg %p107
        %p308 = pneg %p104
        %p309 = pneg %p128
        %p310 = pneg %p125
        %p311 = pneg %p149
        %p312 = pneg %p146
        %p313 = pneg %p170
        %p314 = pneg %p167
        %p315 = pneg %p191
        %p316 = pneg %p188
        %p317 = pneg %p212
        %p318 = pneg %p209
        %p319 = pneg %p238
        %p320 = pneg %p235
        %s321 = sand.u32 %s225, 1
        %s322 = scalar_lea.sflag [#allocation6], %s321
        %s323 = sand.u32 %s225, 1
        %s324 = scalar_lea.vmem [#allocation5], %s323
        %p325 = scmp.lt.s32.totalorder %s23, 3
        %s326 = scalar_select %p325, %s23, 3
        %s327 = smul.addr %s326, 112
        %s328 = smul.addr %s327, 8
        %s329 = scalar_lea.vmem %s0, %s328
        %v331 = vld [vmem:[%s329] sm:$0xff]
        %v332 = vld [vmem:[%s329 + $0x8] sm:$0xff]
        %v333 = vld [vmem:[%s329 + $0x10] sm:$0xff]
        %v334 = vld [vmem:[%s329 + $0x18] sm:$0xf]
        %v335 = vld [vmem:[%s329 + $0x20] sm:$0xff]
        %v336 = vld [vmem:[%s329 + $0x28] sm:$0xff]
        %v337 = vld [vmem:[%s329 + $0x30] sm:$0xff]
        %v338 = vld [vmem:[%s329 + $0x38] sm:$0xf]
        %v339 = vld [vmem:[%s329 + $0x40] sm:$0xff]
        %v340 = vld [vmem:[%s329 + $0x48] sm:$0xff]
        %v341 = vld [vmem:[%s329 + $0x50] sm:$0xff]
        %v342 = vld [vmem:[%s329 + $0x58] sm:$0xf]
        %v343 = vld [vmem:[%s329 + $0x60] sm:$0xff]
        %v344 = vld [vmem:[%s329 + $0x68] sm:$0xff]
        %v345 = vld [vmem:[%s329 + $0x70] sm:$0xff]
        %v346 = vld [vmem:[%s329 + $0x78] sm:$0xf]
        %v347 = vld [vmem:[%s329 + $0x80] sm:$0xff]
        %v348 = vld [vmem:[%s329 + $0x88] sm:$0xff]
        %v349 = vld [vmem:[%s329 + $0x90] sm:$0xff]
        %v350 = vld [vmem:[%s329 + $0x98] sm:$0xf]
        %v351 = vld [vmem:[%s329 + $0xa0] sm:$0xff]
        %v352 = vld [vmem:[%s329 + $0xa8] sm:$0xff]
        %v353 = vld [vmem:[%s329 + $0xb0] sm:$0xff]
        %v354 = vld [vmem:[%s329 + $0xb8] sm:$0xf]
        %v355 = vld [vmem:[%s329 + $0xc0] sm:$0xff]
        %v356 = vld [vmem:[%s329 + $0xc8] sm:$0xff]
        %v357 = vld [vmem:[%s329 + $0xd0] sm:$0xff]
        %v358 = vld [vmem:[%s329 + $0xd8] sm:$0xf]
        %v359 = vld [vmem:[%s329 + $0xe0] sm:$0xff]
        %v360 = vld [vmem:[%s329 + $0xe8] sm:$0xff]
        %v361 = vld [vmem:[%s329 + $0xf0] sm:$0xff]
        %v362 = vld [vmem:[%s329 + $0xf8] sm:$0xf]
        %v363 = vld [vmem:[%s329 + $0x100] sm:$0xff]
        %v364 = vld [vmem:[%s329 + $0x108] sm:$0xff]
        %v365 = vld [vmem:[%s329 + $0x110] sm:$0xff]
        %v366 = vld [vmem:[%s329 + $0x118] sm:$0xf]
        %v367 = vld [vmem:[%s329 + $0x120] sm:$0xff]
        %v368 = vld [vmem:[%s329 + $0x128] sm:$0xff]
        %v369 = vld [vmem:[%s329 + $0x130] sm:$0xff]
        %v370 = vld [vmem:[%s329 + $0x138] sm:$0xf]
        %v371 = vld [vmem:[%s329 + $0x140] sm:$0xff]
        %v372 = vld [vmem:[%s329 + $0x148] sm:$0xff]
        %v373 = vld [vmem:[%s329 + $0x150] sm:$0xff]
        %v374 = vld [vmem:[%s329 + $0x158] sm:$0xf]
        %v375 = vld [vmem:[%s329 + $0x160] sm:$0xff]
        %v376 = vld [vmem:[%s329 + $0x168] sm:$0xff]
        %v377 = vld [vmem:[%s329 + $0x170] sm:$0xff]
        %v378 = vld [vmem:[%s329 + $0x178] sm:$0xf]
        %v379 = vld [vmem:[%s329 + $0x180] sm:$0xff]
        %v380 = vld [vmem:[%s329 + $0x188] sm:$0xff]
        %v381 = vld [vmem:[%s329 + $0x190] sm:$0xff]
        %v382 = vld [vmem:[%s329 + $0x198] sm:$0xf]
        %v383 = vld [vmem:[%s329 + $0x1a0] sm:$0xff]
        %v384 = vld [vmem:[%s329 + $0x1a8] sm:$0xff]
        %v385 = vld [vmem:[%s329 + $0x1b0] sm:$0xff]
        %v386 = vld [vmem:[%s329 + $0x1b8] sm:$0xf]
        %v387 = vld [vmem:[%s329 + $0x1c0] sm:$0xff]
        %v388 = vld [vmem:[%s329 + $0x1c8] sm:$0xff]
        %v389 = vld [vmem:[%s329 + $0x1d0] sm:$0xff]
        %v390 = vld [vmem:[%s329 + $0x1d8] sm:$0xf]
        %v391 = vld [vmem:[%s329 + $0x1e0] sm:$0xff]
        %v392 = vld [vmem:[%s329 + $0x1e8] sm:$0xff]
        %v393 = vld [vmem:[%s329 + $0x1f0] sm:$0xff]
        %v394 = vld [vmem:[%s329 + $0x1f8] sm:$0xf]
        %v395 = vld [vmem:[%s329 + $0x200] sm:$0xff]
        %v396 = vld [vmem:[%s329 + $0x208] sm:$0xff]
        %v397 = vld [vmem:[%s329 + $0x210] sm:$0xff]
        %v398 = vld [vmem:[%s329 + $0x218] sm:$0xf]
        %v399 = vld [vmem:[%s329 + $0x220] sm:$0xff]
        %v400 = vld [vmem:[%s329 + $0x228] sm:$0xff]
        %v401 = vld [vmem:[%s329 + $0x230] sm:$0xff]
        %v402 = vld [vmem:[%s329 + $0x238] sm:$0xf]
        %v403 = vld [vmem:[%s329 + $0x240] sm:$0xff]
        %v404 = vld [vmem:[%s329 + $0x248] sm:$0xff]
        %v405 = vld [vmem:[%s329 + $0x250] sm:$0xff]
        %v406 = vld [vmem:[%s329 + $0x258] sm:$0xf]
        %v407 = vld [vmem:[%s329 + $0x260] sm:$0xff]
        %v408 = vld [vmem:[%s329 + $0x268] sm:$0xff]
        %v409 = vld [vmem:[%s329 + $0x270] sm:$0xff]
        %v410 = vld [vmem:[%s329 + $0x278] sm:$0xf]
        %v411 = vld [vmem:[%s329 + $0x280] sm:$0xff]
        %v412 = vld [vmem:[%s329 + $0x288] sm:$0xff]
        %v413 = vld [vmem:[%s329 + $0x290] sm:$0xff]
        %v414 = vld [vmem:[%s329 + $0x298] sm:$0xf]
        %v415 = vld [vmem:[%s329 + $0x2a0] sm:$0xff]
        %v416 = vld [vmem:[%s329 + $0x2a8] sm:$0xff]
        %v417 = vld [vmem:[%s329 + $0x2b0] sm:$0xff]
        %v418 = vld [vmem:[%s329 + $0x2b8] sm:$0xf]
        %v419 = vld [vmem:[%s329 + $0x2c0] sm:$0xff]
        %v420 = vld [vmem:[%s329 + $0x2c8] sm:$0xff]
        %v421 = vld [vmem:[%s329 + $0x2d0] sm:$0xff]
        %v422 = vld [vmem:[%s329 + $0x2d8] sm:$0xf]
        %v423 = vld [vmem:[%s329 + $0x2e0] sm:$0xff]
        %v424 = vld [vmem:[%s329 + $0x2e8] sm:$0xff]
        %v425 = vld [vmem:[%s329 + $0x2f0] sm:$0xff]
        %v426 = vld [vmem:[%s329 + $0x2f8] sm:$0xf]
        %v427 = vld [vmem:[%s329 + $0x300] sm:$0xff]
        %v428 = vld [vmem:[%s329 + $0x308] sm:$0xff]
        %v429 = vld [vmem:[%s329 + $0x310] sm:$0xff]
        %v430 = vld [vmem:[%s329 + $0x318] sm:$0xf]
        %v431 = vld [vmem:[%s329 + $0x320] sm:$0xff]
        %v432 = vld [vmem:[%s329 + $0x328] sm:$0xff]
        %v433 = vld [vmem:[%s329 + $0x330] sm:$0xff]
        %v434 = vld [vmem:[%s329 + $0x338] sm:$0xf]
        %v435 = vld [vmem:[%s329 + $0x340] sm:$0xff]
        %v436 = vld [vmem:[%s329 + $0x348] sm:$0xff]
        %v437 = vld [vmem:[%s329 + $0x350] sm:$0xff]
        %v438 = vld [vmem:[%s329 + $0x358] sm:$0xf]
        %v439 = vld [vmem:[%s329 + $0x360] sm:$0xff]
        %v440 = vld [vmem:[%s329 + $0x368] sm:$0xff]
        %v441 = vld [vmem:[%s329 + $0x370] sm:$0xff]
        %v442 = vld [vmem:[%s329 + $0x378] sm:$0xf]
        %v443 = vld [vmem:[%s1] sm:$0xff]
        %v444 = vld [vmem:[%s1 + $0x8] sm:$0x1]
        %446 = vset.pattern.permute.xlu0 0
        %447 = vperm.xlu0 %446, %v331
        %v448 = vpop.permute.xlu0 %447
        %451 = vset.pattern.permute.xlu0 0
        %452 = vperm.xlu0 %451, %v332
        %v453 = vpop.permute.xlu0 %452
        %456 = vset.pattern.permute.xlu0 0
        %457 = vperm.xlu0 %456, %v333
        %v458 = vpop.permute.xlu0 %457
        %461 = vset.pattern.permute.xlu0 0
        %462 = vperm.xlu0 %461, %v334
        %v463 = vpop.permute.xlu0 %462
        %466 = vset.pattern.permute.xlu0 0
        %467 = vperm.xlu0 %466, %v335
        %v468 = vpop.permute.xlu0 %467
        %471 = vset.pattern.permute.xlu0 0
        %472 = vperm.xlu0 %471, %v336
        %v473 = vpop.permute.xlu0 %472
        %476 = vset.pattern.permute.xlu0 0
        %477 = vperm.xlu0 %476, %v337
        %v478 = vpop.permute.xlu0 %477
        %481 = vset.pattern.permute.xlu0 0
        %482 = vperm.xlu0 %481, %v338
        %v483 = vpop.permute.xlu0 %482
        %486 = vset.pattern.permute.xlu0 0
        %487 = vperm.xlu0 %486, %v339
        %v488 = vpop.permute.xlu0 %487
        %491 = vset.pattern.permute.xlu0 0
        %492 = vperm.xlu0 %491, %v340
        %v493 = vpop.permute.xlu0 %492
        %496 = vset.pattern.permute.xlu0 0
        %497 = vperm.xlu0 %496, %v341
        %v498 = vpop.permute.xlu0 %497
        %501 = vset.pattern.permute.xlu0 0
        %502 = vperm.xlu0 %501, %v342
        %v503 = vpop.permute.xlu0 %502
        %506 = vset.pattern.permute.xlu0 0
        %507 = vperm.xlu0 %506, %v343
        %v508 = vpop.permute.xlu0 %507
        %511 = vset.pattern.permute.xlu0 0
        %512 = vperm.xlu0 %511, %v344
        %v513 = vpop.permute.xlu0 %512
        %516 = vset.pattern.permute.xlu0 0
        %517 = vperm.xlu0 %516, %v345
        %v518 = vpop.permute.xlu0 %517
        %521 = vset.pattern.permute.xlu0 0
        %522 = vperm.xlu0 %521, %v346
        %v523 = vpop.permute.xlu0 %522
        %526 = vset.pattern.permute.xlu0 0
        %527 = vperm.xlu0 %526, %v347
        %v528 = vpop.permute.xlu0 %527
        %531 = vset.pattern.permute.xlu0 0
        %532 = vperm.xlu0 %531, %v348
        %v533 = vpop.permute.xlu0 %532
        %536 = vset.pattern.permute.xlu0 0
        %537 = vperm.xlu0 %536, %v349
        %v538 = vpop.permute.xlu0 %537
        %541 = vset.pattern.permute.xlu0 0
        %542 = vperm.xlu0 %541, %v350
        %v543 = vpop.permute.xlu0 %542
        %546 = vset.pattern.permute.xlu0 0
        %547 = vperm.xlu0 %546, %v351
        %v548 = vpop.permute.xlu0 %547
        %551 = vset.pattern.permute.xlu0 0
        %552 = vperm.xlu0 %551, %v352
        %v553 = vpop.permute.xlu0 %552
        %556 = vset.pattern.permute.xlu0 0
        %557 = vperm.xlu0 %556, %v353
        %v558 = vpop.permute.xlu0 %557
        %561 = vset.pattern.permute.xlu0 0
        %562 = vperm.xlu0 %561, %v354
        %v563 = vpop.permute.xlu0 %562
        %566 = vset.pattern.permute.xlu0 0
        %567 = vperm.xlu0 %566, %v355
        %v568 = vpop.permute.xlu0 %567
        %571 = vset.pattern.permute.xlu0 0
        %572 = vperm.xlu0 %571, %v356
        %v573 = vpop.permute.xlu0 %572
        %576 = vset.pattern.permute.xlu0 0
        %577 = vperm.xlu0 %576, %v357
        %v578 = vpop.permute.xlu0 %577
        %581 = vset.pattern.permute.xlu0 0
        %582 = vperm.xlu0 %581, %v358
        %v583 = vpop.permute.xlu0 %582
        %586 = vset.pattern.permute.xlu0 0
        %587 = vperm.xlu0 %586, %v359
        %v588 = vpop.permute.xlu0 %587
        %591 = vset.pattern.permute.xlu0 0
        %592 = vperm.xlu0 %591, %v360
        %v593 = vpop.permute.xlu0 %592
        %596 = vset.pattern.permute.xlu0 0
        %597 = vperm.xlu0 %596, %v361
        %v598 = vpop.permute.xlu0 %597
        %601 = vset.pattern.permute.xlu0 0
        %602 = vperm.xlu0 %601, %v362
        %v603 = vpop.permute.xlu0 %602
        %606 = vset.pattern.permute.xlu0 0
        %607 = vperm.xlu0 %606, %v363
        %v608 = vpop.permute.xlu0 %607
        %611 = vset.pattern.permute.xlu0 0
        %612 = vperm.xlu0 %611, %v364
        %v613 = vpop.permute.xlu0 %612
        %616 = vset.pattern.permute.xlu0 0
        %617 = vperm.xlu0 %616, %v365
        %v618 = vpop.permute.xlu0 %617
        %621 = vset.pattern.permute.xlu0 0
        %622 = vperm.xlu0 %621, %v366
        %v623 = vpop.permute.xlu0 %622
        %626 = vset.pattern.permute.xlu0 0
        %627 = vperm.xlu0 %626, %v367
        %v628 = vpop.permute.xlu0 %627
        %631 = vset.pattern.permute.xlu0 0
        %632 = vperm.xlu0 %631, %v368
        %v633 = vpop.permute.xlu0 %632
        %636 = vset.pattern.permute.xlu0 0
        %637 = vperm.xlu0 %636, %v369
        %v638 = vpop.permute.xlu0 %637
        %641 = vset.pattern.permute.xlu0 0
        %642 = vperm.xlu0 %641, %v370
        %v643 = vpop.permute.xlu0 %642
        %646 = vset.pattern.permute.xlu0 0
        %647 = vperm.xlu0 %646, %v371
        %v648 = vpop.permute.xlu0 %647
        %651 = vset.pattern.permute.xlu0 0
        %652 = vperm.xlu0 %651, %v372
        %v653 = vpop.permute.xlu0 %652
        %656 = vset.pattern.permute.xlu0 0
        %657 = vperm.xlu0 %656, %v373
        %v658 = vpop.permute.xlu0 %657
        %661 = vset.pattern.permute.xlu0 0
        %662 = vperm.xlu0 %661, %v374
        %v663 = vpop.permute.xlu0 %662
        %666 = vset.pattern.permute.xlu0 0
        %667 = vperm.xlu0 %666, %v375
        %v668 = vpop.permute.xlu0 %667
        %671 = vset.pattern.permute.xlu0 0
        %672 = vperm.xlu0 %671, %v376
        %v673 = vpop.permute.xlu0 %672
        %676 = vset.pattern.permute.xlu0 0
        %677 = vperm.xlu0 %676, %v377
        %v678 = vpop.permute.xlu0 %677
        %681 = vset.pattern.permute.xlu0 0
        %682 = vperm.xlu0 %681, %v378
        %v683 = vpop.permute.xlu0 %682
        %686 = vset.pattern.permute.xlu0 0
        %687 = vperm.xlu0 %686, %v379
        %v688 = vpop.permute.xlu0 %687
        %691 = vset.pattern.permute.xlu0 0
        %692 = vperm.xlu0 %691, %v380
        %v693 = vpop.permute.xlu0 %692
        %696 = vset.pattern.permute.xlu0 0
        %697 = vperm.xlu0 %696, %v381
        %v698 = vpop.permute.xlu0 %697
        %701 = vset.pattern.permute.xlu0 0
        %702 = vperm.xlu0 %701, %v382
        %v703 = vpop.permute.xlu0 %702
        %706 = vset.pattern.permute.xlu0 0
        %707 = vperm.xlu0 %706, %v383
        %v708 = vpop.permute.xlu0 %707
        %711 = vset.pattern.permute.xlu0 0
        %712 = vperm.xlu0 %711, %v384
        %v713 = vpop.permute.xlu0 %712
        %716 = vset.pattern.permute.xlu0 0
        %717 = vperm.xlu0 %716, %v385
        %v718 = vpop.permute.xlu0 %717
        %721 = vset.pattern.permute.xlu0 0
        %722 = vperm.xlu0 %721, %v386
        %v723 = vpop.permute.xlu0 %722
        %726 = vset.pattern.permute.xlu0 0
        %727 = vperm.xlu0 %726, %v387
        %v728 = vpop.permute.xlu0 %727
        %731 = vset.pattern.permute.xlu0 0
        %732 = vperm.xlu0 %731, %v388
        %v733 = vpop.permute.xlu0 %732
        %736 = vset.pattern.permute.xlu0 0
        %737 = vperm.xlu0 %736, %v389
        %v738 = vpop.permute.xlu0 %737
        %741 = vset.pattern.permute.xlu0 0
        %742 = vperm.xlu0 %741, %v390
        %v743 = vpop.permute.xlu0 %742
        %746 = vset.pattern.permute.xlu0 0
        %747 = vperm.xlu0 %746, %v391
        %v748 = vpop.permute.xlu0 %747
        %751 = vset.pattern.permute.xlu0 0
        %752 = vperm.xlu0 %751, %v392
        %v753 = vpop.permute.xlu0 %752
        %756 = vset.pattern.permute.xlu0 0
        %757 = vperm.xlu0 %756, %v393
        %v758 = vpop.permute.xlu0 %757
        %761 = vset.pattern.permute.xlu0 0
        %762 = vperm.xlu0 %761, %v394
        %v763 = vpop.permute.xlu0 %762
        %766 = vset.pattern.permute.xlu0 0
        %767 = vperm.xlu0 %766, %v395
        %v768 = vpop.permute.xlu0 %767
        %771 = vset.pattern.permute.xlu0 0
        %772 = vperm.xlu0 %771, %v396
        %v773 = vpop.permute.xlu0 %772
        %776 = vset.pattern.permute.xlu0 0
        %777 = vperm.xlu0 %776, %v397
        %v778 = vpop.permute.xlu0 %777
        %781 = vset.pattern.permute.xlu0 0
        %782 = vperm.xlu0 %781, %v398
        %v783 = vpop.permute.xlu0 %782
        %786 = vset.pattern.permute.xlu0 0
        %787 = vperm.xlu0 %786, %v399
        %v788 = vpop.permute.xlu0 %787
        %791 = vset.pattern.permute.xlu0 0
        %792 = vperm.xlu0 %791, %v400
        %v793 = vpop.permute.xlu0 %792
        %796 = vset.pattern.permute.xlu0 0
        %797 = vperm.xlu0 %796, %v401
        %v798 = vpop.permute.xlu0 %797
        %801 = vset.pattern.permute.xlu0 0
        %802 = vperm.xlu0 %801, %v402
        %v803 = vpop.permute.xlu0 %802
        %806 = vset.pattern.permute.xlu0 0
        %807 = vperm.xlu0 %806, %v403
        %v808 = vpop.permute.xlu0 %807
        %811 = vset.pattern.permute.xlu0 0
        %812 = vperm.xlu0 %811, %v404
        %v813 = vpop.permute.xlu0 %812
        %816 = vset.pattern.permute.xlu0 0
        %817 = vperm.xlu0 %816, %v405
        %v818 = vpop.permute.xlu0 %817
        %821 = vset.pattern.permute.xlu0 0
        %822 = vperm.xlu0 %821, %v406
        %v823 = vpop.permute.xlu0 %822
        %826 = vset.pattern.permute.xlu0 0
        %827 = vperm.xlu0 %826, %v407
        %v828 = vpop.permute.xlu0 %827
        %831 = vset.pattern.permute.xlu0 0
        %832 = vperm.xlu0 %831, %v408
        %v833 = vpop.permute.xlu0 %832
        %836 = vset.pattern.permute.xlu0 0
        %837 = vperm.xlu0 %836, %v409
        %v838 = vpop.permute.xlu0 %837
        %841 = vset.pattern.permute.xlu0 0
        %842 = vperm.xlu0 %841, %v410
        %v843 = vpop.permute.xlu0 %842
        %846 = vset.pattern.permute.xlu0 0
        %847 = vperm.xlu0 %846, %v411
        %v848 = vpop.permute.xlu0 %847
        %851 = vset.pattern.permute.xlu0 0
        %852 = vperm.xlu0 %851, %v412
        %v853 = vpop.permute.xlu0 %852
        %856 = vset.pattern.permute.xlu0 0
        %857 = vperm.xlu0 %856, %v413
        %v858 = vpop.permute.xlu0 %857
        %861 = vset.pattern.permute.xlu0 0
        %862 = vperm.xlu0 %861, %v414
        %v863 = vpop.permute.xlu0 %862
        %866 = vset.pattern.permute.xlu0 0
        %867 = vperm.xlu0 %866, %v415
        %v868 = vpop.permute.xlu0 %867
        %871 = vset.pattern.permute.xlu0 0
        %872 = vperm.xlu0 %871, %v416
        %v873 = vpop.permute.xlu0 %872
        %876 = vset.pattern.permute.xlu0 0
        %877 = vperm.xlu0 %876, %v417
        %v878 = vpop.permute.xlu0 %877
        %881 = vset.pattern.permute.xlu0 0
        %882 = vperm.xlu0 %881, %v418
        %v883 = vpop.permute.xlu0 %882
        %886 = vset.pattern.permute.xlu0 0
        %887 = vperm.xlu0 %886, %v419
        %v888 = vpop.permute.xlu0 %887
        %891 = vset.pattern.permute.xlu0 0
        %892 = vperm.xlu0 %891, %v420
        %v893 = vpop.permute.xlu0 %892
        %896 = vset.pattern.permute.xlu0 0
        %897 = vperm.xlu0 %896, %v421
        %v898 = vpop.permute.xlu0 %897
        %901 = vset.pattern.permute.xlu0 0
        %902 = vperm.xlu0 %901, %v422
        %v903 = vpop.permute.xlu0 %902
        %906 = vset.pattern.permute.xlu0 0
        %907 = vperm.xlu0 %906, %v423
        %v908 = vpop.permute.xlu0 %907
        %911 = vset.pattern.permute.xlu0 0
        %912 = vperm.xlu0 %911, %v424
        %v913 = vpop.permute.xlu0 %912
        %916 = vset.pattern.permute.xlu0 0
        %917 = vperm.xlu0 %916, %v425
        %v918 = vpop.permute.xlu0 %917
        %921 = vset.pattern.permute.xlu0 0
        %922 = vperm.xlu0 %921, %v426
        %v923 = vpop.permute.xlu0 %922
        %926 = vset.pattern.permute.xlu0 0
        %927 = vperm.xlu0 %926, %v427
        %v928 = vpop.permute.xlu0 %927
        %931 = vset.pattern.permute.xlu0 0
        %932 = vperm.xlu0 %931, %v428
        %v933 = vpop.permute.xlu0 %932
        %936 = vset.pattern.permute.xlu0 0
        %937 = vperm.xlu0 %936, %v429
        %v938 = vpop.permute.xlu0 %937
        %941 = vset.pattern.permute.xlu0 0
        %942 = vperm.xlu0 %941, %v430
        %v943 = vpop.permute.xlu0 %942
        %946 = vset.pattern.permute.xlu0 0
        %947 = vperm.xlu0 %946, %v431
        %v948 = vpop.permute.xlu0 %947
        %951 = vset.pattern.permute.xlu0 0
        %952 = vperm.xlu0 %951, %v432
        %v953 = vpop.permute.xlu0 %952
        %956 = vset.pattern.permute.xlu0 0
        %957 = vperm.xlu0 %956, %v433
        %v958 = vpop.permute.xlu0 %957
        %961 = vset.pattern.permute.xlu0 0
        %962 = vperm.xlu0 %961, %v434
        %v963 = vpop.permute.xlu0 %962
        %v965 = vlaneseq
        %v966 = vshrl.u32 %v965, 7
        %v967 = vsub.s32 0, %v966
        %v968 = vrot.slane %v443, %v967
        %v969 = vmul.f32 %v448, %v968
        %v970 = vmul.f32 %v453, %v968
        %v971 = vmul.f32 %v458, %v968
        %v972 = vmul.f32 %v463, %v968
        %v973 = vmul.f32 %v468, %v968
        %v974 = vmul.f32 %v473, %v968
        %v975 = vmul.f32 %v478, %v968
        %v976 = vmul.f32 %v483, %v968
        %v977 = vmul.f32 %v488, %v968
        %v978 = vmul.f32 %v493, %v968
        %v979 = vmul.f32 %v498, %v968
        %v980 = vmul.f32 %v503, %v968
        %v981 = vmul.f32 %v508, %v968
        %v982 = vmul.f32 %v513, %v968
        %v983 = vmul.f32 %v518, %v968
        %v984 = vmul.f32 %v523, %v968
        %v985 = vmul.f32 %v528, %v968
        %v986 = vmul.f32 %v533, %v968
        %v987 = vmul.f32 %v538, %v968
        %v988 = vmul.f32 %v543, %v968
        %v989 = vmul.f32 %v548, %v968
        %v990 = vmul.f32 %v553, %v968
        %v991 = vmul.f32 %v558, %v968
        %v992 = vmul.f32 %v563, %v968
        %v993 = vmul.f32 %v568, %v968
        %v994 = vmul.f32 %v573, %v968
        %v995 = vmul.f32 %v578, %v968
        %v996 = vmul.f32 %v583, %v968
        %v997 = vmul.f32 %v588, %v968
        %v998 = vmul.f32 %v593, %v968
        %v999 = vmul.f32 %v598, %v968
        %v1000 = vmul.f32 %v603, %v968
        %v1001 = vmul.f32 %v608, %v968
        %v1002 = vmul.f32 %v613, %v968
        %v1003 = vmul.f32 %v618, %v968
        %v1004 = vmul.f32 %v623, %v968
        %v1005 = vmul.f32 %v628, %v968
        %v1006 = vmul.f32 %v633, %v968
        %v1007 = vmul.f32 %v638, %v968
        %v1008 = vmul.f32 %v643, %v968
        %v1009 = vmul.f32 %v648, %v968
        %v1010 = vmul.f32 %v653, %v968
        %v1011 = vmul.f32 %v658, %v968
        %v1012 = vmul.f32 %v663, %v968
        %v1013 = vmul.f32 %v668, %v968
        %v1014 = vmul.f32 %v673, %v968
        %v1015 = vmul.f32 %v678, %v968
        %v1016 = vmul.f32 %v683, %v968
        %v1017 = vmul.f32 %v688, %v968
        %v1018 = vmul.f32 %v693, %v968
        %v1019 = vmul.f32 %v698, %v968
        %v1020 = vmul.f32 %v703, %v968
        %v1021 = vmul.f32 %v708, %v968
        %v1022 = vmul.f32 %v713, %v968
        %v1023 = vmul.f32 %v718, %v968
        %v1024 = vmul.f32 %v723, %v968
        %v1025 = vmul.f32 %v728, %v968
        %v1026 = vmul.f32 %v733, %v968
        %v1027 = vmul.f32 %v738, %v968
        %v1028 = vmul.f32 %v743, %v968
        %v1029 = vmul.f32 %v748, %v968
        %v1030 = vmul.f32 %v753, %v968
        %v1031 = vmul.f32 %v758, %v968
        %v1032 = vmul.f32 %v763, %v968
        %v1033 = vmul.f32 %v768, %v968
        %v1034 = vmul.f32 %v773, %v968
        %v1035 = vmul.f32 %v778, %v968
        %v1036 = vmul.f32 %v783, %v968
        %v1037 = vmul.f32 %v788, %v968
        %v1038 = vmul.f32 %v793, %v968
        %v1039 = vmul.f32 %v798, %v968
        %v1040 = vmul.f32 %v803, %v968
        %v1041 = vmul.f32 %v808, %v968
        %v1042 = vmul.f32 %v813, %v968
        %v1043 = vmul.f32 %v818, %v968
        %v1044 = vmul.f32 %v823, %v968
        %v1045 = vmul.f32 %v828, %v968
        %v1046 = vmul.f32 %v833, %v968
        %v1047 = vmul.f32 %v838, %v968
        %v1048 = vmul.f32 %v843, %v968
        %v1049 = vmul.f32 %v848, %v968
        %v1050 = vmul.f32 %v853, %v968
        %v1051 = vmul.f32 %v858, %v968
        %v1052 = vmul.f32 %v863, %v968
        %v1053 = vmul.f32 %v868, %v968
        %v1054 = vmul.f32 %v873, %v968
        %v1055 = vmul.f32 %v878, %v968
        %v1056 = vmul.f32 %v883, %v968
        %v1057 = vmul.f32 %v888, %v968
        %v1058 = vmul.f32 %v893, %v968
        %v1059 = vmul.f32 %v898, %v968
        %v1060 = vmul.f32 %v903, %v968
        %v1061 = vmul.f32 %v908, %v968
        %v1062 = vmul.f32 %v913, %v968
        %v1063 = vmul.f32 %v918, %v968
        %v1064 = vmul.f32 %v923, %v968
        %v1065 = vmul.f32 %v928, %v968
        %v1066 = vmul.f32 %v933, %v968
        %v1067 = vmul.f32 %v938, %v968
        %v1068 = vmul.f32 %v943, %v968
        %v1069 = vmul.f32 %v948, %v968
        %v1070 = vmul.f32 %v953, %v968
        %v1071 = vmul.f32 %v958, %v968
        %v1072 = vmul.f32 %v963, %v968
        %v1073 = vlaneseq
        %v1074 = vshrl.u32 %v1073, 7
        %v1075 = vsub.s32 1, %v1074
        %v1076 = vrot.slane %v443, %v1075
        %v1077 = vmul.f32 %v448, %v1076
        %v1078 = vmul.f32 %v453, %v1076
        %v1079 = vmul.f32 %v458, %v1076
        %v1080 = vmul.f32 %v463, %v1076
        %v1081 = vmul.f32 %v468, %v1076
        %v1082 = vmul.f32 %v473, %v1076
        %v1083 = vmul.f32 %v478, %v1076
        %v1084 = vmul.f32 %v483, %v1076
        %v1085 = vmul.f32 %v488, %v1076
        %v1086 = vmul.f32 %v493, %v1076
        %v1087 = vmul.f32 %v498, %v1076
        %v1088 = vmul.f32 %v503, %v1076
        %v1089 = vmul.f32 %v508, %v1076
        %v1090 = vmul.f32 %v513, %v1076
        %v1091 = vmul.f32 %v518, %v1076
        %v1092 = vmul.f32 %v523, %v1076
        %v1093 = vmul.f32 %v528, %v1076
        %v1094 = vmul.f32 %v533, %v1076
        %v1095 = vmul.f32 %v538, %v1076
        %v1096 = vmul.f32 %v543, %v1076
        %v1097 = vmul.f32 %v548, %v1076
        %v1098 = vmul.f32 %v553, %v1076
        %v1099 = vmul.f32 %v558, %v1076
        %v1100 = vmul.f32 %v563, %v1076
        %v1101 = vmul.f32 %v568, %v1076
        %v1102 = vmul.f32 %v573, %v1076
        %v1103 = vmul.f32 %v578, %v1076
        %v1104 = vmul.f32 %v583, %v1076
        %v1105 = vmul.f32 %v588, %v1076
        %v1106 = vmul.f32 %v593, %v1076
        %v1107 = vmul.f32 %v598, %v1076
        %v1108 = vmul.f32 %v603, %v1076
        %v1109 = vmul.f32 %v608, %v1076
        %v1110 = vmul.f32 %v613, %v1076
        %v1111 = vmul.f32 %v618, %v1076
        %v1112 = vmul.f32 %v623, %v1076
        %v1113 = vmul.f32 %v628, %v1076
        %v1114 = vmul.f32 %v633, %v1076
        %v1115 = vmul.f32 %v638, %v1076
        %v1116 = vmul.f32 %v643, %v1076
        %v1117 = vmul.f32 %v648, %v1076
        %v1118 = vmul.f32 %v653, %v1076
        %v1119 = vmul.f32 %v658, %v1076
        %v1120 = vmul.f32 %v663, %v1076
        %v1121 = vmul.f32 %v668, %v1076
        %v1122 = vmul.f32 %v673, %v1076
        %v1123 = vmul.f32 %v678, %v1076
        %v1124 = vmul.f32 %v683, %v1076
        %v1125 = vmul.f32 %v688, %v1076
        %v1126 = vmul.f32 %v693, %v1076
        %v1127 = vmul.f32 %v698, %v1076
        %v1128 = vmul.f32 %v703, %v1076
        %v1129 = vmul.f32 %v708, %v1076
        %v1130 = vmul.f32 %v713, %v1076
        %v1131 = vmul.f32 %v718, %v1076
        %v1132 = vmul.f32 %v723, %v1076
        %v1133 = vmul.f32 %v728, %v1076
        %v1134 = vmul.f32 %v733, %v1076
        %v1135 = vmul.f32 %v738, %v1076
        %v1136 = vmul.f32 %v743, %v1076
        %v1137 = vmul.f32 %v748, %v1076
        %v1138 = vmul.f32 %v753, %v1076
        %v1139 = vmul.f32 %v758, %v1076
        %v1140 = vmul.f32 %v763, %v1076
        %v1141 = vmul.f32 %v768, %v1076
        %v1142 = vmul.f32 %v773, %v1076
        %v1143 = vmul.f32 %v778, %v1076
        %v1144 = vmul.f32 %v783, %v1076
        %v1145 = vmul.f32 %v788, %v1076
        %v1146 = vmul.f32 %v793, %v1076
        %v1147 = vmul.f32 %v798, %v1076
        %v1148 = vmul.f32 %v803, %v1076
        %v1149 = vmul.f32 %v808, %v1076
        %v1150 = vmul.f32 %v813, %v1076
        %v1151 = vmul.f32 %v818, %v1076
        %v1152 = vmul.f32 %v823, %v1076
        %v1153 = vmul.f32 %v828, %v1076
        %v1154 = vmul.f32 %v833, %v1076
        %v1155 = vmul.f32 %v838, %v1076
        %v1156 = vmul.f32 %v843, %v1076
        %v1157 = vmul.f32 %v848, %v1076
        %v1158 = vmul.f32 %v853, %v1076
        %v1159 = vmul.f32 %v858, %v1076
        %v1160 = vmul.f32 %v863, %v1076
        %v1161 = vmul.f32 %v868, %v1076
        %v1162 = vmul.f32 %v873, %v1076
        %v1163 = vmul.f32 %v878, %v1076
        %v1164 = vmul.f32 %v883, %v1076
        %v1165 = vmul.f32 %v888, %v1076
        %v1166 = vmul.f32 %v893, %v1076
        %v1167 = vmul.f32 %v898, %v1076
        %v1168 = vmul.f32 %v903, %v1076
        %v1169 = vmul.f32 %v908, %v1076
        %v1170 = vmul.f32 %v913, %v1076
        %v1171 = vmul.f32 %v918, %v1076
        %v1172 = vmul.f32 %v923, %v1076
        %v1173 = vmul.f32 %v928, %v1076
        %v1174 = vmul.f32 %v933, %v1076
        %v1175 = vmul.f32 %v938, %v1076
        %v1176 = vmul.f32 %v943, %v1076
        %v1177 = vmul.f32 %v948, %v1076
        %v1178 = vmul.f32 %v953, %v1076
        %v1179 = vmul.f32 %v958, %v1076
        %v1180 = vmul.f32 %v963, %v1076
        %vm1285 = vcmask 1046528
        %v1286 = vrot.slane %v1077, 1
        %v1287 = vrot.slane %v1078, 1
        %v1288 = vsel %vm1285, %v1286, %v1287
        %v1289 = vrot.slane %v1079, 1
        %v1290 = vsel %vm1285, %v1287, %v1289
        %v1291 = vrot.slane %v1080, 1
        %v1292 = vsel %vm1285, %v1289, %v1291
        %v1293 = vrot.slane %v1081, 1
        %v1294 = vrot.slane %v1082, 1
        %v1295 = vsel %vm1285, %v1293, %v1294
        %v1296 = vrot.slane %v1083, 1
        %v1297 = vsel %vm1285, %v1294, %v1296
        %v1298 = vrot.slane %v1084, 1
        %v1299 = vsel %vm1285, %v1296, %v1298
        %v1300 = vrot.slane %v1085, 1
        %v1301 = vrot.slane %v1086, 1
        %v1302 = vsel %vm1285, %v1300, %v1301
        %v1303 = vrot.slane %v1087, 1
        %v1304 = vsel %vm1285, %v1301, %v1303
        %v1305 = vrot.slane %v1088, 1
        %v1306 = vsel %vm1285, %v1303, %v1305
        %v1307 = vrot.slane %v1089, 1
        %v1308 = vrot.slane %v1090, 1
        %v1309 = vsel %vm1285, %v1307, %v1308
        %v1310 = vrot.slane %v1091, 1
        %v1311 = vsel %vm1285, %v1308, %v1310
        %v1312 = vrot.slane %v1092, 1
        %v1313 = vsel %vm1285, %v1310, %v1312
        %v1314 = vrot.slane %v1093, 1
        %v1315 = vrot.slane %v1094, 1
        %v1316 = vsel %vm1285, %v1314, %v1315
        %v1317 = vrot.slane %v1095, 1
        %v1318 = vsel %vm1285, %v1315, %v1317
        %v1319 = vrot.slane %v1096, 1
        %v1320 = vsel %vm1285, %v1317, %v1319
        %v1321 = vrot.slane %v1097, 1
        %v1322 = vrot.slane %v1098, 1
        %v1323 = vsel %vm1285, %v1321, %v1322
        %v1324 = vrot.slane %v1099, 1
        %v1325 = vsel %vm1285, %v1322, %v1324
        %v1326 = vrot.slane %v1100, 1
        %v1327 = vsel %vm1285, %v1324, %v1326
        %v1328 = vrot.slane %v1101, 1
        %v1329 = vrot.slane %v1102, 1
        %v1330 = vsel %vm1285, %v1328, %v1329
        %v1331 = vrot.slane %v1103, 1
        %v1332 = vsel %vm1285, %v1329, %v1331
        %v1333 = vrot.slane %v1104, 1
        %v1334 = vsel %vm1285, %v1331, %v1333
        %v1335 = vrot.slane %v1105, 1
        %v1336 = vrot.slane %v1106, 1
        %v1337 = vsel %vm1285, %v1335, %v1336
        %v1338 = vrot.slane %v1107, 1
        %v1339 = vsel %vm1285, %v1336, %v1338
        %v1340 = vrot.slane %v1108, 1
        %v1341 = vsel %vm1285, %v1338, %v1340
        %v1342 = vrot.slane %v1109, 1
        %v1343 = vrot.slane %v1110, 1
        %v1344 = vsel %vm1285, %v1342, %v1343
        %v1345 = vrot.slane %v1111, 1
        %v1346 = vsel %vm1285, %v1343, %v1345
        %v1347 = vrot.slane %v1112, 1
        %v1348 = vsel %vm1285, %v1345, %v1347
        %v1349 = vrot.slane %v1113, 1
        %v1350 = vrot.slane %v1114, 1
        %v1351 = vsel %vm1285, %v1349, %v1350
        %v1352 = vrot.slane %v1115, 1
        %v1353 = vsel %vm1285, %v1350, %v1352
        %v1354 = vrot.slane %v1116, 1
        %v1355 = vsel %vm1285, %v1352, %v1354
        %v1356 = vrot.slane %v1117, 1
        %v1357 = vrot.slane %v1118, 1
        %v1358 = vsel %vm1285, %v1356, %v1357
        %v1359 = vrot.slane %v1119, 1
        %v1360 = vsel %vm1285, %v1357, %v1359
        %v1361 = vrot.slane %v1120, 1
        %v1362 = vsel %vm1285, %v1359, %v1361
        %v1363 = vrot.slane %v1121, 1
        %v1364 = vrot.slane %v1122, 1
        %v1365 = vsel %vm1285, %v1363, %v1364
        %v1366 = vrot.slane %v1123, 1
        %v1367 = vsel %vm1285, %v1364, %v1366
        %v1368 = vrot.slane %v1124, 1
        %v1369 = vsel %vm1285, %v1366, %v1368
        %v1370 = vrot.slane %v1125, 1
        %v1371 = vrot.slane %v1126, 1
        %v1372 = vsel %vm1285, %v1370, %v1371
        %v1373 = vrot.slane %v1127, 1
        %v1374 = vsel %vm1285, %v1371, %v1373
        %v1375 = vrot.slane %v1128, 1
        %v1376 = vsel %vm1285, %v1373, %v1375
        %v1377 = vrot.slane %v1129, 1
        %v1378 = vrot.slane %v1130, 1
        %v1379 = vsel %vm1285, %v1377, %v1378
        %v1380 = vrot.slane %v1131, 1
        %v1381 = vsel %vm1285, %v1378, %v1380
        %v1382 = vrot.slane %v1132, 1
        %v1383 = vsel %vm1285, %v1380, %v1382
        %v1384 = vrot.slane %v1133, 1
        %v1385 = vrot.slane %v1134, 1
        %v1386 = vsel %vm1285, %v1384, %v1385
        %v1387 = vrot.slane %v1135, 1
        %v1388 = vsel %vm1285, %v1385, %v1387
        %v1389 = vrot.slane %v1136, 1
        %v1390 = vsel %vm1285, %v1387, %v1389
        %v1391 = vrot.slane %v1137, 1
        %v1392 = vrot.slane %v1138, 1
        %v1393 = vsel %vm1285, %v1391, %v1392
        %v1394 = vrot.slane %v1139, 1
        %v1395 = vsel %vm1285, %v1392, %v1394
        %v1396 = vrot.slane %v1140, 1
        %v1397 = vsel %vm1285, %v1394, %v1396
        %v1398 = vrot.slane %v1141, 1
        %v1399 = vrot.slane %v1142, 1
        %v1400 = vsel %vm1285, %v1398, %v1399
        %v1401 = vrot.slane %v1143, 1
        %v1402 = vsel %vm1285, %v1399, %v1401
        %v1403 = vrot.slane %v1144, 1
        %v1404 = vsel %vm1285, %v1401, %v1403
        %v1405 = vrot.slane %v1145, 1
        %v1406 = vrot.slane %v1146, 1
        %v1407 = vsel %vm1285, %v1405, %v1406
        %v1408 = vrot.slane %v1147, 1
        %v1409 = vsel %vm1285, %v1406, %v1408
        %v1410 = vrot.slane %v1148, 1
        %v1411 = vsel %vm1285, %v1408, %v1410
        %v1412 = vrot.slane %v1149, 1
        %v1413 = vrot.slane %v1150, 1
        %v1414 = vsel %vm1285, %v1412, %v1413
        %v1415 = vrot.slane %v1151, 1
        %v1416 = vsel %vm1285, %v1413, %v1415
        %v1417 = vrot.slane %v1152, 1
        %v1418 = vsel %vm1285, %v1415, %v1417
        %v1419 = vrot.slane %v1153, 1
        %v1420 = vrot.slane %v1154, 1
        %v1421 = vsel %vm1285, %v1419, %v1420
        %v1422 = vrot.slane %v1155, 1
        %v1423 = vsel %vm1285, %v1420, %v1422
        %v1424 = vrot.slane %v1156, 1
        %v1425 = vsel %vm1285, %v1422, %v1424
        %v1426 = vrot.slane %v1157, 1
        %v1427 = vrot.slane %v1158, 1
        %v1428 = vsel %vm1285, %v1426, %v1427
        %v1429 = vrot.slane %v1159, 1
        %v1430 = vsel %vm1285, %v1427, %v1429
        %v1431 = vrot.slane %v1160, 1
        %v1432 = vsel %vm1285, %v1429, %v1431
        %v1433 = vrot.slane %v1161, 1
        %v1434 = vrot.slane %v1162, 1
        %v1435 = vsel %vm1285, %v1433, %v1434
        %v1436 = vrot.slane %v1163, 1
        %v1437 = vsel %vm1285, %v1434, %v1436
        %v1438 = vrot.slane %v1164, 1
        %v1439 = vsel %vm1285, %v1436, %v1438
        %v1440 = vrot.slane %v1165, 1
        %v1441 = vrot.slane %v1166, 1
        %v1442 = vsel %vm1285, %v1440, %v1441
        %v1443 = vrot.slane %v1167, 1
        %v1444 = vsel %vm1285, %v1441, %v1443
        %v1445 = vrot.slane %v1168, 1
        %v1446 = vsel %vm1285, %v1443, %v1445
        %v1447 = vrot.slane %v1169, 1
        %v1448 = vrot.slane %v1170, 1
        %v1449 = vsel %vm1285, %v1447, %v1448
        %v1450 = vrot.slane %v1171, 1
        %v1451 = vsel %vm1285, %v1448, %v1450
        %v1452 = vrot.slane %v1172, 1
        %v1453 = vsel %vm1285, %v1450, %v1452
        %v1454 = vrot.slane %v1173, 1
        %v1455 = vrot.slane %v1174, 1
        %v1456 = vsel %vm1285, %v1454, %v1455
        %v1457 = vrot.slane %v1175, 1
        %v1458 = vsel %vm1285, %v1455, %v1457
        %v1459 = vrot.slane %v1176, 1
        %v1460 = vsel %vm1285, %v1457, %v1459
        %v1461 = vrot.slane %v1177, 1
        %v1462 = vrot.slane %v1178, 1
        %v1463 = vsel %vm1285, %v1461, %v1462
        %v1464 = vrot.slane %v1179, 1
        %v1465 = vsel %vm1285, %v1462, %v1464
        %v1466 = vrot.slane %v1180, 1
        %v1467 = vsel %vm1285, %v1464, %v1466
        %v1572 = vadd.f32 %v969, %v1288
        %v1573 = vadd.f32 %v970, %v1290
        %v1574 = vadd.f32 %v971, %v1292
        %v1575 = vadd.f32 %v972, %v1291
        %v1576 = vadd.f32 %v973, %v1295
        %v1577 = vadd.f32 %v974, %v1297
        %v1578 = vadd.f32 %v975, %v1299
        %v1579 = vadd.f32 %v976, %v1298
        %v1580 = vadd.f32 %v977, %v1302
        %v1581 = vadd.f32 %v978, %v1304
        %v1582 = vadd.f32 %v979, %v1306
        %v1583 = vadd.f32 %v980, %v1305
        %v1584 = vadd.f32 %v981, %v1309
        %v1585 = vadd.f32 %v982, %v1311
        %v1586 = vadd.f32 %v983, %v1313
        %v1587 = vadd.f32 %v984, %v1312
        %v1588 = vadd.f32 %v985, %v1316
        %v1589 = vadd.f32 %v986, %v1318
        %v1590 = vadd.f32 %v987, %v1320
        %v1591 = vadd.f32 %v988, %v1319
        %v1592 = vadd.f32 %v989, %v1323
        %v1593 = vadd.f32 %v990, %v1325
        %v1594 = vadd.f32 %v991, %v1327
        %v1595 = vadd.f32 %v992, %v1326
        %v1596 = vadd.f32 %v993, %v1330
        %v1597 = vadd.f32 %v994, %v1332
        %v1598 = vadd.f32 %v995, %v1334
        %v1599 = vadd.f32 %v996, %v1333
        %v1600 = vadd.f32 %v997, %v1337
        %v1601 = vadd.f32 %v998, %v1339
        %v1602 = vadd.f32 %v999, %v1341
        %v1603 = vadd.f32 %v1000, %v1340
        %v1604 = vadd.f32 %v1001, %v1344
        %v1605 = vadd.f32 %v1002, %v1346
        %v1606 = vadd.f32 %v1003, %v1348
        %v1607 = vadd.f32 %v1004, %v1347
        %v1608 = vadd.f32 %v1005, %v1351
        %v1609 = vadd.f32 %v1006, %v1353
        %v1610 = vadd.f32 %v1007, %v1355
        %v1611 = vadd.f32 %v1008, %v1354
        %v1612 = vadd.f32 %v1009, %v1358
        %v1613 = vadd.f32 %v1010, %v1360
        %v1614 = vadd.f32 %v1011, %v1362
        %v1615 = vadd.f32 %v1012, %v1361
        %v1616 = vadd.f32 %v1013, %v1365
        %v1617 = vadd.f32 %v1014, %v1367
        %v1618 = vadd.f32 %v1015, %v1369
        %v1619 = vadd.f32 %v1016, %v1368
        %v1620 = vadd.f32 %v1017, %v1372
        %v1621 = vadd.f32 %v1018, %v1374
        %v1622 = vadd.f32 %v1019, %v1376
        %v1623 = vadd.f32 %v1020, %v1375
        %v1624 = vadd.f32 %v1021, %v1379
        %v1625 = vadd.f32 %v1022, %v1381
        %v1626 = vadd.f32 %v1023, %v1383
        %v1627 = vadd.f32 %v1024, %v1382
        %v1628 = vadd.f32 %v1025, %v1386
        %v1629 = vadd.f32 %v1026, %v1388
        %v1630 = vadd.f32 %v1027, %v1390
        %v1631 = vadd.f32 %v1028, %v1389
        %v1632 = vadd.f32 %v1029, %v1393
        %v1633 = vadd.f32 %v1030, %v1395
        %v1634 = vadd.f32 %v1031, %v1397
        %v1635 = vadd.f32 %v1032, %v1396
        %v1636 = vadd.f32 %v1033, %v1400
        %v1637 = vadd.f32 %v1034, %v1402
        %v1638 = vadd.f32 %v1035, %v1404
        %v1639 = vadd.f32 %v1036, %v1403
        %v1640 = vadd.f32 %v1037, %v1407
        %v1641 = vadd.f32 %v1038, %v1409
        %v1642 = vadd.f32 %v1039, %v1411
        %v1643 = vadd.f32 %v1040, %v1410
        %v1644 = vadd.f32 %v1041, %v1414
        %v1645 = vadd.f32 %v1042, %v1416
        %v1646 = vadd.f32 %v1043, %v1418
        %v1647 = vadd.f32 %v1044, %v1417
        %v1648 = vadd.f32 %v1045, %v1421
        %v1649 = vadd.f32 %v1046, %v1423
        %v1650 = vadd.f32 %v1047, %v1425
        %v1651 = vadd.f32 %v1048, %v1424
        %v1652 = vadd.f32 %v1049, %v1428
        %v1653 = vadd.f32 %v1050, %v1430
        %v1654 = vadd.f32 %v1051, %v1432
        %v1655 = vadd.f32 %v1052, %v1431
        %v1656 = vadd.f32 %v1053, %v1435
        %v1657 = vadd.f32 %v1054, %v1437
        %v1658 = vadd.f32 %v1055, %v1439
        %v1659 = vadd.f32 %v1056, %v1438
        %v1660 = vadd.f32 %v1057, %v1442
        %v1661 = vadd.f32 %v1058, %v1444
        %v1662 = vadd.f32 %v1059, %v1446
        %v1663 = vadd.f32 %v1060, %v1445
        %v1664 = vadd.f32 %v1061, %v1449
        %v1665 = vadd.f32 %v1062, %v1451
        %v1666 = vadd.f32 %v1063, %v1453
        %v1667 = vadd.f32 %v1064, %v1452
        %v1668 = vadd.f32 %v1065, %v1456
        %v1669 = vadd.f32 %v1066, %v1458
        %v1670 = vadd.f32 %v1067, %v1460
        %v1671 = vadd.f32 %v1068, %v1459
        %v1672 = vadd.f32 %v1069, %v1463
        %v1673 = vadd.f32 %v1070, %v1465
        %v1674 = vadd.f32 %v1071, %v1467
        %v1675 = vadd.f32 %v1072, %v1466
        %v1676 = vlaneseq
        %v1677 = vshrl.u32 %v1676, 7
        %v1678 = vsub.s32 2, %v1677
        %v1679 = vrot.slane %v443, %v1678
        %v1680 = vmul.f32 %v448, %v1679
        %v1681 = vmul.f32 %v453, %v1679
        %v1682 = vmul.f32 %v458, %v1679
        %v1683 = vmul.f32 %v463, %v1679
        %v1684 = vmul.f32 %v468, %v1679
        %v1685 = vmul.f32 %v473, %v1679
        %v1686 = vmul.f32 %v478, %v1679
        %v1687 = vmul.f32 %v483, %v1679
        %v1688 = vmul.f32 %v488, %v1679
        %v1689 = vmul.f32 %v493, %v1679
        %v1690 = vmul.f32 %v498, %v1679
        %v1691 = vmul.f32 %v503, %v1679
        %v1692 = vmul.f32 %v508, %v1679
        %v1693 = vmul.f32 %v513, %v1679
        %v1694 = vmul.f32 %v518, %v1679
        %v1695 = vmul.f32 %v523, %v1679
        %v1696 = vmul.f32 %v528, %v1679
        %v1697 = vmul.f32 %v533, %v1679
        %v1698 = vmul.f32 %v538, %v1679
        %v1699 = vmul.f32 %v543, %v1679
        %v1700 = vmul.f32 %v548, %v1679
        %v1701 = vmul.f32 %v553, %v1679
        %v1702 = vmul.f32 %v558, %v1679
        %v1703 = vmul.f32 %v563, %v1679
        %v1704 = vmul.f32 %v568, %v1679
        %v1705 = vmul.f32 %v573, %v1679
        %v1706 = vmul.f32 %v578, %v1679
        %v1707 = vmul.f32 %v583, %v1679
        %v1708 = vmul.f32 %v588, %v1679
        %v1709 = vmul.f32 %v593, %v1679
        %v1710 = vmul.f32 %v598, %v1679
        %v1711 = vmul.f32 %v603, %v1679
        %v1712 = vmul.f32 %v608, %v1679
        %v1713 = vmul.f32 %v613, %v1679
        %v1714 = vmul.f32 %v618, %v1679
        %v1715 = vmul.f32 %v623, %v1679
        %v1716 = vmul.f32 %v628, %v1679
        %v1717 = vmul.f32 %v633, %v1679
        %v1718 = vmul.f32 %v638, %v1679
        %v1719 = vmul.f32 %v643, %v1679
        %v1720 = vmul.f32 %v648, %v1679
        %v1721 = vmul.f32 %v653, %v1679
        %v1722 = vmul.f32 %v658, %v1679
        %v1723 = vmul.f32 %v663, %v1679
        %v1724 = vmul.f32 %v668, %v1679
        %v1725 = vmul.f32 %v673, %v1679
        %v1726 = vmul.f32 %v678, %v1679
        %v1727 = vmul.f32 %v683, %v1679
        %v1728 = vmul.f32 %v688, %v1679
        %v1729 = vmul.f32 %v693, %v1679
        %v1730 = vmul.f32 %v698, %v1679
        %v1731 = vmul.f32 %v703, %v1679
        %v1732 = vmul.f32 %v708, %v1679
        %v1733 = vmul.f32 %v713, %v1679
        %v1734 = vmul.f32 %v718, %v1679
        %v1735 = vmul.f32 %v723, %v1679
        %v1736 = vmul.f32 %v728, %v1679
        %v1737 = vmul.f32 %v733, %v1679
        %v1738 = vmul.f32 %v738, %v1679
        %v1739 = vmul.f32 %v743, %v1679
        %v1740 = vmul.f32 %v748, %v1679
        %v1741 = vmul.f32 %v753, %v1679
        %v1742 = vmul.f32 %v758, %v1679
        %v1743 = vmul.f32 %v763, %v1679
        %v1744 = vmul.f32 %v768, %v1679
        %v1745 = vmul.f32 %v773, %v1679
        %v1746 = vmul.f32 %v778, %v1679
        %v1747 = vmul.f32 %v783, %v1679
        %v1748 = vmul.f32 %v788, %v1679
        %v1749 = vmul.f32 %v793, %v1679
        %v1750 = vmul.f32 %v798, %v1679
        %v1751 = vmul.f32 %v803, %v1679
        %v1752 = vmul.f32 %v808, %v1679
        %v1753 = vmul.f32 %v813, %v1679
        %v1754 = vmul.f32 %v818, %v1679
        %v1755 = vmul.f32 %v823, %v1679
        %v1756 = vmul.f32 %v828, %v1679
        %v1757 = vmul.f32 %v833, %v1679
        %v1758 = vmul.f32 %v838, %v1679
        %v1759 = vmul.f32 %v843, %v1679
        %v1760 = vmul.f32 %v848, %v1679
        %v1761 = vmul.f32 %v853, %v1679
        %v1762 = vmul.f32 %v858, %v1679
        %v1763 = vmul.f32 %v863, %v1679
        %v1764 = vmul.f32 %v868, %v1679
        %v1765 = vmul.f32 %v873, %v1679
        %v1766 = vmul.f32 %v878, %v1679
        %v1767 = vmul.f32 %v883, %v1679
        %v1768 = vmul.f32 %v888, %v1679
        %v1769 = vmul.f32 %v893, %v1679
        %v1770 = vmul.f32 %v898, %v1679
        %v1771 = vmul.f32 %v903, %v1679
        %v1772 = vmul.f32 %v908, %v1679
        %v1773 = vmul.f32 %v913, %v1679
        %v1774 = vmul.f32 %v918, %v1679
        %v1775 = vmul.f32 %v923, %v1679
        %v1776 = vmul.f32 %v928, %v1679
        %v1777 = vmul.f32 %v933, %v1679
        %v1778 = vmul.f32 %v938, %v1679
        %v1779 = vmul.f32 %v943, %v1679
        %v1780 = vmul.f32 %v948, %v1679
        %v1781 = vmul.f32 %v953, %v1679
        %v1782 = vmul.f32 %v958, %v1679
        %v1783 = vmul.f32 %v963, %v1679
        %vm1888 = vcmask 1045504
        %v1889 = vrot.slane %v1680, 2
        %v1890 = vrot.slane %v1681, 2
        %v1891 = vsel %vm1888, %v1889, %v1890
        %v1892 = vrot.slane %v1682, 2
        %v1893 = vsel %vm1888, %v1890, %v1892
        %v1894 = vrot.slane %v1683, 2
        %v1895 = vsel %vm1888, %v1892, %v1894
        %v1896 = vrot.slane %v1684, 2
        %v1897 = vrot.slane %v1685, 2
        %v1898 = vsel %vm1888, %v1896, %v1897
        %v1899 = vrot.slane %v1686, 2
        %v1900 = vsel %vm1888, %v1897, %v1899
        %v1901 = vrot.slane %v1687, 2
        %v1902 = vsel %vm1888, %v1899, %v1901
        %v1903 = vrot.slane %v1688, 2
        %v1904 = vrot.slane %v1689, 2
        %v1905 = vsel %vm1888, %v1903, %v1904
        %v1906 = vrot.slane %v1690, 2
        %v1907 = vsel %vm1888, %v1904, %v1906
        %v1908 = vrot.slane %v1691, 2
        %v1909 = vsel %vm1888, %v1906, %v1908
        %v1910 = vrot.slane %v1692, 2
        %v1911 = vrot.slane %v1693, 2
        %v1912 = vsel %vm1888, %v1910, %v1911
        %v1913 = vrot.slane %v1694, 2
        %v1914 = vsel %vm1888, %v1911, %v1913
        %v1915 = vrot.slane %v1695, 2
        %v1916 = vsel %vm1888, %v1913, %v1915
        %v1917 = vrot.slane %v1696, 2
        %v1918 = vrot.slane %v1697, 2
        %v1919 = vsel %vm1888, %v1917, %v1918
        %v1920 = vrot.slane %v1698, 2
        %v1921 = vsel %vm1888, %v1918, %v1920
        %v1922 = vrot.slane %v1699, 2
        %v1923 = vsel %vm1888, %v1920, %v1922
        %v1924 = vrot.slane %v1700, 2
        %v1925 = vrot.slane %v1701, 2
        %v1926 = vsel %vm1888, %v1924, %v1925
        %v1927 = vrot.slane %v1702, 2
        %v1928 = vsel %vm1888, %v1925, %v1927
        %v1929 = vrot.slane %v1703, 2
        %v1930 = vsel %vm1888, %v1927, %v1929
        %v1931 = vrot.slane %v1704, 2
        %v1932 = vrot.slane %v1705, 2
        %v1933 = vsel %vm1888, %v1931, %v1932
        %v1934 = vrot.slane %v1706, 2
        %v1935 = vsel %vm1888, %v1932, %v1934
        %v1936 = vrot.slane %v1707, 2
        %v1937 = vsel %vm1888, %v1934, %v1936
        %v1938 = vrot.slane %v1708, 2
        %v1939 = vrot.slane %v1709, 2
        %v1940 = vsel %vm1888, %v1938, %v1939
        %v1941 = vrot.slane %v1710, 2
        %v1942 = vsel %vm1888, %v1939, %v1941
        %v1943 = vrot.slane %v1711, 2
        %v1944 = vsel %vm1888, %v1941, %v1943
        %v1945 = vrot.slane %v1712, 2
        %v1946 = vrot.slane %v1713, 2
        %v1947 = vsel %vm1888, %v1945, %v1946
        %v1948 = vrot.slane %v1714, 2
        %v1949 = vsel %vm1888, %v1946, %v1948
        %v1950 = vrot.slane %v1715, 2
        %v1951 = vsel %vm1888, %v1948, %v1950
        %v1952 = vrot.slane %v1716, 2
        %v1953 = vrot.slane %v1717, 2
        %v1954 = vsel %vm1888, %v1952, %v1953
        %v1955 = vrot.slane %v1718, 2
        %v1956 = vsel %vm1888, %v1953, %v1955
        %v1957 = vrot.slane %v1719, 2
        %v1958 = vsel %vm1888, %v1955, %v1957
        %v1959 = vrot.slane %v1720, 2
        %v1960 = vrot.slane %v1721, 2
        %v1961 = vsel %vm1888, %v1959, %v1960
        %v1962 = vrot.slane %v1722, 2
        %v1963 = vsel %vm1888, %v1960, %v1962
        %v1964 = vrot.slane %v1723, 2
        %v1965 = vsel %vm1888, %v1962, %v1964
        %v1966 = vrot.slane %v1724, 2
        %v1967 = vrot.slane %v1725, 2
        %v1968 = vsel %vm1888, %v1966, %v1967
        %v1969 = vrot.slane %v1726, 2
        %v1970 = vsel %vm1888, %v1967, %v1969
        %v1971 = vrot.slane %v1727, 2
        %v1972 = vsel %vm1888, %v1969, %v1971
        %v1973 = vrot.slane %v1728, 2
        %v1974 = vrot.slane %v1729, 2
        %v1975 = vsel %vm1888, %v1973, %v1974
        %v1976 = vrot.slane %v1730, 2
        %v1977 = vsel %vm1888, %v1974, %v1976
        %v1978 = vrot.slane %v1731, 2
        %v1979 = vsel %vm1888, %v1976, %v1978
        %v1980 = vrot.slane %v1732, 2
        %v1981 = vrot.slane %v1733, 2
        %v1982 = vsel %vm1888, %v1980, %v1981
        %v1983 = vrot.slane %v1734, 2
        %v1984 = vsel %vm1888, %v1981, %v1983
        %v1985 = vrot.slane %v1735, 2
        %v1986 = vsel %vm1888, %v1983, %v1985
        %v1987 = vrot.slane %v1736, 2
        %v1988 = vrot.slane %v1737, 2
        %v1989 = vsel %vm1888, %v1987, %v1988
        %v1990 = vrot.slane %v1738, 2
        %v1991 = vsel %vm1888, %v1988, %v1990
        %v1992 = vrot.slane %v1739, 2
        %v1993 = vsel %vm1888, %v1990, %v1992
        %v1994 = vrot.slane %v1740, 2
        %v1995 = vrot.slane %v1741, 2
        %v1996 = vsel %vm1888, %v1994, %v1995
        %v1997 = vrot.slane %v1742, 2
        %v1998 = vsel %vm1888, %v1995, %v1997
        %v1999 = vrot.slane %v1743, 2
        %v2000 = vsel %vm1888, %v1997, %v1999
        %v2001 = vrot.slane %v1744, 2
        %v2002 = vrot.slane %v1745, 2
        %v2003 = vsel %vm1888, %v2001, %v2002
        %v2004 = vrot.slane %v1746, 2
        %v2005 = vsel %vm1888, %v2002, %v2004
        %v2006 = vrot.slane %v1747, 2
        %v2007 = vsel %vm1888, %v2004, %v2006
        %v2008 = vrot.slane %v1748, 2
        %v2009 = vrot.slane %v1749, 2
        %v2010 = vsel %vm1888, %v2008, %v2009
        %v2011 = vrot.slane %v1750, 2
        %v2012 = vsel %vm1888, %v2009, %v2011
        %v2013 = vrot.slane %v1751, 2
        %v2014 = vsel %vm1888, %v2011, %v2013
        %v2015 = vrot.slane %v1752, 2
        %v2016 = vrot.slane %v1753, 2
        %v2017 = vsel %vm1888, %v2015, %v2016
        %v2018 = vrot.slane %v1754, 2
        %v2019 = vsel %vm1888, %v2016, %v2018
        %v2020 = vrot.slane %v1755, 2
        %v2021 = vsel %vm1888, %v2018, %v2020
        %v2022 = vrot.slane %v1756, 2
        %v2023 = vrot.slane %v1757, 2
        %v2024 = vsel %vm1888, %v2022, %v2023
        %v2025 = vrot.slane %v1758, 2
        %v2026 = vsel %vm1888, %v2023, %v2025
        %v2027 = vrot.slane %v1759, 2
        %v2028 = vsel %vm1888, %v2025, %v2027
        %v2029 = vrot.slane %v1760, 2
        %v2030 = vrot.slane %v1761, 2
        %v2031 = vsel %vm1888, %v2029, %v2030
        %v2032 = vrot.slane %v1762, 2
        %v2033 = vsel %vm1888, %v2030, %v2032
        %v2034 = vrot.slane %v1763, 2
        %v2035 = vsel %vm1888, %v2032, %v2034
        %v2036 = vrot.slane %v1764, 2
        %v2037 = vrot.slane %v1765, 2
        %v2038 = vsel %vm1888, %v2036, %v2037
        %v2039 = vrot.slane %v1766, 2
        %v2040 = vsel %vm1888, %v2037, %v2039
        %v2041 = vrot.slane %v1767, 2
        %v2042 = vsel %vm1888, %v2039, %v2041
        %v2043 = vrot.slane %v1768, 2
        %v2044 = vrot.slane %v1769, 2
        %v2045 = vsel %vm1888, %v2043, %v2044
        %v2046 = vrot.slane %v1770, 2
        %v2047 = vsel %vm1888, %v2044, %v2046
        %v2048 = vrot.slane %v1771, 2
        %v2049 = vsel %vm1888, %v2046, %v2048
        %v2050 = vrot.slane %v1772, 2
        %v2051 = vrot.slane %v1773, 2
        %v2052 = vsel %vm1888, %v2050, %v2051
        %v2053 = vrot.slane %v1774, 2
        %v2054 = vsel %vm1888, %v2051, %v2053
        %v2055 = vrot.slane %v1775, 2
        %v2056 = vsel %vm1888, %v2053, %v2055
        %v2057 = vrot.slane %v1776, 2
        %v2058 = vrot.slane %v1777, 2
        %v2059 = vsel %vm1888, %v2057, %v2058
        %v2060 = vrot.slane %v1778, 2
        %v2061 = vsel %vm1888, %v2058, %v2060
        %v2062 = vrot.slane %v1779, 2
        %v2063 = vsel %vm1888, %v2060, %v2062
        %v2064 = vrot.slane %v1780, 2
        %v2065 = vrot.slane %v1781, 2
        %v2066 = vsel %vm1888, %v2064, %v2065
        %v2067 = vrot.slane %v1782, 2
        %v2068 = vsel %vm1888, %v2065, %v2067
        %v2069 = vrot.slane %v1783, 2
        %v2070 = vsel %vm1888, %v2067, %v2069
        %v2175 = vadd.f32 %v1572, %v1891
        %v2176 = vadd.f32 %v1573, %v1893
        %v2177 = vadd.f32 %v1574, %v1895
        %v2178 = vadd.f32 %v1575, %v1894
        %v2179 = vadd.f32 %v1576, %v1898
        %v2180 = vadd.f32 %v1577, %v1900
        %v2181 = vadd.f32 %v1578, %v1902
        %v2182 = vadd.f32 %v1579, %v1901
        %v2183 = vadd.f32 %v1580, %v1905
        %v2184 = vadd.f32 %v1581, %v1907
        %v2185 = vadd.f32 %v1582, %v1909
        %v2186 = vadd.f32 %v1583, %v1908
        %v2187 = vadd.f32 %v1584, %v1912
        %v2188 = vadd.f32 %v1585, %v1914
        %v2189 = vadd.f32 %v1586, %v1916
        %v2190 = vadd.f32 %v1587, %v1915
        %v2191 = vadd.f32 %v1588, %v1919
        %v2192 = vadd.f32 %v1589, %v1921
        %v2193 = vadd.f32 %v1590, %v1923
        %v2194 = vadd.f32 %v1591, %v1922
        %v2195 = vadd.f32 %v1592, %v1926
        %v2196 = vadd.f32 %v1593, %v1928
        %v2197 = vadd.f32 %v1594, %v1930
        %v2198 = vadd.f32 %v1595, %v1929
        %v2199 = vadd.f32 %v1596, %v1933
        %v2200 = vadd.f32 %v1597, %v1935
        %v2201 = vadd.f32 %v1598, %v1937
        %v2202 = vadd.f32 %v1599, %v1936
        %v2203 = vadd.f32 %v1600, %v1940
        %v2204 = vadd.f32 %v1601, %v1942
        %v2205 = vadd.f32 %v1602, %v1944
        %v2206 = vadd.f32 %v1603, %v1943
        %v2207 = vadd.f32 %v1604, %v1947
        %v2208 = vadd.f32 %v1605, %v1949
        %v2209 = vadd.f32 %v1606, %v1951
        %v2210 = vadd.f32 %v1607, %v1950
        %v2211 = vadd.f32 %v1608, %v1954
        %v2212 = vadd.f32 %v1609, %v1956
        %v2213 = vadd.f32 %v1610, %v1958
        %v2214 = vadd.f32 %v1611, %v1957
        %v2215 = vadd.f32 %v1612, %v1961
        %v2216 = vadd.f32 %v1613, %v1963
        %v2217 = vadd.f32 %v1614, %v1965
        %v2218 = vadd.f32 %v1615, %v1964
        %v2219 = vadd.f32 %v1616, %v1968
        %v2220 = vadd.f32 %v1617, %v1970
        %v2221 = vadd.f32 %v1618, %v1972
        %v2222 = vadd.f32 %v1619, %v1971
        %v2223 = vadd.f32 %v1620, %v1975
        %v2224 = vadd.f32 %v1621, %v1977
        %v2225 = vadd.f32 %v1622, %v1979
        %v2226 = vadd.f32 %v1623, %v1978
        %v2227 = vadd.f32 %v1624, %v1982
        %v2228 = vadd.f32 %v1625, %v1984
        %v2229 = vadd.f32 %v1626, %v1986
        %v2230 = vadd.f32 %v1627, %v1985
        %v2231 = vadd.f32 %v1628, %v1989
        %v2232 = vadd.f32 %v1629, %v1991
        %v2233 = vadd.f32 %v1630, %v1993
        %v2234 = vadd.f32 %v1631, %v1992
        %v2235 = vadd.f32 %v1632, %v1996
        %v2236 = vadd.f32 %v1633, %v1998
        %v2237 = vadd.f32 %v1634, %v2000
        %v2238 = vadd.f32 %v1635, %v1999
        %v2239 = vadd.f32 %v1636, %v2003
        %v2240 = vadd.f32 %v1637, %v2005
        %v2241 = vadd.f32 %v1638, %v2007
        %v2242 = vadd.f32 %v1639, %v2006
        %v2243 = vadd.f32 %v1640, %v2010
        %v2244 = vadd.f32 %v1641, %v2012
        %v2245 = vadd.f32 %v1642, %v2014
        %v2246 = vadd.f32 %v1643, %v2013
        %v2247 = vadd.f32 %v1644, %v2017
        %v2248 = vadd.f32 %v1645, %v2019
        %v2249 = vadd.f32 %v1646, %v2021
        %v2250 = vadd.f32 %v1647, %v2020
        %v2251 = vadd.f32 %v1648, %v2024
        %v2252 = vadd.f32 %v1649, %v2026
        %v2253 = vadd.f32 %v1650, %v2028
        %v2254 = vadd.f32 %v1651, %v2027
        %v2255 = vadd.f32 %v1652, %v2031
        %v2256 = vadd.f32 %v1653, %v2033
        %v2257 = vadd.f32 %v1654, %v2035
        %v2258 = vadd.f32 %v1655, %v2034
        %v2259 = vadd.f32 %v1656, %v2038
        %v2260 = vadd.f32 %v1657, %v2040
        %v2261 = vadd.f32 %v1658, %v2042
        %v2262 = vadd.f32 %v1659, %v2041
        %v2263 = vadd.f32 %v1660, %v2045
        %v2264 = vadd.f32 %v1661, %v2047
        %v2265 = vadd.f32 %v1662, %v2049
        %v2266 = vadd.f32 %v1663, %v2048
        %v2267 = vadd.f32 %v1664, %v2052
        %v2268 = vadd.f32 %v1665, %v2054
        %v2269 = vadd.f32 %v1666, %v2056
        %v2270 = vadd.f32 %v1667, %v2055
        %v2271 = vadd.f32 %v1668, %v2059
        %v2272 = vadd.f32 %v1669, %v2061
        %v2273 = vadd.f32 %v1670, %v2063
        %v2274 = vadd.f32 %v1671, %v2062
        %v2275 = vadd.f32 %v1672, %v2066
        %v2276 = vadd.f32 %v1673, %v2068
        %v2277 = vadd.f32 %v1674, %v2070
        %v2278 = vadd.f32 %v1675, %v2069
        %2280 = vset.pattern.permute.xlu0 0
        %2281 = vperm.xlu0 %2280, %v435
        %v2282 = vpop.permute.xlu0 %2281
        %2285 = vset.pattern.permute.xlu0 0
        %2286 = vperm.xlu0 %2285, %v436
        %v2287 = vpop.permute.xlu0 %2286
        %2290 = vset.pattern.permute.xlu0 0
        %2291 = vperm.xlu0 %2290, %v437
        %v2292 = vpop.permute.xlu0 %2291
        %2295 = vset.pattern.permute.xlu0 0
        %2296 = vperm.xlu0 %2295, %v438
        %v2297 = vpop.permute.xlu0 %2296
        %v2299 = vlaneseq
        %v2300 = vshrl.u32 %v2299, 7
        %v2301 = vsub.s32 3, %v2300
        %v2302 = vrot.slane %v443, %v2301
        %v2303 = vmul.f32 %v468, %v2302
        %v2304 = vmul.f32 %v473, %v2302
        %v2305 = vmul.f32 %v478, %v2302
        %v2306 = vmul.f32 %v483, %v2302
        %v2307 = vmul.f32 %v488, %v2302
        %v2308 = vmul.f32 %v493, %v2302
        %v2309 = vmul.f32 %v498, %v2302
        %v2310 = vmul.f32 %v503, %v2302
        %v2311 = vmul.f32 %v508, %v2302
        %v2312 = vmul.f32 %v513, %v2302
        %v2313 = vmul.f32 %v518, %v2302
        %v2314 = vmul.f32 %v523, %v2302
        %v2315 = vmul.f32 %v528, %v2302
        %v2316 = vmul.f32 %v533, %v2302
        %v2317 = vmul.f32 %v538, %v2302
        %v2318 = vmul.f32 %v543, %v2302
        %v2319 = vmul.f32 %v548, %v2302
        %v2320 = vmul.f32 %v553, %v2302
        %v2321 = vmul.f32 %v558, %v2302
        %v2322 = vmul.f32 %v563, %v2302
        %v2323 = vmul.f32 %v568, %v2302
        %v2324 = vmul.f32 %v573, %v2302
        %v2325 = vmul.f32 %v578, %v2302
        %v2326 = vmul.f32 %v583, %v2302
        %v2327 = vmul.f32 %v588, %v2302
        %v2328 = vmul.f32 %v593, %v2302
        %v2329 = vmul.f32 %v598, %v2302
        %v2330 = vmul.f32 %v603, %v2302
        %v2331 = vmul.f32 %v608, %v2302
        %v2332 = vmul.f32 %v613, %v2302
        %v2333 = vmul.f32 %v618, %v2302
        %v2334 = vmul.f32 %v623, %v2302
        %v2335 = vmul.f32 %v628, %v2302
        %v2336 = vmul.f32 %v633, %v2302
        %v2337 = vmul.f32 %v638, %v2302
        %v2338 = vmul.f32 %v643, %v2302
        %v2339 = vmul.f32 %v648, %v2302
        %v2340 = vmul.f32 %v653, %v2302
        %v2341 = vmul.f32 %v658, %v2302
        %v2342 = vmul.f32 %v663, %v2302
        %v2343 = vmul.f32 %v668, %v2302
        %v2344 = vmul.f32 %v673, %v2302
        %v2345 = vmul.f32 %v678, %v2302
        %v2346 = vmul.f32 %v683, %v2302
        %v2347 = vmul.f32 %v688, %v2302
        %v2348 = vmul.f32 %v693, %v2302
        %v2349 = vmul.f32 %v698, %v2302
        %v2350 = vmul.f32 %v703, %v2302
        %v2351 = vmul.f32 %v708, %v2302
        %v2352 = vmul.f32 %v713, %v2302
        %v2353 = vmul.f32 %v718, %v2302
        %v2354 = vmul.f32 %v723, %v2302
        %v2355 = vmul.f32 %v728, %v2302
        %v2356 = vmul.f32 %v733, %v2302
        %v2357 = vmul.f32 %v738, %v2302
        %v2358 = vmul.f32 %v743, %v2302
        %v2359 = vmul.f32 %v748, %v2302
        %v2360 = vmul.f32 %v753, %v2302
        %v2361 = vmul.f32 %v758, %v2302
        %v2362 = vmul.f32 %v763, %v2302
        %v2363 = vmul.f32 %v768, %v2302
        %v2364 = vmul.f32 %v773, %v2302
        %v2365 = vmul.f32 %v778, %v2302
        %v2366 = vmul.f32 %v783, %v2302
        %v2367 = vmul.f32 %v788, %v2302
        %v2368 = vmul.f32 %v793, %v2302
        %v2369 = vmul.f32 %v798, %v2302
        %v2370 = vmul.f32 %v803, %v2302
        %v2371 = vmul.f32 %v808, %v2302
        %v2372 = vmul.f32 %v813, %v2302
        %v2373 = vmul.f32 %v818, %v2302
        %v2374 = vmul.f32 %v823, %v2302
        %v2375 = vmul.f32 %v828, %v2302
        %v2376 = vmul.f32 %v833, %v2302
        %v2377 = vmul.f32 %v838, %v2302
        %v2378 = vmul.f32 %v843, %v2302
        %v2379 = vmul.f32 %v848, %v2302
        %v2380 = vmul.f32 %v853, %v2302
        %v2381 = vmul.f32 %v858, %v2302
        %v2382 = vmul.f32 %v863, %v2302
        %v2383 = vmul.f32 %v868, %v2302
        %v2384 = vmul.f32 %v873, %v2302
        %v2385 = vmul.f32 %v878, %v2302
        %v2386 = vmul.f32 %v883, %v2302
        %v2387 = vmul.f32 %v888, %v2302
        %v2388 = vmul.f32 %v893, %v2302
        %v2389 = vmul.f32 %v898, %v2302
        %v2390 = vmul.f32 %v903, %v2302
        %v2391 = vmul.f32 %v908, %v2302
        %v2392 = vmul.f32 %v913, %v2302
        %v2393 = vmul.f32 %v918, %v2302
        %v2394 = vmul.f32 %v923, %v2302
        %v2395 = vmul.f32 %v928, %v2302
        %v2396 = vmul.f32 %v933, %v2302
        %v2397 = vmul.f32 %v938, %v2302
        %v2398 = vmul.f32 %v943, %v2302
        %v2399 = vmul.f32 %v948, %v2302
        %v2400 = vmul.f32 %v953, %v2302
        %v2401 = vmul.f32 %v958, %v2302
        %v2402 = vmul.f32 %v963, %v2302
        %v2403 = vmul.f32 %v2282, %v2302
        %v2404 = vmul.f32 %v2287, %v2302
        %v2405 = vmul.f32 %v2292, %v2302
        %v2406 = vmul.f32 %v2297, %v2302
        %v2407 = vadd.f32 %v2175, %v2303
        %v2408 = vadd.f32 %v2176, %v2304
        %v2409 = vadd.f32 %v2177, %v2305
        %v2410 = vadd.f32 %v2178, %v2306
        %v2411 = vadd.f32 %v2179, %v2307
        %v2412 = vadd.f32 %v2180, %v2308
        %v2413 = vadd.f32 %v2181, %v2309
        %v2414 = vadd.f32 %v2182, %v2310
        %v2415 = vadd.f32 %v2183, %v2311
        %v2416 = vadd.f32 %v2184, %v2312
        %v2417 = vadd.f32 %v2185, %v2313
        %v2418 = vadd.f32 %v2186, %v2314
        %v2419 = vadd.f32 %v2187, %v2315
        %v2420 = vadd.f32 %v2188, %v2316
        %v2421 = vadd.f32 %v2189, %v2317
        %v2422 = vadd.f32 %v2190, %v2318
        %v2423 = vadd.f32 %v2191, %v2319
        %v2424 = vadd.f32 %v2192, %v2320
        %v2425 = vadd.f32 %v2193, %v2321
        %v2426 = vadd.f32 %v2194, %v2322
        %v2427 = vadd.f32 %v2195, %v2323
        %v2428 = vadd.f32 %v2196, %v2324
        %v2429 = vadd.f32 %v2197, %v2325
        %v2430 = vadd.f32 %v2198, %v2326
        %v2431 = vadd.f32 %v2199, %v2327
        %v2432 = vadd.f32 %v2200, %v2328
        %v2433 = vadd.f32 %v2201, %v2329
        %v2434 = vadd.f32 %v2202, %v2330
        %v2435 = vadd.f32 %v2203, %v2331
        %v2436 = vadd.f32 %v2204, %v2332
        %v2437 = vadd.f32 %v2205, %v2333
        %v2438 = vadd.f32 %v2206, %v2334
        %v2439 = vadd.f32 %v2207, %v2335
        %v2440 = vadd.f32 %v2208, %v2336
        %v2441 = vadd.f32 %v2209, %v2337
        %v2442 = vadd.f32 %v2210, %v2338
        %v2443 = vadd.f32 %v2211, %v2339
        %v2444 = vadd.f32 %v2212, %v2340
        %v2445 = vadd.f32 %v2213, %v2341
        %v2446 = vadd.f32 %v2214, %v2342
        %v2447 = vadd.f32 %v2215, %v2343
        %v2448 = vadd.f32 %v2216, %v2344
        %v2449 = vadd.f32 %v2217, %v2345
        %v2450 = vadd.f32 %v2218, %v2346
        %v2451 = vadd.f32 %v2219, %v2347
        %v2452 = vadd.f32 %v2220, %v2348
        %v2453 = vadd.f32 %v2221, %v2349
        %v2454 = vadd.f32 %v2222, %v2350
        %v2455 = vadd.f32 %v2223, %v2351
        %v2456 = vadd.f32 %v2224, %v2352
        %v2457 = vadd.f32 %v2225, %v2353
        %v2458 = vadd.f32 %v2226, %v2354
        %v2459 = vadd.f32 %v2227, %v2355
        %v2460 = vadd.f32 %v2228, %v2356
        %v2461 = vadd.f32 %v2229, %v2357
        %v2462 = vadd.f32 %v2230, %v2358
        %v2463 = vadd.f32 %v2231, %v2359
        %v2464 = vadd.f32 %v2232, %v2360
        %v2465 = vadd.f32 %v2233, %v2361
        %v2466 = vadd.f32 %v2234, %v2362
        %v2467 = vadd.f32 %v2235, %v2363
        %v2468 = vadd.f32 %v2236, %v2364
        %v2469 = vadd.f32 %v2237, %v2365
        %v2470 = vadd.f32 %v2238, %v2366
        %v2471 = vadd.f32 %v2239, %v2367
        %v2472 = vadd.f32 %v2240, %v2368
        %v2473 = vadd.f32 %v2241, %v2369
        %v2474 = vadd.f32 %v2242, %v2370
        %v2475 = vadd.f32 %v2243, %v2371
        %v2476 = vadd.f32 %v2244, %v2372
        %v2477 = vadd.f32 %v2245, %v2373
        %v2478 = vadd.f32 %v2246, %v2374
        %v2479 = vadd.f32 %v2247, %v2375
        %v2480 = vadd.f32 %v2248, %v2376
        %v2481 = vadd.f32 %v2249, %v2377
        %v2482 = vadd.f32 %v2250, %v2378
        %v2483 = vadd.f32 %v2251, %v2379
        %v2484 = vadd.f32 %v2252, %v2380
        %v2485 = vadd.f32 %v2253, %v2381
        %v2486 = vadd.f32 %v2254, %v2382
        %v2487 = vadd.f32 %v2255, %v2383
        %v2488 = vadd.f32 %v2256, %v2384
        %v2489 = vadd.f32 %v2257, %v2385
        %v2490 = vadd.f32 %v2258, %v2386
        %v2491 = vadd.f32 %v2259, %v2387
        %v2492 = vadd.f32 %v2260, %v2388
        %v2493 = vadd.f32 %v2261, %v2389
        %v2494 = vadd.f32 %v2262, %v2390
        %v2495 = vadd.f32 %v2263, %v2391
        %v2496 = vadd.f32 %v2264, %v2392
        %v2497 = vadd.f32 %v2265, %v2393
        %v2498 = vadd.f32 %v2266, %v2394
        %v2499 = vadd.f32 %v2267, %v2395
        %v2500 = vadd.f32 %v2268, %v2396
        %v2501 = vadd.f32 %v2269, %v2397
        %v2502 = vadd.f32 %v2270, %v2398
        %v2503 = vadd.f32 %v2271, %v2399
        %v2504 = vadd.f32 %v2272, %v2400
        %v2505 = vadd.f32 %v2273, %v2401
        %v2506 = vadd.f32 %v2274, %v2402
        %v2507 = vadd.f32 %v2275, %v2403
        %v2508 = vadd.f32 %v2276, %v2404
        %v2509 = vadd.f32 %v2277, %v2405
        %v2510 = vadd.f32 %v2278, %v2406
        %v2511 = vlaneseq
        %v2512 = vshrl.u32 %v2511, 7
        %v2513 = vsub.s32 4, %v2512
        %v2514 = vrot.slane %v443, %v2513
        %v2515 = vmul.f32 %v468, %v2514
        %v2516 = vmul.f32 %v473, %v2514
        %v2517 = vmul.f32 %v478, %v2514
        %v2518 = vmul.f32 %v483, %v2514
        %v2519 = vmul.f32 %v488, %v2514
        %v2520 = vmul.f32 %v493, %v2514
        %v2521 = vmul.f32 %v498, %v2514
        %v2522 = vmul.f32 %v503, %v2514
        %v2523 = vmul.f32 %v508, %v2514
        %v2524 = vmul.f32 %v513, %v2514
        %v2525 = vmul.f32 %v518, %v2514
        %v2526 = vmul.f32 %v523, %v2514
        %v2527 = vmul.f32 %v528, %v2514
        %v2528 = vmul.f32 %v533, %v2514
        %v2529 = vmul.f32 %v538, %v2514
        %v2530 = vmul.f32 %v543, %v2514
        %v2531 = vmul.f32 %v548, %v2514
        %v2532 = vmul.f32 %v553, %v2514
        %v2533 = vmul.f32 %v558, %v2514
        %v2534 = vmul.f32 %v563, %v2514
        %v2535 = vmul.f32 %v568, %v2514
        %v2536 = vmul.f32 %v573, %v2514
        %v2537 = vmul.f32 %v578, %v2514
        %v2538 = vmul.f32 %v583, %v2514
        %v2539 = vmul.f32 %v588, %v2514
        %v2540 = vmul.f32 %v593, %v2514
        %v2541 = vmul.f32 %v598, %v2514
        %v2542 = vmul.f32 %v603, %v2514
        %v2543 = vmul.f32 %v608, %v2514
        %v2544 = vmul.f32 %v613, %v2514
        %v2545 = vmul.f32 %v618, %v2514
        %v2546 = vmul.f32 %v623, %v2514
        %v2547 = vmul.f32 %v628, %v2514
        %v2548 = vmul.f32 %v633, %v2514
        %v2549 = vmul.f32 %v638, %v2514
        %v2550 = vmul.f32 %v643, %v2514
        %v2551 = vmul.f32 %v648, %v2514
        %v2552 = vmul.f32 %v653, %v2514
        %v2553 = vmul.f32 %v658, %v2514
        %v2554 = vmul.f32 %v663, %v2514
        %v2555 = vmul.f32 %v668, %v2514
        %v2556 = vmul.f32 %v673, %v2514
        %v2557 = vmul.f32 %v678, %v2514
        %v2558 = vmul.f32 %v683, %v2514
        %v2559 = vmul.f32 %v688, %v2514
        %v2560 = vmul.f32 %v693, %v2514
        %v2561 = vmul.f32 %v698, %v2514
        %v2562 = vmul.f32 %v703, %v2514
        %v2563 = vmul.f32 %v708, %v2514
        %v2564 = vmul.f32 %v713, %v2514
        %v2565 = vmul.f32 %v718, %v2514
        %v2566 = vmul.f32 %v723, %v2514
        %v2567 = vmul.f32 %v728, %v2514
        %v2568 = vmul.f32 %v733, %v2514
        %v2569 = vmul.f32 %v738, %v2514
        %v2570 = vmul.f32 %v743, %v2514
        %v2571 = vmul.f32 %v748, %v2514
        %v2572 = vmul.f32 %v753, %v2514
        %v2573 = vmul.f32 %v758, %v2514
        %v2574 = vmul.f32 %v763, %v2514
        %v2575 = vmul.f32 %v768, %v2514
        %v2576 = vmul.f32 %v773, %v2514
        %v2577 = vmul.f32 %v778, %v2514
        %v2578 = vmul.f32 %v783, %v2514
        %v2579 = vmul.f32 %v788, %v2514
        %v2580 = vmul.f32 %v793, %v2514
        %v2581 = vmul.f32 %v798, %v2514
        %v2582 = vmul.f32 %v803, %v2514
        %v2583 = vmul.f32 %v808, %v2514
        %v2584 = vmul.f32 %v813, %v2514
        %v2585 = vmul.f32 %v818, %v2514
        %v2586 = vmul.f32 %v823, %v2514
        %v2587 = vmul.f32 %v828, %v2514
        %v2588 = vmul.f32 %v833, %v2514
        %v2589 = vmul.f32 %v838, %v2514
        %v2590 = vmul.f32 %v843, %v2514
        %v2591 = vmul.f32 %v848, %v2514
        %v2592 = vmul.f32 %v853, %v2514
        %v2593 = vmul.f32 %v858, %v2514
        %v2594 = vmul.f32 %v863, %v2514
        %v2595 = vmul.f32 %v868, %v2514
        %v2596 = vmul.f32 %v873, %v2514
        %v2597 = vmul.f32 %v878, %v2514
        %v2598 = vmul.f32 %v883, %v2514
        %v2599 = vmul.f32 %v888, %v2514
        %v2600 = vmul.f32 %v893, %v2514
        %v2601 = vmul.f32 %v898, %v2514
        %v2602 = vmul.f32 %v903, %v2514
        %v2603 = vmul.f32 %v908, %v2514
        %v2604 = vmul.f32 %v913, %v2514
        %v2605 = vmul.f32 %v918, %v2514
        %v2606 = vmul.f32 %v923, %v2514
        %v2607 = vmul.f32 %v928, %v2514
        %v2608 = vmul.f32 %v933, %v2514
        %v2609 = vmul.f32 %v938, %v2514
        %v2610 = vmul.f32 %v943, %v2514
        %v2611 = vmul.f32 %v948, %v2514
        %v2612 = vmul.f32 %v953, %v2514
        %v2613 = vmul.f32 %v958, %v2514
        %v2614 = vmul.f32 %v963, %v2514
        %v2615 = vmul.f32 %v2282, %v2514
        %v2616 = vmul.f32 %v2287, %v2514
        %v2617 = vmul.f32 %v2292, %v2514
        %v2618 = vmul.f32 %v2297, %v2514
        %v2723 = vrot.slane %v2515, 1
        %v2724 = vrot.slane %v2516, 1
        %v2725 = vsel %vm1285, %v2723, %v2724
        %v2726 = vrot.slane %v2517, 1
        %v2727 = vsel %vm1285, %v2724, %v2726
        %v2728 = vrot.slane %v2518, 1
        %v2729 = vsel %vm1285, %v2726, %v2728
        %v2730 = vrot.slane %v2519, 1
        %v2731 = vrot.slane %v2520, 1
        %v2732 = vsel %vm1285, %v2730, %v2731
        %v2733 = vrot.slane %v2521, 1
        %v2734 = vsel %vm1285, %v2731, %v2733
        %v2735 = vrot.slane %v2522, 1
        %v2736 = vsel %vm1285, %v2733, %v2735
        %v2737 = vrot.slane %v2523, 1
        %v2738 = vrot.slane %v2524, 1
        %v2739 = vsel %vm1285, %v2737, %v2738
        %v2740 = vrot.slane %v2525, 1
        %v2741 = vsel %vm1285, %v2738, %v2740
        %v2742 = vrot.slane %v2526, 1
        %v2743 = vsel %vm1285, %v2740, %v2742
        %v2744 = vrot.slane %v2527, 1
        %v2745 = vrot.slane %v2528, 1
        %v2746 = vsel %vm1285, %v2744, %v2745
        %v2747 = vrot.slane %v2529, 1
        %v2748 = vsel %vm1285, %v2745, %v2747
        %v2749 = vrot.slane %v2530, 1
        %v2750 = vsel %vm1285, %v2747, %v2749
        %v2751 = vrot.slane %v2531, 1
        %v2752 = vrot.slane %v2532, 1
        %v2753 = vsel %vm1285, %v2751, %v2752
        %v2754 = vrot.slane %v2533, 1
        %v2755 = vsel %vm1285, %v2752, %v2754
        %v2756 = vrot.slane %v2534, 1
        %v2757 = vsel %vm1285, %v2754, %v2756
        %v2758 = vrot.slane %v2535, 1
        %v2759 = vrot.slane %v2536, 1
        %v2760 = vsel %vm1285, %v2758, %v2759
        %v2761 = vrot.slane %v2537, 1
        %v2762 = vsel %vm1285, %v2759, %v2761
        %v2763 = vrot.slane %v2538, 1
        %v2764 = vsel %vm1285, %v2761, %v2763
        %v2765 = vrot.slane %v2539, 1
        %v2766 = vrot.slane %v2540, 1
        %v2767 = vsel %vm1285, %v2765, %v2766
        %v2768 = vrot.slane %v2541, 1
        %v2769 = vsel %vm1285, %v2766, %v2768
        %v2770 = vrot.slane %v2542, 1
        %v2771 = vsel %vm1285, %v2768, %v2770
        %v2772 = vrot.slane %v2543, 1
        %v2773 = vrot.slane %v2544, 1
        %v2774 = vsel %vm1285, %v2772, %v2773
        %v2775 = vrot.slane %v2545, 1
        %v2776 = vsel %vm1285, %v2773, %v2775
        %v2777 = vrot.slane %v2546, 1
        %v2778 = vsel %vm1285, %v2775, %v2777
        %v2779 = vrot.slane %v2547, 1
        %v2780 = vrot.slane %v2548, 1
        %v2781 = vsel %vm1285, %v2779, %v2780
        %v2782 = vrot.slane %v2549, 1
        %v2783 = vsel %vm1285, %v2780, %v2782
        %v2784 = vrot.slane %v2550, 1
        %v2785 = vsel %vm1285, %v2782, %v2784
        %v2786 = vrot.slane %v2551, 1
        %v2787 = vrot.slane %v2552, 1
        %v2788 = vsel %vm1285, %v2786, %v2787
        %v2789 = vrot.slane %v2553, 1
        %v2790 = vsel %vm1285, %v2787, %v2789
        %v2791 = vrot.slane %v2554, 1
        %v2792 = vsel %vm1285, %v2789, %v2791
        %v2793 = vrot.slane %v2555, 1
        %v2794 = vrot.slane %v2556, 1
        %v2795 = vsel %vm1285, %v2793, %v2794
        %v2796 = vrot.slane %v2557, 1
        %v2797 = vsel %vm1285, %v2794, %v2796
        %v2798 = vrot.slane %v2558, 1
        %v2799 = vsel %vm1285, %v2796, %v2798
        %v2800 = vrot.slane %v2559, 1
        %v2801 = vrot.slane %v2560, 1
        %v2802 = vsel %vm1285, %v2800, %v2801
        %v2803 = vrot.slane %v2561, 1
        %v2804 = vsel %vm1285, %v2801, %v2803
        %v2805 = vrot.slane %v2562, 1
        %v2806 = vsel %vm1285, %v2803, %v2805
        %v2807 = vrot.slane %v2563, 1
        %v2808 = vrot.slane %v2564, 1
        %v2809 = vsel %vm1285, %v2807, %v2808
        %v2810 = vrot.slane %v2565, 1
        %v2811 = vsel %vm1285, %v2808, %v2810
        %v2812 = vrot.slane %v2566, 1
        %v2813 = vsel %vm1285, %v2810, %v2812
        %v2814 = vrot.slane %v2567, 1
        %v2815 = vrot.slane %v2568, 1
        %v2816 = vsel %vm1285, %v2814, %v2815
        %v2817 = vrot.slane %v2569, 1
        %v2818 = vsel %vm1285, %v2815, %v2817
        %v2819 = vrot.slane %v2570, 1
        %v2820 = vsel %vm1285, %v2817, %v2819
        %v2821 = vrot.slane %v2571, 1
        %v2822 = vrot.slane %v2572, 1
        %v2823 = vsel %vm1285, %v2821, %v2822
        %v2824 = vrot.slane %v2573, 1
        %v2825 = vsel %vm1285, %v2822, %v2824
        %v2826 = vrot.slane %v2574, 1
        %v2827 = vsel %vm1285, %v2824, %v2826
        %v2828 = vrot.slane %v2575, 1
        %v2829 = vrot.slane %v2576, 1
        %v2830 = vsel %vm1285, %v2828, %v2829
        %v2831 = vrot.slane %v2577, 1
        %v2832 = vsel %vm1285, %v2829, %v2831
        %v2833 = vrot.slane %v2578, 1
        %v2834 = vsel %vm1285, %v2831, %v2833
        %v2835 = vrot.slane %v2579, 1
        %v2836 = vrot.slane %v2580, 1
        %v2837 = vsel %vm1285, %v2835, %v2836
        %v2838 = vrot.slane %v2581, 1
        %v2839 = vsel %vm1285, %v2836, %v2838
        %v2840 = vrot.slane %v2582, 1
        %v2841 = vsel %vm1285, %v2838, %v2840
        %v2842 = vrot.slane %v2583, 1
        %v2843 = vrot.slane %v2584, 1
        %v2844 = vsel %vm1285, %v2842, %v2843
        %v2845 = vrot.slane %v2585, 1
        %v2846 = vsel %vm1285, %v2843, %v2845
        %v2847 = vrot.slane %v2586, 1
        %v2848 = vsel %vm1285, %v2845, %v2847
        %v2849 = vrot.slane %v2587, 1
        %v2850 = vrot.slane %v2588, 1
        %v2851 = vsel %vm1285, %v2849, %v2850
        %v2852 = vrot.slane %v2589, 1
        %v2853 = vsel %vm1285, %v2850, %v2852
        %v2854 = vrot.slane %v2590, 1
        %v2855 = vsel %vm1285, %v2852, %v2854
        %v2856 = vrot.slane %v2591, 1
        %v2857 = vrot.slane %v2592, 1
        %v2858 = vsel %vm1285, %v2856, %v2857
        %v2859 = vrot.slane %v2593, 1
        %v2860 = vsel %vm1285, %v2857, %v2859
        %v2861 = vrot.slane %v2594, 1
        %v2862 = vsel %vm1285, %v2859, %v2861
        %v2863 = vrot.slane %v2595, 1
        %v2864 = vrot.slane %v2596, 1
        %v2865 = vsel %vm1285, %v2863, %v2864
        %v2866 = vrot.slane %v2597, 1
        %v2867 = vsel %vm1285, %v2864, %v2866
        %v2868 = vrot.slane %v2598, 1
        %v2869 = vsel %vm1285, %v2866, %v2868
        %v2870 = vrot.slane %v2599, 1
        %v2871 = vrot.slane %v2600, 1
        %v2872 = vsel %vm1285, %v2870, %v2871
        %v2873 = vrot.slane %v2601, 1
        %v2874 = vsel %vm1285, %v2871, %v2873
        %v2875 = vrot.slane %v2602, 1
        %v2876 = vsel %vm1285, %v2873, %v2875
        %v2877 = vrot.slane %v2603, 1
        %v2878 = vrot.slane %v2604, 1
        %v2879 = vsel %vm1285, %v2877, %v2878
        %v2880 = vrot.slane %v2605, 1
        %v2881 = vsel %vm1285, %v2878, %v2880
        %v2882 = vrot.slane %v2606, 1
        %v2883 = vsel %vm1285, %v2880, %v2882
        %v2884 = vrot.slane %v2607, 1
        %v2885 = vrot.slane %v2608, 1
        %v2886 = vsel %vm1285, %v2884, %v2885
        %v2887 = vrot.slane %v2609, 1
        %v2888 = vsel %vm1285, %v2885, %v2887
        %v2889 = vrot.slane %v2610, 1
        %v2890 = vsel %vm1285, %v2887, %v2889
        %v2891 = vrot.slane %v2611, 1
        %v2892 = vrot.slane %v2612, 1
        %v2893 = vsel %vm1285, %v2891, %v2892
        %v2894 = vrot.slane %v2613, 1
        %v2895 = vsel %vm1285, %v2892, %v2894
        %v2896 = vrot.slane %v2614, 1
        %v2897 = vsel %vm1285, %v2894, %v2896
        %v2898 = vrot.slane %v2615, 1
        %v2899 = vrot.slane %v2616, 1
        %v2900 = vsel %vm1285, %v2898, %v2899
        %v2901 = vrot.slane %v2617, 1
        %v2902 = vsel %vm1285, %v2899, %v2901
        %v2903 = vrot.slane %v2618, 1
        %v2904 = vsel %vm1285, %v2901, %v2903
        %v3009 = vadd.f32 %v2407, %v2725
        %v3010 = vadd.f32 %v2408, %v2727
        %v3011 = vadd.f32 %v2409, %v2729
        %v3012 = vadd.f32 %v2410, %v2728
        %v3013 = vadd.f32 %v2411, %v2732
        %v3014 = vadd.f32 %v2412, %v2734
        %v3015 = vadd.f32 %v2413, %v2736
        %v3016 = vadd.f32 %v2414, %v2735
        %v3017 = vadd.f32 %v2415, %v2739
        %v3018 = vadd.f32 %v2416, %v2741
        %v3019 = vadd.f32 %v2417, %v2743
        %v3020 = vadd.f32 %v2418, %v2742
        %v3021 = vadd.f32 %v2419, %v2746
        %v3022 = vadd.f32 %v2420, %v2748
        %v3023 = vadd.f32 %v2421, %v2750
        %v3024 = vadd.f32 %v2422, %v2749
        %v3025 = vadd.f32 %v2423, %v2753
        %v3026 = vadd.f32 %v2424, %v2755
        %v3027 = vadd.f32 %v2425, %v2757
        %v3028 = vadd.f32 %v2426, %v2756
        %v3029 = vadd.f32 %v2427, %v2760
        %v3030 = vadd.f32 %v2428, %v2762
        %v3031 = vadd.f32 %v2429, %v2764
        %v3032 = vadd.f32 %v2430, %v2763
        %v3033 = vadd.f32 %v2431, %v2767
        %v3034 = vadd.f32 %v2432, %v2769
        %v3035 = vadd.f32 %v2433, %v2771
        %v3036 = vadd.f32 %v2434, %v2770
        %v3037 = vadd.f32 %v2435, %v2774
        %v3038 = vadd.f32 %v2436, %v2776
        %v3039 = vadd.f32 %v2437, %v2778
        %v3040 = vadd.f32 %v2438, %v2777
        %v3041 = vadd.f32 %v2439, %v2781
        %v3042 = vadd.f32 %v2440, %v2783
        %v3043 = vadd.f32 %v2441, %v2785
        %v3044 = vadd.f32 %v2442, %v2784
        %v3045 = vadd.f32 %v2443, %v2788
        %v3046 = vadd.f32 %v2444, %v2790
        %v3047 = vadd.f32 %v2445, %v2792
        %v3048 = vadd.f32 %v2446, %v2791
        %v3049 = vadd.f32 %v2447, %v2795
        %v3050 = vadd.f32 %v2448, %v2797
        %v3051 = vadd.f32 %v2449, %v2799
        %v3052 = vadd.f32 %v2450, %v2798
        %v3053 = vadd.f32 %v2451, %v2802
        %v3054 = vadd.f32 %v2452, %v2804
        %v3055 = vadd.f32 %v2453, %v2806
        %v3056 = vadd.f32 %v2454, %v2805
        %v3057 = vadd.f32 %v2455, %v2809
        %v3058 = vadd.f32 %v2456, %v2811
        %v3059 = vadd.f32 %v2457, %v2813
        %v3060 = vadd.f32 %v2458, %v2812
        %v3061 = vadd.f32 %v2459, %v2816
        %v3062 = vadd.f32 %v2460, %v2818
        %v3063 = vadd.f32 %v2461, %v2820
        %v3064 = vadd.f32 %v2462, %v2819
        %v3065 = vadd.f32 %v2463, %v2823
        %v3066 = vadd.f32 %v2464, %v2825
        %v3067 = vadd.f32 %v2465, %v2827
        %v3068 = vadd.f32 %v2466, %v2826
        %v3069 = vadd.f32 %v2467, %v2830
        %v3070 = vadd.f32 %v2468, %v2832
        %v3071 = vadd.f32 %v2469, %v2834
        %v3072 = vadd.f32 %v2470, %v2833
        %v3073 = vadd.f32 %v2471, %v2837
        %v3074 = vadd.f32 %v2472, %v2839
        %v3075 = vadd.f32 %v2473, %v2841
        %v3076 = vadd.f32 %v2474, %v2840
        %v3077 = vadd.f32 %v2475, %v2844
        %v3078 = vadd.f32 %v2476, %v2846
        %v3079 = vadd.f32 %v2477, %v2848
        %v3080 = vadd.f32 %v2478, %v2847
        %v3081 = vadd.f32 %v2479, %v2851
        %v3082 = vadd.f32 %v2480, %v2853
        %v3083 = vadd.f32 %v2481, %v2855
        %v3084 = vadd.f32 %v2482, %v2854
        %v3085 = vadd.f32 %v2483, %v2858
        %v3086 = vadd.f32 %v2484, %v2860
        %v3087 = vadd.f32 %v2485, %v2862
        %v3088 = vadd.f32 %v2486, %v2861
        %v3089 = vadd.f32 %v2487, %v2865
        %v3090 = vadd.f32 %v2488, %v2867
        %v3091 = vadd.f32 %v2489, %v2869
        %v3092 = vadd.f32 %v2490, %v2868
        %v3093 = vadd.f32 %v2491, %v2872
        %v3094 = vadd.f32 %v2492, %v2874
        %v3095 = vadd.f32 %v2493, %v2876
        %v3096 = vadd.f32 %v2494, %v2875
        %v3097 = vadd.f32 %v2495, %v2879
        %v3098 = vadd.f32 %v2496, %v2881
        %v3099 = vadd.f32 %v2497, %v2883
        %v3100 = vadd.f32 %v2498, %v2882
        %v3101 = vadd.f32 %v2499, %v2886
        %v3102 = vadd.f32 %v2500, %v2888
        %v3103 = vadd.f32 %v2501, %v2890
        %v3104 = vadd.f32 %v2502, %v2889
        %v3105 = vadd.f32 %v2503, %v2893
        %v3106 = vadd.f32 %v2504, %v2895
        %v3107 = vadd.f32 %v2505, %v2897
        %v3108 = vadd.f32 %v2506, %v2896
        %v3109 = vadd.f32 %v2507, %v2900
        %v3110 = vadd.f32 %v2508, %v2902
        %v3111 = vadd.f32 %v2509, %v2904
        %v3112 = vadd.f32 %v2510, %v2903
        %v3113 = vlaneseq
        %v3114 = vshrl.u32 %v3113, 7
        %v3115 = vsub.s32 5, %v3114
        %v3116 = vrot.slane %v443, %v3115
        %v3117 = vmul.f32 %v468, %v3116
        %v3118 = vmul.f32 %v473, %v3116
        %v3119 = vmul.f32 %v478, %v3116
        %v3120 = vmul.f32 %v483, %v3116
        %v3121 = vmul.f32 %v488, %v3116
        %v3122 = vmul.f32 %v493, %v3116
        %v3123 = vmul.f32 %v498, %v3116
        %v3124 = vmul.f32 %v503, %v3116
        %v3125 = vmul.f32 %v508, %v3116
        %v3126 = vmul.f32 %v513, %v3116
        %v3127 = vmul.f32 %v518, %v3116
        %v3128 = vmul.f32 %v523, %v3116
        %v3129 = vmul.f32 %v528, %v3116
        %v3130 = vmul.f32 %v533, %v3116
        %v3131 = vmul.f32 %v538, %v3116
        %v3132 = vmul.f32 %v543, %v3116
        %v3133 = vmul.f32 %v548, %v3116
        %v3134 = vmul.f32 %v553, %v3116
        %v3135 = vmul.f32 %v558, %v3116
        %v3136 = vmul.f32 %v563, %v3116
        %v3137 = vmul.f32 %v568, %v3116
        %v3138 = vmul.f32 %v573, %v3116
        %v3139 = vmul.f32 %v578, %v3116
        %v3140 = vmul.f32 %v583, %v3116
        %v3141 = vmul.f32 %v588, %v3116
        %v3142 = vmul.f32 %v593, %v3116
        %v3143 = vmul.f32 %v598, %v3116
        %v3144 = vmul.f32 %v603, %v3116
        %v3145 = vmul.f32 %v608, %v3116
        %v3146 = vmul.f32 %v613, %v3116
        %v3147 = vmul.f32 %v618, %v3116
        %v3148 = vmul.f32 %v623, %v3116
        %v3149 = vmul.f32 %v628, %v3116
        %v3150 = vmul.f32 %v633, %v3116
        %v3151 = vmul.f32 %v638, %v3116
        %v3152 = vmul.f32 %v643, %v3116
        %v3153 = vmul.f32 %v648, %v3116
        %v3154 = vmul.f32 %v653, %v3116
        %v3155 = vmul.f32 %v658, %v3116
        %v3156 = vmul.f32 %v663, %v3116
        %v3157 = vmul.f32 %v668, %v3116
        %v3158 = vmul.f32 %v673, %v3116
        %v3159 = vmul.f32 %v678, %v3116
        %v3160 = vmul.f32 %v683, %v3116
        %v3161 = vmul.f32 %v688, %v3116
        %v3162 = vmul.f32 %v693, %v3116
        %v3163 = vmul.f32 %v698, %v3116
        %v3164 = vmul.f32 %v703, %v3116
        %v3165 = vmul.f32 %v708, %v3116
        %v3166 = vmul.f32 %v713, %v3116
        %v3167 = vmul.f32 %v718, %v3116
        %v3168 = vmul.f32 %v723, %v3116
        %v3169 = vmul.f32 %v728, %v3116
        %v3170 = vmul.f32 %v733, %v3116
        %v3171 = vmul.f32 %v738, %v3116
        %v3172 = vmul.f32 %v743, %v3116
        %v3173 = vmul.f32 %v748, %v3116
        %v3174 = vmul.f32 %v753, %v3116
        %v3175 = vmul.f32 %v758, %v3116
        %v3176 = vmul.f32 %v763, %v3116
        %v3177 = vmul.f32 %v768, %v3116
        %v3178 = vmul.f32 %v773, %v3116
        %v3179 = vmul.f32 %v778, %v3116
        %v3180 = vmul.f32 %v783, %v3116
        %v3181 = vmul.f32 %v788, %v3116
        %v3182 = vmul.f32 %v793, %v3116
        %v3183 = vmul.f32 %v798, %v3116
        %v3184 = vmul.f32 %v803, %v3116
        %v3185 = vmul.f32 %v808, %v3116
        %v3186 = vmul.f32 %v813, %v3116
        %v3187 = vmul.f32 %v818, %v3116
        %v3188 = vmul.f32 %v823, %v3116
        %v3189 = vmul.f32 %v828, %v3116
        %v3190 = vmul.f32 %v833, %v3116
        %v3191 = vmul.f32 %v838, %v3116
        %v3192 = vmul.f32 %v843, %v3116
        %v3193 = vmul.f32 %v848, %v3116
        %v3194 = vmul.f32 %v853, %v3116
        %v3195 = vmul.f32 %v858, %v3116
        %v3196 = vmul.f32 %v863, %v3116
        %v3197 = vmul.f32 %v868, %v3116
        %v3198 = vmul.f32 %v873, %v3116
        %v3199 = vmul.f32 %v878, %v3116
        %v3200 = vmul.f32 %v883, %v3116
        %v3201 = vmul.f32 %v888, %v3116
        %v3202 = vmul.f32 %v893, %v3116
        %v3203 = vmul.f32 %v898, %v3116
        %v3204 = vmul.f32 %v903, %v3116
        %v3205 = vmul.f32 %v908, %v3116
        %v3206 = vmul.f32 %v913, %v3116
        %v3207 = vmul.f32 %v918, %v3116
        %v3208 = vmul.f32 %v923, %v3116
        %v3209 = vmul.f32 %v928, %v3116
        %v3210 = vmul.f32 %v933, %v3116
        %v3211 = vmul.f32 %v938, %v3116
        %v3212 = vmul.f32 %v943, %v3116
        %v3213 = vmul.f32 %v948, %v3116
        %v3214 = vmul.f32 %v953, %v3116
        %v3215 = vmul.f32 %v958, %v3116
        %v3216 = vmul.f32 %v963, %v3116
        %v3217 = vmul.f32 %v2282, %v3116
        %v3218 = vmul.f32 %v2287, %v3116
        %v3219 = vmul.f32 %v2292, %v3116
        %v3220 = vmul.f32 %v2297, %v3116
        %v3325 = vrot.slane %v3117, 2
        %v3326 = vrot.slane %v3118, 2
        %v3327 = vsel %vm1888, %v3325, %v3326
        %v3328 = vrot.slane %v3119, 2
        %v3329 = vsel %vm1888, %v3326, %v3328
        %v3330 = vrot.slane %v3120, 2
        %v3331 = vsel %vm1888, %v3328, %v3330
        %v3332 = vrot.slane %v3121, 2
        %v3333 = vrot.slane %v3122, 2
        %v3334 = vsel %vm1888, %v3332, %v3333
        %v3335 = vrot.slane %v3123, 2
        %v3336 = vsel %vm1888, %v3333, %v3335
        %v3337 = vrot.slane %v3124, 2
        %v3338 = vsel %vm1888, %v3335, %v3337
        %v3339 = vrot.slane %v3125, 2
        %v3340 = vrot.slane %v3126, 2
        %v3341 = vsel %vm1888, %v3339, %v3340
        %v3342 = vrot.slane %v3127, 2
        %v3343 = vsel %vm1888, %v3340, %v3342
        %v3344 = vrot.slane %v3128, 2
        %v3345 = vsel %vm1888, %v3342, %v3344
        %v3346 = vrot.slane %v3129, 2
        %v3347 = vrot.slane %v3130, 2
        %v3348 = vsel %vm1888, %v3346, %v3347
        %v3349 = vrot.slane %v3131, 2
        %v3350 = vsel %vm1888, %v3347, %v3349
        %v3351 = vrot.slane %v3132, 2
        %v3352 = vsel %vm1888, %v3349, %v3351
        %v3353 = vrot.slane %v3133, 2
        %v3354 = vrot.slane %v3134, 2
        %v3355 = vsel %vm1888, %v3353, %v3354
        %v3356 = vrot.slane %v3135, 2
        %v3357 = vsel %vm1888, %v3354, %v3356
        %v3358 = vrot.slane %v3136, 2
        %v3359 = vsel %vm1888, %v3356, %v3358
        %v3360 = vrot.slane %v3137, 2
        %v3361 = vrot.slane %v3138, 2
        %v3362 = vsel %vm1888, %v3360, %v3361
        %v3363 = vrot.slane %v3139, 2
        %v3364 = vsel %vm1888, %v3361, %v3363
        %v3365 = vrot.slane %v3140, 2
        %v3366 = vsel %vm1888, %v3363, %v3365
        %v3367 = vrot.slane %v3141, 2
        %v3368 = vrot.slane %v3142, 2
        %v3369 = vsel %vm1888, %v3367, %v3368
        %v3370 = vrot.slane %v3143, 2
        %v3371 = vsel %vm1888, %v3368, %v3370
        %v3372 = vrot.slane %v3144, 2
        %v3373 = vsel %vm1888, %v3370, %v3372
        %v3374 = vrot.slane %v3145, 2
        %v3375 = vrot.slane %v3146, 2
        %v3376 = vsel %vm1888, %v3374, %v3375
        %v3377 = vrot.slane %v3147, 2
        %v3378 = vsel %vm1888, %v3375, %v3377
        %v3379 = vrot.slane %v3148, 2
        %v3380 = vsel %vm1888, %v3377, %v3379
        %v3381 = vrot.slane %v3149, 2
        %v3382 = vrot.slane %v3150, 2
        %v3383 = vsel %vm1888, %v3381, %v3382
        %v3384 = vrot.slane %v3151, 2
        %v3385 = vsel %vm1888, %v3382, %v3384
        %v3386 = vrot.slane %v3152, 2
        %v3387 = vsel %vm1888, %v3384, %v3386
        %v3388 = vrot.slane %v3153, 2
        %v3389 = vrot.slane %v3154, 2
        %v3390 = vsel %vm1888, %v3388, %v3389
        %v3391 = vrot.slane %v3155, 2
        %v3392 = vsel %vm1888, %v3389, %v3391
        %v3393 = vrot.slane %v3156, 2
        %v3394 = vsel %vm1888, %v3391, %v3393
        %v3395 = vrot.slane %v3157, 2
        %v3396 = vrot.slane %v3158, 2
        %v3397 = vsel %vm1888, %v3395, %v3396
        %v3398 = vrot.slane %v3159, 2
        %v3399 = vsel %vm1888, %v3396, %v3398
        %v3400 = vrot.slane %v3160, 2
        %v3401 = vsel %vm1888, %v3398, %v3400
        %v3402 = vrot.slane %v3161, 2
        %v3403 = vrot.slane %v3162, 2
        %v3404 = vsel %vm1888, %v3402, %v3403
        %v3405 = vrot.slane %v3163, 2
        %v3406 = vsel %vm1888, %v3403, %v3405
        %v3407 = vrot.slane %v3164, 2
        %v3408 = vsel %vm1888, %v3405, %v3407
        %v3409 = vrot.slane %v3165, 2
        %v3410 = vrot.slane %v3166, 2
        %v3411 = vsel %vm1888, %v3409, %v3410
        %v3412 = vrot.slane %v3167, 2
        %v3413 = vsel %vm1888, %v3410, %v3412
        %v3414 = vrot.slane %v3168, 2
        %v3415 = vsel %vm1888, %v3412, %v3414
        %v3416 = vrot.slane %v3169, 2
        %v3417 = vrot.slane %v3170, 2
        %v3418 = vsel %vm1888, %v3416, %v3417
        %v3419 = vrot.slane %v3171, 2
        %v3420 = vsel %vm1888, %v3417, %v3419
        %v3421 = vrot.slane %v3172, 2
        %v3422 = vsel %vm1888, %v3419, %v3421
        %v3423 = vrot.slane %v3173, 2
        %v3424 = vrot.slane %v3174, 2
        %v3425 = vsel %vm1888, %v3423, %v3424
        %v3426 = vrot.slane %v3175, 2
        %v3427 = vsel %vm1888, %v3424, %v3426
        %v3428 = vrot.slane %v3176, 2
        %v3429 = vsel %vm1888, %v3426, %v3428
        %v3430 = vrot.slane %v3177, 2
        %v3431 = vrot.slane %v3178, 2
        %v3432 = vsel %vm1888, %v3430, %v3431
        %v3433 = vrot.slane %v3179, 2
        %v3434 = vsel %vm1888, %v3431, %v3433
        %v3435 = vrot.slane %v3180, 2
        %v3436 = vsel %vm1888, %v3433, %v3435
        %v3437 = vrot.slane %v3181, 2
        %v3438 = vrot.slane %v3182, 2
        %v3439 = vsel %vm1888, %v3437, %v3438
        %v3440 = vrot.slane %v3183, 2
        %v3441 = vsel %vm1888, %v3438, %v3440
        %v3442 = vrot.slane %v3184, 2
        %v3443 = vsel %vm1888, %v3440, %v3442
        %v3444 = vrot.slane %v3185, 2
        %v3445 = vrot.slane %v3186, 2
        %v3446 = vsel %vm1888, %v3444, %v3445
        %v3447 = vrot.slane %v3187, 2
        %v3448 = vsel %vm1888, %v3445, %v3447
        %v3449 = vrot.slane %v3188, 2
        %v3450 = vsel %vm1888, %v3447, %v3449
        %v3451 = vrot.slane %v3189, 2
        %v3452 = vrot.slane %v3190, 2
        %v3453 = vsel %vm1888, %v3451, %v3452
        %v3454 = vrot.slane %v3191, 2
        %v3455 = vsel %vm1888, %v3452, %v3454
        %v3456 = vrot.slane %v3192, 2
        %v3457 = vsel %vm1888, %v3454, %v3456
        %v3458 = vrot.slane %v3193, 2
        %v3459 = vrot.slane %v3194, 2
        %v3460 = vsel %vm1888, %v3458, %v3459
        %v3461 = vrot.slane %v3195, 2
        %v3462 = vsel %vm1888, %v3459, %v3461
        %v3463 = vrot.slane %v3196, 2
        %v3464 = vsel %vm1888, %v3461, %v3463
        %v3465 = vrot.slane %v3197, 2
        %v3466 = vrot.slane %v3198, 2
        %v3467 = vsel %vm1888, %v3465, %v3466
        %v3468 = vrot.slane %v3199, 2
        %v3469 = vsel %vm1888, %v3466, %v3468
        %v3470 = vrot.slane %v3200, 2
        %v3471 = vsel %vm1888, %v3468, %v3470
        %v3472 = vrot.slane %v3201, 2
        %v3473 = vrot.slane %v3202, 2
        %v3474 = vsel %vm1888, %v3472, %v3473
        %v3475 = vrot.slane %v3203, 2
        %v3476 = vsel %vm1888, %v3473, %v3475
        %v3477 = vrot.slane %v3204, 2
        %v3478 = vsel %vm1888, %v3475, %v3477
        %v3479 = vrot.slane %v3205, 2
        %v3480 = vrot.slane %v3206, 2
        %v3481 = vsel %vm1888, %v3479, %v3480
        %v3482 = vrot.slane %v3207, 2
        %v3483 = vsel %vm1888, %v3480, %v3482
        %v3484 = vrot.slane %v3208, 2
        %v3485 = vsel %vm1888, %v3482, %v3484
        %v3486 = vrot.slane %v3209, 2
        %v3487 = vrot.slane %v3210, 2
        %v3488 = vsel %vm1888, %v3486, %v3487
        %v3489 = vrot.slane %v3211, 2
        %v3490 = vsel %vm1888, %v3487, %v3489
        %v3491 = vrot.slane %v3212, 2
        %v3492 = vsel %vm1888, %v3489, %v3491
        %v3493 = vrot.slane %v3213, 2
        %v3494 = vrot.slane %v3214, 2
        %v3495 = vsel %vm1888, %v3493, %v3494
        %v3496 = vrot.slane %v3215, 2
        %v3497 = vsel %vm1888, %v3494, %v3496
        %v3498 = vrot.slane %v3216, 2
        %v3499 = vsel %vm1888, %v3496, %v3498
        %v3500 = vrot.slane %v3217, 2
        %v3501 = vrot.slane %v3218, 2
        %v3502 = vsel %vm1888, %v3500, %v3501
        %v3503 = vrot.slane %v3219, 2
        %v3504 = vsel %vm1888, %v3501, %v3503
        %v3505 = vrot.slane %v3220, 2
        %v3506 = vsel %vm1888, %v3503, %v3505
        %v3611 = vadd.f32 %v3009, %v3327
        %v3612 = vadd.f32 %v3010, %v3329
        %v3613 = vadd.f32 %v3011, %v3331
        %v3614 = vadd.f32 %v3012, %v3330
        %v3615 = vadd.f32 %v3013, %v3334
        %v3616 = vadd.f32 %v3014, %v3336
        %v3617 = vadd.f32 %v3015, %v3338
        %v3618 = vadd.f32 %v3016, %v3337
        %v3619 = vadd.f32 %v3017, %v3341
        %v3620 = vadd.f32 %v3018, %v3343
        %v3621 = vadd.f32 %v3019, %v3345
        %v3622 = vadd.f32 %v3020, %v3344
        %v3623 = vadd.f32 %v3021, %v3348
        %v3624 = vadd.f32 %v3022, %v3350
        %v3625 = vadd.f32 %v3023, %v3352
        %v3626 = vadd.f32 %v3024, %v3351
        %v3627 = vadd.f32 %v3025, %v3355
        %v3628 = vadd.f32 %v3026, %v3357
        %v3629 = vadd.f32 %v3027, %v3359
        %v3630 = vadd.f32 %v3028, %v3358
        %v3631 = vadd.f32 %v3029, %v3362
        %v3632 = vadd.f32 %v3030, %v3364
        %v3633 = vadd.f32 %v3031, %v3366
        %v3634 = vadd.f32 %v3032, %v3365
        %v3635 = vadd.f32 %v3033, %v3369
        %v3636 = vadd.f32 %v3034, %v3371
        %v3637 = vadd.f32 %v3035, %v3373
        %v3638 = vadd.f32 %v3036, %v3372
        %v3639 = vadd.f32 %v3037, %v3376
        %v3640 = vadd.f32 %v3038, %v3378
        %v3641 = vadd.f32 %v3039, %v3380
        %v3642 = vadd.f32 %v3040, %v3379
        %v3643 = vadd.f32 %v3041, %v3383
        %v3644 = vadd.f32 %v3042, %v3385
        %v3645 = vadd.f32 %v3043, %v3387
        %v3646 = vadd.f32 %v3044, %v3386
        %v3647 = vadd.f32 %v3045, %v3390
        %v3648 = vadd.f32 %v3046, %v3392
        %v3649 = vadd.f32 %v3047, %v3394
        %v3650 = vadd.f32 %v3048, %v3393
        %v3651 = vadd.f32 %v3049, %v3397
        %v3652 = vadd.f32 %v3050, %v3399
        %v3653 = vadd.f32 %v3051, %v3401
        %v3654 = vadd.f32 %v3052, %v3400
        %v3655 = vadd.f32 %v3053, %v3404
        %v3656 = vadd.f32 %v3054, %v3406
        %v3657 = vadd.f32 %v3055, %v3408
        %v3658 = vadd.f32 %v3056, %v3407
        %v3659 = vadd.f32 %v3057, %v3411
        %v3660 = vadd.f32 %v3058, %v3413
        %v3661 = vadd.f32 %v3059, %v3415
        %v3662 = vadd.f32 %v3060, %v3414
        %v3663 = vadd.f32 %v3061, %v3418
        %v3664 = vadd.f32 %v3062, %v3420
        %v3665 = vadd.f32 %v3063, %v3422
        %v3666 = vadd.f32 %v3064, %v3421
        %v3667 = vadd.f32 %v3065, %v3425
        %v3668 = vadd.f32 %v3066, %v3427
        %v3669 = vadd.f32 %v3067, %v3429
        %v3670 = vadd.f32 %v3068, %v3428
        %v3671 = vadd.f32 %v3069, %v3432
        %v3672 = vadd.f32 %v3070, %v3434
        %v3673 = vadd.f32 %v3071, %v3436
        %v3674 = vadd.f32 %v3072, %v3435
        %v3675 = vadd.f32 %v3073, %v3439
        %v3676 = vadd.f32 %v3074, %v3441
        %v3677 = vadd.f32 %v3075, %v3443
        %v3678 = vadd.f32 %v3076, %v3442
        %v3679 = vadd.f32 %v3077, %v3446
        %v3680 = vadd.f32 %v3078, %v3448
        %v3681 = vadd.f32 %v3079, %v3450
        %v3682 = vadd.f32 %v3080, %v3449
        %v3683 = vadd.f32 %v3081, %v3453
        %v3684 = vadd.f32 %v3082, %v3455
        %v3685 = vadd.f32 %v3083, %v3457
        %v3686 = vadd.f32 %v3084, %v3456
        %v3687 = vadd.f32 %v3085, %v3460
        %v3688 = vadd.f32 %v3086, %v3462
        %v3689 = vadd.f32 %v3087, %v3464
        %v3690 = vadd.f32 %v3088, %v3463
        %v3691 = vadd.f32 %v3089, %v3467
        %v3692 = vadd.f32 %v3090, %v3469
        %v3693 = vadd.f32 %v3091, %v3471
        %v3694 = vadd.f32 %v3092, %v3470
        %v3695 = vadd.f32 %v3093, %v3474
        %v3696 = vadd.f32 %v3094, %v3476
        %v3697 = vadd.f32 %v3095, %v3478
        %v3698 = vadd.f32 %v3096, %v3477
        %v3699 = vadd.f32 %v3097, %v3481
        %v3700 = vadd.f32 %v3098, %v3483
        %v3701 = vadd.f32 %v3099, %v3485
        %v3702 = vadd.f32 %v3100, %v3484
        %v3703 = vadd.f32 %v3101, %v3488
        %v3704 = vadd.f32 %v3102, %v3490
        %v3705 = vadd.f32 %v3103, %v3492
        %v3706 = vadd.f32 %v3104, %v3491
        %v3707 = vadd.f32 %v3105, %v3495
        %v3708 = vadd.f32 %v3106, %v3497
        %v3709 = vadd.f32 %v3107, %v3499
        %v3710 = vadd.f32 %v3108, %v3498
        %v3711 = vadd.f32 %v3109, %v3502
        %v3712 = vadd.f32 %v3110, %v3504
        %v3713 = vadd.f32 %v3111, %v3506
        %v3714 = vadd.f32 %v3112, %v3505
        %3716 = vset.pattern.permute.xlu0 0
        %3717 = vperm.xlu0 %3716, %v439
        %v3718 = vpop.permute.xlu0 %3717
        %3721 = vset.pattern.permute.xlu0 0
        %3722 = vperm.xlu0 %3721, %v440
        %v3723 = vpop.permute.xlu0 %3722
        %3726 = vset.pattern.permute.xlu0 0
        %3727 = vperm.xlu0 %3726, %v441
        %v3728 = vpop.permute.xlu0 %3727
        %3731 = vset.pattern.permute.xlu0 0
        %3732 = vperm.xlu0 %3731, %v442
        %v3733 = vpop.permute.xlu0 %3732
        %v3735 = vlaneseq
        %v3736 = vshrl.u32 %v3735, 7
        %v3737 = vsub.s32 6, %v3736
        %v3738 = vrot.slane %v443, %v3737
        %v3739 = vmul.f32 %v488, %v3738
        %v3740 = vmul.f32 %v493, %v3738
        %v3741 = vmul.f32 %v498, %v3738
        %v3742 = vmul.f32 %v503, %v3738
        %v3743 = vmul.f32 %v508, %v3738
        %v3744 = vmul.f32 %v513, %v3738
        %v3745 = vmul.f32 %v518, %v3738
        %v3746 = vmul.f32 %v523, %v3738
        %v3747 = vmul.f32 %v528, %v3738
        %v3748 = vmul.f32 %v533, %v3738
        %v3749 = vmul.f32 %v538, %v3738
        %v3750 = vmul.f32 %v543, %v3738
        %v3751 = vmul.f32 %v548, %v3738
        %v3752 = vmul.f32 %v553, %v3738
        %v3753 = vmul.f32 %v558, %v3738
        %v3754 = vmul.f32 %v563, %v3738
        %v3755 = vmul.f32 %v568, %v3738
        %v3756 = vmul.f32 %v573, %v3738
        %v3757 = vmul.f32 %v578, %v3738
        %v3758 = vmul.f32 %v583, %v3738
        %v3759 = vmul.f32 %v588, %v3738
        %v3760 = vmul.f32 %v593, %v3738
        %v3761 = vmul.f32 %v598, %v3738
        %v3762 = vmul.f32 %v603, %v3738
        %v3763 = vmul.f32 %v608, %v3738
        %v3764 = vmul.f32 %v613, %v3738
        %v3765 = vmul.f32 %v618, %v3738
        %v3766 = vmul.f32 %v623, %v3738
        %v3767 = vmul.f32 %v628, %v3738
        %v3768 = vmul.f32 %v633, %v3738
        %v3769 = vmul.f32 %v638, %v3738
        %v3770 = vmul.f32 %v643, %v3738
        %v3771 = vmul.f32 %v648, %v3738
        %v3772 = vmul.f32 %v653, %v3738
        %v3773 = vmul.f32 %v658, %v3738
        %v3774 = vmul.f32 %v663, %v3738
        %v3775 = vmul.f32 %v668, %v3738
        %v3776 = vmul.f32 %v673, %v3738
        %v3777 = vmul.f32 %v678, %v3738
        %v3778 = vmul.f32 %v683, %v3738
        %v3779 = vmul.f32 %v688, %v3738
        %v3780 = vmul.f32 %v693, %v3738
        %v3781 = vmul.f32 %v698, %v3738
        %v3782 = vmul.f32 %v703, %v3738
        %v3783 = vmul.f32 %v708, %v3738
        %v3784 = vmul.f32 %v713, %v3738
        %v3785 = vmul.f32 %v718, %v3738
        %v3786 = vmul.f32 %v723, %v3738
        %v3787 = vmul.f32 %v728, %v3738
        %v3788 = vmul.f32 %v733, %v3738
        %v3789 = vmul.f32 %v738, %v3738
        %v3790 = vmul.f32 %v743, %v3738
        %v3791 = vmul.f32 %v748, %v3738
        %v3792 = vmul.f32 %v753, %v3738
        %v3793 = vmul.f32 %v758, %v3738
        %v3794 = vmul.f32 %v763, %v3738
        %v3795 = vmul.f32 %v768, %v3738
        %v3796 = vmul.f32 %v773, %v3738
        %v3797 = vmul.f32 %v778, %v3738
        %v3798 = vmul.f32 %v783, %v3738
        %v3799 = vmul.f32 %v788, %v3738
        %v3800 = vmul.f32 %v793, %v3738
        %v3801 = vmul.f32 %v798, %v3738
        %v3802 = vmul.f32 %v803, %v3738
        %v3803 = vmul.f32 %v808, %v3738
        %v3804 = vmul.f32 %v813, %v3738
        %v3805 = vmul.f32 %v818, %v3738
        %v3806 = vmul.f32 %v823, %v3738
        %v3807 = vmul.f32 %v828, %v3738
        %v3808 = vmul.f32 %v833, %v3738
        %v3809 = vmul.f32 %v838, %v3738
        %v3810 = vmul.f32 %v843, %v3738
        %v3811 = vmul.f32 %v848, %v3738
        %v3812 = vmul.f32 %v853, %v3738
        %v3813 = vmul.f32 %v858, %v3738
        %v3814 = vmul.f32 %v863, %v3738
        %v3815 = vmul.f32 %v868, %v3738
        %v3816 = vmul.f32 %v873, %v3738
        %v3817 = vmul.f32 %v878, %v3738
        %v3818 = vmul.f32 %v883, %v3738
        %v3819 = vmul.f32 %v888, %v3738
        %v3820 = vmul.f32 %v893, %v3738
        %v3821 = vmul.f32 %v898, %v3738
        %v3822 = vmul.f32 %v903, %v3738
        %v3823 = vmul.f32 %v908, %v3738
        %v3824 = vmul.f32 %v913, %v3738
        %v3825 = vmul.f32 %v918, %v3738
        %v3826 = vmul.f32 %v923, %v3738
        %v3827 = vmul.f32 %v928, %v3738
        %v3828 = vmul.f32 %v933, %v3738
        %v3829 = vmul.f32 %v938, %v3738
        %v3830 = vmul.f32 %v943, %v3738
        %v3831 = vmul.f32 %v948, %v3738
        %v3832 = vmul.f32 %v953, %v3738
        %v3833 = vmul.f32 %v958, %v3738
        %v3834 = vmul.f32 %v963, %v3738
        %v3835 = vmul.f32 %v2282, %v3738
        %v3836 = vmul.f32 %v2287, %v3738
        %v3837 = vmul.f32 %v2292, %v3738
        %v3838 = vmul.f32 %v2297, %v3738
        %v3839 = vmul.f32 %v3718, %v3738
        %v3840 = vmul.f32 %v3723, %v3738
        %v3841 = vmul.f32 %v3728, %v3738
        %v3842 = vmul.f32 %v3733, %v3738
        %v3843 = vadd.f32 %v3611, %v3739
        %v3844 = vadd.f32 %v3612, %v3740
        %v3845 = vadd.f32 %v3613, %v3741
        %v3846 = vadd.f32 %v3614, %v3742
        %v3847 = vadd.f32 %v3615, %v3743
        %v3848 = vadd.f32 %v3616, %v3744
        %v3849 = vadd.f32 %v3617, %v3745
        %v3850 = vadd.f32 %v3618, %v3746
        %v3851 = vadd.f32 %v3619, %v3747
        %v3852 = vadd.f32 %v3620, %v3748
        %v3853 = vadd.f32 %v3621, %v3749
        %v3854 = vadd.f32 %v3622, %v3750
        %v3855 = vadd.f32 %v3623, %v3751
        %v3856 = vadd.f32 %v3624, %v3752
        %v3857 = vadd.f32 %v3625, %v3753
        %v3858 = vadd.f32 %v3626, %v3754
        %v3859 = vadd.f32 %v3627, %v3755
        %v3860 = vadd.f32 %v3628, %v3756
        %v3861 = vadd.f32 %v3629, %v3757
        %v3862 = vadd.f32 %v3630, %v3758
        %v3863 = vadd.f32 %v3631, %v3759
        %v3864 = vadd.f32 %v3632, %v3760
        %v3865 = vadd.f32 %v3633, %v3761
        %v3866 = vadd.f32 %v3634, %v3762
        %v3867 = vadd.f32 %v3635, %v3763
        %v3868 = vadd.f32 %v3636, %v3764
        %v3869 = vadd.f32 %v3637, %v3765
        %v3870 = vadd.f32 %v3638, %v3766
        %v3871 = vadd.f32 %v3639, %v3767
        %v3872 = vadd.f32 %v3640, %v3768
        %v3873 = vadd.f32 %v3641, %v3769
        %v3874 = vadd.f32 %v3642, %v3770
        %v3875 = vadd.f32 %v3643, %v3771
        %v3876 = vadd.f32 %v3644, %v3772
        %v3877 = vadd.f32 %v3645, %v3773
        %v3878 = vadd.f32 %v3646, %v3774
        %v3879 = vadd.f32 %v3647, %v3775
        %v3880 = vadd.f32 %v3648, %v3776
        %v3881 = vadd.f32 %v3649, %v3777
        %v3882 = vadd.f32 %v3650, %v3778
        %v3883 = vadd.f32 %v3651, %v3779
        %v3884 = vadd.f32 %v3652, %v3780
        %v3885 = vadd.f32 %v3653, %v3781
        %v3886 = vadd.f32 %v3654, %v3782
        %v3887 = vadd.f32 %v3655, %v3783
        %v3888 = vadd.f32 %v3656, %v3784
        %v3889 = vadd.f32 %v3657, %v3785
        %v3890 = vadd.f32 %v3658, %v3786
        %v3891 = vadd.f32 %v3659, %v3787
        %v3892 = vadd.f32 %v3660, %v3788
        %v3893 = vadd.f32 %v3661, %v3789
        %v3894 = vadd.f32 %v3662, %v3790
        %v3895 = vadd.f32 %v3663, %v3791
        %v3896 = vadd.f32 %v3664, %v3792
        %v3897 = vadd.f32 %v3665, %v3793
        %v3898 = vadd.f32 %v3666, %v3794
        %v3899 = vadd.f32 %v3667, %v3795
        %v3900 = vadd.f32 %v3668, %v3796
        %v3901 = vadd.f32 %v3669, %v3797
        %v3902 = vadd.f32 %v3670, %v3798
        %v3903 = vadd.f32 %v3671, %v3799
        %v3904 = vadd.f32 %v3672, %v3800
        %v3905 = vadd.f32 %v3673, %v3801
        %v3906 = vadd.f32 %v3674, %v3802
        %v3907 = vadd.f32 %v3675, %v3803
        %v3908 = vadd.f32 %v3676, %v3804
        %v3909 = vadd.f32 %v3677, %v3805
        %v3910 = vadd.f32 %v3678, %v3806
        %v3911 = vadd.f32 %v3679, %v3807
        %v3912 = vadd.f32 %v3680, %v3808
        %v3913 = vadd.f32 %v3681, %v3809
        %v3914 = vadd.f32 %v3682, %v3810
        %v3915 = vadd.f32 %v3683, %v3811
        %v3916 = vadd.f32 %v3684, %v3812
        %v3917 = vadd.f32 %v3685, %v3813
        %v3918 = vadd.f32 %v3686, %v3814
        %v3919 = vadd.f32 %v3687, %v3815
        %v3920 = vadd.f32 %v3688, %v3816
        %v3921 = vadd.f32 %v3689, %v3817
        %v3922 = vadd.f32 %v3690, %v3818
        %v3923 = vadd.f32 %v3691, %v3819
        %v3924 = vadd.f32 %v3692, %v3820
        %v3925 = vadd.f32 %v3693, %v3821
        %v3926 = vadd.f32 %v3694, %v3822
        %v3927 = vadd.f32 %v3695, %v3823
        %v3928 = vadd.f32 %v3696, %v3824
        %v3929 = vadd.f32 %v3697, %v3825
        %v3930 = vadd.f32 %v3698, %v3826
        %v3931 = vadd.f32 %v3699, %v3827
        %v3932 = vadd.f32 %v3700, %v3828
        %v3933 = vadd.f32 %v3701, %v3829
        %v3934 = vadd.f32 %v3702, %v3830
        %v3935 = vadd.f32 %v3703, %v3831
        %v3936 = vadd.f32 %v3704, %v3832
        %v3937 = vadd.f32 %v3705, %v3833
        %v3938 = vadd.f32 %v3706, %v3834
        %v3939 = vadd.f32 %v3707, %v3835
        %v3940 = vadd.f32 %v3708, %v3836
        %v3941 = vadd.f32 %v3709, %v3837
        %v3942 = vadd.f32 %v3710, %v3838
        %v3943 = vadd.f32 %v3711, %v3839
        %v3944 = vadd.f32 %v3712, %v3840
        %v3945 = vadd.f32 %v3713, %v3841
        %v3946 = vadd.f32 %v3714, %v3842
        %v3947 = vlaneseq
        %v3948 = vshrl.u32 %v3947, 7
        %v3949 = vsub.s32 7, %v3948
        %v3950 = vrot.slane %v443, %v3949
        %v3951 = vmul.f32 %v488, %v3950
        %v3952 = vmul.f32 %v493, %v3950
        %v3953 = vmul.f32 %v498, %v3950
        %v3954 = vmul.f32 %v503, %v3950
        %v3955 = vmul.f32 %v508, %v3950
        %v3956 = vmul.f32 %v513, %v3950
        %v3957 = vmul.f32 %v518, %v3950
        %v3958 = vmul.f32 %v523, %v3950
        %v3959 = vmul.f32 %v528, %v3950
        %v3960 = vmul.f32 %v533, %v3950
        %v3961 = vmul.f32 %v538, %v3950
        %v3962 = vmul.f32 %v543, %v3950
        %v3963 = vmul.f32 %v548, %v3950
        %v3964 = vmul.f32 %v553, %v3950
        %v3965 = vmul.f32 %v558, %v3950
        %v3966 = vmul.f32 %v563, %v3950
        %v3967 = vmul.f32 %v568, %v3950
        %v3968 = vmul.f32 %v573, %v3950
        %v3969 = vmul.f32 %v578, %v3950
        %v3970 = vmul.f32 %v583, %v3950
        %v3971 = vmul.f32 %v588, %v3950
        %v3972 = vmul.f32 %v593, %v3950
        %v3973 = vmul.f32 %v598, %v3950
        %v3974 = vmul.f32 %v603, %v3950
        %v3975 = vmul.f32 %v608, %v3950
        %v3976 = vmul.f32 %v613, %v3950
        %v3977 = vmul.f32 %v618, %v3950
        %v3978 = vmul.f32 %v623, %v3950
        %v3979 = vmul.f32 %v628, %v3950
        %v3980 = vmul.f32 %v633, %v3950
        %v3981 = vmul.f32 %v638, %v3950
        %v3982 = vmul.f32 %v643, %v3950
        %v3983 = vmul.f32 %v648, %v3950
        %v3984 = vmul.f32 %v653, %v3950
        %v3985 = vmul.f32 %v658, %v3950
        %v3986 = vmul.f32 %v663, %v3950
        %v3987 = vmul.f32 %v668, %v3950
        %v3988 = vmul.f32 %v673, %v3950
        %v3989 = vmul.f32 %v678, %v3950
        %v3990 = vmul.f32 %v683, %v3950
        %v3991 = vmul.f32 %v688, %v3950
        %v3992 = vmul.f32 %v693, %v3950
        %v3993 = vmul.f32 %v698, %v3950
        %v3994 = vmul.f32 %v703, %v3950
        %v3995 = vmul.f32 %v708, %v3950
        %v3996 = vmul.f32 %v713, %v3950
        %v3997 = vmul.f32 %v718, %v3950
        %v3998 = vmul.f32 %v723, %v3950
        %v3999 = vmul.f32 %v728, %v3950
        %v4000 = vmul.f32 %v733, %v3950
        %v4001 = vmul.f32 %v738, %v3950
        %v4002 = vmul.f32 %v743, %v3950
        %v4003 = vmul.f32 %v748, %v3950
        %v4004 = vmul.f32 %v753, %v3950
        %v4005 = vmul.f32 %v758, %v3950
        %v4006 = vmul.f32 %v763, %v3950
        %v4007 = vmul.f32 %v768, %v3950
        %v4008 = vmul.f32 %v773, %v3950
        %v4009 = vmul.f32 %v778, %v3950
        %v4010 = vmul.f32 %v783, %v3950
        %v4011 = vmul.f32 %v788, %v3950
        %v4012 = vmul.f32 %v793, %v3950
        %v4013 = vmul.f32 %v798, %v3950
        %v4014 = vmul.f32 %v803, %v3950
        %v4015 = vmul.f32 %v808, %v3950
        %v4016 = vmul.f32 %v813, %v3950
        %v4017 = vmul.f32 %v818, %v3950
        %v4018 = vmul.f32 %v823, %v3950
        %v4019 = vmul.f32 %v828, %v3950
        %v4020 = vmul.f32 %v833, %v3950
        %v4021 = vmul.f32 %v838, %v3950
        %v4022 = vmul.f32 %v843, %v3950
        %v4023 = vmul.f32 %v848, %v3950
        %v4024 = vmul.f32 %v853, %v3950
        %v4025 = vmul.f32 %v858, %v3950
        %v4026 = vmul.f32 %v863, %v3950
        %v4027 = vmul.f32 %v868, %v3950
        %v4028 = vmul.f32 %v873, %v3950
        %v4029 = vmul.f32 %v878, %v3950
        %v4030 = vmul.f32 %v883, %v3950
        %v4031 = vmul.f32 %v888, %v3950
        %v4032 = vmul.f32 %v893, %v3950
        %v4033 = vmul.f32 %v898, %v3950
        %v4034 = vmul.f32 %v903, %v3950
        %v4035 = vmul.f32 %v908, %v3950
        %v4036 = vmul.f32 %v913, %v3950
        %v4037 = vmul.f32 %v918, %v3950
        %v4038 = vmul.f32 %v923, %v3950
        %v4039 = vmul.f32 %v928, %v3950
        %v4040 = vmul.f32 %v933, %v3950
        %v4041 = vmul.f32 %v938, %v3950
        %v4042 = vmul.f32 %v943, %v3950
        %v4043 = vmul.f32 %v948, %v3950
        %v4044 = vmul.f32 %v953, %v3950
        %v4045 = vmul.f32 %v958, %v3950
        %v4046 = vmul.f32 %v963, %v3950
        %v4047 = vmul.f32 %v2282, %v3950
        %v4048 = vmul.f32 %v2287, %v3950
        %v4049 = vmul.f32 %v2292, %v3950
        %v4050 = vmul.f32 %v2297, %v3950
        %v4051 = vmul.f32 %v3718, %v3950
        %v4052 = vmul.f32 %v3723, %v3950
        %v4053 = vmul.f32 %v3728, %v3950
        %v4054 = vmul.f32 %v3733, %v3950
        %v4159 = vrot.slane %v3951, 1
        %v4160 = vrot.slane %v3952, 1
        %v4161 = vsel %vm1285, %v4159, %v4160
        %v4162 = vrot.slane %v3953, 1
        %v4163 = vsel %vm1285, %v4160, %v4162
        %v4164 = vrot.slane %v3954, 1
        %v4165 = vsel %vm1285, %v4162, %v4164
        %v4166 = vrot.slane %v3955, 1
        %v4167 = vrot.slane %v3956, 1
        %v4168 = vsel %vm1285, %v4166, %v4167
        %v4169 = vrot.slane %v3957, 1
        %v4170 = vsel %vm1285, %v4167, %v4169
        %v4171 = vrot.slane %v3958, 1
        %v4172 = vsel %vm1285, %v4169, %v4171
        %v4173 = vrot.slane %v3959, 1
        %v4174 = vrot.slane %v3960, 1
        %v4175 = vsel %vm1285, %v4173, %v4174
        %v4176 = vrot.slane %v3961, 1
        %v4177 = vsel %vm1285, %v4174, %v4176
        %v4178 = vrot.slane %v3962, 1
        %v4179 = vsel %vm1285, %v4176, %v4178
        %v4180 = vrot.slane %v3963, 1
        %v4181 = vrot.slane %v3964, 1
        %v4182 = vsel %vm1285, %v4180, %v4181
        %v4183 = vrot.slane %v3965, 1
        %v4184 = vsel %vm1285, %v4181, %v4183
        %v4185 = vrot.slane %v3966, 1
        %v4186 = vsel %vm1285, %v4183, %v4185
        %v4187 = vrot.slane %v3967, 1
        %v4188 = vrot.slane %v3968, 1
        %v4189 = vsel %vm1285, %v4187, %v4188
        %v4190 = vrot.slane %v3969, 1
        %v4191 = vsel %vm1285, %v4188, %v4190
        %v4192 = vrot.slane %v3970, 1
        %v4193 = vsel %vm1285, %v4190, %v4192
        %v4194 = vrot.slane %v3971, 1
        %v4195 = vrot.slane %v3972, 1
        %v4196 = vsel %vm1285, %v4194, %v4195
        %v4197 = vrot.slane %v3973, 1
        %v4198 = vsel %vm1285, %v4195, %v4197
        %v4199 = vrot.slane %v3974, 1
        %v4200 = vsel %vm1285, %v4197, %v4199
        %v4201 = vrot.slane %v3975, 1
        %v4202 = vrot.slane %v3976, 1
        %v4203 = vsel %vm1285, %v4201, %v4202
        %v4204 = vrot.slane %v3977, 1
        %v4205 = vsel %vm1285, %v4202, %v4204
        %v4206 = vrot.slane %v3978, 1
        %v4207 = vsel %vm1285, %v4204, %v4206
        %v4208 = vrot.slane %v3979, 1
        %v4209 = vrot.slane %v3980, 1
        %v4210 = vsel %vm1285, %v4208, %v4209
        %v4211 = vrot.slane %v3981, 1
        %v4212 = vsel %vm1285, %v4209, %v4211
        %v4213 = vrot.slane %v3982, 1
        %v4214 = vsel %vm1285, %v4211, %v4213
        %v4215 = vrot.slane %v3983, 1
        %v4216 = vrot.slane %v3984, 1
        %v4217 = vsel %vm1285, %v4215, %v4216
        %v4218 = vrot.slane %v3985, 1
        %v4219 = vsel %vm1285, %v4216, %v4218
        %v4220 = vrot.slane %v3986, 1
        %v4221 = vsel %vm1285, %v4218, %v4220
        %v4222 = vrot.slane %v3987, 1
        %v4223 = vrot.slane %v3988, 1
        %v4224 = vsel %vm1285, %v4222, %v4223
        %v4225 = vrot.slane %v3989, 1
        %v4226 = vsel %vm1285, %v4223, %v4225
        %v4227 = vrot.slane %v3990, 1
        %v4228 = vsel %vm1285, %v4225, %v4227
        %v4229 = vrot.slane %v3991, 1
        %v4230 = vrot.slane %v3992, 1
        %v4231 = vsel %vm1285, %v4229, %v4230
        %v4232 = vrot.slane %v3993, 1
        %v4233 = vsel %vm1285, %v4230, %v4232
        %v4234 = vrot.slane %v3994, 1
        %v4235 = vsel %vm1285, %v4232, %v4234
        %v4236 = vrot.slane %v3995, 1
        %v4237 = vrot.slane %v3996, 1
        %v4238 = vsel %vm1285, %v4236, %v4237
        %v4239 = vrot.slane %v3997, 1
        %v4240 = vsel %vm1285, %v4237, %v4239
        %v4241 = vrot.slane %v3998, 1
        %v4242 = vsel %vm1285, %v4239, %v4241
        %v4243 = vrot.slane %v3999, 1
        %v4244 = vrot.slane %v4000, 1
        %v4245 = vsel %vm1285, %v4243, %v4244
        %v4246 = vrot.slane %v4001, 1
        %v4247 = vsel %vm1285, %v4244, %v4246
        %v4248 = vrot.slane %v4002, 1
        %v4249 = vsel %vm1285, %v4246, %v4248
        %v4250 = vrot.slane %v4003, 1
        %v4251 = vrot.slane %v4004, 1
        %v4252 = vsel %vm1285, %v4250, %v4251
        %v4253 = vrot.slane %v4005, 1
        %v4254 = vsel %vm1285, %v4251, %v4253
        %v4255 = vrot.slane %v4006, 1
        %v4256 = vsel %vm1285, %v4253, %v4255
        %v4257 = vrot.slane %v4007, 1
        %v4258 = vrot.slane %v4008, 1
        %v4259 = vsel %vm1285, %v4257, %v4258
        %v4260 = vrot.slane %v4009, 1
        %v4261 = vsel %vm1285, %v4258, %v4260
        %v4262 = vrot.slane %v4010, 1
        %v4263 = vsel %vm1285, %v4260, %v4262
        %v4264 = vrot.slane %v4011, 1
        %v4265 = vrot.slane %v4012, 1
        %v4266 = vsel %vm1285, %v4264, %v4265
        %v4267 = vrot.slane %v4013, 1
        %v4268 = vsel %vm1285, %v4265, %v4267
        %v4269 = vrot.slane %v4014, 1
        %v4270 = vsel %vm1285, %v4267, %v4269
        %v4271 = vrot.slane %v4015, 1
        %v4272 = vrot.slane %v4016, 1
        %v4273 = vsel %vm1285, %v4271, %v4272
        %v4274 = vrot.slane %v4017, 1
        %v4275 = vsel %vm1285, %v4272, %v4274
        %v4276 = vrot.slane %v4018, 1
        %v4277 = vsel %vm1285, %v4274, %v4276
        %v4278 = vrot.slane %v4019, 1
        %v4279 = vrot.slane %v4020, 1
        %v4280 = vsel %vm1285, %v4278, %v4279
        %v4281 = vrot.slane %v4021, 1
        %v4282 = vsel %vm1285, %v4279, %v4281
        %v4283 = vrot.slane %v4022, 1
        %v4284 = vsel %vm1285, %v4281, %v4283
        %v4285 = vrot.slane %v4023, 1
        %v4286 = vrot.slane %v4024, 1
        %v4287 = vsel %vm1285, %v4285, %v4286
        %v4288 = vrot.slane %v4025, 1
        %v4289 = vsel %vm1285, %v4286, %v4288
        %v4290 = vrot.slane %v4026, 1
        %v4291 = vsel %vm1285, %v4288, %v4290
        %v4292 = vrot.slane %v4027, 1
        %v4293 = vrot.slane %v4028, 1
        %v4294 = vsel %vm1285, %v4292, %v4293
        %v4295 = vrot.slane %v4029, 1
        %v4296 = vsel %vm1285, %v4293, %v4295
        %v4297 = vrot.slane %v4030, 1
        %v4298 = vsel %vm1285, %v4295, %v4297
        %v4299 = vrot.slane %v4031, 1
        %v4300 = vrot.slane %v4032, 1
        %v4301 = vsel %vm1285, %v4299, %v4300
        %v4302 = vrot.slane %v4033, 1
        %v4303 = vsel %vm1285, %v4300, %v4302
        %v4304 = vrot.slane %v4034, 1
        %v4305 = vsel %vm1285, %v4302, %v4304
        %v4306 = vrot.slane %v4035, 1
        %v4307 = vrot.slane %v4036, 1
        %v4308 = vsel %vm1285, %v4306, %v4307
        %v4309 = vrot.slane %v4037, 1
        %v4310 = vsel %vm1285, %v4307, %v4309
        %v4311 = vrot.slane %v4038, 1
        %v4312 = vsel %vm1285, %v4309, %v4311
        %v4313 = vrot.slane %v4039, 1
        %v4314 = vrot.slane %v4040, 1
        %v4315 = vsel %vm1285, %v4313, %v4314
        %v4316 = vrot.slane %v4041, 1
        %v4317 = vsel %vm1285, %v4314, %v4316
        %v4318 = vrot.slane %v4042, 1
        %v4319 = vsel %vm1285, %v4316, %v4318
        %v4320 = vrot.slane %v4043, 1
        %v4321 = vrot.slane %v4044, 1
        %v4322 = vsel %vm1285, %v4320, %v4321
        %v4323 = vrot.slane %v4045, 1
        %v4324 = vsel %vm1285, %v4321, %v4323
        %v4325 = vrot.slane %v4046, 1
        %v4326 = vsel %vm1285, %v4323, %v4325
        %v4327 = vrot.slane %v4047, 1
        %v4328 = vrot.slane %v4048, 1
        %v4329 = vsel %vm1285, %v4327, %v4328
        %v4330 = vrot.slane %v4049, 1
        %v4331 = vsel %vm1285, %v4328, %v4330
        %v4332 = vrot.slane %v4050, 1
        %v4333 = vsel %vm1285, %v4330, %v4332
        %v4334 = vrot.slane %v4051, 1
        %v4335 = vrot.slane %v4052, 1
        %v4336 = vsel %vm1285, %v4334, %v4335
        %v4337 = vrot.slane %v4053, 1
        %v4338 = vsel %vm1285, %v4335, %v4337
        %v4339 = vrot.slane %v4054, 1
        %v4340 = vsel %vm1285, %v4337, %v4339
        %v4445 = vadd.f32 %v3843, %v4161
        %v4446 = vadd.f32 %v3844, %v4163
        %v4447 = vadd.f32 %v3845, %v4165
        %v4448 = vadd.f32 %v3846, %v4164
        %v4449 = vadd.f32 %v3847, %v4168
        %v4450 = vadd.f32 %v3848, %v4170
        %v4451 = vadd.f32 %v3849, %v4172
        %v4452 = vadd.f32 %v3850, %v4171
        %v4453 = vadd.f32 %v3851, %v4175
        %v4454 = vadd.f32 %v3852, %v4177
        %v4455 = vadd.f32 %v3853, %v4179
        %v4456 = vadd.f32 %v3854, %v4178
        %v4457 = vadd.f32 %v3855, %v4182
        %v4458 = vadd.f32 %v3856, %v4184
        %v4459 = vadd.f32 %v3857, %v4186
        %v4460 = vadd.f32 %v3858, %v4185
        %v4461 = vadd.f32 %v3859, %v4189
        %v4462 = vadd.f32 %v3860, %v4191
        %v4463 = vadd.f32 %v3861, %v4193
        %v4464 = vadd.f32 %v3862, %v4192
        %v4465 = vadd.f32 %v3863, %v4196
        %v4466 = vadd.f32 %v3864, %v4198
        %v4467 = vadd.f32 %v3865, %v4200
        %v4468 = vadd.f32 %v3866, %v4199
        %v4469 = vadd.f32 %v3867, %v4203
        %v4470 = vadd.f32 %v3868, %v4205
        %v4471 = vadd.f32 %v3869, %v4207
        %v4472 = vadd.f32 %v3870, %v4206
        %v4473 = vadd.f32 %v3871, %v4210
        %v4474 = vadd.f32 %v3872, %v4212
        %v4475 = vadd.f32 %v3873, %v4214
        %v4476 = vadd.f32 %v3874, %v4213
        %v4477 = vadd.f32 %v3875, %v4217
        %v4478 = vadd.f32 %v3876, %v4219
        %v4479 = vadd.f32 %v3877, %v4221
        %v4480 = vadd.f32 %v3878, %v4220
        %v4481 = vadd.f32 %v3879, %v4224
        %v4482 = vadd.f32 %v3880, %v4226
        %v4483 = vadd.f32 %v3881, %v4228
        %v4484 = vadd.f32 %v3882, %v4227
        %v4485 = vadd.f32 %v3883, %v4231
        %v4486 = vadd.f32 %v3884, %v4233
        %v4487 = vadd.f32 %v3885, %v4235
        %v4488 = vadd.f32 %v3886, %v4234
        %v4489 = vadd.f32 %v3887, %v4238
        %v4490 = vadd.f32 %v3888, %v4240
        %v4491 = vadd.f32 %v3889, %v4242
        %v4492 = vadd.f32 %v3890, %v4241
        %v4493 = vadd.f32 %v3891, %v4245
        %v4494 = vadd.f32 %v3892, %v4247
        %v4495 = vadd.f32 %v3893, %v4249
        %v4496 = vadd.f32 %v3894, %v4248
        %v4497 = vadd.f32 %v3895, %v4252
        %v4498 = vadd.f32 %v3896, %v4254
        %v4499 = vadd.f32 %v3897, %v4256
        %v4500 = vadd.f32 %v3898, %v4255
        %v4501 = vadd.f32 %v3899, %v4259
        %v4502 = vadd.f32 %v3900, %v4261
        %v4503 = vadd.f32 %v3901, %v4263
        %v4504 = vadd.f32 %v3902, %v4262
        %v4505 = vadd.f32 %v3903, %v4266
        %v4506 = vadd.f32 %v3904, %v4268
        %v4507 = vadd.f32 %v3905, %v4270
        %v4508 = vadd.f32 %v3906, %v4269
        %v4509 = vadd.f32 %v3907, %v4273
        %v4510 = vadd.f32 %v3908, %v4275
        %v4511 = vadd.f32 %v3909, %v4277
        %v4512 = vadd.f32 %v3910, %v4276
        %v4513 = vadd.f32 %v3911, %v4280
        %v4514 = vadd.f32 %v3912, %v4282
        %v4515 = vadd.f32 %v3913, %v4284
        %v4516 = vadd.f32 %v3914, %v4283
        %v4517 = vadd.f32 %v3915, %v4287
        %v4518 = vadd.f32 %v3916, %v4289
        %v4519 = vadd.f32 %v3917, %v4291
        %v4520 = vadd.f32 %v3918, %v4290
        %v4521 = vadd.f32 %v3919, %v4294
        %v4522 = vadd.f32 %v3920, %v4296
        %v4523 = vadd.f32 %v3921, %v4298
        %v4524 = vadd.f32 %v3922, %v4297
        %v4525 = vadd.f32 %v3923, %v4301
        %v4526 = vadd.f32 %v3924, %v4303
        %v4527 = vadd.f32 %v3925, %v4305
        %v4528 = vadd.f32 %v3926, %v4304
        %v4529 = vadd.f32 %v3927, %v4308
        %v4530 = vadd.f32 %v3928, %v4310
        %v4531 = vadd.f32 %v3929, %v4312
        %v4532 = vadd.f32 %v3930, %v4311
        %v4533 = vadd.f32 %v3931, %v4315
        %v4534 = vadd.f32 %v3932, %v4317
        %v4535 = vadd.f32 %v3933, %v4319
        %v4536 = vadd.f32 %v3934, %v4318
        %v4537 = vadd.f32 %v3935, %v4322
        %v4538 = vadd.f32 %v3936, %v4324
        %v4539 = vadd.f32 %v3937, %v4326
        %v4540 = vadd.f32 %v3938, %v4325
        %v4541 = vadd.f32 %v3939, %v4329
        %v4542 = vadd.f32 %v3940, %v4331
        %v4543 = vadd.f32 %v3941, %v4333
        %v4544 = vadd.f32 %v3942, %v4332
        %v4545 = vadd.f32 %v3943, %v4336
        %v4546 = vadd.f32 %v3944, %v4338
        %v4547 = vadd.f32 %v3945, %v4340
        %v4548 = vadd.f32 %v3946, %v4339
        %v4549 = vlaneseq
        %v4550 = vshrl.u32 %v4549, 7
        %v4551 = vsub.s32 0, %v4550
        %v4552 = vrot.slane %v444, %v4551
        %v4553 = vmul.f32 %v488, %v4552
        %v4554 = vmul.f32 %v493, %v4552
        %v4555 = vmul.f32 %v498, %v4552
        %v4556 = vmul.f32 %v503, %v4552
        %v4557 = vmul.f32 %v508, %v4552
        %v4558 = vmul.f32 %v513, %v4552
        %v4559 = vmul.f32 %v518, %v4552
        %v4560 = vmul.f32 %v523, %v4552
        %v4561 = vmul.f32 %v528, %v4552
        %v4562 = vmul.f32 %v533, %v4552
        %v4563 = vmul.f32 %v538, %v4552
        %v4564 = vmul.f32 %v543, %v4552
        %v4565 = vmul.f32 %v548, %v4552
        %v4566 = vmul.f32 %v553, %v4552
        %v4567 = vmul.f32 %v558, %v4552
        %v4568 = vmul.f32 %v563, %v4552
        %v4569 = vmul.f32 %v568, %v4552
        %v4570 = vmul.f32 %v573, %v4552
        %v4571 = vmul.f32 %v578, %v4552
        %v4572 = vmul.f32 %v583, %v4552
        %v4573 = vmul.f32 %v588, %v4552
        %v4574 = vmul.f32 %v593, %v4552
        %v4575 = vmul.f32 %v598, %v4552
        %v4576 = vmul.f32 %v603, %v4552
        %v4577 = vmul.f32 %v608, %v4552
        %v4578 = vmul.f32 %v613, %v4552
        %v4579 = vmul.f32 %v618, %v4552
        %v4580 = vmul.f32 %v623, %v4552
        %v4581 = vmul.f32 %v628, %v4552
        %v4582 = vmul.f32 %v633, %v4552
        %v4583 = vmul.f32 %v638, %v4552
        %v4584 = vmul.f32 %v643, %v4552
        %v4585 = vmul.f32 %v648, %v4552
        %v4586 = vmul.f32 %v653, %v4552
        %v4587 = vmul.f32 %v658, %v4552
        %v4588 = vmul.f32 %v663, %v4552
        %v4589 = vmul.f32 %v668, %v4552
        %v4590 = vmul.f32 %v673, %v4552
        %v4591 = vmul.f32 %v678, %v4552
        %v4592 = vmul.f32 %v683, %v4552
        %v4593 = vmul.f32 %v688, %v4552
        %v4594 = vmul.f32 %v693, %v4552
        %v4595 = vmul.f32 %v698, %v4552
        %v4596 = vmul.f32 %v703, %v4552
        %v4597 = vmul.f32 %v708, %v4552
        %v4598 = vmul.f32 %v713, %v4552
        %v4599 = vmul.f32 %v718, %v4552
        %v4600 = vmul.f32 %v723, %v4552
        %v4601 = vmul.f32 %v728, %v4552
        %v4602 = vmul.f32 %v733, %v4552
        %v4603 = vmul.f32 %v738, %v4552
        %v4604 = vmul.f32 %v743, %v4552
        %v4605 = vmul.f32 %v748, %v4552
        %v4606 = vmul.f32 %v753, %v4552
        %v4607 = vmul.f32 %v758, %v4552
        %v4608 = vmul.f32 %v763, %v4552
        %v4609 = vmul.f32 %v768, %v4552
        %v4610 = vmul.f32 %v773, %v4552
        %v4611 = vmul.f32 %v778, %v4552
        %v4612 = vmul.f32 %v783, %v4552
        %v4613 = vmul.f32 %v788, %v4552
        %v4614 = vmul.f32 %v793, %v4552
        %v4615 = vmul.f32 %v798, %v4552
        %v4616 = vmul.f32 %v803, %v4552
        %v4617 = vmul.f32 %v808, %v4552
        %v4618 = vmul.f32 %v813, %v4552
        %v4619 = vmul.f32 %v818, %v4552
        %v4620 = vmul.f32 %v823, %v4552
        %v4621 = vmul.f32 %v828, %v4552
        %v4622 = vmul.f32 %v833, %v4552
        %v4623 = vmul.f32 %v838, %v4552
        %v4624 = vmul.f32 %v843, %v4552
        %v4625 = vmul.f32 %v848, %v4552
        %v4626 = vmul.f32 %v853, %v4552
        %v4627 = vmul.f32 %v858, %v4552
        %v4628 = vmul.f32 %v863, %v4552
        %v4629 = vmul.f32 %v868, %v4552
        %v4630 = vmul.f32 %v873, %v4552
        %v4631 = vmul.f32 %v878, %v4552
        %v4632 = vmul.f32 %v883, %v4552
        %v4633 = vmul.f32 %v888, %v4552
        %v4634 = vmul.f32 %v893, %v4552
        %v4635 = vmul.f32 %v898, %v4552
        %v4636 = vmul.f32 %v903, %v4552
        %v4637 = vmul.f32 %v908, %v4552
        %v4638 = vmul.f32 %v913, %v4552
        %v4639 = vmul.f32 %v918, %v4552
        %v4640 = vmul.f32 %v923, %v4552
        %v4641 = vmul.f32 %v928, %v4552
        %v4642 = vmul.f32 %v933, %v4552
        %v4643 = vmul.f32 %v938, %v4552
        %v4644 = vmul.f32 %v943, %v4552
        %v4645 = vmul.f32 %v948, %v4552
        %v4646 = vmul.f32 %v953, %v4552
        %v4647 = vmul.f32 %v958, %v4552
        %v4648 = vmul.f32 %v963, %v4552
        %v4649 = vmul.f32 %v2282, %v4552
        %v4650 = vmul.f32 %v2287, %v4552
        %v4651 = vmul.f32 %v2292, %v4552
        %v4652 = vmul.f32 %v2297, %v4552
        %v4653 = vmul.f32 %v3718, %v4552
        %v4654 = vmul.f32 %v3723, %v4552
        %v4655 = vmul.f32 %v3728, %v4552
        %v4656 = vmul.f32 %v3733, %v4552
        %v4761 = vrot.slane %v4553, 2
        %v4762 = vrot.slane %v4554, 2
        %v4763 = vsel %vm1888, %v4761, %v4762
        %v4764 = vrot.slane %v4555, 2
        %v4765 = vsel %vm1888, %v4762, %v4764
        %v4766 = vrot.slane %v4556, 2
        %v4767 = vsel %vm1888, %v4764, %v4766
        %v4768 = vrot.slane %v4557, 2
        %v4769 = vrot.slane %v4558, 2
        %v4770 = vsel %vm1888, %v4768, %v4769
        %v4771 = vrot.slane %v4559, 2
        %v4772 = vsel %vm1888, %v4769, %v4771
        %v4773 = vrot.slane %v4560, 2
        %v4774 = vsel %vm1888, %v4771, %v4773
        %v4775 = vrot.slane %v4561, 2
        %v4776 = vrot.slane %v4562, 2
        %v4777 = vsel %vm1888, %v4775, %v4776
        %v4778 = vrot.slane %v4563, 2
        %v4779 = vsel %vm1888, %v4776, %v4778
        %v4780 = vrot.slane %v4564, 2
        %v4781 = vsel %vm1888, %v4778, %v4780
        %v4782 = vrot.slane %v4565, 2
        %v4783 = vrot.slane %v4566, 2
        %v4784 = vsel %vm1888, %v4782, %v4783
        %v4785 = vrot.slane %v4567, 2
        %v4786 = vsel %vm1888, %v4783, %v4785
        %v4787 = vrot.slane %v4568, 2
        %v4788 = vsel %vm1888, %v4785, %v4787
        %v4789 = vrot.slane %v4569, 2
        %v4790 = vrot.slane %v4570, 2
        %v4791 = vsel %vm1888, %v4789, %v4790
        %v4792 = vrot.slane %v4571, 2
        %v4793 = vsel %vm1888, %v4790, %v4792
        %v4794 = vrot.slane %v4572, 2
        %v4795 = vsel %vm1888, %v4792, %v4794
        %v4796 = vrot.slane %v4573, 2
        %v4797 = vrot.slane %v4574, 2
        %v4798 = vsel %vm1888, %v4796, %v4797
        %v4799 = vrot.slane %v4575, 2
        %v4800 = vsel %vm1888, %v4797, %v4799
        %v4801 = vrot.slane %v4576, 2
        %v4802 = vsel %vm1888, %v4799, %v4801
        %v4803 = vrot.slane %v4577, 2
        %v4804 = vrot.slane %v4578, 2
        %v4805 = vsel %vm1888, %v4803, %v4804
        %v4806 = vrot.slane %v4579, 2
        %v4807 = vsel %vm1888, %v4804, %v4806
        %v4808 = vrot.slane %v4580, 2
        %v4809 = vsel %vm1888, %v4806, %v4808
        %v4810 = vrot.slane %v4581, 2
        %v4811 = vrot.slane %v4582, 2
        %v4812 = vsel %vm1888, %v4810, %v4811
        %v4813 = vrot.slane %v4583, 2
        %v4814 = vsel %vm1888, %v4811, %v4813
        %v4815 = vrot.slane %v4584, 2
        %v4816 = vsel %vm1888, %v4813, %v4815
        %v4817 = vrot.slane %v4585, 2
        %v4818 = vrot.slane %v4586, 2
        %v4819 = vsel %vm1888, %v4817, %v4818
        %v4820 = vrot.slane %v4587, 2
        %v4821 = vsel %vm1888, %v4818, %v4820
        %v4822 = vrot.slane %v4588, 2
        %v4823 = vsel %vm1888, %v4820, %v4822
        %v4824 = vrot.slane %v4589, 2
        %v4825 = vrot.slane %v4590, 2
        %v4826 = vsel %vm1888, %v4824, %v4825
        %v4827 = vrot.slane %v4591, 2
        %v4828 = vsel %vm1888, %v4825, %v4827
        %v4829 = vrot.slane %v4592, 2
        %v4830 = vsel %vm1888, %v4827, %v4829
        %v4831 = vrot.slane %v4593, 2
        %v4832 = vrot.slane %v4594, 2
        %v4833 = vsel %vm1888, %v4831, %v4832
        %v4834 = vrot.slane %v4595, 2
        %v4835 = vsel %vm1888, %v4832, %v4834
        %v4836 = vrot.slane %v4596, 2
        %v4837 = vsel %vm1888, %v4834, %v4836
        %v4838 = vrot.slane %v4597, 2
        %v4839 = vrot.slane %v4598, 2
        %v4840 = vsel %vm1888, %v4838, %v4839
        %v4841 = vrot.slane %v4599, 2
        %v4842 = vsel %vm1888, %v4839, %v4841
        %v4843 = vrot.slane %v4600, 2
        %v4844 = vsel %vm1888, %v4841, %v4843
        %v4845 = vrot.slane %v4601, 2
        %v4846 = vrot.slane %v4602, 2
        %v4847 = vsel %vm1888, %v4845, %v4846
        %v4848 = vrot.slane %v4603, 2
        %v4849 = vsel %vm1888, %v4846, %v4848
        %v4850 = vrot.slane %v4604, 2
        %v4851 = vsel %vm1888, %v4848, %v4850
        %v4852 = vrot.slane %v4605, 2
        %v4853 = vrot.slane %v4606, 2
        %v4854 = vsel %vm1888, %v4852, %v4853
        %v4855 = vrot.slane %v4607, 2
        %v4856 = vsel %vm1888, %v4853, %v4855
        %v4857 = vrot.slane %v4608, 2
        %v4858 = vsel %vm1888, %v4855, %v4857
        %v4859 = vrot.slane %v4609, 2
        %v4860 = vrot.slane %v4610, 2
        %v4861 = vsel %vm1888, %v4859, %v4860
        %v4862 = vrot.slane %v4611, 2
        %v4863 = vsel %vm1888, %v4860, %v4862
        %v4864 = vrot.slane %v4612, 2
        %v4865 = vsel %vm1888, %v4862, %v4864
        %v4866 = vrot.slane %v4613, 2
        %v4867 = vrot.slane %v4614, 2
        %v4868 = vsel %vm1888, %v4866, %v4867
        %v4869 = vrot.slane %v4615, 2
        %v4870 = vsel %vm1888, %v4867, %v4869
        %v4871 = vrot.slane %v4616, 2
        %v4872 = vsel %vm1888, %v4869, %v4871
        %v4873 = vrot.slane %v4617, 2
        %v4874 = vrot.slane %v4618, 2
        %v4875 = vsel %vm1888, %v4873, %v4874
        %v4876 = vrot.slane %v4619, 2
        %v4877 = vsel %vm1888, %v4874, %v4876
        %v4878 = vrot.slane %v4620, 2
        %v4879 = vsel %vm1888, %v4876, %v4878
        %v4880 = vrot.slane %v4621, 2
        %v4881 = vrot.slane %v4622, 2
        %v4882 = vsel %vm1888, %v4880, %v4881
        %v4883 = vrot.slane %v4623, 2
        %v4884 = vsel %vm1888, %v4881, %v4883
        %v4885 = vrot.slane %v4624, 2
        %v4886 = vsel %vm1888, %v4883, %v4885
        %v4887 = vrot.slane %v4625, 2
        %v4888 = vrot.slane %v4626, 2
        %v4889 = vsel %vm1888, %v4887, %v4888
        %v4890 = vrot.slane %v4627, 2
        %v4891 = vsel %vm1888, %v4888, %v4890
        %v4892 = vrot.slane %v4628, 2
        %v4893 = vsel %vm1888, %v4890, %v4892
        %v4894 = vrot.slane %v4629, 2
        %v4895 = vrot.slane %v4630, 2
        %v4896 = vsel %vm1888, %v4894, %v4895
        %v4897 = vrot.slane %v4631, 2
        %v4898 = vsel %vm1888, %v4895, %v4897
        %v4899 = vrot.slane %v4632, 2
        %v4900 = vsel %vm1888, %v4897, %v4899
        %v4901 = vrot.slane %v4633, 2
        %v4902 = vrot.slane %v4634, 2
        %v4903 = vsel %vm1888, %v4901, %v4902
        %v4904 = vrot.slane %v4635, 2
        %v4905 = vsel %vm1888, %v4902, %v4904
        %v4906 = vrot.slane %v4636, 2
        %v4907 = vsel %vm1888, %v4904, %v4906
        %v4908 = vrot.slane %v4637, 2
        %v4909 = vrot.slane %v4638, 2
        %v4910 = vsel %vm1888, %v4908, %v4909
        %v4911 = vrot.slane %v4639, 2
        %v4912 = vsel %vm1888, %v4909, %v4911
        %v4913 = vrot.slane %v4640, 2
        %v4914 = vsel %vm1888, %v4911, %v4913
        %v4915 = vrot.slane %v4641, 2
        %v4916 = vrot.slane %v4642, 2
        %v4917 = vsel %vm1888, %v4915, %v4916
        %v4918 = vrot.slane %v4643, 2
        %v4919 = vsel %vm1888, %v4916, %v4918
        %v4920 = vrot.slane %v4644, 2
        %v4921 = vsel %vm1888, %v4918, %v4920
        %v4922 = vrot.slane %v4645, 2
        %v4923 = vrot.slane %v4646, 2
        %v4924 = vsel %vm1888, %v4922, %v4923
        %v4925 = vrot.slane %v4647, 2
        %v4926 = vsel %vm1888, %v4923, %v4925
        %v4927 = vrot.slane %v4648, 2
        %v4928 = vsel %vm1888, %v4925, %v4927
        %v4929 = vrot.slane %v4649, 2
        %v4930 = vrot.slane %v4650, 2
        %v4931 = vsel %vm1888, %v4929, %v4930
        %v4932 = vrot.slane %v4651, 2
        %v4933 = vsel %vm1888, %v4930, %v4932
        %v4934 = vrot.slane %v4652, 2
        %v4935 = vsel %vm1888, %v4932, %v4934
        %v4936 = vrot.slane %v4653, 2
        %v4937 = vrot.slane %v4654, 2
        %v4938 = vsel %vm1888, %v4936, %v4937
        %v4939 = vrot.slane %v4655, 2
        %v4940 = vsel %vm1888, %v4937, %v4939
        %v4941 = vrot.slane %v4656, 2
        %v4942 = vsel %vm1888, %v4939, %v4941
        %v5047 = vadd.f32 %v4445, %v4763
        %v5048 = vadd.f32 %v4446, %v4765
        %v5049 = vadd.f32 %v4447, %v4767
        %v5050 = vadd.f32 %v4448, %v4766
        %v5051 = vadd.f32 %v4449, %v4770
        %v5052 = vadd.f32 %v4450, %v4772
        %v5053 = vadd.f32 %v4451, %v4774
        %v5054 = vadd.f32 %v4452, %v4773
        %v5055 = vadd.f32 %v4453, %v4777
        %v5056 = vadd.f32 %v4454, %v4779
        %v5057 = vadd.f32 %v4455, %v4781
        %v5058 = vadd.f32 %v4456, %v4780
        %v5059 = vadd.f32 %v4457, %v4784
        %v5060 = vadd.f32 %v4458, %v4786
        %v5061 = vadd.f32 %v4459, %v4788
        %v5062 = vadd.f32 %v4460, %v4787
        %v5063 = vadd.f32 %v4461, %v4791
        %v5064 = vadd.f32 %v4462, %v4793
        %v5065 = vadd.f32 %v4463, %v4795
        %v5066 = vadd.f32 %v4464, %v4794
        %v5067 = vadd.f32 %v4465, %v4798
        %v5068 = vadd.f32 %v4466, %v4800
        %v5069 = vadd.f32 %v4467, %v4802
        %v5070 = vadd.f32 %v4468, %v4801
        %v5071 = vadd.f32 %v4469, %v4805
        %v5072 = vadd.f32 %v4470, %v4807
        %v5073 = vadd.f32 %v4471, %v4809
        %v5074 = vadd.f32 %v4472, %v4808
        %v5075 = vadd.f32 %v4473, %v4812
        %v5076 = vadd.f32 %v4474, %v4814
        %v5077 = vadd.f32 %v4475, %v4816
        %v5078 = vadd.f32 %v4476, %v4815
        %v5079 = vadd.f32 %v4477, %v4819
        %v5080 = vadd.f32 %v4478, %v4821
        %v5081 = vadd.f32 %v4479, %v4823
        %v5082 = vadd.f32 %v4480, %v4822
        %v5083 = vadd.f32 %v4481, %v4826
        %v5084 = vadd.f32 %v4482, %v4828
        %v5085 = vadd.f32 %v4483, %v4830
        %v5086 = vadd.f32 %v4484, %v4829
        %v5087 = vadd.f32 %v4485, %v4833
        %v5088 = vadd.f32 %v4486, %v4835
        %v5089 = vadd.f32 %v4487, %v4837
        %v5090 = vadd.f32 %v4488, %v4836
        %v5091 = vadd.f32 %v4489, %v4840
        %v5092 = vadd.f32 %v4490, %v4842
        %v5093 = vadd.f32 %v4491, %v4844
        %v5094 = vadd.f32 %v4492, %v4843
        %v5095 = vadd.f32 %v4493, %v4847
        %v5096 = vadd.f32 %v4494, %v4849
        %v5097 = vadd.f32 %v4495, %v4851
        %v5098 = vadd.f32 %v4496, %v4850
        %v5099 = vadd.f32 %v4497, %v4854
        %v5100 = vadd.f32 %v4498, %v4856
        %v5101 = vadd.f32 %v4499, %v4858
        %v5102 = vadd.f32 %v4500, %v4857
        %v5103 = vadd.f32 %v4501, %v4861
        %v5104 = vadd.f32 %v4502, %v4863
        %v5105 = vadd.f32 %v4503, %v4865
        %v5106 = vadd.f32 %v4504, %v4864
        %v5107 = vadd.f32 %v4505, %v4868
        %v5108 = vadd.f32 %v4506, %v4870
        %v5109 = vadd.f32 %v4507, %v4872
        %v5110 = vadd.f32 %v4508, %v4871
        %v5111 = vadd.f32 %v4509, %v4875
        %v5112 = vadd.f32 %v4510, %v4877
        %v5113 = vadd.f32 %v4511, %v4879
        %v5114 = vadd.f32 %v4512, %v4878
        %v5115 = vadd.f32 %v4513, %v4882
        %v5116 = vadd.f32 %v4514, %v4884
        %v5117 = vadd.f32 %v4515, %v4886
        %v5118 = vadd.f32 %v4516, %v4885
        %v5119 = vadd.f32 %v4517, %v4889
        %v5120 = vadd.f32 %v4518, %v4891
        %v5121 = vadd.f32 %v4519, %v4893
        %v5122 = vadd.f32 %v4520, %v4892
        %v5123 = vadd.f32 %v4521, %v4896
        %v5124 = vadd.f32 %v4522, %v4898
        %v5125 = vadd.f32 %v4523, %v4900
        %v5126 = vadd.f32 %v4524, %v4899
        %v5127 = vadd.f32 %v4525, %v4903
        %v5128 = vadd.f32 %v4526, %v4905
        %v5129 = vadd.f32 %v4527, %v4907
        %v5130 = vadd.f32 %v4528, %v4906
        %v5131 = vadd.f32 %v4529, %v4910
        %v5132 = vadd.f32 %v4530, %v4912
        %v5133 = vadd.f32 %v4531, %v4914
        %v5134 = vadd.f32 %v4532, %v4913
        %v5135 = vadd.f32 %v4533, %v4917
        %v5136 = vadd.f32 %v4534, %v4919
        %v5137 = vadd.f32 %v4535, %v4921
        %v5138 = vadd.f32 %v4536, %v4920
        %v5139 = vadd.f32 %v4537, %v4924
        %v5140 = vadd.f32 %v4538, %v4926
        %v5141 = vadd.f32 %v4539, %v4928
        %v5142 = vadd.f32 %v4540, %v4927
        %v5143 = vadd.f32 %v4541, %v4931
        %v5144 = vadd.f32 %v4542, %v4933
        %v5145 = vadd.f32 %v4543, %v4935
        %v5146 = vadd.f32 %v4544, %v4934
        %v5147 = vadd.f32 %v4545, %v4938
        %v5148 = vadd.f32 %v4546, %v4940
        %v5149 = vadd.f32 %v4547, %v4942
        %v5150 = vadd.f32 %v4548, %v4941
        %v5151 = vld [vmem:[%s2] sm:$0x1]
        %v5153 = vlaneseq
        %v5154 = vshrl.u32 %v5153, 7
        %v5155 = vsub.s32 0, %v5154
        %v5156 = vrot.slane %v5151, %v5155
        %v5158 = vadd.f32 %v5047, %v5156
        %v5159 = vadd.f32 %v5048, %v5156
        %v5160 = vadd.f32 %v5049, %v5156
        %v5161 = vadd.f32 %v5050, %v5156
        %v5162 = vadd.f32 %v5051, %v5156
        %v5163 = vadd.f32 %v5052, %v5156
        %v5164 = vadd.f32 %v5053, %v5156
        %v5165 = vadd.f32 %v5054, %v5156
        %v5166 = vadd.f32 %v5055, %v5156
        %v5167 = vadd.f32 %v5056, %v5156
        %v5168 = vadd.f32 %v5057, %v5156
        %v5169 = vadd.f32 %v5058, %v5156
        %v5170 = vadd.f32 %v5059, %v5156
        %v5171 = vadd.f32 %v5060, %v5156
        %v5172 = vadd.f32 %v5061, %v5156
        %v5173 = vadd.f32 %v5062, %v5156
        %v5174 = vadd.f32 %v5063, %v5156
        %v5175 = vadd.f32 %v5064, %v5156
        %v5176 = vadd.f32 %v5065, %v5156
        %v5177 = vadd.f32 %v5066, %v5156
        %v5178 = vadd.f32 %v5067, %v5156
        %v5179 = vadd.f32 %v5068, %v5156
        %v5180 = vadd.f32 %v5069, %v5156
        %v5181 = vadd.f32 %v5070, %v5156
        %v5182 = vadd.f32 %v5071, %v5156
        %v5183 = vadd.f32 %v5072, %v5156
        %v5184 = vadd.f32 %v5073, %v5156
        %v5185 = vadd.f32 %v5074, %v5156
        %v5186 = vadd.f32 %v5075, %v5156
        %v5187 = vadd.f32 %v5076, %v5156
        %v5188 = vadd.f32 %v5077, %v5156
        %v5189 = vadd.f32 %v5078, %v5156
        %v5190 = vadd.f32 %v5079, %v5156
        %v5191 = vadd.f32 %v5080, %v5156
        %v5192 = vadd.f32 %v5081, %v5156
        %v5193 = vadd.f32 %v5082, %v5156
        %v5194 = vadd.f32 %v5083, %v5156
        %v5195 = vadd.f32 %v5084, %v5156
        %v5196 = vadd.f32 %v5085, %v5156
        %v5197 = vadd.f32 %v5086, %v5156
        %v5198 = vadd.f32 %v5087, %v5156
        %v5199 = vadd.f32 %v5088, %v5156
        %v5200 = vadd.f32 %v5089, %v5156
        %v5201 = vadd.f32 %v5090, %v5156
        %v5202 = vadd.f32 %v5091, %v5156
        %v5203 = vadd.f32 %v5092, %v5156
        %v5204 = vadd.f32 %v5093, %v5156
        %v5205 = vadd.f32 %v5094, %v5156
        %v5206 = vadd.f32 %v5095, %v5156
        %v5207 = vadd.f32 %v5096, %v5156
        %v5208 = vadd.f32 %v5097, %v5156
        %v5209 = vadd.f32 %v5098, %v5156
        %v5210 = vadd.f32 %v5099, %v5156
        %v5211 = vadd.f32 %v5100, %v5156
        %v5212 = vadd.f32 %v5101, %v5156
        %v5213 = vadd.f32 %v5102, %v5156
        %v5214 = vadd.f32 %v5103, %v5156
        %v5215 = vadd.f32 %v5104, %v5156
        %v5216 = vadd.f32 %v5105, %v5156
        %v5217 = vadd.f32 %v5106, %v5156
        %v5218 = vadd.f32 %v5107, %v5156
        %v5219 = vadd.f32 %v5108, %v5156
        %v5220 = vadd.f32 %v5109, %v5156
        %v5221 = vadd.f32 %v5110, %v5156
        %v5222 = vadd.f32 %v5111, %v5156
        %v5223 = vadd.f32 %v5112, %v5156
        %v5224 = vadd.f32 %v5113, %v5156
        %v5225 = vadd.f32 %v5114, %v5156
        %v5226 = vadd.f32 %v5115, %v5156
        %v5227 = vadd.f32 %v5116, %v5156
        %v5228 = vadd.f32 %v5117, %v5156
        %v5229 = vadd.f32 %v5118, %v5156
        %v5230 = vadd.f32 %v5119, %v5156
        %v5231 = vadd.f32 %v5120, %v5156
        %v5232 = vadd.f32 %v5121, %v5156
        %v5233 = vadd.f32 %v5122, %v5156
        %v5234 = vadd.f32 %v5123, %v5156
        %v5235 = vadd.f32 %v5124, %v5156
        %v5236 = vadd.f32 %v5125, %v5156
        %v5237 = vadd.f32 %v5126, %v5156
        %v5238 = vadd.f32 %v5127, %v5156
        %v5239 = vadd.f32 %v5128, %v5156
        %v5240 = vadd.f32 %v5129, %v5156
        %v5241 = vadd.f32 %v5130, %v5156
        %v5242 = vadd.f32 %v5131, %v5156
        %v5243 = vadd.f32 %v5132, %v5156
        %v5244 = vadd.f32 %v5133, %v5156
        %v5245 = vadd.f32 %v5134, %v5156
        %v5246 = vadd.f32 %v5135, %v5156
        %v5247 = vadd.f32 %v5136, %v5156
        %v5248 = vadd.f32 %v5137, %v5156
        %v5249 = vadd.f32 %v5138, %v5156
        %v5250 = vadd.f32 %v5139, %v5156
        %v5251 = vadd.f32 %v5140, %v5156
        %v5252 = vadd.f32 %v5141, %v5156
        %v5253 = vadd.f32 %v5142, %v5156
        %v5254 = vadd.f32 %v5143, %v5156
        %v5255 = vadd.f32 %v5144, %v5156
        %v5256 = vadd.f32 %v5145, %v5156
        %v5257 = vadd.f32 %v5146, %v5156
        %v5258 = vadd.f32 %v5147, %v5156
        %v5259 = vadd.f32 %v5148, %v5156
        %v5260 = vadd.f32 %v5149, %v5156
        %v5261 = vadd.f32 %v5150, %v5156
        %v5262 = vmax.f32 %v5158, 0.0
        %v5263 = vmax.f32 %v5159, 0.0
        %v5264 = vmax.f32 %v5160, 0.0
        %v5265 = vmax.f32 %v5161, 0.0
        %v5266 = vmax.f32 %v5162, 0.0
        %v5267 = vmax.f32 %v5163, 0.0
        %v5268 = vmax.f32 %v5164, 0.0
        %v5269 = vmax.f32 %v5165, 0.0
        %v5270 = vmax.f32 %v5166, 0.0
        %v5271 = vmax.f32 %v5167, 0.0
        %v5272 = vmax.f32 %v5168, 0.0
        %v5273 = vmax.f32 %v5169, 0.0
        %v5274 = vmax.f32 %v5170, 0.0
        %v5275 = vmax.f32 %v5171, 0.0
        %v5276 = vmax.f32 %v5172, 0.0
        %v5277 = vmax.f32 %v5173, 0.0
        %v5278 = vmax.f32 %v5174, 0.0
        %v5279 = vmax.f32 %v5175, 0.0
        %v5280 = vmax.f32 %v5176, 0.0
        %v5281 = vmax.f32 %v5177, 0.0
        %v5282 = vmax.f32 %v5178, 0.0
        %v5283 = vmax.f32 %v5179, 0.0
        %v5284 = vmax.f32 %v5180, 0.0
        %v5285 = vmax.f32 %v5181, 0.0
        %v5286 = vmax.f32 %v5182, 0.0
        %v5287 = vmax.f32 %v5183, 0.0
        %v5288 = vmax.f32 %v5184, 0.0
        %v5289 = vmax.f32 %v5185, 0.0
        %v5290 = vmax.f32 %v5186, 0.0
        %v5291 = vmax.f32 %v5187, 0.0
        %v5292 = vmax.f32 %v5188, 0.0
        %v5293 = vmax.f32 %v5189, 0.0
        %v5294 = vmax.f32 %v5190, 0.0
        %v5295 = vmax.f32 %v5191, 0.0
        %v5296 = vmax.f32 %v5192, 0.0
        %v5297 = vmax.f32 %v5193, 0.0
        %v5298 = vmax.f32 %v5194, 0.0
        %v5299 = vmax.f32 %v5195, 0.0
        %v5300 = vmax.f32 %v5196, 0.0
        %v5301 = vmax.f32 %v5197, 0.0
        %v5302 = vmax.f32 %v5198, 0.0
        %v5303 = vmax.f32 %v5199, 0.0
        %v5304 = vmax.f32 %v5200, 0.0
        %v5305 = vmax.f32 %v5201, 0.0
        %v5306 = vmax.f32 %v5202, 0.0
        %v5307 = vmax.f32 %v5203, 0.0
        %v5308 = vmax.f32 %v5204, 0.0
        %v5309 = vmax.f32 %v5205, 0.0
        %v5310 = vmax.f32 %v5206, 0.0
        %v5311 = vmax.f32 %v5207, 0.0
        %v5312 = vmax.f32 %v5208, 0.0
        %v5313 = vmax.f32 %v5209, 0.0
        %v5314 = vmax.f32 %v5210, 0.0
        %v5315 = vmax.f32 %v5211, 0.0
        %v5316 = vmax.f32 %v5212, 0.0
        %v5317 = vmax.f32 %v5213, 0.0
        %v5318 = vmax.f32 %v5214, 0.0
        %v5319 = vmax.f32 %v5215, 0.0
        %v5320 = vmax.f32 %v5216, 0.0
        %v5321 = vmax.f32 %v5217, 0.0
        %v5322 = vmax.f32 %v5218, 0.0
        %v5323 = vmax.f32 %v5219, 0.0
        %v5324 = vmax.f32 %v5220, 0.0
        %v5325 = vmax.f32 %v5221, 0.0
        %v5326 = vmax.f32 %v5222, 0.0
        %v5327 = vmax.f32 %v5223, 0.0
        %v5328 = vmax.f32 %v5224, 0.0
        %v5329 = vmax.f32 %v5225, 0.0
        %v5330 = vmax.f32 %v5226, 0.0
        %v5331 = vmax.f32 %v5227, 0.0
        %v5332 = vmax.f32 %v5228, 0.0
        %v5333 = vmax.f32 %v5229, 0.0
        %v5334 = vmax.f32 %v5230, 0.0
        %v5335 = vmax.f32 %v5231, 0.0
        %v5336 = vmax.f32 %v5232, 0.0
        %v5337 = vmax.f32 %v5233, 0.0
        %v5338 = vmax.f32 %v5234, 0.0
        %v5339 = vmax.f32 %v5235, 0.0
        %v5340 = vmax.f32 %v5236, 0.0
        %v5341 = vmax.f32 %v5237, 0.0
        %v5342 = vmax.f32 %v5238, 0.0
        %v5343 = vmax.f32 %v5239, 0.0
        %v5344 = vmax.f32 %v5240, 0.0
        %v5345 = vmax.f32 %v5241, 0.0
        %v5346 = vmax.f32 %v5242, 0.0
        %v5347 = vmax.f32 %v5243, 0.0
        %v5348 = vmax.f32 %v5244, 0.0
        %v5349 = vmax.f32 %v5245, 0.0
        %v5350 = vmax.f32 %v5246, 0.0
        %v5351 = vmax.f32 %v5247, 0.0
        %v5352 = vmax.f32 %v5248, 0.0
        %v5353 = vmax.f32 %v5249, 0.0
        %v5354 = vmax.f32 %v5250, 0.0
        %v5355 = vmax.f32 %v5251, 0.0
        %v5356 = vmax.f32 %v5252, 0.0
        %v5357 = vmax.f32 %v5253, 0.0
        %v5358 = vmax.f32 %v5254, 0.0
        %v5359 = vmax.f32 %v5255, 0.0
        %v5360 = vmax.f32 %v5256, 0.0
        %v5361 = vmax.f32 %v5257, 0.0
        %v5362 = vmax.f32 %v5258, 0.0
        %v5363 = vmax.f32 %v5259, 0.0
        %v5364 = vmax.f32 %v5260, 0.0
        %v5365 = vmax.f32 %v5261, 0.0
        %v5366 = vmax.f32 %v5262, %v5266
        %v5367 = vmax.f32 %v5263, %v5267
        %v5368 = vmax.f32 %v5264, %v5268
        %v5369 = vmax.f32 %v5265, %v5269
        %v5370 = vmax.f32 %v5270, %v5274
        %v5371 = vmax.f32 %v5271, %v5275
        %v5372 = vmax.f32 %v5272, %v5276
        %v5373 = vmax.f32 %v5273, %v5277
        %v5374 = vmax.f32 %v5278, %v5282
        %v5375 = vmax.f32 %v5279, %v5283
        %v5376 = vmax.f32 %v5280, %v5284
        %v5377 = vmax.f32 %v5281, %v5285
        %v5378 = vmax.f32 %v5286, %v5290
        %v5379 = vmax.f32 %v5287, %v5291
        %v5380 = vmax.f32 %v5288, %v5292
        %v5381 = vmax.f32 %v5289, %v5293
        %v5382 = vmax.f32 %v5294, %v5298
        %v5383 = vmax.f32 %v5295, %v5299
        %v5384 = vmax.f32 %v5296, %v5300
        %v5385 = vmax.f32 %v5297, %v5301
        %v5386 = vmax.f32 %v5302, %v5306
        %v5387 = vmax.f32 %v5303, %v5307
        %v5388 = vmax.f32 %v5304, %v5308
        %v5389 = vmax.f32 %v5305, %v5309
        %v5390 = vmax.f32 %v5310, %v5314
        %v5391 = vmax.f32 %v5311, %v5315
        %v5392 = vmax.f32 %v5312, %v5316
        %v5393 = vmax.f32 %v5313, %v5317
        %v5394 = vmax.f32 %v5318, %v5322
        %v5395 = vmax.f32 %v5319, %v5323
        %v5396 = vmax.f32 %v5320, %v5324
        %v5397 = vmax.f32 %v5321, %v5325
        %v5398 = vmax.f32 %v5326, %v5330
        %v5399 = vmax.f32 %v5327, %v5331
        %v5400 = vmax.f32 %v5328, %v5332
        %v5401 = vmax.f32 %v5329, %v5333
        %v5402 = vmax.f32 %v5334, %v5338
        %v5403 = vmax.f32 %v5335, %v5339
        %v5404 = vmax.f32 %v5336, %v5340
        %v5405 = vmax.f32 %v5337, %v5341
        %v5406 = vmax.f32 %v5342, %v5346
        %v5407 = vmax.f32 %v5343, %v5347
        %v5408 = vmax.f32 %v5344, %v5348
        %v5409 = vmax.f32 %v5345, %v5349
        %v5410 = vmax.f32 %v5350, %v5354
        %v5411 = vmax.f32 %v5351, %v5355
        %v5412 = vmax.f32 %v5352, %v5356
        %v5413 = vmax.f32 %v5353, %v5357
        %v5414 = vmax.f32 %v5358, %v5362
        %v5415 = vmax.f32 %v5359, %v5363
        %v5416 = vmax.f32 %v5360, %v5364
        %v5417 = vmax.f32 %v5361, %v5365
        %v5431 = vrot.slane %v5366, 1
        %v5432 = vrot.slane %v5370, 1
        %v5433 = vrot.slane %v5374, 1
        %v5434 = vrot.slane %v5378, 1
        %v5435 = vrot.slane %v5382, 1
        %v5436 = vrot.slane %v5386, 1
        %v5437 = vrot.slane %v5390, 1
        %v5438 = vrot.slane %v5394, 1
        %v5439 = vrot.slane %v5398, 1
        %v5440 = vrot.slane %v5402, 1
        %v5441 = vrot.slane %v5406, 1
        %v5442 = vrot.slane %v5410, 1
        %v5443 = vrot.slane %v5414, 1
        %v5457 = vmax.f32 %v5366, %v5431
        %v5458 = vmax.f32 %v5370, %v5432
        %v5459 = vmax.f32 %v5374, %v5433
        %v5460 = vmax.f32 %v5378, %v5434
        %v5461 = vmax.f32 %v5382, %v5435
        %v5462 = vmax.f32 %v5386, %v5436
        %v5463 = vmax.f32 %v5390, %v5437
        %v5464 = vmax.f32 %v5394, %v5438
        %v5465 = vmax.f32 %v5398, %v5439
        %v5466 = vmax.f32 %v5402, %v5440
        %v5467 = vmax.f32 %v5406, %v5441
        %v5468 = vmax.f32 %v5410, %v5442
        %v5469 = vmax.f32 %v5414, %v5443
        %vm5470 = vcmask 253952
        %5471 = vst.msk [vmem:[#allocation2] sm:$0x1] %vm5470, %v5457
        %5472 = vst.msk [vmem:[#allocation2 + $0x10] sm:$0x1] %vm5470, %v5458
        %5473 = vst.msk [vmem:[#allocation2 + $0x20] sm:$0x1] %vm5470, %v5459
        %5474 = vst.msk [vmem:[#allocation2 + $0x30] sm:$0x1] %vm5470, %v5460
        %5475 = vst.msk [vmem:[#allocation2 + $0x40] sm:$0x1] %vm5470, %v5461
        %5476 = vst.msk [vmem:[#allocation2 + $0x50] sm:$0x1] %vm5470, %v5462
        %5477 = vst.msk [vmem:[#allocation2 + $0x60] sm:$0x1] %vm5470, %v5463
        %5478 = vst.msk [vmem:[#allocation2 + $0x70] sm:$0x1] %vm5470, %v5464
        %5479 = vst.msk [vmem:[#allocation2 + $0x80] sm:$0x1] %vm5470, %v5465
        %5480 = vst.msk [vmem:[#allocation2 + $0x90] sm:$0x1] %vm5470, %v5466
        %5481 = vst.msk [vmem:[#allocation2 + $0xa0] sm:$0x1] %vm5470, %v5467
        %5482 = vst.msk [vmem:[#allocation2 + $0xb0] sm:$0x1] %vm5470, %v5468
        %5483 = vst.msk [vmem:[#allocation2 + $0xc0] sm:$0x1] %vm5470, %v5469
        %vm5484 = vcmask 256002
        %5485 = vst.msk [vmem:[#allocation2 - $0x1] sm:$0x4] %vm5484, %v5457
        %5486 = vst.msk [vmem:[#allocation2 + $0xf] sm:$0x4] %vm5484, %v5458
        %5487 = vst.msk [vmem:[#allocation2 + $0x1f] sm:$0x4] %vm5484, %v5459
        %5488 = vst.msk [vmem:[#allocation2 + $0x2f] sm:$0x4] %vm5484, %v5460
        %5489 = vst.msk [vmem:[#allocation2 + $0x3f] sm:$0x4] %vm5484, %v5461
        %5490 = vst.msk [vmem:[#allocation2 + $0x4f] sm:$0x4] %vm5484, %v5462
        %5491 = vst.msk [vmem:[#allocation2 + $0x5f] sm:$0x4] %vm5484, %v5463
        %5492 = vst.msk [vmem:[#allocation2 + $0x6f] sm:$0x4] %vm5484, %v5464
        %5493 = vst.msk [vmem:[#allocation2 + $0x7f] sm:$0x4] %vm5484, %v5465
        %5494 = vst.msk [vmem:[#allocation2 + $0x8f] sm:$0x4] %vm5484, %v5466
        %5495 = vst.msk [vmem:[#allocation2 + $0x9f] sm:$0x4] %vm5484, %v5467
        %5496 = vst.msk [vmem:[#allocation2 + $0xaf] sm:$0x4] %vm5484, %v5468
        %5497 = vst.msk [vmem:[#allocation2 + $0xbf] sm:$0x4] %vm5484, %v5469
        %vm5498 = vcmask 258052
        %5499 = vst.msk [vmem:[#allocation2 - $0x2] sm:$0x10] %vm5498, %v5457
        %5500 = vst.msk [vmem:[#allocation2 + $0xe] sm:$0x10] %vm5498, %v5458
        %5501 = vst.msk [vmem:[#allocation2 + $0x1e] sm:$0x10] %vm5498, %v5459
        %5502 = vst.msk [vmem:[#allocation2 + $0x2e] sm:$0x10] %vm5498, %v5460
        %5503 = vst.msk [vmem:[#allocation2 + $0x3e] sm:$0x10] %vm5498, %v5461
        %5504 = vst.msk [vmem:[#allocation2 + $0x4e] sm:$0x10] %vm5498, %v5462
        %5505 = vst.msk [vmem:[#allocation2 + $0x5e] sm:$0x10] %vm5498, %v5463
        %5506 = vst.msk [vmem:[#allocation2 + $0x6e] sm:$0x10] %vm5498, %v5464
        %5507 = vst.msk [vmem:[#allocation2 + $0x7e] sm:$0x10] %vm5498, %v5465
        %5508 = vst.msk [vmem:[#allocation2 + $0x8e] sm:$0x10] %vm5498, %v5466
        %5509 = vst.msk [vmem:[#allocation2 + $0x9e] sm:$0x10] %vm5498, %v5467
        %5510 = vst.msk [vmem:[#allocation2 + $0xae] sm:$0x10] %vm5498, %v5468
        %5511 = vst.msk [vmem:[#allocation2 + $0xbe] sm:$0x10] %vm5498, %v5469
        %vm5512 = vcmask 260102
        %5513 = vst.msk [vmem:[#allocation2 - $0x3] sm:$0x40] %vm5512, %v5457
        %5514 = vst.msk [vmem:[#allocation2 + $0xd] sm:$0x40] %vm5512, %v5458
        %5515 = vst.msk [vmem:[#allocation2 + $0x1d] sm:$0x40] %vm5512, %v5459
        %5516 = vst.msk [vmem:[#allocation2 + $0x2d] sm:$0x40] %vm5512, %v5460
        %5517 = vst.msk [vmem:[#allocation2 + $0x3d] sm:$0x40] %vm5512, %v5461
        %5518 = vst.msk [vmem:[#allocation2 + $0x4d] sm:$0x40] %vm5512, %v5462
        %5519 = vst.msk [vmem:[#allocation2 + $0x5d] sm:$0x40] %vm5512, %v5463
        %5520 = vst.msk [vmem:[#allocation2 + $0x6d] sm:$0x40] %vm5512, %v5464
        %5521 = vst.msk [vmem:[#allocation2 + $0x7d] sm:$0x40] %vm5512, %v5465
        %5522 = vst.msk [vmem:[#allocation2 + $0x8d] sm:$0x40] %vm5512, %v5466
        %5523 = vst.msk [vmem:[#allocation2 + $0x9d] sm:$0x40] %vm5512, %v5467
        %5524 = vst.msk [vmem:[#allocation2 + $0xad] sm:$0x40] %vm5512, %v5468
        %5525 = vst.msk [vmem:[#allocation2 + $0xbd] sm:$0x40] %vm5512, %v5469
        %v5539 = vrot.slane %v5367, 1
        %v5540 = vrot.slane %v5371, 1
        %v5541 = vrot.slane %v5375, 1
        %v5542 = vrot.slane %v5379, 1
        %v5543 = vrot.slane %v5383, 1
        %v5544 = vrot.slane %v5387, 1
        %v5545 = vrot.slane %v5391, 1
        %v5546 = vrot.slane %v5395, 1
        %v5547 = vrot.slane %v5399, 1
        %v5548 = vrot.slane %v5403, 1
        %v5549 = vrot.slane %v5407, 1
        %v5550 = vrot.slane %v5411, 1
        %v5551 = vrot.slane %v5415, 1
        %v5565 = vmax.f32 %v5367, %v5539
        %v5566 = vmax.f32 %v5371, %v5540
        %v5567 = vmax.f32 %v5375, %v5541
        %v5568 = vmax.f32 %v5379, %v5542
        %v5569 = vmax.f32 %v5383, %v5543
        %v5570 = vmax.f32 %v5387, %v5544
        %v5571 = vmax.f32 %v5391, %v5545
        %v5572 = vmax.f32 %v5395, %v5546
        %v5573 = vmax.f32 %v5399, %v5547
        %v5574 = vmax.f32 %v5403, %v5548
        %v5575 = vmax.f32 %v5407, %v5549
        %v5576 = vmax.f32 %v5411, %v5550
        %v5577 = vmax.f32 %v5415, %v5551
        %5578 = vst.msk [vmem:[#allocation2 + $0x4] sm:$0x1] %vm5470, %v5565
        %5579 = vst.msk [vmem:[#allocation2 + $0x14] sm:$0x1] %vm5470, %v5566
        %5580 = vst.msk [vmem:[#allocation2 + $0x24] sm:$0x1] %vm5470, %v5567
        %5581 = vst.msk [vmem:[#allocation2 + $0x34] sm:$0x1] %vm5470, %v5568
        %5582 = vst.msk [vmem:[#allocation2 + $0x44] sm:$0x1] %vm5470, %v5569
        %5583 = vst.msk [vmem:[#allocation2 + $0x54] sm:$0x1] %vm5470, %v5570
        %5584 = vst.msk [vmem:[#allocation2 + $0x64] sm:$0x1] %vm5470, %v5571
        %5585 = vst.msk [vmem:[#allocation2 + $0x74] sm:$0x1] %vm5470, %v5572
        %5586 = vst.msk [vmem:[#allocation2 + $0x84] sm:$0x1] %vm5470, %v5573
        %5587 = vst.msk [vmem:[#allocation2 + $0x94] sm:$0x1] %vm5470, %v5574
        %5588 = vst.msk [vmem:[#allocation2 + $0xa4] sm:$0x1] %vm5470, %v5575
        %5589 = vst.msk [vmem:[#allocation2 + $0xb4] sm:$0x1] %vm5470, %v5576
        %5590 = vst.msk [vmem:[#allocation2 + $0xc4] sm:$0x1] %vm5470, %v5577
        %5591 = vst.msk [vmem:[#allocation2 + $0x3] sm:$0x4] %vm5484, %v5565
        %5592 = vst.msk [vmem:[#allocation2 + $0x13] sm:$0x4] %vm5484, %v5566
        %5593 = vst.msk [vmem:[#allocation2 + $0x23] sm:$0x4] %vm5484, %v5567
        %5594 = vst.msk [vmem:[#allocation2 + $0x33] sm:$0x4] %vm5484, %v5568
        %5595 = vst.msk [vmem:[#allocation2 + $0x43] sm:$0x4] %vm5484, %v5569
        %5596 = vst.msk [vmem:[#allocation2 + $0x53] sm:$0x4] %vm5484, %v5570
        %5597 = vst.msk [vmem:[#allocation2 + $0x63] sm:$0x4] %vm5484, %v5571
        %5598 = vst.msk [vmem:[#allocation2 + $0x73] sm:$0x4] %vm5484, %v5572
        %5599 = vst.msk [vmem:[#allocation2 + $0x83] sm:$0x4] %vm5484, %v5573
        %5600 = vst.msk [vmem:[#allocation2 + $0x93] sm:$0x4] %vm5484, %v5574
        %5601 = vst.msk [vmem:[#allocation2 + $0xa3] sm:$0x4] %vm5484, %v5575
        %5602 = vst.msk [vmem:[#allocation2 + $0xb3] sm:$0x4] %vm5484, %v5576
        %5603 = vst.msk [vmem:[#allocation2 + $0xc3] sm:$0x4] %vm5484, %v5577
        %5604 = vst.msk [vmem:[#allocation2 + $0x2] sm:$0x10] %vm5498, %v5565
        %5605 = vst.msk [vmem:[#allocation2 + $0x12] sm:$0x10] %vm5498, %v5566
        %5606 = vst.msk [vmem:[#allocation2 + $0x22] sm:$0x10] %vm5498, %v5567
        %5607 = vst.msk [vmem:[#allocation2 + $0x32] sm:$0x10] %vm5498, %v5568
        %5608 = vst.msk [vmem:[#allocation2 + $0x42] sm:$0x10] %vm5498, %v5569
        %5609 = vst.msk [vmem:[#allocation2 + $0x52] sm:$0x10] %vm5498, %v5570
        %5610 = vst.msk [vmem:[#allocation2 + $0x62] sm:$0x10] %vm5498, %v5571
        %5611 = vst.msk [vmem:[#allocation2 + $0x72] sm:$0x10] %vm5498, %v5572
        %5612 = vst.msk [vmem:[#allocation2 + $0x82] sm:$0x10] %vm5498, %v5573
        %5613 = vst.msk [vmem:[#allocation2 + $0x92] sm:$0x10] %vm5498, %v5574
        %5614 = vst.msk [vmem:[#allocation2 + $0xa2] sm:$0x10] %vm5498, %v5575
        %5615 = vst.msk [vmem:[#allocation2 + $0xb2] sm:$0x10] %vm5498, %v5576
        %5616 = vst.msk [vmem:[#allocation2 + $0xc2] sm:$0x10] %vm5498, %v5577
        %5617 = vst.msk [vmem:[#allocation2 + $0x1] sm:$0x40] %vm5512, %v5565
        %5618 = vst.msk [vmem:[#allocation2 + $0x11] sm:$0x40] %vm5512, %v5566
        %5619 = vst.msk [vmem:[#allocation2 + $0x21] sm:$0x40] %vm5512, %v5567
        %5620 = vst.msk [vmem:[#allocation2 + $0x31] sm:$0x40] %vm5512, %v5568
        %5621 = vst.msk [vmem:[#allocation2 + $0x41] sm:$0x40] %vm5512, %v5569
        %5622 = vst.msk [vmem:[#allocation2 + $0x51] sm:$0x40] %vm5512, %v5570
        %5623 = vst.msk [vmem:[#allocation2 + $0x61] sm:$0x40] %vm5512, %v5571
        %5624 = vst.msk [vmem:[#allocation2 + $0x71] sm:$0x40] %vm5512, %v5572
        %5625 = vst.msk [vmem:[#allocation2 + $0x81] sm:$0x40] %vm5512, %v5573
        %5626 = vst.msk [vmem:[#allocation2 + $0x91] sm:$0x40] %vm5512, %v5574
        %5627 = vst.msk [vmem:[#allocation2 + $0xa1] sm:$0x40] %vm5512, %v5575
        %5628 = vst.msk [vmem:[#allocation2 + $0xb1] sm:$0x40] %vm5512, %v5576
        %5629 = vst.msk [vmem:[#allocation2 + $0xc1] sm:$0x40] %vm5512, %v5577
        %v5643 = vrot.slane %v5368, 1
        %v5644 = vrot.slane %v5372, 1
        %v5645 = vrot.slane %v5376, 1
        %v5646 = vrot.slane %v5380, 1
        %v5647 = vrot.slane %v5384, 1
        %v5648 = vrot.slane %v5388, 1
        %v5649 = vrot.slane %v5392, 1
        %v5650 = vrot.slane %v5396, 1
        %v5651 = vrot.slane %v5400, 1
        %v5652 = vrot.slane %v5404, 1
        %v5653 = vrot.slane %v5408, 1
        %v5654 = vrot.slane %v5412, 1
        %v5655 = vrot.slane %v5416, 1
        %v5669 = vmax.f32 %v5368, %v5643
        %v5670 = vmax.f32 %v5372, %v5644
        %v5671 = vmax.f32 %v5376, %v5645
        %v5672 = vmax.f32 %v5380, %v5646
        %v5673 = vmax.f32 %v5384, %v5647
        %v5674 = vmax.f32 %v5388, %v5648
        %v5675 = vmax.f32 %v5392, %v5649
        %v5676 = vmax.f32 %v5396, %v5650
        %v5677 = vmax.f32 %v5400, %v5651
        %v5678 = vmax.f32 %v5404, %v5652
        %v5679 = vmax.f32 %v5408, %v5653
        %v5680 = vmax.f32 %v5412, %v5654
        %v5681 = vmax.f32 %v5416, %v5655
        %5682 = vst.msk [vmem:[#allocation2 + $0x8] sm:$0x1] %vm5470, %v5669
        %5683 = vst.msk [vmem:[#allocation2 + $0x18] sm:$0x1] %vm5470, %v5670
        %5684 = vst.msk [vmem:[#allocation2 + $0x28] sm:$0x1] %vm5470, %v5671
        %5685 = vst.msk [vmem:[#allocation2 + $0x38] sm:$0x1] %vm5470, %v5672
        %5686 = vst.msk [vmem:[#allocation2 + $0x48] sm:$0x1] %vm5470, %v5673
        %5687 = vst.msk [vmem:[#allocation2 + $0x58] sm:$0x1] %vm5470, %v5674
        %5688 = vst.msk [vmem:[#allocation2 + $0x68] sm:$0x1] %vm5470, %v5675
        %5689 = vst.msk [vmem:[#allocation2 + $0x78] sm:$0x1] %vm5470, %v5676
        %5690 = vst.msk [vmem:[#allocation2 + $0x88] sm:$0x1] %vm5470, %v5677
        %5691 = vst.msk [vmem:[#allocation2 + $0x98] sm:$0x1] %vm5470, %v5678
        %5692 = vst.msk [vmem:[#allocation2 + $0xa8] sm:$0x1] %vm5470, %v5679
        %5693 = vst.msk [vmem:[#allocation2 + $0xb8] sm:$0x1] %vm5470, %v5680
        %5694 = vst.msk [vmem:[#allocation2 + $0xc8] sm:$0x1] %vm5470, %v5681
        %5695 = vst.msk [vmem:[#allocation2 + $0x7] sm:$0x4] %vm5484, %v5669
        %5696 = vst.msk [vmem:[#allocation2 + $0x17] sm:$0x4] %vm5484, %v5670
        %5697 = vst.msk [vmem:[#allocation2 + $0x27] sm:$0x4] %vm5484, %v5671
        %5698 = vst.msk [vmem:[#allocation2 + $0x37] sm:$0x4] %vm5484, %v5672
        %5699 = vst.msk [vmem:[#allocation2 + $0x47] sm:$0x4] %vm5484, %v5673
        %5700 = vst.msk [vmem:[#allocation2 + $0x57] sm:$0x4] %vm5484, %v5674
        %5701 = vst.msk [vmem:[#allocation2 + $0x67] sm:$0x4] %vm5484, %v5675
        %5702 = vst.msk [vmem:[#allocation2 + $0x77] sm:$0x4] %vm5484, %v5676
        %5703 = vst.msk [vmem:[#allocation2 + $0x87] sm:$0x4] %vm5484, %v5677
        %5704 = vst.msk [vmem:[#allocation2 + $0x97] sm:$0x4] %vm5484, %v5678
        %5705 = vst.msk [vmem:[#allocation2 + $0xa7] sm:$0x4] %vm5484, %v5679
        %5706 = vst.msk [vmem:[#allocation2 + $0xb7] sm:$0x4] %vm5484, %v5680
        %5707 = vst.msk [vmem:[#allocation2 + $0xc7] sm:$0x4] %vm5484, %v5681
        %5708 = vst.msk [vmem:[#allocation2 + $0x6] sm:$0x10] %vm5498, %v5669
        %5709 = vst.msk [vmem:[#allocation2 + $0x16] sm:$0x10] %vm5498, %v5670
        %5710 = vst.msk [vmem:[#allocation2 + $0x26] sm:$0x10] %vm5498, %v5671
        %5711 = vst.msk [vmem:[#allocation2 + $0x36] sm:$0x10] %vm5498, %v5672
        %5712 = vst.msk [vmem:[#allocation2 + $0x46] sm:$0x10] %vm5498, %v5673
        %5713 = vst.msk [vmem:[#allocation2 + $0x56] sm:$0x10] %vm5498, %v5674
        %5714 = vst.msk [vmem:[#allocation2 + $0x66] sm:$0x10] %vm5498, %v5675
        %5715 = vst.msk [vmem:[#allocation2 + $0x76] sm:$0x10] %vm5498, %v5676
        %5716 = vst.msk [vmem:[#allocation2 + $0x86] sm:$0x10] %vm5498, %v5677
        %5717 = vst.msk [vmem:[#allocation2 + $0x96] sm:$0x10] %vm5498, %v5678
        %5718 = vst.msk [vmem:[#allocation2 + $0xa6] sm:$0x10] %vm5498, %v5679
        %5719 = vst.msk [vmem:[#allocation2 + $0xb6] sm:$0x10] %vm5498, %v5680
        %5720 = vst.msk [vmem:[#allocation2 + $0xc6] sm:$0x10] %vm5498, %v5681
        %5721 = vst.msk [vmem:[#allocation2 + $0x5] sm:$0x40] %vm5512, %v5669
        %5722 = vst.msk [vmem:[#allocation2 + $0x15] sm:$0x40] %vm5512, %v5670
        %5723 = vst.msk [vmem:[#allocation2 + $0x25] sm:$0x40] %vm5512, %v5671
        %5724 = vst.msk [vmem:[#allocation2 + $0x35] sm:$0x40] %vm5512, %v5672
        %5725 = vst.msk [vmem:[#allocation2 + $0x45] sm:$0x40] %vm5512, %v5673
        %5726 = vst.msk [vmem:[#allocation2 + $0x55] sm:$0x40] %vm5512, %v5674
        %5727 = vst.msk [vmem:[#allocation2 + $0x65] sm:$0x40] %vm5512, %v5675
        %5728 = vst.msk [vmem:[#allocation2 + $0x75] sm:$0x40] %vm5512, %v5676
        %5729 = vst.msk [vmem:[#allocation2 + $0x85] sm:$0x40] %vm5512, %v5677
        %5730 = vst.msk [vmem:[#allocation2 + $0x95] sm:$0x40] %vm5512, %v5678
        %5731 = vst.msk [vmem:[#allocation2 + $0xa5] sm:$0x40] %vm5512, %v5679
        %5732 = vst.msk [vmem:[#allocation2 + $0xb5] sm:$0x40] %vm5512, %v5680
        %5733 = vst.msk [vmem:[#allocation2 + $0xc5] sm:$0x40] %vm5512, %v5681
        %v5747 = vrot.slane %v5369, 1
        %v5748 = vrot.slane %v5373, 1
        %v5749 = vrot.slane %v5377, 1
        %v5750 = vrot.slane %v5381, 1
        %v5751 = vrot.slane %v5385, 1
        %v5752 = vrot.slane %v5389, 1
        %v5753 = vrot.slane %v5393, 1
        %v5754 = vrot.slane %v5397, 1
        %v5755 = vrot.slane %v5401, 1
        %v5756 = vrot.slane %v5405, 1
        %v5757 = vrot.slane %v5409, 1
        %v5758 = vrot.slane %v5413, 1
        %v5759 = vrot.slane %v5417, 1
        %v5773 = vmax.f32 %v5369, %v5747
        %v5774 = vmax.f32 %v5373, %v5748
        %v5775 = vmax.f32 %v5377, %v5749
        %v5776 = vmax.f32 %v5381, %v5750
        %v5777 = vmax.f32 %v5385, %v5751
        %v5778 = vmax.f32 %v5389, %v5752
        %v5779 = vmax.f32 %v5393, %v5753
        %v5780 = vmax.f32 %v5397, %v5754
        %v5781 = vmax.f32 %v5401, %v5755
        %v5782 = vmax.f32 %v5405, %v5756
        %v5783 = vmax.f32 %v5409, %v5757
        %v5784 = vmax.f32 %v5413, %v5758
        %v5785 = vmax.f32 %v5417, %v5759
        %5786 = vst.msk [vmem:[#allocation2 + $0xc] sm:$0x1] %vm5470, %v5773
        %5787 = vst.msk [vmem:[#allocation2 + $0x1c] sm:$0x1] %vm5470, %v5774
        %5788 = vst.msk [vmem:[#allocation2 + $0x2c] sm:$0x1] %vm5470, %v5775
        %5789 = vst.msk [vmem:[#allocation2 + $0x3c] sm:$0x1] %vm5470, %v5776
        %5790 = vst.msk [vmem:[#allocation2 + $0x4c] sm:$0x1] %vm5470, %v5777
        %5791 = vst.msk [vmem:[#allocation2 + $0x5c] sm:$0x1] %vm5470, %v5778
        %5792 = vst.msk [vmem:[#allocation2 + $0x6c] sm:$0x1] %vm5470, %v5779
        %5793 = vst.msk [vmem:[#allocation2 + $0x7c] sm:$0x1] %vm5470, %v5780
        %5794 = vst.msk [vmem:[#allocation2 + $0x8c] sm:$0x1] %vm5470, %v5781
        %5795 = vst.msk [vmem:[#allocation2 + $0x9c] sm:$0x1] %vm5470, %v5782
        %5796 = vst.msk [vmem:[#allocation2 + $0xac] sm:$0x1] %vm5470, %v5783
        %5797 = vst.msk [vmem:[#allocation2 + $0xbc] sm:$0x1] %vm5470, %v5784
        %5798 = vst.msk [vmem:[#allocation2 + $0xcc] sm:$0x1] %vm5470, %v5785
        %v5799 = vld [vmem:[#allocation2] sm:$0xff]
        %v5800 = vld [vmem:[#allocation2 + $0x8] sm:$0x7]
        %v5801 = vld [vmem:[#allocation2 + $0x10] sm:$0xff]
        %v5802 = vld [vmem:[#allocation2 + $0x18] sm:$0x7]
        %v5803 = vld [vmem:[#allocation2 + $0x20] sm:$0xff]
        %v5804 = vld [vmem:[#allocation2 + $0x28] sm:$0x7]
        %v5805 = vld [vmem:[#allocation2 + $0x30] sm:$0xff]
        %v5806 = vld [vmem:[#allocation2 + $0x38] sm:$0x7]
        %v5807 = vld [vmem:[#allocation2 + $0x40] sm:$0xff]
        %v5808 = vld [vmem:[#allocation2 + $0x48] sm:$0x7]
        %v5809 = vld [vmem:[#allocation2 + $0x50] sm:$0xff]
        %v5810 = vld [vmem:[#allocation2 + $0x58] sm:$0x7]
        %v5811 = vld [vmem:[#allocation2 + $0x60] sm:$0xff]
        %v5812 = vld [vmem:[#allocation2 + $0x68] sm:$0x7]
        %v5813 = vld [vmem:[#allocation2 + $0x70] sm:$0xff]
        %v5814 = vld [vmem:[#allocation2 + $0x78] sm:$0x7]
        %v5815 = vld [vmem:[#allocation2 + $0x80] sm:$0xff]
        %v5816 = vld [vmem:[#allocation2 + $0x88] sm:$0x7]
        %v5817 = vld [vmem:[#allocation2 + $0x90] sm:$0xff]
        %v5818 = vld [vmem:[#allocation2 + $0x98] sm:$0x7]
        %v5819 = vld [vmem:[#allocation2 + $0xa0] sm:$0xff]
        %v5820 = vld [vmem:[#allocation2 + $0xa8] sm:$0x7]
        %vm5821 = vcmask 261120
        %5822 = vst.msk [vmem:[#allocation3] sm:$0xff] %vm5821, %v5799
        %vm5823 = vcmask 256000
        %5824 = vst.msk [vmem:[#allocation3 + $0x18] sm:$0x7] %vm5823, %v5800
        %5825 = vst.msk [vmem:[#allocation3 + $0x30] sm:$0xff] %vm5821, %v5801
        %5826 = vst.msk [vmem:[#allocation3 + $0x48] sm:$0x7] %vm5823, %v5802
        %5827 = vst.msk [vmem:[#allocation3 + $0x60] sm:$0xff] %vm5821, %v5803
        %5828 = vst.msk [vmem:[#allocation3 + $0x78] sm:$0x7] %vm5823, %v5804
        %5829 = vst.msk [vmem:[#allocation3 + $0x90] sm:$0xff] %vm5821, %v5805
        %5830 = vst.msk [vmem:[#allocation3 + $0xa8] sm:$0x7] %vm5823, %v5806
        %5831 = vst.msk [vmem:[#allocation3 + $0xc0] sm:$0xff] %vm5821, %v5807
        %5832 = vst.msk [vmem:[#allocation3 + $0xd8] sm:$0x7] %vm5823, %v5808
        %5833 = vst.msk [vmem:[#allocation3 + $0xf0] sm:$0xff] %vm5821, %v5809
        %5834 = vst.msk [vmem:[#allocation3 + $0x108] sm:$0x7] %vm5823, %v5810
        %5835 = vst.msk [vmem:[#allocation3 + $0x120] sm:$0xff] %vm5821, %v5811
        %5836 = vst.msk [vmem:[#allocation3 + $0x138] sm:$0x7] %vm5823, %v5812
        %5837 = vst.msk [vmem:[#allocation3 + $0x150] sm:$0xff] %vm5821, %v5813
        %5838 = vst.msk [vmem:[#allocation3 + $0x168] sm:$0x7] %vm5823, %v5814
        %5839 = vst.msk [vmem:[#allocation3 + $0x180] sm:$0xff] %vm5821, %v5815
        %5840 = vst.msk [vmem:[#allocation3 + $0x198] sm:$0x7] %vm5823, %v5816
        %5841 = vst.msk [vmem:[#allocation3 + $0x1b0] sm:$0xff] %vm5821, %v5817
        %5842 = vst.msk [vmem:[#allocation3 + $0x1c8] sm:$0x7] %vm5823, %v5818
        %5843 = vst.msk [vmem:[#allocation3 + $0x1e0] sm:$0xff] %vm5821, %v5819
        %5844 = vst.msk [vmem:[#allocation3 + $0x1f8] sm:$0x7] %vm5823, %v5820
        %v5845 = vld [vmem:[#allocation2 + $0x1] sm:$0xff]
        %v5846 = vld [vmem:[#allocation2 + $0x9] sm:$0x7]
        %v5847 = vld [vmem:[#allocation2 + $0x11] sm:$0xff]
        %v5848 = vld [vmem:[#allocation2 + $0x19] sm:$0x7]
        %v5849 = vld [vmem:[#allocation2 + $0x21] sm:$0xff]
        %v5850 = vld [vmem:[#allocation2 + $0x29] sm:$0x7]
        %v5851 = vld [vmem:[#allocation2 + $0x31] sm:$0xff]
        %v5852 = vld [vmem:[#allocation2 + $0x39] sm:$0x7]
        %v5853 = vld [vmem:[#allocation2 + $0x41] sm:$0xff]
        %v5854 = vld [vmem:[#allocation2 + $0x49] sm:$0x7]
        %v5855 = vld [vmem:[#allocation2 + $0x51] sm:$0xff]
        %v5856 = vld [vmem:[#allocation2 + $0x59] sm:$0x7]
        %v5857 = vld [vmem:[#allocation2 + $0x61] sm:$0xff]
        %v5858 = vld [vmem:[#allocation2 + $0x69] sm:$0x7]
        %v5859 = vld [vmem:[#allocation2 + $0x71] sm:$0xff]
        %v5860 = vld [vmem:[#allocation2 + $0x79] sm:$0x7]
        %v5861 = vld [vmem:[#allocation2 + $0x81] sm:$0xff]
        %v5862 = vld [vmem:[#allocation2 + $0x89] sm:$0x7]
        %v5863 = vld [vmem:[#allocation2 + $0x91] sm:$0xff]
        %v5864 = vld [vmem:[#allocation2 + $0x99] sm:$0x7]
        %v5865 = vld [vmem:[#allocation2 + $0xa1] sm:$0xff]
        %v5866 = vld [vmem:[#allocation2 + $0xa9] sm:$0x7]
        %5889 = vrot.lane.b32.xlu0 %v5845, 32
        %v5890 = vpop.permute.xlu0 %5889
        %5891 = vrot.lane.b32.xlu0 %v5846, 32
        %v5892 = vpop.permute.xlu0 %5891
        %5893 = vrot.lane.b32.xlu0 %v5847, 32
        %v5894 = vpop.permute.xlu0 %5893
        %5895 = vrot.lane.b32.xlu0 %v5848, 32
        %v5896 = vpop.permute.xlu0 %5895
        %5897 = vrot.lane.b32.xlu0 %v5849, 32
        %v5898 = vpop.permute.xlu0 %5897
        %5899 = vrot.lane.b32.xlu0 %v5850, 32
        %v5900 = vpop.permute.xlu0 %5899
        %5901 = vrot.lane.b32.xlu0 %v5851, 32
        %v5902 = vpop.permute.xlu0 %5901
        %5903 = vrot.lane.b32.xlu0 %v5852, 32
        %v5904 = vpop.permute.xlu0 %5903
        %5905 = vrot.lane.b32.xlu0 %v5853, 32
        %v5906 = vpop.permute.xlu0 %5905
        %5907 = vrot.lane.b32.xlu0 %v5854, 32
        %v5908 = vpop.permute.xlu0 %5907
        %5909 = vrot.lane.b32.xlu0 %v5855, 32
        %v5910 = vpop.permute.xlu0 %5909
        %5911 = vrot.lane.b32.xlu0 %v5856, 32
        %v5912 = vpop.permute.xlu0 %5911
        %5913 = vrot.lane.b32.xlu0 %v5857, 32
        %v5914 = vpop.permute.xlu0 %5913
        %5915 = vrot.lane.b32.xlu0 %v5858, 32
        %v5916 = vpop.permute.xlu0 %5915
        %5917 = vrot.lane.b32.xlu0 %v5859, 32
        %v5918 = vpop.permute.xlu0 %5917
        %5919 = vrot.lane.b32.xlu0 %v5860, 32
        %v5920 = vpop.permute.xlu0 %5919
        %5921 = vrot.lane.b32.xlu0 %v5861, 32
        %v5922 = vpop.permute.xlu0 %5921
        %5923 = vrot.lane.b32.xlu0 %v5862, 32
        %v5924 = vpop.permute.xlu0 %5923
        %5925 = vrot.lane.b32.xlu0 %v5863, 32
        %v5926 = vpop.permute.xlu0 %5925
        %5927 = vrot.lane.b32.xlu0 %v5864, 32
        %v5928 = vpop.permute.xlu0 %5927
        %5929 = vrot.lane.b32.xlu0 %v5865, 32
        %v5930 = vpop.permute.xlu0 %5929
        %5931 = vrot.lane.b32.xlu0 %v5866, 32
        %v5932 = vpop.permute.xlu0 %5931
        %vm5955 = vcmask 523520
        %5956 = vst.msk [vmem:[#allocation3] sm:$0xff] %vm5955, %v5890
        %vm5957 = vcmask 518400
        %5958 = vst.msk [vmem:[#allocation3 + $0x18] sm:$0x7] %vm5957, %v5892
        %5959 = vst.msk [vmem:[#allocation3 + $0x30] sm:$0xff] %vm5955, %v5894
        %5960 = vst.msk [vmem:[#allocation3 + $0x48] sm:$0x7] %vm5957, %v5896
        %5961 = vst.msk [vmem:[#allocation3 + $0x60] sm:$0xff] %vm5955, %v5898
        %5962 = vst.msk [vmem:[#allocation3 + $0x78] sm:$0x7] %vm5957, %v5900
        %5963 = vst.msk [vmem:[#allocation3 + $0x90] sm:$0xff] %vm5955, %v5902
        %5964 = vst.msk [vmem:[#allocation3 + $0xa8] sm:$0x7] %vm5957, %v5904
        %5965 = vst.msk [vmem:[#allocation3 + $0xc0] sm:$0xff] %vm5955, %v5906
        %5966 = vst.msk [vmem:[#allocation3 + $0xd8] sm:$0x7] %vm5957, %v5908
        %5967 = vst.msk [vmem:[#allocation3 + $0xf0] sm:$0xff] %vm5955, %v5910
        %5968 = vst.msk [vmem:[#allocation3 + $0x108] sm:$0x7] %vm5957, %v5912
        %5969 = vst.msk [vmem:[#allocation3 + $0x120] sm:$0xff] %vm5955, %v5914
        %5970 = vst.msk [vmem:[#allocation3 + $0x138] sm:$0x7] %vm5957, %v5916
        %5971 = vst.msk [vmem:[#allocation3 + $0x150] sm:$0xff] %vm5955, %v5918
        %5972 = vst.msk [vmem:[#allocation3 + $0x168] sm:$0x7] %vm5957, %v5920
        %5973 = vst.msk [vmem:[#allocation3 + $0x180] sm:$0xff] %vm5955, %v5922
        %5974 = vst.msk [vmem:[#allocation3 + $0x198] sm:$0x7] %vm5957, %v5924
        %5975 = vst.msk [vmem:[#allocation3 + $0x1b0] sm:$0xff] %vm5955, %v5926
        %5976 = vst.msk [vmem:[#allocation3 + $0x1c8] sm:$0x7] %vm5957, %v5928
        %5977 = vst.msk [vmem:[#allocation3 + $0x1e0] sm:$0xff] %vm5955, %v5930
        %5978 = vst.msk [vmem:[#allocation3 + $0x1f8] sm:$0x7] %vm5957, %v5932
        %v5979 = vld [vmem:[#allocation2 + $0x2] sm:$0xff]
        %v5980 = vld [vmem:[#allocation2 + $0xa] sm:$0x7]
        %v5981 = vld [vmem:[#allocation2 + $0x12] sm:$0xff]
        %v5982 = vld [vmem:[#allocation2 + $0x1a] sm:$0x7]
        %v5983 = vld [vmem:[#allocation2 + $0x22] sm:$0xff]
        %v5984 = vld [vmem:[#allocation2 + $0x2a] sm:$0x7]
        %v5985 = vld [vmem:[#allocation2 + $0x32] sm:$0xff]
        %v5986 = vld [vmem:[#allocation2 + $0x3a] sm:$0x7]
        %v5987 = vld [vmem:[#allocation2 + $0x42] sm:$0xff]
        %v5988 = vld [vmem:[#allocation2 + $0x4a] sm:$0x7]
        %v5989 = vld [vmem:[#allocation2 + $0x52] sm:$0xff]
        %v5990 = vld [vmem:[#allocation2 + $0x5a] sm:$0x7]
        %v5991 = vld [vmem:[#allocation2 + $0x62] sm:$0xff]
        %v5992 = vld [vmem:[#allocation2 + $0x6a] sm:$0x7]
        %v5993 = vld [vmem:[#allocation2 + $0x72] sm:$0xff]
        %v5994 = vld [vmem:[#allocation2 + $0x7a] sm:$0x7]
        %v5995 = vld [vmem:[#allocation2 + $0x82] sm:$0xff]
        %v5996 = vld [vmem:[#allocation2 + $0x8a] sm:$0x7]
        %v5997 = vld [vmem:[#allocation2 + $0x92] sm:$0xff]
        %v5998 = vld [vmem:[#allocation2 + $0x9a] sm:$0x7]
        %v5999 = vld [vmem:[#allocation2 + $0xa2] sm:$0xff]
        %v6000 = vld [vmem:[#allocation2 + $0xaa] sm:$0x7]
        %6023 = vrot.lane.b32.xlu0 %v5979, 64
        %v6024 = vpop.permute.xlu0 %6023
        %6025 = vrot.lane.b32.xlu0 %v5980, 64
        %v6026 = vpop.permute.xlu0 %6025
        %6027 = vrot.lane.b32.xlu0 %v5981, 64
        %v6028 = vpop.permute.xlu0 %6027
        %6029 = vrot.lane.b32.xlu0 %v5982, 64
        %v6030 = vpop.permute.xlu0 %6029
        %6031 = vrot.lane.b32.xlu0 %v5983, 64
        %v6032 = vpop.permute.xlu0 %6031
        %6033 = vrot.lane.b32.xlu0 %v5984, 64
        %v6034 = vpop.permute.xlu0 %6033
        %6035 = vrot.lane.b32.xlu0 %v5985, 64
        %v6036 = vpop.permute.xlu0 %6035
        %6037 = vrot.lane.b32.xlu0 %v5986, 64
        %v6038 = vpop.permute.xlu0 %6037
        %6039 = vrot.lane.b32.xlu0 %v5987, 64
        %v6040 = vpop.permute.xlu0 %6039
        %6041 = vrot.lane.b32.xlu0 %v5988, 64
        %v6042 = vpop.permute.xlu0 %6041
        %6043 = vrot.lane.b32.xlu0 %v5989, 64
        %v6044 = vpop.permute.xlu0 %6043
        %6045 = vrot.lane.b32.xlu0 %v5990, 64
        %v6046 = vpop.permute.xlu0 %6045
        %6047 = vrot.lane.b32.xlu0 %v5991, 64
        %v6048 = vpop.permute.xlu0 %6047
        %6049 = vrot.lane.b32.xlu0 %v5992, 64
        %v6050 = vpop.permute.xlu0 %6049
        %6051 = vrot.lane.b32.xlu0 %v5993, 64
        %v6052 = vpop.permute.xlu0 %6051
        %6053 = vrot.lane.b32.xlu0 %v5994, 64
        %v6054 = vpop.permute.xlu0 %6053
        %6055 = vrot.lane.b32.xlu0 %v5995, 64
        %v6056 = vpop.permute.xlu0 %6055
        %6057 = vrot.lane.b32.xlu0 %v5996, 64
        %v6058 = vpop.permute.xlu0 %6057
        %6059 = vrot.lane.b32.xlu0 %v5997, 64
        %v6060 = vpop.permute.xlu0 %6059
        %6061 = vrot.lane.b32.xlu0 %v5998, 64
        %v6062 = vpop.permute.xlu0 %6061
        %6063 = vrot.lane.b32.xlu0 %v5999, 64
        %v6064 = vpop.permute.xlu0 %6063
        %6065 = vrot.lane.b32.xlu0 %v6000, 64
        %v6066 = vpop.permute.xlu0 %6065
        %vm6089 = vcmask 785920
        %6090 = vst.msk [vmem:[#allocation3] sm:$0xff] %vm6089, %v6024
        %vm6091 = vcmask 780800
        %6092 = vst.msk [vmem:[#allocation3 + $0x18] sm:$0x7] %vm6091, %v6026
        %6093 = vst.msk [vmem:[#allocation3 + $0x30] sm:$0xff] %vm6089, %v6028
        %6094 = vst.msk [vmem:[#allocation3 + $0x48] sm:$0x7] %vm6091, %v6030
        %6095 = vst.msk [vmem:[#allocation3 + $0x60] sm:$0xff] %vm6089, %v6032
        %6096 = vst.msk [vmem:[#allocation3 + $0x78] sm:$0x7] %vm6091, %v6034
        %6097 = vst.msk [vmem:[#allocation3 + $0x90] sm:$0xff] %vm6089, %v6036
        %6098 = vst.msk [vmem:[#allocation3 + $0xa8] sm:$0x7] %vm6091, %v6038
        %6099 = vst.msk [vmem:[#allocation3 + $0xc0] sm:$0xff] %vm6089, %v6040
        %6100 = vst.msk [vmem:[#allocation3 + $0xd8] sm:$0x7] %vm6091, %v6042
        %6101 = vst.msk [vmem:[#allocation3 + $0xf0] sm:$0xff] %vm6089, %v6044
        %6102 = vst.msk [vmem:[#allocation3 + $0x108] sm:$0x7] %vm6091, %v6046
        %6103 = vst.msk [vmem:[#allocation3 + $0x120] sm:$0xff] %vm6089, %v6048
        %6104 = vst.msk [vmem:[#allocation3 + $0x138] sm:$0x7] %vm6091, %v6050
        %6105 = vst.msk [vmem:[#allocation3 + $0x150] sm:$0xff] %vm6089, %v6052
        %6106 = vst.msk [vmem:[#allocation3 + $0x168] sm:$0x7] %vm6091, %v6054
        %6107 = vst.msk [vmem:[#allocation3 + $0x180] sm:$0xff] %vm6089, %v6056
        %6108 = vst.msk [vmem:[#allocation3 + $0x198] sm:$0x7] %vm6091, %v6058
        %6109 = vst.msk [vmem:[#allocation3 + $0x1b0] sm:$0xff] %vm6089, %v6060
        %6110 = vst.msk [vmem:[#allocation3 + $0x1c8] sm:$0x7] %vm6091, %v6062
        %6111 = vst.msk [vmem:[#allocation3 + $0x1e0] sm:$0xff] %vm6089, %v6064
        %6112 = vst.msk [vmem:[#allocation3 + $0x1f8] sm:$0x7] %vm6091, %v6066
        %s6113 = scalar_lea.vmem [#allocation2], 16
        %v6114 = vld [vmem:[%s6113] sm:$0xff]
        %v6115 = vld [vmem:[%s6113 + $0x8] sm:$0x7]
        %v6116 = vld [vmem:[%s6113 + $0x10] sm:$0xff]
        %v6117 = vld [vmem:[%s6113 + $0x18] sm:$0x7]
        %v6118 = vld [vmem:[%s6113 + $0x20] sm:$0xff]
        %v6119 = vld [vmem:[%s6113 + $0x28] sm:$0x7]
        %v6120 = vld [vmem:[%s6113 + $0x30] sm:$0xff]
        %v6121 = vld [vmem:[%s6113 + $0x38] sm:$0x7]
        %v6122 = vld [vmem:[%s6113 + $0x40] sm:$0xff]
        %v6123 = vld [vmem:[%s6113 + $0x48] sm:$0x7]
        %v6124 = vld [vmem:[%s6113 + $0x50] sm:$0xff]
        %v6125 = vld [vmem:[%s6113 + $0x58] sm:$0x7]
        %v6126 = vld [vmem:[%s6113 + $0x60] sm:$0xff]
        %v6127 = vld [vmem:[%s6113 + $0x68] sm:$0x7]
        %v6128 = vld [vmem:[%s6113 + $0x70] sm:$0xff]
        %v6129 = vld [vmem:[%s6113 + $0x78] sm:$0x7]
        %v6130 = vld [vmem:[%s6113 + $0x80] sm:$0xff]
        %v6131 = vld [vmem:[%s6113 + $0x88] sm:$0x7]
        %v6132 = vld [vmem:[%s6113 + $0x90] sm:$0xff]
        %v6133 = vld [vmem:[%s6113 + $0x98] sm:$0x7]
        %v6134 = vld [vmem:[%s6113 + $0xa0] sm:$0xff]
        %v6135 = vld [vmem:[%s6113 + $0xa8] sm:$0x7]
        %6158 = vrot.lane.b32.xlu0 %v6114, 96
        %v6159 = vpop.permute.xlu0 %6158
        %6160 = vrot.lane.b32.xlu0 %v6115, 96
        %v6161 = vpop.permute.xlu0 %6160
        %6162 = vrot.lane.b32.xlu0 %v6116, 96
        %v6163 = vpop.permute.xlu0 %6162
        %6164 = vrot.lane.b32.xlu0 %v6117, 96
        %v6165 = vpop.permute.xlu0 %6164
        %6166 = vrot.lane.b32.xlu0 %v6118, 96
        %v6167 = vpop.permute.xlu0 %6166
        %6168 = vrot.lane.b32.xlu0 %v6119, 96
        %v6169 = vpop.permute.xlu0 %6168
        %6170 = vrot.lane.b32.xlu0 %v6120, 96
        %v6171 = vpop.permute.xlu0 %6170
        %6172 = vrot.lane.b32.xlu0 %v6121, 96
        %v6173 = vpop.permute.xlu0 %6172
        %6174 = vrot.lane.b32.xlu0 %v6122, 96
        %v6175 = vpop.permute.xlu0 %6174
        %6176 = vrot.lane.b32.xlu0 %v6123, 96
        %v6177 = vpop.permute.xlu0 %6176
        %6178 = vrot.lane.b32.xlu0 %v6124, 96
        %v6179 = vpop.permute.xlu0 %6178
        %6180 = vrot.lane.b32.xlu0 %v6125, 96
        %v6181 = vpop.permute.xlu0 %6180
        %6182 = vrot.lane.b32.xlu0 %v6126, 96
        %v6183 = vpop.permute.xlu0 %6182
        %6184 = vrot.lane.b32.xlu0 %v6127, 96
        %v6185 = vpop.permute.xlu0 %6184
        %6186 = vrot.lane.b32.xlu0 %v6128, 96
        %v6187 = vpop.permute.xlu0 %6186
        %6188 = vrot.lane.b32.xlu0 %v6129, 96
        %v6189 = vpop.permute.xlu0 %6188
        %6190 = vrot.lane.b32.xlu0 %v6130, 96
        %v6191 = vpop.permute.xlu0 %6190
        %6192 = vrot.lane.b32.xlu0 %v6131, 96
        %v6193 = vpop.permute.xlu0 %6192
        %6194 = vrot.lane.b32.xlu0 %v6132, 96
        %v6195 = vpop.permute.xlu0 %6194
        %6196 = vrot.lane.b32.xlu0 %v6133, 96
        %v6197 = vpop.permute.xlu0 %6196
        %6198 = vrot.lane.b32.xlu0 %v6134, 96
        %v6199 = vpop.permute.xlu0 %6198
        %6200 = vrot.lane.b32.xlu0 %v6135, 96
        %v6201 = vpop.permute.xlu0 %6200
        %vm6224 = vcmask 1048320
        %6225 = vst.msk [vmem:[#allocation3] sm:$0xff] %vm6224, %v6159
        %vm6226 = vcmask 1043200
        %6227 = vst.msk [vmem:[#allocation3 + $0x18] sm:$0x7] %vm6226, %v6161
        %6228 = vst.msk [vmem:[#allocation3 + $0x30] sm:$0xff] %vm6224, %v6163
        %6229 = vst.msk [vmem:[#allocation3 + $0x48] sm:$0x7] %vm6226, %v6165
        %6230 = vst.msk [vmem:[#allocation3 + $0x60] sm:$0xff] %vm6224, %v6167
        %6231 = vst.msk [vmem:[#allocation3 + $0x78] sm:$0x7] %vm6226, %v6169
        %6232 = vst.msk [vmem:[#allocation3 + $0x90] sm:$0xff] %vm6224, %v6171
        %6233 = vst.msk [vmem:[#allocation3 + $0xa8] sm:$0x7] %vm6226, %v6173
        %6234 = vst.msk [vmem:[#allocation3 + $0xc0] sm:$0xff] %vm6224, %v6175
        %6235 = vst.msk [vmem:[#allocation3 + $0xd8] sm:$0x7] %vm6226, %v6177
        %6236 = vst.msk [vmem:[#allocation3 + $0xf0] sm:$0xff] %vm6224, %v6179
        %6237 = vst.msk [vmem:[#allocation3 + $0x108] sm:$0x7] %vm6226, %v6181
        %6238 = vst.msk [vmem:[#allocation3 + $0x120] sm:$0xff] %vm6224, %v6183
        %6239 = vst.msk [vmem:[#allocation3 + $0x138] sm:$0x7] %vm6226, %v6185
        %6240 = vst.msk [vmem:[#allocation3 + $0x150] sm:$0xff] %vm6224, %v6187
        %6241 = vst.msk [vmem:[#allocation3 + $0x168] sm:$0x7] %vm6226, %v6189
        %6242 = vst.msk [vmem:[#allocation3 + $0x180] sm:$0xff] %vm6224, %v6191
        %6243 = vst.msk [vmem:[#allocation3 + $0x198] sm:$0x7] %vm6226, %v6193
        %6244 = vst.msk [vmem:[#allocation3 + $0x1b0] sm:$0xff] %vm6224, %v6195
        %6245 = vst.msk [vmem:[#allocation3 + $0x1c8] sm:$0x7] %vm6226, %v6197
        %6246 = vst.msk [vmem:[#allocation3 + $0x1e0] sm:$0xff] %vm6224, %v6199
        %6247 = vst.msk [vmem:[#allocation3 + $0x1f8] sm:$0x7] %vm6226, %v6201
        %v6248 = vld [vmem:[%s6113 + $0x1] sm:$0xff]
        %v6249 = vld [vmem:[%s6113 + $0x9] sm:$0x7]
        %v6250 = vld [vmem:[%s6113 + $0x11] sm:$0xff]
        %v6251 = vld [vmem:[%s6113 + $0x19] sm:$0x7]
        %v6252 = vld [vmem:[%s6113 + $0x21] sm:$0xff]
        %v6253 = vld [vmem:[%s6113 + $0x29] sm:$0x7]
        %v6254 = vld [vmem:[%s6113 + $0x31] sm:$0xff]
        %v6255 = vld [vmem:[%s6113 + $0x39] sm:$0x7]
        %v6256 = vld [vmem:[%s6113 + $0x41] sm:$0xff]
        %v6257 = vld [vmem:[%s6113 + $0x49] sm:$0x7]
        %v6258 = vld [vmem:[%s6113 + $0x51] sm:$0xff]
        %v6259 = vld [vmem:[%s6113 + $0x59] sm:$0x7]
        %v6260 = vld [vmem:[%s6113 + $0x61] sm:$0xff]
        %v6261 = vld [vmem:[%s6113 + $0x69] sm:$0x7]
        %v6262 = vld [vmem:[%s6113 + $0x71] sm:$0xff]
        %v6263 = vld [vmem:[%s6113 + $0x79] sm:$0x7]
        %v6264 = vld [vmem:[%s6113 + $0x81] sm:$0xff]
        %v6265 = vld [vmem:[%s6113 + $0x89] sm:$0x7]
        %v6266 = vld [vmem:[%s6113 + $0x91] sm:$0xff]
        %v6267 = vld [vmem:[%s6113 + $0x99] sm:$0x7]
        %v6268 = vld [vmem:[%s6113 + $0xa1] sm:$0xff]
        %v6269 = vld [vmem:[%s6113 + $0xa9] sm:$0x7]
        %6270 = vst.msk [vmem:[#allocation3 + $0x8] sm:$0xff] %vm5821, %v6248
        %6271 = vst.msk [vmem:[#allocation3 + $0x20] sm:$0x7] %vm5823, %v6249
        %6272 = vst.msk [vmem:[#allocation3 + $0x38] sm:$0xff] %vm5821, %v6250
        %6273 = vst.msk [vmem:[#allocation3 + $0x50] sm:$0x7] %vm5823, %v6251
        %6274 = vst.msk [vmem:[#allocation3 + $0x68] sm:$0xff] %vm5821, %v6252
        %6275 = vst.msk [vmem:[#allocation3 + $0x80] sm:$0x7] %vm5823, %v6253
        %6276 = vst.msk [vmem:[#allocation3 + $0x98] sm:$0xff] %vm5821, %v6254
        %6277 = vst.msk [vmem:[#allocation3 + $0xb0] sm:$0x7] %vm5823, %v6255
        %6278 = vst.msk [vmem:[#allocation3 + $0xc8] sm:$0xff] %vm5821, %v6256
        %6279 = vst.msk [vmem:[#allocation3 + $0xe0] sm:$0x7] %vm5823, %v6257
        %6280 = vst.msk [vmem:[#allocation3 + $0xf8] sm:$0xff] %vm5821, %v6258
        %6281 = vst.msk [vmem:[#allocation3 + $0x110] sm:$0x7] %vm5823, %v6259
        %6282 = vst.msk [vmem:[#allocation3 + $0x128] sm:$0xff] %vm5821, %v6260
        %6283 = vst.msk [vmem:[#allocation3 + $0x140] sm:$0x7] %vm5823, %v6261
        %6284 = vst.msk [vmem:[#allocation3 + $0x158] sm:$0xff] %vm5821, %v6262
        %6285 = vst.msk [vmem:[#allocation3 + $0x170] sm:$0x7] %vm5823, %v6263
        %6286 = vst.msk [vmem:[#allocation3 + $0x188] sm:$0xff] %vm5821, %v6264
        %6287 = vst.msk [vmem:[#allocation3 + $0x1a0] sm:$0x7] %vm5823, %v6265
        %6288 = vst.msk [vmem:[#allocation3 + $0x1b8] sm:$0xff] %vm5821, %v6266
        %6289 = vst.msk [vmem:[#allocation3 + $0x1d0] sm:$0x7] %vm5823, %v6267
        %6290 = vst.msk [vmem:[#allocation3 + $0x1e8] sm:$0xff] %vm5821, %v6268
        %6291 = vst.msk [vmem:[#allocation3 + $0x200] sm:$0x7] %vm5823, %v6269
        %v6292 = vld [vmem:[%s6113 + $0x2] sm:$0xff]
        %v6293 = vld [vmem:[%s6113 + $0xa] sm:$0x7]
        %v6294 = vld [vmem:[%s6113 + $0x12] sm:$0xff]
        %v6295 = vld [vmem:[%s6113 + $0x1a] sm:$0x7]
        %v6296 = vld [vmem:[%s6113 + $0x22] sm:$0xff]
        %v6297 = vld [vmem:[%s6113 + $0x2a] sm:$0x7]
        %v6298 = vld [vmem:[%s6113 + $0x32] sm:$0xff]
        %v6299 = vld [vmem:[%s6113 + $0x3a] sm:$0x7]
        %v6300 = vld [vmem:[%s6113 + $0x42] sm:$0xff]
        %v6301 = vld [vmem:[%s6113 + $0x4a] sm:$0x7]
        %v6302 = vld [vmem:[%s6113 + $0x52] sm:$0xff]
        %v6303 = vld [vmem:[%s6113 + $0x5a] sm:$0x7]
        %v6304 = vld [vmem:[%s6113 + $0x62] sm:$0xff]
        %v6305 = vld [vmem:[%s6113 + $0x6a] sm:$0x7]
        %v6306 = vld [vmem:[%s6113 + $0x72] sm:$0xff]
        %v6307 = vld [vmem:[%s6113 + $0x7a] sm:$0x7]
        %v6308 = vld [vmem:[%s6113 + $0x82] sm:$0xff]
        %v6309 = vld [vmem:[%s6113 + $0x8a] sm:$0x7]
        %v6310 = vld [vmem:[%s6113 + $0x92] sm:$0xff]
        %v6311 = vld [vmem:[%s6113 + $0x9a] sm:$0x7]
        %v6312 = vld [vmem:[%s6113 + $0xa2] sm:$0xff]
        %v6313 = vld [vmem:[%s6113 + $0xaa] sm:$0x7]
        %6336 = vrot.lane.b32.xlu0 %v6292, 32
        %v6337 = vpop.permute.xlu0 %6336
        %6338 = vrot.lane.b32.xlu0 %v6293, 32
        %v6339 = vpop.permute.xlu0 %6338
        %6340 = vrot.lane.b32.xlu0 %v6294, 32
        %v6341 = vpop.permute.xlu0 %6340
        %6342 = vrot.lane.b32.xlu0 %v6295, 32
        %v6343 = vpop.permute.xlu0 %6342
        %6344 = vrot.lane.b32.xlu0 %v6296, 32
        %v6345 = vpop.permute.xlu0 %6344
        %6346 = vrot.lane.b32.xlu0 %v6297, 32
        %v6347 = vpop.permute.xlu0 %6346
        %6348 = vrot.lane.b32.xlu0 %v6298, 32
        %v6349 = vpop.permute.xlu0 %6348
        %6350 = vrot.lane.b32.xlu0 %v6299, 32
        %v6351 = vpop.permute.xlu0 %6350
        %6352 = vrot.lane.b32.xlu0 %v6300, 32
        %v6353 = vpop.permute.xlu0 %6352
        %6354 = vrot.lane.b32.xlu0 %v6301, 32
        %v6355 = vpop.permute.xlu0 %6354
        %6356 = vrot.lane.b32.xlu0 %v6302, 32
        %v6357 = vpop.permute.xlu0 %6356
        %6358 = vrot.lane.b32.xlu0 %v6303, 32
        %v6359 = vpop.permute.xlu0 %6358
        %6360 = vrot.lane.b32.xlu0 %v6304, 32
        %v6361 = vpop.permute.xlu0 %6360
        %6362 = vrot.lane.b32.xlu0 %v6305, 32
        %v6363 = vpop.permute.xlu0 %6362
        %6364 = vrot.lane.b32.xlu0 %v6306, 32
        %v6365 = vpop.permute.xlu0 %6364
        %6366 = vrot.lane.b32.xlu0 %v6307, 32
        %v6367 = vpop.permute.xlu0 %6366
        %6368 = vrot.lane.b32.xlu0 %v6308, 32
        %v6369 = vpop.permute.xlu0 %6368
        %6370 = vrot.lane.b32.xlu0 %v6309, 32
        %v6371 = vpop.permute.xlu0 %6370
        %6372 = vrot.lane.b32.xlu0 %v6310, 32
        %v6373 = vpop.permute.xlu0 %6372
        %6374 = vrot.lane.b32.xlu0 %v6311, 32
        %v6375 = vpop.permute.xlu0 %6374
        %6376 = vrot.lane.b32.xlu0 %v6312, 32
        %v6377 = vpop.permute.xlu0 %6376
        %6378 = vrot.lane.b32.xlu0 %v6313, 32
        %v6379 = vpop.permute.xlu0 %6378
        %6402 = vst.msk [vmem:[#allocation3 + $0x8] sm:$0xff] %vm5955, %v6337
        %6403 = vst.msk [vmem:[#allocation3 + $0x20] sm:$0x7] %vm5957, %v6339
        %6404 = vst.msk [vmem:[#allocation3 + $0x38] sm:$0xff] %vm5955, %v6341
        %6405 = vst.msk [vmem:[#allocation3 + $0x50] sm:$0x7] %vm5957, %v6343
        %6406 = vst.msk [vmem:[#allocation3 + $0x68] sm:$0xff] %vm5955, %v6345
        %6407 = vst.msk [vmem:[#allocation3 + $0x80] sm:$0x7] %vm5957, %v6347
        %6408 = vst.msk [vmem:[#allocation3 + $0x98] sm:$0xff] %vm5955, %v6349
        %6409 = vst.msk [vmem:[#allocation3 + $0xb0] sm:$0x7] %vm5957, %v6351
        %6410 = vst.msk [vmem:[#allocation3 + $0xc8] sm:$0xff] %vm5955, %v6353
        %6411 = vst.msk [vmem:[#allocation3 + $0xe0] sm:$0x7] %vm5957, %v6355
        %6412 = vst.msk [vmem:[#allocation3 + $0xf8] sm:$0xff] %vm5955, %v6357
        %6413 = vst.msk [vmem:[#allocation3 + $0x110] sm:$0x7] %vm5957, %v6359
        %6414 = vst.msk [vmem:[#allocation3 + $0x128] sm:$0xff] %vm5955, %v6361
        %6415 = vst.msk [vmem:[#allocation3 + $0x140] sm:$0x7] %vm5957, %v6363
        %6416 = vst.msk [vmem:[#allocation3 + $0x158] sm:$0xff] %vm5955, %v6365
        %6417 = vst.msk [vmem:[#allocation3 + $0x170] sm:$0x7] %vm5957, %v6367
        %6418 = vst.msk [vmem:[#allocation3 + $0x188] sm:$0xff] %vm5955, %v6369
        %6419 = vst.msk [vmem:[#allocation3 + $0x1a0] sm:$0x7] %vm5957, %v6371
        %6420 = vst.msk [vmem:[#allocation3 + $0x1b8] sm:$0xff] %vm5955, %v6373
        %6421 = vst.msk [vmem:[#allocation3 + $0x1d0] sm:$0x7] %vm5957, %v6375
        %6422 = vst.msk [vmem:[#allocation3 + $0x1e8] sm:$0xff] %vm5955, %v6377
        %6423 = vst.msk [vmem:[#allocation3 + $0x200] sm:$0x7] %vm5957, %v6379
        %s6424 = scalar_lea.vmem [#allocation2], 32
        %v6425 = vld [vmem:[%s6424] sm:$0xff]
        %v6426 = vld [vmem:[%s6424 + $0x8] sm:$0x7]
        %v6427 = vld [vmem:[%s6424 + $0x10] sm:$0xff]
        %v6428 = vld [vmem:[%s6424 + $0x18] sm:$0x7]
        %v6429 = vld [vmem:[%s6424 + $0x20] sm:$0xff]
        %v6430 = vld [vmem:[%s6424 + $0x28] sm:$0x7]
        %v6431 = vld [vmem:[%s6424 + $0x30] sm:$0xff]
        %v6432 = vld [vmem:[%s6424 + $0x38] sm:$0x7]
        %v6433 = vld [vmem:[%s6424 + $0x40] sm:$0xff]
        %v6434 = vld [vmem:[%s6424 + $0x48] sm:$0x7]
        %v6435 = vld [vmem:[%s6424 + $0x50] sm:$0xff]
        %v6436 = vld [vmem:[%s6424 + $0x58] sm:$0x7]
        %v6437 = vld [vmem:[%s6424 + $0x60] sm:$0xff]
        %v6438 = vld [vmem:[%s6424 + $0x68] sm:$0x7]
        %v6439 = vld [vmem:[%s6424 + $0x70] sm:$0xff]
        %v6440 = vld [vmem:[%s6424 + $0x78] sm:$0x7]
        %v6441 = vld [vmem:[%s6424 + $0x80] sm:$0xff]
        %v6442 = vld [vmem:[%s6424 + $0x88] sm:$0x7]
        %v6443 = vld [vmem:[%s6424 + $0x90] sm:$0xff]
        %v6444 = vld [vmem:[%s6424 + $0x98] sm:$0x7]
        %v6445 = vld [vmem:[%s6424 + $0xa0] sm:$0xff]
        %v6446 = vld [vmem:[%s6424 + $0xa8] sm:$0x7]
        %6469 = vrot.lane.b32.xlu0 %v6425, 64
        %v6470 = vpop.permute.xlu0 %6469
        %6471 = vrot.lane.b32.xlu0 %v6426, 64
        %v6472 = vpop.permute.xlu0 %6471
        %6473 = vrot.lane.b32.xlu0 %v6427, 64
        %v6474 = vpop.permute.xlu0 %6473
        %6475 = vrot.lane.b32.xlu0 %v6428, 64
        %v6476 = vpop.permute.xlu0 %6475
        %6477 = vrot.lane.b32.xlu0 %v6429, 64
        %v6478 = vpop.permute.xlu0 %6477
        %6479 = vrot.lane.b32.xlu0 %v6430, 64
        %v6480 = vpop.permute.xlu0 %6479
        %6481 = vrot.lane.b32.xlu0 %v6431, 64
        %v6482 = vpop.permute.xlu0 %6481
        %6483 = vrot.lane.b32.xlu0 %v6432, 64
        %v6484 = vpop.permute.xlu0 %6483
        %6485 = vrot.lane.b32.xlu0 %v6433, 64
        %v6486 = vpop.permute.xlu0 %6485
        %6487 = vrot.lane.b32.xlu0 %v6434, 64
        %v6488 = vpop.permute.xlu0 %6487
        %6489 = vrot.lane.b32.xlu0 %v6435, 64
        %v6490 = vpop.permute.xlu0 %6489
        %6491 = vrot.lane.b32.xlu0 %v6436, 64
        %v6492 = vpop.permute.xlu0 %6491
        %6493 = vrot.lane.b32.xlu0 %v6437, 64
        %v6494 = vpop.permute.xlu0 %6493
        %6495 = vrot.lane.b32.xlu0 %v6438, 64
        %v6496 = vpop.permute.xlu0 %6495
        %6497 = vrot.lane.b32.xlu0 %v6439, 64
        %v6498 = vpop.permute.xlu0 %6497
        %6499 = vrot.lane.b32.xlu0 %v6440, 64
        %v6500 = vpop.permute.xlu0 %6499
        %6501 = vrot.lane.b32.xlu0 %v6441, 64
        %v6502 = vpop.permute.xlu0 %6501
        %6503 = vrot.lane.b32.xlu0 %v6442, 64
        %v6504 = vpop.permute.xlu0 %6503
        %6505 = vrot.lane.b32.xlu0 %v6443, 64
        %v6506 = vpop.permute.xlu0 %6505
        %6507 = vrot.lane.b32.xlu0 %v6444, 64
        %v6508 = vpop.permute.xlu0 %6507
        %6509 = vrot.lane.b32.xlu0 %v6445, 64
        %v6510 = vpop.permute.xlu0 %6509
        %6511 = vrot.lane.b32.xlu0 %v6446, 64
        %v6512 = vpop.permute.xlu0 %6511
        %6535 = vst.msk [vmem:[#allocation3 + $0x8] sm:$0xff] %vm6089, %v6470
        %6536 = vst.msk [vmem:[#allocation3 + $0x20] sm:$0x7] %vm6091, %v6472
        %6537 = vst.msk [vmem:[#allocation3 + $0x38] sm:$0xff] %vm6089, %v6474
        %6538 = vst.msk [vmem:[#allocation3 + $0x50] sm:$0x7] %vm6091, %v6476
        %6539 = vst.msk [vmem:[#allocation3 + $0x68] sm:$0xff] %vm6089, %v6478
        %6540 = vst.msk [vmem:[#allocation3 + $0x80] sm:$0x7] %vm6091, %v6480
        %6541 = vst.msk [vmem:[#allocation3 + $0x98] sm:$0xff] %vm6089, %v6482
        %6542 = vst.msk [vmem:[#allocation3 + $0xb0] sm:$0x7] %vm6091, %v6484
        %6543 = vst.msk [vmem:[#allocation3 + $0xc8] sm:$0xff] %vm6089, %v6486
        %6544 = vst.msk [vmem:[#allocation3 + $0xe0] sm:$0x7] %vm6091, %v6488
        %6545 = vst.msk [vmem:[#allocation3 + $0xf8] sm:$0xff] %vm6089, %v6490
        %6546 = vst.msk [vmem:[#allocation3 + $0x110] sm:$0x7] %vm6091, %v6492
        %6547 = vst.msk [vmem:[#allocation3 + $0x128] sm:$0xff] %vm6089, %v6494
        %6548 = vst.msk [vmem:[#allocation3 + $0x140] sm:$0x7] %vm6091, %v6496
        %6549 = vst.msk [vmem:[#allocation3 + $0x158] sm:$0xff] %vm6089, %v6498
        %6550 = vst.msk [vmem:[#allocation3 + $0x170] sm:$0x7] %vm6091, %v6500
        %6551 = vst.msk [vmem:[#allocation3 + $0x188] sm:$0xff] %vm6089, %v6502
        %6552 = vst.msk [vmem:[#allocation3 + $0x1a0] sm:$0x7] %vm6091, %v6504
        %6553 = vst.msk [vmem:[#allocation3 + $0x1b8] sm:$0xff] %vm6089, %v6506
        %6554 = vst.msk [vmem:[#allocation3 + $0x1d0] sm:$0x7] %vm6091, %v6508
        %6555 = vst.msk [vmem:[#allocation3 + $0x1e8] sm:$0xff] %vm6089, %v6510
        %6556 = vst.msk [vmem:[#allocation3 + $0x200] sm:$0x7] %vm6091, %v6512
        %v6557 = vld [vmem:[%s6424 + $0x1] sm:$0xff]
        %v6558 = vld [vmem:[%s6424 + $0x9] sm:$0x7]
        %v6559 = vld [vmem:[%s6424 + $0x11] sm:$0xff]
        %v6560 = vld [vmem:[%s6424 + $0x19] sm:$0x7]
        %v6561 = vld [vmem:[%s6424 + $0x21] sm:$0xff]
        %v6562 = vld [vmem:[%s6424 + $0x29] sm:$0x7]
        %v6563 = vld [vmem:[%s6424 + $0x31] sm:$0xff]
        %v6564 = vld [vmem:[%s6424 + $0x39] sm:$0x7]
        %v6565 = vld [vmem:[%s6424 + $0x41] sm:$0xff]
        %v6566 = vld [vmem:[%s6424 + $0x49] sm:$0x7]
        %v6567 = vld [vmem:[%s6424 + $0x51] sm:$0xff]
        %v6568 = vld [vmem:[%s6424 + $0x59] sm:$0x7]
        %v6569 = vld [vmem:[%s6424 + $0x61] sm:$0xff]
        %v6570 = vld [vmem:[%s6424 + $0x69] sm:$0x7]
        %v6571 = vld [vmem:[%s6424 + $0x71] sm:$0xff]
        %v6572 = vld [vmem:[%s6424 + $0x79] sm:$0x7]
        %v6573 = vld [vmem:[%s6424 + $0x81] sm:$0xff]
        %v6574 = vld [vmem:[%s6424 + $0x89] sm:$0x7]
        %v6575 = vld [vmem:[%s6424 + $0x91] sm:$0xff]
        %v6576 = vld [vmem:[%s6424 + $0x99] sm:$0x7]
        %v6577 = vld [vmem:[%s6424 + $0xa1] sm:$0xff]
        %v6578 = vld [vmem:[%s6424 + $0xa9] sm:$0x7]
        %6601 = vrot.lane.b32.xlu0 %v6557, 96
        %v6602 = vpop.permute.xlu0 %6601
        %6603 = vrot.lane.b32.xlu0 %v6558, 96
        %v6604 = vpop.permute.xlu0 %6603
        %6605 = vrot.lane.b32.xlu0 %v6559, 96
        %v6606 = vpop.permute.xlu0 %6605
        %6607 = vrot.lane.b32.xlu0 %v6560, 96
        %v6608 = vpop.permute.xlu0 %6607
        %6609 = vrot.lane.b32.xlu0 %v6561, 96
        %v6610 = vpop.permute.xlu0 %6609
        %6611 = vrot.lane.b32.xlu0 %v6562, 96
        %v6612 = vpop.permute.xlu0 %6611
        %6613 = vrot.lane.b32.xlu0 %v6563, 96
        %v6614 = vpop.permute.xlu0 %6613
        %6615 = vrot.lane.b32.xlu0 %v6564, 96
        %v6616 = vpop.permute.xlu0 %6615
        %6617 = vrot.lane.b32.xlu0 %v6565, 96
        %v6618 = vpop.permute.xlu0 %6617
        %6619 = vrot.lane.b32.xlu0 %v6566, 96
        %v6620 = vpop.permute.xlu0 %6619
        %6621 = vrot.lane.b32.xlu0 %v6567, 96
        %v6622 = vpop.permute.xlu0 %6621
        %6623 = vrot.lane.b32.xlu0 %v6568, 96
        %v6624 = vpop.permute.xlu0 %6623
        %6625 = vrot.lane.b32.xlu0 %v6569, 96
        %v6626 = vpop.permute.xlu0 %6625
        %6627 = vrot.lane.b32.xlu0 %v6570, 96
        %v6628 = vpop.permute.xlu0 %6627
        %6629 = vrot.lane.b32.xlu0 %v6571, 96
        %v6630 = vpop.permute.xlu0 %6629
        %6631 = vrot.lane.b32.xlu0 %v6572, 96
        %v6632 = vpop.permute.xlu0 %6631
        %6633 = vrot.lane.b32.xlu0 %v6573, 96
        %v6634 = vpop.permute.xlu0 %6633
        %6635 = vrot.lane.b32.xlu0 %v6574, 96
        %v6636 = vpop.permute.xlu0 %6635
        %6637 = vrot.lane.b32.xlu0 %v6575, 96
        %v6638 = vpop.permute.xlu0 %6637
        %6639 = vrot.lane.b32.xlu0 %v6576, 96
        %v6640 = vpop.permute.xlu0 %6639
        %6641 = vrot.lane.b32.xlu0 %v6577, 96
        %v6642 = vpop.permute.xlu0 %6641
        %6643 = vrot.lane.b32.xlu0 %v6578, 96
        %v6644 = vpop.permute.xlu0 %6643
        %6667 = vst.msk [vmem:[#allocation3 + $0x8] sm:$0xff] %vm6224, %v6602
        %6668 = vst.msk [vmem:[#allocation3 + $0x20] sm:$0x7] %vm6226, %v6604
        %6669 = vst.msk [vmem:[#allocation3 + $0x38] sm:$0xff] %vm6224, %v6606
        %6670 = vst.msk [vmem:[#allocation3 + $0x50] sm:$0x7] %vm6226, %v6608
        %6671 = vst.msk [vmem:[#allocation3 + $0x68] sm:$0xff] %vm6224, %v6610
        %6672 = vst.msk [vmem:[#allocation3 + $0x80] sm:$0x7] %vm6226, %v6612
        %6673 = vst.msk [vmem:[#allocation3 + $0x98] sm:$0xff] %vm6224, %v6614
        %6674 = vst.msk [vmem:[#allocation3 + $0xb0] sm:$0x7] %vm6226, %v6616
        %6675 = vst.msk [vmem:[#allocation3 + $0xc8] sm:$0xff] %vm6224, %v6618
        %6676 = vst.msk [vmem:[#allocation3 + $0xe0] sm:$0x7] %vm6226, %v6620
        %6677 = vst.msk [vmem:[#allocation3 + $0xf8] sm:$0xff] %vm6224, %v6622
        %6678 = vst.msk [vmem:[#allocation3 + $0x110] sm:$0x7] %vm6226, %v6624
        %6679 = vst.msk [vmem:[#allocation3 + $0x128] sm:$0xff] %vm6224, %v6626
        %6680 = vst.msk [vmem:[#allocation3 + $0x140] sm:$0x7] %vm6226, %v6628
        %6681 = vst.msk [vmem:[#allocation3 + $0x158] sm:$0xff] %vm6224, %v6630
        %6682 = vst.msk [vmem:[#allocation3 + $0x170] sm:$0x7] %vm6226, %v6632
        %6683 = vst.msk [vmem:[#allocation3 + $0x188] sm:$0xff] %vm6224, %v6634
        %6684 = vst.msk [vmem:[#allocation3 + $0x1a0] sm:$0x7] %vm6226, %v6636
        %6685 = vst.msk [vmem:[#allocation3 + $0x1b8] sm:$0xff] %vm6224, %v6638
        %6686 = vst.msk [vmem:[#allocation3 + $0x1d0] sm:$0x7] %vm6226, %v6640
        %6687 = vst.msk [vmem:[#allocation3 + $0x1e8] sm:$0xff] %vm6224, %v6642
        %6688 = vst.msk [vmem:[#allocation3 + $0x200] sm:$0x7] %vm6226, %v6644
        %v6689 = vld [vmem:[%s6424 + $0x2] sm:$0xff]
        %v6690 = vld [vmem:[%s6424 + $0xa] sm:$0x7]
        %v6691 = vld [vmem:[%s6424 + $0x12] sm:$0xff]
        %v6692 = vld [vmem:[%s6424 + $0x1a] sm:$0x7]
        %v6693 = vld [vmem:[%s6424 + $0x22] sm:$0xff]
        %v6694 = vld [vmem:[%s6424 + $0x2a] sm:$0x7]
        %v6695 = vld [vmem:[%s6424 + $0x32] sm:$0xff]
        %v6696 = vld [vmem:[%s6424 + $0x3a] sm:$0x7]
        %v6697 = vld [vmem:[%s6424 + $0x42] sm:$0xff]
        %v6698 = vld [vmem:[%s6424 + $0x4a] sm:$0x7]
        %v6699 = vld [vmem:[%s6424 + $0x52] sm:$0xff]
        %v6700 = vld [vmem:[%s6424 + $0x5a] sm:$0x7]
        %v6701 = vld [vmem:[%s6424 + $0x62] sm:$0xff]
        %v6702 = vld [vmem:[%s6424 + $0x6a] sm:$0x7]
        %v6703 = vld [vmem:[%s6424 + $0x72] sm:$0xff]
        %v6704 = vld [vmem:[%s6424 + $0x7a] sm:$0x7]
        %v6705 = vld [vmem:[%s6424 + $0x82] sm:$0xff]
        %v6706 = vld [vmem:[%s6424 + $0x8a] sm:$0x7]
        %v6707 = vld [vmem:[%s6424 + $0x92] sm:$0xff]
        %v6708 = vld [vmem:[%s6424 + $0x9a] sm:$0x7]
        %v6709 = vld [vmem:[%s6424 + $0xa2] sm:$0xff]
        %v6710 = vld [vmem:[%s6424 + $0xaa] sm:$0x7]
        %6711 = vst.msk [vmem:[#allocation3 + $0x10] sm:$0xff] %vm5821, %v6689
        %6712 = vst.msk [vmem:[#allocation3 + $0x28] sm:$0x7] %vm5823, %v6690
        %6713 = vst.msk [vmem:[#allocation3 + $0x40] sm:$0xff] %vm5821, %v6691
        %6714 = vst.msk [vmem:[#allocation3 + $0x58] sm:$0x7] %vm5823, %v6692
        %6715 = vst.msk [vmem:[#allocation3 + $0x70] sm:$0xff] %vm5821, %v6693
        %6716 = vst.msk [vmem:[#allocation3 + $0x88] sm:$0x7] %vm5823, %v6694
        %6717 = vst.msk [vmem:[#allocation3 + $0xa0] sm:$0xff] %vm5821, %v6695
        %6718 = vst.msk [vmem:[#allocation3 + $0xb8] sm:$0x7] %vm5823, %v6696
        %6719 = vst.msk [vmem:[#allocation3 + $0xd0] sm:$0xff] %vm5821, %v6697
        %6720 = vst.msk [vmem:[#allocation3 + $0xe8] sm:$0x7] %vm5823, %v6698
        %6721 = vst.msk [vmem:[#allocation3 + $0x100] sm:$0xff] %vm5821, %v6699
        %6722 = vst.msk [vmem:[#allocation3 + $0x118] sm:$0x7] %vm5823, %v6700
        %6723 = vst.msk [vmem:[#allocation3 + $0x130] sm:$0xff] %vm5821, %v6701
        %6724 = vst.msk [vmem:[#allocation3 + $0x148] sm:$0x7] %vm5823, %v6702
        %6725 = vst.msk [vmem:[#allocation3 + $0x160] sm:$0xff] %vm5821, %v6703
        %6726 = vst.msk [vmem:[#allocation3 + $0x178] sm:$0x7] %vm5823, %v6704
        %6727 = vst.msk [vmem:[#allocation3 + $0x190] sm:$0xff] %vm5821, %v6705
        %6728 = vst.msk [vmem:[#allocation3 + $0x1a8] sm:$0x7] %vm5823, %v6706
        %6729 = vst.msk [vmem:[#allocation3 + $0x1c0] sm:$0xff] %vm5821, %v6707
        %6730 = vst.msk [vmem:[#allocation3 + $0x1d8] sm:$0x7] %vm5823, %v6708
        %6731 = vst.msk [vmem:[#allocation3 + $0x1f0] sm:$0xff] %vm5821, %v6709
        %6732 = vst.msk [vmem:[#allocation3 + $0x208] sm:$0x7] %vm5823, %v6710
        %v6733 = vld [vmem:[%s3] sm:$0xf]
        %v6734 = vld [vmem:[%s3 + $0x4] sm:$0xf]
        %v6735 = vld [vmem:[%s3 + $0x8] sm:$0xf]
        %v6736 = vld [vmem:[%s3 + $0xc] sm:$0xf]
        %v6737 = vld [vmem:[%s3 + $0x10] sm:$0xf]
        %v6738 = vld [vmem:[%s3 + $0x14] sm:$0xf]
        %v6739 = vld [vmem:[%s3 + $0x18] sm:$0xf]
        %v6740 = vld [vmem:[%s3 + $0x1c] sm:$0xf]
        %v6741 = vld [vmem:[%s3 + $0x20] sm:$0xf]
        %v6742 = vld [vmem:[%s3 + $0x24] sm:$0xf]
        %v6743 = vld [vmem:[%s3 + $0x28] sm:$0xf]
        %v6744 = vld [vmem:[%s3 + $0x2c] sm:$0xf]
        %v6745 = vld [vmem:[%s3 + $0x30] sm:$0xf]
        %v6746 = vld [vmem:[%s3 + $0x34] sm:$0xf]
        %v6747 = vld [vmem:[%s3 + $0x38] sm:$0xf]
        %v6748 = vld [vmem:[%s3 + $0x3c] sm:$0xf]
        %v6749 = vld [vmem:[%s3 + $0x40] sm:$0xf]
        %v6750 = vld [vmem:[%s3 + $0x44] sm:$0xf]
        %v6751 = vld [vmem:[%s3 + $0x48] sm:$0xf]
        %v6752 = vld [vmem:[%s3 + $0x4c] sm:$0xf]
        %v6753 = vld [vmem:[%s3 + $0x50] sm:$0xf]
        %v6754 = vld [vmem:[%s3 + $0x54] sm:$0xf]
        %v6755 = vld [vmem:[%s3 + $0x58] sm:$0xf]
        %v6756 = vld [vmem:[%s3 + $0x5c] sm:$0xf]
        %v6757 = vld [vmem:[%s3 + $0x60] sm:$0xf]
        %v6758 = vld [vmem:[%s3 + $0x64] sm:$0xf]
        %v6759 = vld [vmem:[%s3 + $0x68] sm:$0xf]
        %v6760 = vld [vmem:[%s3 + $0x6c] sm:$0xf]
        %v6761 = vld [vmem:[%s3 + $0x70] sm:$0xf]
        %v6762 = vld [vmem:[%s3 + $0x74] sm:$0xf]
        %v6763 = vld [vmem:[%s3 + $0x78] sm:$0xf]
        %v6764 = vld [vmem:[%s3 + $0x7c] sm:$0xf]
        %v6765 = vld [vmem:[%s3 + $0x80] sm:$0xf]
        %v6766 = vld [vmem:[%s3 + $0x84] sm:$0xf]
        %v6767 = vld [vmem:[%s3 + $0x88] sm:$0xf]
        %v6768 = vld [vmem:[%s3 + $0x8c] sm:$0xf]
        %v6769 = vld [vmem:[%s4] sm:$0x1]
        %6770 = vst [vmem:[#allocation4] sm:$0xff] 0.0
        %6771 = vst [vmem:[#allocation4 + $0x8] sm:$0xff] 0.0
        %6772 = vst [vmem:[#allocation4 + $0x10] sm:$0xff] 0.0
        %6773 = vst [vmem:[#allocation4 + $0x18] sm:$0xff] 0.0
        %6774 = vst [vmem:[#allocation4 + $0x20] sm:$0xff] 0.0
        %6775 = vst [vmem:[#allocation4 + $0x28] sm:$0xff] 0.0
        %6776 = vst [vmem:[#allocation4 + $0x30] sm:$0xff] 0.0
        %6777 = vst [vmem:[#allocation4 + $0x38] sm:$0xff] 0.0
        %6778 = vst [vmem:[#allocation4 + $0x40] sm:$0xff] 0.0
        %6779 = vst [vmem:[#allocation4 + $0x48] sm:$0xff] 0.0
        %6780 = vst [vmem:[#allocation4 + $0x50] sm:$0xff] 0.0
        %6781 = vst [vmem:[#allocation4 + $0x58] sm:$0xff] 0.0
        %vm6782 = vcmask 523264
        %6783 = vst.msk [vmem:[#allocation4 + $0x60] sm:$0xff] %vm6782, 0.0
        %v6784 = vld [vmem:[#allocation3] sm:$0xff]
        %v6785 = vld [vmem:[#allocation3 + $0x8] sm:$0xff]
        %v6786 = vld [vmem:[#allocation3 + $0x10] sm:$0xff]
        %v6787 = vld [vmem:[#allocation3 + $0x18] sm:$0x7]
        %v6788 = vld [vmem:[#allocation3 + $0x20] sm:$0x7]
        %v6789 = vld [vmem:[#allocation3 + $0x28] sm:$0x7]
        %v6790 = vpack.c.bf16 %v6787, %v6784
        %v6791 = vpack.c.bf16 %v6788, %v6785
        %v6792 = vpack.c.bf16 %v6789, %v6786
        %s6793 = scalar_lea.vmem [#allocation3], 48
        %v6794 = vld [vmem:[%s6793] sm:$0xff]
        %v6795 = vld [vmem:[%s6793 + $0x8] sm:$0xff]
        %v6796 = vld [vmem:[%s6793 + $0x10] sm:$0xff]
        %v6797 = vld [vmem:[%s6793 + $0x18] sm:$0x7]
        %v6798 = vld [vmem:[%s6793 + $0x20] sm:$0x7]
        %v6799 = vld [vmem:[%s6793 + $0x28] sm:$0x7]
        %v6800 = vpack.c.bf16 %v6797, %v6794
        %v6801 = vpack.c.bf16 %v6798, %v6795
        %v6802 = vpack.c.bf16 %v6799, %v6796
        %v6804 = vlaneseq
        %v6805 = vshrl.u32 %v6804, 7
        %v6806 = vsub.s32 0, %v6805
        %v6807 = vrot.slane %v6769, %v6806
        %v6845 = vunpack.c.l.b16 %v6733
        %v6846 = vunpack.c.l.b16 %v6734
        %v6847 = vunpack.c.l.b16 %v6735
        %v6848 = vunpack.c.l.b16 %v6736
        %v6849 = vunpack.c.l.b16 %v6737
        %v6850 = vunpack.c.l.b16 %v6738
        %v6851 = vunpack.c.l.b16 %v6739
        %v6852 = vunpack.c.l.b16 %v6740
        %v6853 = vunpack.c.l.b16 %v6741
        %v6854 = vunpack.c.l.b16 %v6742
        %v6855 = vunpack.c.l.b16 %v6743
        %v6856 = vunpack.c.l.b16 %v6744
        %v6857 = vunpack.c.l.b16 %v6745
        %v6858 = vunpack.c.l.b16 %v6746
        %v6859 = vunpack.c.l.b16 %v6747
        %v6860 = vunpack.c.l.b16 %v6748
        %v6861 = vunpack.c.l.b16 %v6749
        %v6862 = vunpack.c.l.b16 %v6750
        %v6863 = vunpack.c.l.b16 %v6751
        %v6864 = vunpack.c.l.b16 %v6752
        %v6865 = vunpack.c.l.b16 %v6753
        %v6866 = vunpack.c.l.b16 %v6754
        %v6867 = vunpack.c.l.b16 %v6755
        %v6868 = vunpack.c.l.b16 %v6756
        %v6869 = vunpack.c.l.b16 %v6757
        %v6870 = vunpack.c.l.b16 %v6758
        %v6871 = vunpack.c.l.b16 %v6759
        %v6872 = vunpack.c.l.b16 %v6760
        %v6873 = vunpack.c.l.b16 %v6761
        %v6874 = vunpack.c.l.b16 %v6762
        %v6875 = vunpack.c.l.b16 %v6763
        %v6876 = vunpack.c.l.b16 %v6764
        %v6877 = vunpack.c.l.b16 %v6765
        %v6878 = vunpack.c.l.b16 %v6766
        %v6879 = vunpack.c.l.b16 %v6767
        %v6880 = vunpack.c.l.b16 %v6768
        %v6881 = vpack.c.b16 %v6846, %v6845
        %v6882 = vpack.c.b16 %v6848, %v6847
        %v6883 = vpack.c.b16 %v6850, %v6849
        %v6884 = vpack.c.b16 %v6852, %v6851
        %v6885 = vpack.c.b16 %v6854, %v6853
        %v6886 = vpack.c.b16 %v6856, %v6855
        %v6887 = vpack.c.b16 %v6858, %v6857
        %v6888 = vpack.c.b16 %v6860, %v6859
        %v6889 = vpack.c.b16 %v6862, %v6861
        %v6890 = vpack.c.b16 %v6864, %v6863
        %v6891 = vpack.c.b16 %v6866, %v6865
        %v6892 = vpack.c.b16 %v6868, %v6867
        %v6893 = vpack.c.b16 %v6870, %v6869
        %v6894 = vpack.c.b16 %v6872, %v6871
        %v6895 = vpack.c.b16 %v6874, %v6873
        %v6896 = vpack.c.b16 %v6876, %v6875
        %v6897 = vpack.c.b16 %v6878, %v6877
        %v6898 = vpack.c.b16 %v6880, %v6879
        %v6918 = vsel %vm5821, %v6792, 0
        %6920 = vmatprep.subr.bf16.mxu0 0
        %6921 = vmatpush1.bf16.msra.mxu0 %v6888
        %6922 = vmatprep.subr.bf16.mxu0 0
        %6923 = vmatpush1.bf16.msra.mxu0 %v6887
        %6924 = vmatprep.subr.bf16.mxu0 0
        %6925 = vmatpush1.bf16.msra.mxu0 %v6886
        %6926 = vmatprep.subr.bf16.mxu0 0
        %6927 = vmatpush1.bf16.msra.mxu0 %v6885
        %6928 = vmatprep.subr.bf16.mxu0 0
        %6929 = vmatpush1.bf16.msra.mxu0 %v6884
        %6930 = vmatprep.subr.bf16.mxu0 0
        %6931 = vmatpush1.bf16.msra.mxu0 %v6883
        %6932 = vmatprep.subr.bf16.mxu0 0
        %6933 = vmatpush1.bf16.msra.mxu0 %v6882
        %6934 = vmatprep.subr.bf16.mxu0 0
        %6935 = vmatpush1.bf16.msra.mxu0 %v6881
        %6936 = vmatprep.subr.bf16.mxu0 0
        %6937 = vmatpush2.bf16.msra.mxu0 %v6896
        %6938 = vmatprep.subr.bf16.mxu0 0
        %6939 = vmatpush2.bf16.msra.mxu0 %v6895
        %6940 = vmatprep.subr.bf16.mxu0 0
        %6941 = vmatpush2.bf16.msra.mxu0 %v6894
        %6942 = vmatprep.subr.bf16.mxu0 0
        %6943 = vmatpush2.bf16.msra.mxu0 %v6893
        %6944 = vmatprep.subr.bf16.mxu0 0
        %6945 = vmatpush2.bf16.msra.mxu0 %v6892
        %6946 = vmatprep.subr.bf16.mxu0 0
        %6947 = vmatpush2.bf16.msra.mxu0 %v6891
        %6948 = vmatprep.subr.bf16.mxu0 0
        %6949 = vmatpush2.bf16.msra.mxu0 %v6890
        %6950 = vmatprep.subr.bf16.mxu0 0
        %6951 = vmatpush2.bf16.msra.mxu0 %v6889
        %6952 = vmatprep.mubr.bf16.mxu0 %v6791
        %6953 = vmatmul.mubr.bf16.gmra.mxu0 %v6790
        %v6954 = vpop.f32.mrf.mxu0
        %v6955 = vadd.f32 %v6807, %v6954
        %v6956 = vpop.f32.mrf.mxu0
        %v6957 = vpop.f32.mrf.mxu0
        %v6958 = vadd.f32 %v6807, %v6957
        %v6959 = vpop.f32.mrf.mxu0
        %6960 = vdwg.mxu0
        %6961 = vmatprep.subr.bf16.mxu0 0
        %6962 = vmatpush1.bf16.msra.mxu0 0
        %6963 = vmatprep.subr.bf16.mxu0 0
        %6964 = vmatpush1.bf16.msra.mxu0 0
        %6965 = vmatprep.subr.bf16.mxu0 0
        %6966 = vmatpush1.bf16.msra.mxu0 0
        %6967 = vmatprep.subr.bf16.mxu0 0
        %6968 = vmatpush1.bf16.msra.mxu0 0
        %6969 = vmatprep.subr.bf16.mxu0 0
        %6970 = vmatpush1.bf16.msra.mxu0 0
        %6971 = vmatprep.subr.bf16.mxu0 0
        %6972 = vmatpush1.bf16.msra.mxu0 0
        %6973 = vmatprep.subr.bf16.mxu0 0
        %6974 = vmatpush1.bf16.msra.mxu0 %v6898
        %6975 = vmatprep.subr.bf16.mxu0 0
        %6976 = vmatpush1.bf16.msra.mxu0 %v6897
        %6977 = vmatprep.subr.bf16.mxu0 0
        %6978 = vmatpush2.bf16.msra.mxu0 0
        %6979 = vmatprep.subr.bf16.mxu0 0
        %6980 = vmatpush2.bf16.msra.mxu0 0
        %6981 = vmatprep.subr.bf16.mxu0 0
        %6982 = vmatpush2.bf16.msra.mxu0 0
        %6983 = vmatprep.subr.bf16.mxu0 0
        %6984 = vmatpush2.bf16.msra.mxu0 0
        %6985 = vmatprep.subr.bf16.mxu0 0
        %6986 = vmatpush2.bf16.msra.mxu0 0
        %6987 = vmatprep.subr.bf16.mxu0 0
        %6988 = vmatpush2.bf16.msra.mxu0 0
        %6989 = vmatprep.subr.bf16.mxu0 0
        %6990 = vmatpush2.bf16.msra.mxu0 0
        %6991 = vmatprep.subr.bf16.mxu0 0
        %6992 = vmatpush2.bf16.msra.mxu0 0
        %6993 = vmatprep.mubr.bf16.mxu0 0
        %6994 = vmatmul.mubr.bf16.gmra.mxu0 %v6918
        %v6995 = vpop.f32.mrf.mxu0
        %v6996 = vadd.f32 %v6955, %v6995
        %v6997 = vpop.f32.mrf.mxu0
        %v6998 = vpop.f32.mrf.mxu0
        %v6999 = vadd.f32 %v6958, %v6998
        %v7000 = vpop.f32.mrf.mxu0
        %7001 = vdwg.mxu0
        %v7002 = vmax.f32 %v6996, 0.0
        %v7003 = vmax.f32 %v6999, 0.0
        %v7005 = vsel %vm5821, %v6802, 0
        %7007 = vmatprep.subr.bf16.mxu0 0
        %7008 = vmatpush1.bf16.msra.mxu0 %v6888
        %7009 = vmatprep.subr.bf16.mxu0 0
        %7010 = vmatpush1.bf16.msra.mxu0 %v6887
        %7011 = vmatprep.subr.bf16.mxu0 0
        %7012 = vmatpush1.bf16.msra.mxu0 %v6886
        %7013 = vmatprep.subr.bf16.mxu0 0
        %7014 = vmatpush1.bf16.msra.mxu0 %v6885
        %7015 = vmatprep.subr.bf16.mxu0 0
        %7016 = vmatpush1.bf16.msra.mxu0 %v6884
        %7017 = vmatprep.subr.bf16.mxu0 0
        %7018 = vmatpush1.bf16.msra.mxu0 %v6883
        %7019 = vmatprep.subr.bf16.mxu0 0
        %7020 = vmatpush1.bf16.msra.mxu0 %v6882
        %7021 = vmatprep.subr.bf16.mxu0 0
        %7022 = vmatpush1.bf16.msra.mxu0 %v6881
        %7023 = vmatprep.subr.bf16.mxu0 0
        %7024 = vmatpush2.bf16.msra.mxu0 %v6896
        %7025 = vmatprep.subr.bf16.mxu0 0
        %7026 = vmatpush2.bf16.msra.mxu0 %v6895
        %7027 = vmatprep.subr.bf16.mxu0 0
        %7028 = vmatpush2.bf16.msra.mxu0 %v6894
        %7029 = vmatprep.subr.bf16.mxu0 0
        %7030 = vmatpush2.bf16.msra.mxu0 %v6893
        %7031 = vmatprep.subr.bf16.mxu0 0
        %7032 = vmatpush2.bf16.msra.mxu0 %v6892
        %7033 = vmatprep.subr.bf16.mxu0 0
        %7034 = vmatpush2.bf16.msra.mxu0 %v6891
        %7035 = vmatprep.subr.bf16.mxu0 0
        %7036 = vmatpush2.bf16.msra.mxu0 %v6890
        %7037 = vmatprep.subr.bf16.mxu0 0
        %7038 = vmatpush2.bf16.msra.mxu0 %v6889
        %7039 = vmatprep.mubr.bf16.mxu0 %v6801
        %7040 = vmatmul.mubr.bf16.gmra.mxu0 %v6800
        %v7041 = vpop.f32.mrf.mxu0
        %v7042 = vadd.f32 %v6807, %v7041
        %v7043 = vpop.f32.mrf.mxu0
        %v7044 = vpop.f32.mrf.mxu0
        %v7045 = vadd.f32 %v6807, %v7044
        %v7046 = vpop.f32.mrf.mxu0
        %7047 = vdwg.mxu0
        %7048 = vmatprep.subr.bf16.mxu0 0
        %7049 = vmatpush1.bf16.msra.mxu0 0
        %7050 = vmatprep.subr.bf16.mxu0 0
        %7051 = vmatpush1.bf16.msra.mxu0 0
        %7052 = vmatprep.subr.bf16.mxu0 0
        %7053 = vmatpush1.bf16.msra.mxu0 0
        %7054 = vmatprep.subr.bf16.mxu0 0
        %7055 = vmatpush1.bf16.msra.mxu0 0
        %7056 = vmatprep.subr.bf16.mxu0 0
        %7057 = vmatpush1.bf16.msra.mxu0 0
        %7058 = vmatprep.subr.bf16.mxu0 0
        %7059 = vmatpush1.bf16.msra.mxu0 0
        %7060 = vmatprep.subr.bf16.mxu0 0
        %7061 = vmatpush1.bf16.msra.mxu0 %v6898
        %7062 = vmatprep.subr.bf16.mxu0 0
        %7063 = vmatpush1.bf16.msra.mxu0 %v6897
        %7064 = vmatprep.subr.bf16.mxu0 0
        %7065 = vmatpush2.bf16.msra.mxu0 0
        %7066 = vmatprep.subr.bf16.mxu0 0
        %7067 = vmatpush2.bf16.msra.mxu0 0
        %7068 = vmatprep.subr.bf16.mxu0 0
        %7069 = vmatpush2.bf16.msra.mxu0 0
        %7070 = vmatprep.subr.bf16.mxu0 0
        %7071 = vmatpush2.bf16.msra.mxu0 0
        %7072 = vmatprep.subr.bf16.mxu0 0
        %7073 = vmatpush2.bf16.msra.mxu0 0
        %7074 = vmatprep.subr.bf16.mxu0 0
        %7075 = vmatpush2.bf16.msra.mxu0 0
        %7076 = vmatprep.subr.bf16.mxu0 0
        %7077 = vmatpush2.bf16.msra.mxu0 0
        %7078 = vmatprep.subr.bf16.mxu0 0
        %7079 = vmatpush2.bf16.msra.mxu0 0
        %7080 = vmatprep.mubr.bf16.mxu0 0
        %7081 = vmatmul.mubr.bf16.gmra.mxu0 %v7005
        %v7082 = vpop.f32.mrf.mxu0
        %v7083 = vadd.f32 %v7042, %v7082
        %v7084 = vpop.f32.mrf.mxu0
        %v7085 = vpop.f32.mrf.mxu0
        %v7086 = vadd.f32 %v7045, %v7085
        %v7087 = vpop.f32.mrf.mxu0
        %7088 = vdwg.mxu0
        %v7089 = vmax.f32 %v7083, 0.0
        %v7090 = vmax.f32 %v7086, 0.0
        %v7091 = vmax.f32 %v7002, %v7089
        %v7092 = vmax.f32 %v7003, %v7090
        %v7094 = vrot.slane %v7091, 1
        %v7096 = vmax.f32 %v7091, %v7094
        %vm7097 = vcmask 516096
        %7098 = vst.msk [vmem:[#allocation4] sm:$0x1] %vm7097, %v7096
        %v7100 = vrot.slane %v7096, 2
        %7101 = vrot.lane.b32.xlu0 %v7100, 64
        %v7102 = vpop.permute.xlu0 %7101
        %vm7104 = vcmask 1040896
        %7105 = vst.msk [vmem:[#allocation4] sm:$0x1] %vm7104, %v7102
        %v7106 = vrot.slane %v7096, 4
        %7108 = vst.msk [vmem:[#allocation4 + $0x8] sm:$0x1] %vm7097, %v7106
        %v7109 = vrot.slane %v7096, 6
        %7110 = vrot.lane.b32.xlu0 %v7109, 64
        %v7111 = vpop.permute.xlu0 %7110
        %7113 = vst.msk [vmem:[#allocation4 + $0x8] sm:$0x1] %vm7104, %v7111
        %v7115 = vrot.slane %v7092, 1
        %v7117 = vmax.f32 %v7092, %v7115
        %7118 = vst.msk [vmem:[#allocation4 + $0x10] sm:$0x1] %vm7097, %v7117
        %s7119 = scalar_lea.vmem [#allocation3], 96
        %v7120 = vld [vmem:[%s7119] sm:$0xff]
        %v7121 = vld [vmem:[%s7119 + $0x8] sm:$0xff]
        %v7122 = vld [vmem:[%s7119 + $0x10] sm:$0xff]
        %v7123 = vld [vmem:[%s7119 + $0x18] sm:$0x7]
        %v7124 = vld [vmem:[%s7119 + $0x20] sm:$0x7]
        %v7125 = vld [vmem:[%s7119 + $0x28] sm:$0x7]
        %v7126 = vpack.c.bf16 %v7123, %v7120
        %v7127 = vpack.c.bf16 %v7124, %v7121
        %v7128 = vpack.c.bf16 %v7125, %v7122
        %s7129 = scalar_lea.vmem [#allocation3], 144
        %v7130 = vld [vmem:[%s7129] sm:$0xff]
        %v7131 = vld [vmem:[%s7129 + $0x8] sm:$0xff]
        %v7132 = vld [vmem:[%s7129 + $0x10] sm:$0xff]
        %v7133 = vld [vmem:[%s7129 + $0x18] sm:$0x7]
        %v7134 = vld [vmem:[%s7129 + $0x20] sm:$0x7]
        %v7135 = vld [vmem:[%s7129 + $0x28] sm:$0x7]
        %v7136 = vpack.c.bf16 %v7133, %v7130
        %v7137 = vpack.c.bf16 %v7134, %v7131
        %v7138 = vpack.c.bf16 %v7135, %v7132
        %v7140 = vsel %vm5821, %v7128, 0
        %7142 = vmatprep.subr.bf16.mxu0 0
        %7143 = vmatpush1.bf16.msra.mxu0 %v6888
        %7144 = vmatprep.subr.bf16.mxu0 0
        %7145 = vmatpush1.bf16.msra.mxu0 %v6887
        %7146 = vmatprep.subr.bf16.mxu0 0
        %7147 = vmatpush1.bf16.msra.mxu0 %v6886
        %7148 = vmatprep.subr.bf16.mxu0 0
        %7149 = vmatpush1.bf16.msra.mxu0 %v6885
        %7150 = vmatprep.subr.bf16.mxu0 0
        %7151 = vmatpush1.bf16.msra.mxu0 %v6884
        %7152 = vmatprep.subr.bf16.mxu0 0
        %7153 = vmatpush1.bf16.msra.mxu0 %v6883
        %7154 = vmatprep.subr.bf16.mxu0 0
        %7155 = vmatpush1.bf16.msra.mxu0 %v6882
        %7156 = vmatprep.subr.bf16.mxu0 0
        %7157 = vmatpush1.bf16.msra.mxu0 %v6881
        %7158 = vmatprep.subr.bf16.mxu0 0
        %7159 = vmatpush2.bf16.msra.mxu0 %v6896
        %7160 = vmatprep.subr.bf16.mxu0 0
        %7161 = vmatpush2.bf16.msra.mxu0 %v6895
        %7162 = vmatprep.subr.bf16.mxu0 0
        %7163 = vmatpush2.bf16.msra.mxu0 %v6894
        %7164 = vmatprep.subr.bf16.mxu0 0
        %7165 = vmatpush2.bf16.msra.mxu0 %v6893
        %7166 = vmatprep.subr.bf16.mxu0 0
        %7167 = vmatpush2.bf16.msra.mxu0 %v6892
        %7168 = vmatprep.subr.bf16.mxu0 0
        %7169 = vmatpush2.bf16.msra.mxu0 %v6891
        %7170 = vmatprep.subr.bf16.mxu0 0
        %7171 = vmatpush2.bf16.msra.mxu0 %v6890
        %7172 = vmatprep.subr.bf16.mxu0 0
        %7173 = vmatpush2.bf16.msra.mxu0 %v6889
        %7174 = vmatprep.mubr.bf16.mxu0 %v7127
        %7175 = vmatmul.mubr.bf16.gmra.mxu0 %v7126
        %v7176 = vpop.f32.mrf.mxu0
        %v7177 = vadd.f32 %v6807, %v7176
        %v7178 = vpop.f32.mrf.mxu0
        %v7179 = vpop.f32.mrf.mxu0
        %v7180 = vadd.f32 %v6807, %v7179
        %v7181 = vpop.f32.mrf.mxu0
        %7182 = vdwg.mxu0
        %7183 = vmatprep.subr.bf16.mxu0 0
        %7184 = vmatpush1.bf16.msra.mxu0 0
        %7185 = vmatprep.subr.bf16.mxu0 0
        %7186 = vmatpush1.bf16.msra.mxu0 0
        %7187 = vmatprep.subr.bf16.mxu0 0
        %7188 = vmatpush1.bf16.msra.mxu0 0
        %7189 = vmatprep.subr.bf16.mxu0 0
        %7190 = vmatpush1.bf16.msra.mxu0 0
        %7191 = vmatprep.subr.bf16.mxu0 0
        %7192 = vmatpush1.bf16.msra.mxu0 0
        %7193 = vmatprep.subr.bf16.mxu0 0
        %7194 = vmatpush1.bf16.msra.mxu0 0
        %7195 = vmatprep.subr.bf16.mxu0 0
        %7196 = vmatpush1.bf16.msra.mxu0 %v6898
        %7197 = vmatprep.subr.bf16.mxu0 0
        %7198 = vmatpush1.bf16.msra.mxu0 %v6897
        %7199 = vmatprep.subr.bf16.mxu0 0
        %7200 = vmatpush2.bf16.msra.mxu0 0
        %7201 = vmatprep.subr.bf16.mxu0 0
        %7202 = vmatpush2.bf16.msra.mxu0 0
        %7203 = vmatprep.subr.bf16.mxu0 0
        %7204 = vmatpush2.bf16.msra.mxu0 0
        %7205 = vmatprep.subr.bf16.mxu0 0
        %7206 = vmatpush2.bf16.msra.mxu0 0
        %7207 = vmatprep.subr.bf16.mxu0 0
        %7208 = vmatpush2.bf16.msra.mxu0 0
        %7209 = vmatprep.subr.bf16.mxu0 0
        %7210 = vmatpush2.bf16.msra.mxu0 0
        %7211 = vmatprep.subr.bf16.mxu0 0
        %7212 = vmatpush2.bf16.msra.mxu0 0
        %7213 = vmatprep.subr.bf16.mxu0 0
        %7214 = vmatpush2.bf16.msra.mxu0 0
        %7215 = vmatprep.mubr.bf16.mxu0 0
        %7216 = vmatmul.mubr.bf16.gmra.mxu0 %v7140
        %v7217 = vpop.f32.mrf.mxu0
        %v7218 = vadd.f32 %v7177, %v7217
        %v7219 = vpop.f32.mrf.mxu0
        %v7220 = vpop.f32.mrf.mxu0
        %v7221 = vadd.f32 %v7180, %v7220
        %v7222 = vpop.f32.mrf.mxu0
        %7223 = vdwg.mxu0
        %v7224 = vmax.f32 %v7218, 0.0
        %v7225 = vmax.f32 %v7221, 0.0
        %v7227 = vsel %vm5821, %v7138, 0
        %7229 = vmatprep.subr.bf16.mxu0 0
        %7230 = vmatpush1.bf16.msra.mxu0 %v6888
        %7231 = vmatprep.subr.bf16.mxu0 0
        %7232 = vmatpush1.bf16.msra.mxu0 %v6887
        %7233 = vmatprep.subr.bf16.mxu0 0
        %7234 = vmatpush1.bf16.msra.mxu0 %v6886
        %7235 = vmatprep.subr.bf16.mxu0 0
        %7236 = vmatpush1.bf16.msra.mxu0 %v6885
        %7237 = vmatprep.subr.bf16.mxu0 0
        %7238 = vmatpush1.bf16.msra.mxu0 %v6884
        %7239 = vmatprep.subr.bf16.mxu0 0
        %7240 = vmatpush1.bf16.msra.mxu0 %v6883
        %7241 = vmatprep.subr.bf16.mxu0 0
        %7242 = vmatpush1.bf16.msra.mxu0 %v6882
        %7243 = vmatprep.subr.bf16.mxu0 0
        %7244 = vmatpush1.bf16.msra.mxu0 %v6881
        %7245 = vmatprep.subr.bf16.mxu0 0
        %7246 = vmatpush2.bf16.msra.mxu0 %v6896
        %7247 = vmatprep.subr.bf16.mxu0 0
        %7248 = vmatpush2.bf16.msra.mxu0 %v6895
        %7249 = vmatprep.subr.bf16.mxu0 0
        %7250 = vmatpush2.bf16.msra.mxu0 %v6894
        %7251 = vmatprep.subr.bf16.mxu0 0
        %7252 = vmatpush2.bf16.msra.mxu0 %v6893
        %7253 = vmatprep.subr.bf16.mxu0 0
        %7254 = vmatpush2.bf16.msra.mxu0 %v6892
        %7255 = vmatprep.subr.bf16.mxu0 0
        %7256 = vmatpush2.bf16.msra.mxu0 %v6891
        %7257 = vmatprep.subr.bf16.mxu0 0
        %7258 = vmatpush2.bf16.msra.mxu0 %v6890
        %7259 = vmatprep.subr.bf16.mxu0 0
        %7260 = vmatpush2.bf16.msra.mxu0 %v6889
        %7261 = vmatprep.mubr.bf16.mxu0 %v7137
        %7262 = vmatmul.mubr.bf16.gmra.mxu0 %v7136
        %v7263 = vpop.f32.mrf.mxu0
        %v7264 = vadd.f32 %v6807, %v7263
        %v7265 = vpop.f32.mrf.mxu0
        %v7266 = vpop.f32.mrf.mxu0
        %v7267 = vadd.f32 %v6807, %v7266
        %v7268 = vpop.f32.mrf.mxu0
        %7269 = vdwg.mxu0
        %7270 = vmatprep.subr.bf16.mxu0 0
        %7271 = vmatpush1.bf16.msra.mxu0 0
        %7272 = vmatprep.subr.bf16.mxu0 0
        %7273 = vmatpush1.bf16.msra.mxu0 0
        %7274 = vmatprep.subr.bf16.mxu0 0
        %7275 = vmatpush1.bf16.msra.mxu0 0
        %7276 = vmatprep.subr.bf16.mxu0 0
        %7277 = vmatpush1.bf16.msra.mxu0 0
        %7278 = vmatprep.subr.bf16.mxu0 0
        %7279 = vmatpush1.bf16.msra.mxu0 0
        %7280 = vmatprep.subr.bf16.mxu0 0
        %7281 = vmatpush1.bf16.msra.mxu0 0
        %7282 = vmatprep.subr.bf16.mxu0 0
        %7283 = vmatpush1.bf16.msra.mxu0 %v6898
        %7284 = vmatprep.subr.bf16.mxu0 0
        %7285 = vmatpush1.bf16.msra.mxu0 %v6897
        %7286 = vmatprep.subr.bf16.mxu0 0
        %7287 = vmatpush2.bf16.msra.mxu0 0
        %7288 = vmatprep.subr.bf16.mxu0 0
        %7289 = vmatpush2.bf16.msra.mxu0 0
        %7290 = vmatprep.subr.bf16.mxu0 0
        %7291 = vmatpush2.bf16.msra.mxu0 0
        %7292 = vmatprep.subr.bf16.mxu0 0
        %7293 = vmatpush2.bf16.msra.mxu0 0
        %7294 = vmatprep.subr.bf16.mxu0 0
        %7295 = vmatpush2.bf16.msra.mxu0 0
        %7296 = vmatprep.subr.bf16.mxu0 0
        %7297 = vmatpush2.bf16.msra.mxu0 0
        %7298 = vmatprep.subr.bf16.mxu0 0
        %7299 = vmatpush2.bf16.msra.mxu0 0
        %7300 = vmatprep.subr.bf16.mxu0 0
        %7301 = vmatpush2.bf16.msra.mxu0 0
        %7302 = vmatprep.mubr.bf16.mxu0 0
        %7303 = vmatmul.mubr.bf16.gmra.mxu0 %v7227
        %v7304 = vpop.f32.mrf.mxu0
        %v7305 = vadd.f32 %v7264, %v7304
        %v7306 = vpop.f32.mrf.mxu0
        %v7307 = vpop.f32.mrf.mxu0
        %v7308 = vadd.f32 %v7267, %v7307
        %v7309 = vpop.f32.mrf.mxu0
        %7310 = vdwg.mxu0
        %v7311 = vmax.f32 %v7305, 0.0
        %v7312 = vmax.f32 %v7308, 0.0
        %v7313 = vmax.f32 %v7224, %v7311
        %v7314 = vmax.f32 %v7225, %v7312
        %v7316 = vrot.slane %v7313, 1
        %v7318 = vmax.f32 %v7313, %v7316
        %7320 = vrot.lane.b32.xlu0 %v7318, 64
        %v7321 = vpop.permute.xlu0 %7320
        %7323 = vst.msk [vmem:[#allocation4 + $0x10] sm:$0x1] %vm7104, %v7321
        %v7324 = vrot.slane %v7318, 2
        %7326 = vst.msk [vmem:[#allocation4 + $0x18] sm:$0x1] %vm7097, %v7324
        %v7327 = vrot.slane %v7318, 4
        %7328 = vrot.lane.b32.xlu0 %v7327, 64
        %v7329 = vpop.permute.xlu0 %7328
        %7331 = vst.msk [vmem:[#allocation4 + $0x18] sm:$0x1] %vm7104, %v7329
        %v7332 = vrot.slane %v7318, 6
        %7334 = vst.msk [vmem:[#allocation4 + $0x20] sm:$0x1] %vm7097, %v7332
        %v7336 = vrot.slane %v7314, 1
        %v7338 = vmax.f32 %v7314, %v7336
        %7340 = vrot.lane.b32.xlu0 %v7338, 64
        %v7341 = vpop.permute.xlu0 %7340
        %7343 = vst.msk [vmem:[#allocation4 + $0x20] sm:$0x1] %vm7104, %v7341
        %s7344 = scalar_lea.vmem [#allocation3], 192
        %v7345 = vld [vmem:[%s7344] sm:$0xff]
        %v7346 = vld [vmem:[%s7344 + $0x8] sm:$0xff]
        %v7347 = vld [vmem:[%s7344 + $0x10] sm:$0xff]
        %v7348 = vld [vmem:[%s7344 + $0x18] sm:$0x7]
        %v7349 = vld [vmem:[%s7344 + $0x20] sm:$0x7]
        %v7350 = vld [vmem:[%s7344 + $0x28] sm:$0x7]
        %v7351 = vpack.c.bf16 %v7348, %v7345
        %v7352 = vpack.c.bf16 %v7349, %v7346
        %v7353 = vpack.c.bf16 %v7350, %v7347
        %s7354 = scalar_lea.vmem [#allocation3], 240
        %v7355 = vld [vmem:[%s7354] sm:$0xff]
        %v7356 = vld [vmem:[%s7354 + $0x8] sm:$0xff]
        %v7357 = vld [vmem:[%s7354 + $0x10] sm:$0xff]
        %v7358 = vld [vmem:[%s7354 + $0x18] sm:$0x7]
        %v7359 = vld [vmem:[%s7354 + $0x20] sm:$0x7]
        %v7360 = vld [vmem:[%s7354 + $0x28] sm:$0x7]
        %v7361 = vpack.c.bf16 %v7358, %v7355
        %v7362 = vpack.c.bf16 %v7359, %v7356
        %v7363 = vpack.c.bf16 %v7360, %v7357
        %v7365 = vsel %vm5821, %v7353, 0
        %7367 = vmatprep.subr.bf16.mxu0 0
        %7368 = vmatpush1.bf16.msra.mxu0 %v6888
        %7369 = vmatprep.subr.bf16.mxu0 0
        %7370 = vmatpush1.bf16.msra.mxu0 %v6887
        %7371 = vmatprep.subr.bf16.mxu0 0
        %7372 = vmatpush1.bf16.msra.mxu0 %v6886
        %7373 = vmatprep.subr.bf16.mxu0 0
        %7374 = vmatpush1.bf16.msra.mxu0 %v6885
        %7375 = vmatprep.subr.bf16.mxu0 0
        %7376 = vmatpush1.bf16.msra.mxu0 %v6884
        %7377 = vmatprep.subr.bf16.mxu0 0
        %7378 = vmatpush1.bf16.msra.mxu0 %v6883
        %7379 = vmatprep.subr.bf16.mxu0 0
        %7380 = vmatpush1.bf16.msra.mxu0 %v6882
        %7381 = vmatprep.subr.bf16.mxu0 0
        %7382 = vmatpush1.bf16.msra.mxu0 %v6881
        %7383 = vmatprep.subr.bf16.mxu0 0
        %7384 = vmatpush2.bf16.msra.mxu0 %v6896
        %7385 = vmatprep.subr.bf16.mxu0 0
        %7386 = vmatpush2.bf16.msra.mxu0 %v6895
        %7387 = vmatprep.subr.bf16.mxu0 0
        %7388 = vmatpush2.bf16.msra.mxu0 %v6894
        %7389 = vmatprep.subr.bf16.mxu0 0
        %7390 = vmatpush2.bf16.msra.mxu0 %v6893
        %7391 = vmatprep.subr.bf16.mxu0 0
        %7392 = vmatpush2.bf16.msra.mxu0 %v6892
        %7393 = vmatprep.subr.bf16.mxu0 0
        %7394 = vmatpush2.bf16.msra.mxu0 %v6891
        %7395 = vmatprep.subr.bf16.mxu0 0
        %7396 = vmatpush2.bf16.msra.mxu0 %v6890
        %7397 = vmatprep.subr.bf16.mxu0 0
        %7398 = vmatpush2.bf16.msra.mxu0 %v6889
        %7399 = vmatprep.mubr.bf16.mxu0 %v7352
        %7400 = vmatmul.mubr.bf16.gmra.mxu0 %v7351
        %v7401 = vpop.f32.mrf.mxu0
        %v7402 = vadd.f32 %v6807, %v7401
        %v7403 = vpop.f32.mrf.mxu0
        %v7404 = vpop.f32.mrf.mxu0
        %v7405 = vadd.f32 %v6807, %v7404
        %v7406 = vpop.f32.mrf.mxu0
        %7407 = vdwg.mxu0
        %7408 = vmatprep.subr.bf16.mxu0 0
        %7409 = vmatpush1.bf16.msra.mxu0 0
        %7410 = vmatprep.subr.bf16.mxu0 0
        %7411 = vmatpush1.bf16.msra.mxu0 0
        %7412 = vmatprep.subr.bf16.mxu0 0
        %7413 = vmatpush1.bf16.msra.mxu0 0
        %7414 = vmatprep.subr.bf16.mxu0 0
        %7415 = vmatpush1.bf16.msra.mxu0 0
        %7416 = vmatprep.subr.bf16.mxu0 0
        %7417 = vmatpush1.bf16.msra.mxu0 0
        %7418 = vmatprep.subr.bf16.mxu0 0
        %7419 = vmatpush1.bf16.msra.mxu0 0
        %7420 = vmatprep.subr.bf16.mxu0 0
        %7421 = vmatpush1.bf16.msra.mxu0 %v6898
        %7422 = vmatprep.subr.bf16.mxu0 0
        %7423 = vmatpush1.bf16.msra.mxu0 %v6897
        %7424 = vmatprep.subr.bf16.mxu0 0
        %7425 = vmatpush2.bf16.msra.mxu0 0
        %7426 = vmatprep.subr.bf16.mxu0 0
        %7427 = vmatpush2.bf16.msra.mxu0 0
        %7428 = vmatprep.subr.bf16.mxu0 0
        %7429 = vmatpush2.bf16.msra.mxu0 0
        %7430 = vmatprep.subr.bf16.mxu0 0
        %7431 = vmatpush2.bf16.msra.mxu0 0
        %7432 = vmatprep.subr.bf16.mxu0 0
        %7433 = vmatpush2.bf16.msra.mxu0 0
        %7434 = vmatprep.subr.bf16.mxu0 0
        %7435 = vmatpush2.bf16.msra.mxu0 0
        %7436 = vmatprep.subr.bf16.mxu0 0
        %7437 = vmatpush2.bf16.msra.mxu0 0
        %7438 = vmatprep.subr.bf16.mxu0 0
        %7439 = vmatpush2.bf16.msra.mxu0 0
        %7440 = vmatprep.mubr.bf16.mxu0 0
        %7441 = vmatmul.mubr.bf16.gmra.mxu0 %v7365
        %v7442 = vpop.f32.mrf.mxu0
        %v7443 = vadd.f32 %v7402, %v7442
        %v7444 = vpop.f32.mrf.mxu0
        %v7445 = vpop.f32.mrf.mxu0
        %v7446 = vadd.f32 %v7405, %v7445
        %v7447 = vpop.f32.mrf.mxu0
        %7448 = vdwg.mxu0
        %v7449 = vmax.f32 %v7443, 0.0
        %v7450 = vmax.f32 %v7446, 0.0
        %v7452 = vsel %vm5821, %v7363, 0
        %7454 = vmatprep.subr.bf16.mxu0 0
        %7455 = vmatpush1.bf16.msra.mxu0 %v6888
        %7456 = vmatprep.subr.bf16.mxu0 0
        %7457 = vmatpush1.bf16.msra.mxu0 %v6887
        %7458 = vmatprep.subr.bf16.mxu0 0
        %7459 = vmatpush1.bf16.msra.mxu0 %v6886
        %7460 = vmatprep.subr.bf16.mxu0 0
        %7461 = vmatpush1.bf16.msra.mxu0 %v6885
        %7462 = vmatprep.subr.bf16.mxu0 0
        %7463 = vmatpush1.bf16.msra.mxu0 %v6884
        %7464 = vmatprep.subr.bf16.mxu0 0
        %7465 = vmatpush1.bf16.msra.mxu0 %v6883
        %7466 = vmatprep.subr.bf16.mxu0 0
        %7467 = vmatpush1.bf16.msra.mxu0 %v6882
        %7468 = vmatprep.subr.bf16.mxu0 0
        %7469 = vmatpush1.bf16.msra.mxu0 %v6881
        %7470 = vmatprep.subr.bf16.mxu0 0
        %7471 = vmatpush2.bf16.msra.mxu0 %v6896
        %7472 = vmatprep.subr.bf16.mxu0 0
        %7473 = vmatpush2.bf16.msra.mxu0 %v6895
        %7474 = vmatprep.subr.bf16.mxu0 0
        %7475 = vmatpush2.bf16.msra.mxu0 %v6894
        %7476 = vmatprep.subr.bf16.mxu0 0
        %7477 = vmatpush2.bf16.msra.mxu0 %v6893
        %7478 = vmatprep.subr.bf16.mxu0 0
        %7479 = vmatpush2.bf16.msra.mxu0 %v6892
        %7480 = vmatprep.subr.bf16.mxu0 0
        %7481 = vmatpush2.bf16.msra.mxu0 %v6891
        %7482 = vmatprep.subr.bf16.mxu0 0
        %7483 = vmatpush2.bf16.msra.mxu0 %v6890
        %7484 = vmatprep.subr.bf16.mxu0 0
        %7485 = vmatpush2.bf16.msra.mxu0 %v6889
        %7486 = vmatprep.mubr.bf16.mxu0 %v7362
        %7487 = vmatmul.mubr.bf16.gmra.mxu0 %v7361
        %v7488 = vpop.f32.mrf.mxu0
        %v7489 = vadd.f32 %v6807, %v7488
        %v7490 = vpop.f32.mrf.mxu0
        %v7491 = vpop.f32.mrf.mxu0
        %v7492 = vadd.f32 %v6807, %v7491
        %v7493 = vpop.f32.mrf.mxu0
        %7494 = vdwg.mxu0
        %7495 = vmatprep.subr.bf16.mxu0 0
        %7496 = vmatpush1.bf16.msra.mxu0 0
        %7497 = vmatprep.subr.bf16.mxu0 0
        %7498 = vmatpush1.bf16.msra.mxu0 0
        %7499 = vmatprep.subr.bf16.mxu0 0
        %7500 = vmatpush1.bf16.msra.mxu0 0
        %7501 = vmatprep.subr.bf16.mxu0 0
        %7502 = vmatpush1.bf16.msra.mxu0 0
        %7503 = vmatprep.subr.bf16.mxu0 0
        %7504 = vmatpush1.bf16.msra.mxu0 0
        %7505 = vmatprep.subr.bf16.mxu0 0
        %7506 = vmatpush1.bf16.msra.mxu0 0
        %7507 = vmatprep.subr.bf16.mxu0 0
        %7508 = vmatpush1.bf16.msra.mxu0 %v6898
        %7509 = vmatprep.subr.bf16.mxu0 0
        %7510 = vmatpush1.bf16.msra.mxu0 %v6897
        %7511 = vmatprep.subr.bf16.mxu0 0
        %7512 = vmatpush2.bf16.msra.mxu0 0
        %7513 = vmatprep.subr.bf16.mxu0 0
        %7514 = vmatpush2.bf16.msra.mxu0 0
        %7515 = vmatprep.subr.bf16.mxu0 0
        %7516 = vmatpush2.bf16.msra.mxu0 0
        %7517 = vmatprep.subr.bf16.mxu0 0
        %7518 = vmatpush2.bf16.msra.mxu0 0
        %7519 = vmatprep.subr.bf16.mxu0 0
        %7520 = vmatpush2.bf16.msra.mxu0 0
        %7521 = vmatprep.subr.bf16.mxu0 0
        %7522 = vmatpush2.bf16.msra.mxu0 0
        %7523 = vmatprep.subr.bf16.mxu0 0
        %7524 = vmatpush2.bf16.msra.mxu0 0
        %7525 = vmatprep.subr.bf16.mxu0 0
        %7526 = vmatpush2.bf16.msra.mxu0 0
        %7527 = vmatprep.mubr.bf16.mxu0 0
        %7528 = vmatmul.mubr.bf16.gmra.mxu0 %v7452
        %v7529 = vpop.f32.mrf.mxu0
        %v7530 = vadd.f32 %v7489, %v7529
        %v7531 = vpop.f32.mrf.mxu0
        %v7532 = vpop.f32.mrf.mxu0
        %v7533 = vadd.f32 %v7492, %v7532
        %v7534 = vpop.f32.mrf.mxu0
        %7535 = vdwg.mxu0
        %v7536 = vmax.f32 %v7530, 0.0
        %v7537 = vmax.f32 %v7533, 0.0
        %v7538 = vmax.f32 %v7449, %v7536
        %v7539 = vmax.f32 %v7450, %v7537
        %v7541 = vrot.slane %v7538, 1
        %v7543 = vmax.f32 %v7538, %v7541
        %7544 = vst.msk [vmem:[#allocation4 + $0x28] sm:$0x1] %vm7097, %v7543
        %v7546 = vrot.slane %v7543, 2
        %7547 = vrot.lane.b32.xlu0 %v7546, 64
        %v7548 = vpop.permute.xlu0 %7547
        %7550 = vst.msk [vmem:[#allocation4 + $0x28] sm:$0x1] %vm7104, %v7548
        %v7551 = vrot.slane %v7543, 4
        %7553 = vst.msk [vmem:[#allocation4 + $0x30] sm:$0x1] %vm7097, %v7551
        %v7554 = vrot.slane %v7543, 6
        %7555 = vrot.lane.b32.xlu0 %v7554, 64
        %v7556 = vpop.permute.xlu0 %7555
        %7558 = vst.msk [vmem:[#allocation4 + $0x30] sm:$0x1] %vm7104, %v7556
        %v7560 = vrot.slane %v7539, 1
        %v7562 = vmax.f32 %v7539, %v7560
        %7563 = vst.msk [vmem:[#allocation4 + $0x38] sm:$0x1] %vm7097, %v7562
        %s7564 = scalar_lea.vmem [#allocation3], 288
        %v7565 = vld [vmem:[%s7564] sm:$0xff]
        %v7566 = vld [vmem:[%s7564 + $0x8] sm:$0xff]
        %v7567 = vld [vmem:[%s7564 + $0x10] sm:$0xff]
        %v7568 = vld [vmem:[%s7564 + $0x18] sm:$0x7]
        %v7569 = vld [vmem:[%s7564 + $0x20] sm:$0x7]
        %v7570 = vld [vmem:[%s7564 + $0x28] sm:$0x7]
        %v7571 = vpack.c.bf16 %v7568, %v7565
        %v7572 = vpack.c.bf16 %v7569, %v7566
        %v7573 = vpack.c.bf16 %v7570, %v7567
        %s7574 = scalar_lea.vmem [#allocation3], 336
        %v7575 = vld [vmem:[%s7574] sm:$0xff]
        %v7576 = vld [vmem:[%s7574 + $0x8] sm:$0xff]
        %v7577 = vld [vmem:[%s7574 + $0x10] sm:$0xff]
        %v7578 = vld [vmem:[%s7574 + $0x18] sm:$0x7]
        %v7579 = vld [vmem:[%s7574 + $0x20] sm:$0x7]
        %v7580 = vld [vmem:[%s7574 + $0x28] sm:$0x7]
        %v7581 = vpack.c.bf16 %v7578, %v7575
        %v7582 = vpack.c.bf16 %v7579, %v7576
        %v7583 = vpack.c.bf16 %v7580, %v7577
        %v7585 = vsel %vm5821, %v7573, 0
        %7587 = vmatprep.subr.bf16.mxu0 0
        %7588 = vmatpush1.bf16.msra.mxu0 %v6888
        %7589 = vmatprep.subr.bf16.mxu0 0
        %7590 = vmatpush1.bf16.msra.mxu0 %v6887
        %7591 = vmatprep.subr.bf16.mxu0 0
        %7592 = vmatpush1.bf16.msra.mxu0 %v6886
        %7593 = vmatprep.subr.bf16.mxu0 0
        %7594 = vmatpush1.bf16.msra.mxu0 %v6885
        %7595 = vmatprep.subr.bf16.mxu0 0
        %7596 = vmatpush1.bf16.msra.mxu0 %v6884
        %7597 = vmatprep.subr.bf16.mxu0 0
        %7598 = vmatpush1.bf16.msra.mxu0 %v6883
        %7599 = vmatprep.subr.bf16.mxu0 0
        %7600 = vmatpush1.bf16.msra.mxu0 %v6882
        %7601 = vmatprep.subr.bf16.mxu0 0
        %7602 = vmatpush1.bf16.msra.mxu0 %v6881
        %7603 = vmatprep.subr.bf16.mxu0 0
        %7604 = vmatpush2.bf16.msra.mxu0 %v6896
        %7605 = vmatprep.subr.bf16.mxu0 0
        %7606 = vmatpush2.bf16.msra.mxu0 %v6895
        %7607 = vmatprep.subr.bf16.mxu0 0
        %7608 = vmatpush2.bf16.msra.mxu0 %v6894
        %7609 = vmatprep.subr.bf16.mxu0 0
        %7610 = vmatpush2.bf16.msra.mxu0 %v6893
        %7611 = vmatprep.subr.bf16.mxu0 0
        %7612 = vmatpush2.bf16.msra.mxu0 %v6892
        %7613 = vmatprep.subr.bf16.mxu0 0
        %7614 = vmatpush2.bf16.msra.mxu0 %v6891
        %7615 = vmatprep.subr.bf16.mxu0 0
        %7616 = vmatpush2.bf16.msra.mxu0 %v6890
        %7617 = vmatprep.subr.bf16.mxu0 0
        %7618 = vmatpush2.bf16.msra.mxu0 %v6889
        %7619 = vmatprep.mubr.bf16.mxu0 %v7572
        %7620 = vmatmul.mubr.bf16.gmra.mxu0 %v7571
        %v7621 = vpop.f32.mrf.mxu0
        %v7622 = vadd.f32 %v6807, %v7621
        %v7623 = vpop.f32.mrf.mxu0
        %v7624 = vpop.f32.mrf.mxu0
        %v7625 = vadd.f32 %v6807, %v7624
        %v7626 = vpop.f32.mrf.mxu0
        %7627 = vdwg.mxu0
        %7628 = vmatprep.subr.bf16.mxu0 0
        %7629 = vmatpush1.bf16.msra.mxu0 0
        %7630 = vmatprep.subr.bf16.mxu0 0
        %7631 = vmatpush1.bf16.msra.mxu0 0
        %7632 = vmatprep.subr.bf16.mxu0 0
        %7633 = vmatpush1.bf16.msra.mxu0 0
        %7634 = vmatprep.subr.bf16.mxu0 0
        %7635 = vmatpush1.bf16.msra.mxu0 0
        %7636 = vmatprep.subr.bf16.mxu0 0
        %7637 = vmatpush1.bf16.msra.mxu0 0
        %7638 = vmatprep.subr.bf16.mxu0 0
        %7639 = vmatpush1.bf16.msra.mxu0 0
        %7640 = vmatprep.subr.bf16.mxu0 0
        %7641 = vmatpush1.bf16.msra.mxu0 %v6898
        %7642 = vmatprep.subr.bf16.mxu0 0
        %7643 = vmatpush1.bf16.msra.mxu0 %v6897
        %7644 = vmatprep.subr.bf16.mxu0 0
        %7645 = vmatpush2.bf16.msra.mxu0 0
        %7646 = vmatprep.subr.bf16.mxu0 0
        %7647 = vmatpush2.bf16.msra.mxu0 0
        %7648 = vmatprep.subr.bf16.mxu0 0
        %7649 = vmatpush2.bf16.msra.mxu0 0
        %7650 = vmatprep.subr.bf16.mxu0 0
        %7651 = vmatpush2.bf16.msra.mxu0 0
        %7652 = vmatprep.subr.bf16.mxu0 0
        %7653 = vmatpush2.bf16.msra.mxu0 0
        %7654 = vmatprep.subr.bf16.mxu0 0
        %7655 = vmatpush2.bf16.msra.mxu0 0
        %7656 = vmatprep.subr.bf16.mxu0 0
        %7657 = vmatpush2.bf16.msra.mxu0 0
        %7658 = vmatprep.subr.bf16.mxu0 0
        %7659 = vmatpush2.bf16.msra.mxu0 0
        %7660 = vmatprep.mubr.bf16.mxu0 0
        %7661 = vmatmul.mubr.bf16.gmra.mxu0 %v7585
        %v7662 = vpop.f32.mrf.mxu0
        %v7663 = vadd.f32 %v7622, %v7662
        %v7664 = vpop.f32.mrf.mxu0
        %v7665 = vpop.f32.mrf.mxu0
        %v7666 = vadd.f32 %v7625, %v7665
        %v7667 = vpop.f32.mrf.mxu0
        %7668 = vdwg.mxu0
        %v7669 = vmax.f32 %v7663, 0.0
        %v7670 = vmax.f32 %v7666, 0.0
        %v7672 = vsel %vm5821, %v7583, 0
        %7674 = vmatprep.subr.bf16.mxu0 0
        %7675 = vmatpush1.bf16.msra.mxu0 %v6888
        %7676 = vmatprep.subr.bf16.mxu0 0
        %7677 = vmatpush1.bf16.msra.mxu0 %v6887
        %7678 = vmatprep.subr.bf16.mxu0 0
        %7679 = vmatpush1.bf16.msra.mxu0 %v6886
        %7680 = vmatprep.subr.bf16.mxu0 0
        %7681 = vmatpush1.bf16.msra.mxu0 %v6885
        %7682 = vmatprep.subr.bf16.mxu0 0
        %7683 = vmatpush1.bf16.msra.mxu0 %v6884
        %7684 = vmatprep.subr.bf16.mxu0 0
        %7685 = vmatpush1.bf16.msra.mxu0 %v6883
        %7686 = vmatprep.subr.bf16.mxu0 0
        %7687 = vmatpush1.bf16.msra.mxu0 %v6882
        %7688 = vmatprep.subr.bf16.mxu0 0
        %7689 = vmatpush1.bf16.msra.mxu0 %v6881
        %7690 = vmatprep.subr.bf16.mxu0 0
        %7691 = vmatpush2.bf16.msra.mxu0 %v6896
        %7692 = vmatprep.subr.bf16.mxu0 0
        %7693 = vmatpush2.bf16.msra.mxu0 %v6895
        %7694 = vmatprep.subr.bf16.mxu0 0
        %7695 = vmatpush2.bf16.msra.mxu0 %v6894
        %7696 = vmatprep.subr.bf16.mxu0 0
        %7697 = vmatpush2.bf16.msra.mxu0 %v6893
        %7698 = vmatprep.subr.bf16.mxu0 0
        %7699 = vmatpush2.bf16.msra.mxu0 %v6892
        %7700 = vmatprep.subr.bf16.mxu0 0
        %7701 = vmatpush2.bf16.msra.mxu0 %v6891
        %7702 = vmatprep.subr.bf16.mxu0 0
        %7703 = vmatpush2.bf16.msra.mxu0 %v6890
        %7704 = vmatprep.subr.bf16.mxu0 0
        %7705 = vmatpush2.bf16.msra.mxu0 %v6889
        %7706 = vmatprep.mubr.bf16.mxu0 %v7582
        %7707 = vmatmul.mubr.bf16.gmra.mxu0 %v7581
        %v7708 = vpop.f32.mrf.mxu0
        %v7709 = vadd.f32 %v6807, %v7708
        %v7710 = vpop.f32.mrf.mxu0
        %v7711 = vpop.f32.mrf.mxu0
        %v7712 = vadd.f32 %v6807, %v7711
        %v7713 = vpop.f32.mrf.mxu0
        %7714 = vdwg.mxu0
        %7715 = vmatprep.subr.bf16.mxu0 0
        %7716 = vmatpush1.bf16.msra.mxu0 0
        %7717 = vmatprep.subr.bf16.mxu0 0
        %7718 = vmatpush1.bf16.msra.mxu0 0
        %7719 = vmatprep.subr.bf16.mxu0 0
        %7720 = vmatpush1.bf16.msra.mxu0 0
        %7721 = vmatprep.subr.bf16.mxu0 0
        %7722 = vmatpush1.bf16.msra.mxu0 0
        %7723 = vmatprep.subr.bf16.mxu0 0
        %7724 = vmatpush1.bf16.msra.mxu0 0
        %7725 = vmatprep.subr.bf16.mxu0 0
        %7726 = vmatpush1.bf16.msra.mxu0 0
        %7727 = vmatprep.subr.bf16.mxu0 0
        %7728 = vmatpush1.bf16.msra.mxu0 %v6898
        %7729 = vmatprep.subr.bf16.mxu0 0
        %7730 = vmatpush1.bf16.msra.mxu0 %v6897
        %7731 = vmatprep.subr.bf16.mxu0 0
        %7732 = vmatpush2.bf16.msra.mxu0 0
        %7733 = vmatprep.subr.bf16.mxu0 0
        %7734 = vmatpush2.bf16.msra.mxu0 0
        %7735 = vmatprep.subr.bf16.mxu0 0
        %7736 = vmatpush2.bf16.msra.mxu0 0
        %7737 = vmatprep.subr.bf16.mxu0 0
        %7738 = vmatpush2.bf16.msra.mxu0 0
        %7739 = vmatprep.subr.bf16.mxu0 0
        %7740 = vmatpush2.bf16.msra.mxu0 0
        %7741 = vmatprep.subr.bf16.mxu0 0
        %7742 = vmatpush2.bf16.msra.mxu0 0
        %7743 = vmatprep.subr.bf16.mxu0 0
        %7744 = vmatpush2.bf16.msra.mxu0 0
        %7745 = vmatprep.subr.bf16.mxu0 0
        %7746 = vmatpush2.bf16.msra.mxu0 0
        %7747 = vmatprep.mubr.bf16.mxu0 0
        %7748 = vmatmul.mubr.bf16.gmra.mxu0 %v7672
        %v7749 = vpop.f32.mrf.mxu0
        %v7750 = vadd.f32 %v7709, %v7749
        %v7751 = vpop.f32.mrf.mxu0
        %v7752 = vpop.f32.mrf.mxu0
        %v7753 = vadd.f32 %v7712, %v7752
        %v7754 = vpop.f32.mrf.mxu0
        %7755 = vdwg.mxu0
        %v7756 = vmax.f32 %v7750, 0.0
        %v7757 = vmax.f32 %v7753, 0.0
        %v7758 = vmax.f32 %v7669, %v7756
        %v7759 = vmax.f32 %v7670, %v7757
        %v7761 = vrot.slane %v7758, 1
        %v7763 = vmax.f32 %v7758, %v7761
        %7765 = vrot.lane.b32.xlu0 %v7763, 64
        %v7766 = vpop.permute.xlu0 %7765
        %7768 = vst.msk [vmem:[#allocation4 + $0x38] sm:$0x1] %vm7104, %v7766
        %v7769 = vrot.slane %v7763, 2
        %7771 = vst.msk [vmem:[#allocation4 + $0x40] sm:$0x1] %vm7097, %v7769
        %v7772 = vrot.slane %v7763, 4
        %7773 = vrot.lane.b32.xlu0 %v7772, 64
        %v7774 = vpop.permute.xlu0 %7773
        %7776 = vst.msk [vmem:[#allocation4 + $0x40] sm:$0x1] %vm7104, %v7774
        %v7777 = vrot.slane %v7763, 6
        %7779 = vst.msk [vmem:[#allocation4 + $0x48] sm:$0x1] %vm7097, %v7777
        %v7781 = vrot.slane %v7759, 1
        %v7783 = vmax.f32 %v7759, %v7781
        %7785 = vrot.lane.b32.xlu0 %v7783, 64
        %v7786 = vpop.permute.xlu0 %7785
        %7788 = vst.msk [vmem:[#allocation4 + $0x48] sm:$0x1] %vm7104, %v7786
        %s7789 = scalar_lea.vmem [#allocation3], 384
        %v7790 = vld [vmem:[%s7789] sm:$0xff]
        %v7791 = vld [vmem:[%s7789 + $0x8] sm:$0xff]
        %v7792 = vld [vmem:[%s7789 + $0x10] sm:$0xff]
        %v7793 = vld [vmem:[%s7789 + $0x18] sm:$0x7]
        %v7794 = vld [vmem:[%s7789 + $0x20] sm:$0x7]
        %v7795 = vld [vmem:[%s7789 + $0x28] sm:$0x7]
        %v7796 = vpack.c.bf16 %v7793, %v7790
        %v7797 = vpack.c.bf16 %v7794, %v7791
        %v7798 = vpack.c.bf16 %v7795, %v7792
        %s7799 = scalar_lea.vmem [#allocation3], 432
        %v7800 = vld [vmem:[%s7799] sm:$0xff]
        %v7801 = vld [vmem:[%s7799 + $0x8] sm:$0xff]
        %v7802 = vld [vmem:[%s7799 + $0x10] sm:$0xff]
        %v7803 = vld [vmem:[%s7799 + $0x18] sm:$0x7]
        %v7804 = vld [vmem:[%s7799 + $0x20] sm:$0x7]
        %v7805 = vld [vmem:[%s7799 + $0x28] sm:$0x7]
        %v7806 = vpack.c.bf16 %v7803, %v7800
        %v7807 = vpack.c.bf16 %v7804, %v7801
        %v7808 = vpack.c.bf16 %v7805, %v7802
        %v7810 = vsel %vm5821, %v7798, 0
        %7812 = vmatprep.subr.bf16.mxu0 0
        %7813 = vmatpush1.bf16.msra.mxu0 %v6888
        %7814 = vmatprep.subr.bf16.mxu0 0
        %7815 = vmatpush1.bf16.msra.mxu0 %v6887
        %7816 = vmatprep.subr.bf16.mxu0 0
        %7817 = vmatpush1.bf16.msra.mxu0 %v6886
        %7818 = vmatprep.subr.bf16.mxu0 0
        %7819 = vmatpush1.bf16.msra.mxu0 %v6885
        %7820 = vmatprep.subr.bf16.mxu0 0
        %7821 = vmatpush1.bf16.msra.mxu0 %v6884
        %7822 = vmatprep.subr.bf16.mxu0 0
        %7823 = vmatpush1.bf16.msra.mxu0 %v6883
        %7824 = vmatprep.subr.bf16.mxu0 0
        %7825 = vmatpush1.bf16.msra.mxu0 %v6882
        %7826 = vmatprep.subr.bf16.mxu0 0
        %7827 = vmatpush1.bf16.msra.mxu0 %v6881
        %7828 = vmatprep.subr.bf16.mxu0 0
        %7829 = vmatpush2.bf16.msra.mxu0 %v6896
        %7830 = vmatprep.subr.bf16.mxu0 0
        %7831 = vmatpush2.bf16.msra.mxu0 %v6895
        %7832 = vmatprep.subr.bf16.mxu0 0
        %7833 = vmatpush2.bf16.msra.mxu0 %v6894
        %7834 = vmatprep.subr.bf16.mxu0 0
        %7835 = vmatpush2.bf16.msra.mxu0 %v6893
        %7836 = vmatprep.subr.bf16.mxu0 0
        %7837 = vmatpush2.bf16.msra.mxu0 %v6892
        %7838 = vmatprep.subr.bf16.mxu0 0
        %7839 = vmatpush2.bf16.msra.mxu0 %v6891
        %7840 = vmatprep.subr.bf16.mxu0 0
        %7841 = vmatpush2.bf16.msra.mxu0 %v6890
        %7842 = vmatprep.subr.bf16.mxu0 0
        %7843 = vmatpush2.bf16.msra.mxu0 %v6889
        %7844 = vmatprep.mubr.bf16.mxu0 %v7797
        %7845 = vmatmul.mubr.bf16.gmra.mxu0 %v7796
        %v7846 = vpop.f32.mrf.mxu0
        %v7847 = vadd.f32 %v6807, %v7846
        %v7848 = vpop.f32.mrf.mxu0
        %v7849 = vpop.f32.mrf.mxu0
        %v7850 = vadd.f32 %v6807, %v7849
        %v7851 = vpop.f32.mrf.mxu0
        %7852 = vdwg.mxu0
        %7853 = vmatprep.subr.bf16.mxu0 0
        %7854 = vmatpush1.bf16.msra.mxu0 0
        %7855 = vmatprep.subr.bf16.mxu0 0
        %7856 = vmatpush1.bf16.msra.mxu0 0
        %7857 = vmatprep.subr.bf16.mxu0 0
        %7858 = vmatpush1.bf16.msra.mxu0 0
        %7859 = vmatprep.subr.bf16.mxu0 0
        %7860 = vmatpush1.bf16.msra.mxu0 0
        %7861 = vmatprep.subr.bf16.mxu0 0
        %7862 = vmatpush1.bf16.msra.mxu0 0
        %7863 = vmatprep.subr.bf16.mxu0 0
        %7864 = vmatpush1.bf16.msra.mxu0 0
        %7865 = vmatprep.subr.bf16.mxu0 0
        %7866 = vmatpush1.bf16.msra.mxu0 %v6898
        %7867 = vmatprep.subr.bf16.mxu0 0
        %7868 = vmatpush1.bf16.msra.mxu0 %v6897
        %7869 = vmatprep.subr.bf16.mxu0 0
        %7870 = vmatpush2.bf16.msra.mxu0 0
        %7871 = vmatprep.subr.bf16.mxu0 0
        %7872 = vmatpush2.bf16.msra.mxu0 0
        %7873 = vmatprep.subr.bf16.mxu0 0
        %7874 = vmatpush2.bf16.msra.mxu0 0
        %7875 = vmatprep.subr.bf16.mxu0 0
        %7876 = vmatpush2.bf16.msra.mxu0 0
        %7877 = vmatprep.subr.bf16.mxu0 0
        %7878 = vmatpush2.bf16.msra.mxu0 0
        %7879 = vmatprep.subr.bf16.mxu0 0
        %7880 = vmatpush2.bf16.msra.mxu0 0
        %7881 = vmatprep.subr.bf16.mxu0 0
        %7882 = vmatpush2.bf16.msra.mxu0 0
        %7883 = vmatprep.subr.bf16.mxu0 0
        %7884 = vmatpush2.bf16.msra.mxu0 0
        %7885 = vmatprep.mubr.bf16.mxu0 0
        %7886 = vmatmul.mubr.bf16.gmra.mxu0 %v7810
        %v7887 = vpop.f32.mrf.mxu0
        %v7888 = vadd.f32 %v7847, %v7887
        %v7889 = vpop.f32.mrf.mxu0
        %v7890 = vpop.f32.mrf.mxu0
        %v7891 = vadd.f32 %v7850, %v7890
        %v7892 = vpop.f32.mrf.mxu0
        %7893 = vdwg.mxu0
        %v7894 = vmax.f32 %v7888, 0.0
        %v7895 = vmax.f32 %v7891, 0.0
        %v7897 = vsel %vm5821, %v7808, 0
        %7899 = vmatprep.subr.bf16.mxu0 0
        %7900 = vmatpush1.bf16.msra.mxu0 %v6888
        %7901 = vmatprep.subr.bf16.mxu0 0
        %7902 = vmatpush1.bf16.msra.mxu0 %v6887
        %7903 = vmatprep.subr.bf16.mxu0 0
        %7904 = vmatpush1.bf16.msra.mxu0 %v6886
        %7905 = vmatprep.subr.bf16.mxu0 0
        %7906 = vmatpush1.bf16.msra.mxu0 %v6885
        %7907 = vmatprep.subr.bf16.mxu0 0
        %7908 = vmatpush1.bf16.msra.mxu0 %v6884
        %7909 = vmatprep.subr.bf16.mxu0 0
        %7910 = vmatpush1.bf16.msra.mxu0 %v6883
        %7911 = vmatprep.subr.bf16.mxu0 0
        %7912 = vmatpush1.bf16.msra.mxu0 %v6882
        %7913 = vmatprep.subr.bf16.mxu0 0
        %7914 = vmatpush1.bf16.msra.mxu0 %v6881
        %7915 = vmatprep.subr.bf16.mxu0 0
        %7916 = vmatpush2.bf16.msra.mxu0 %v6896
        %7917 = vmatprep.subr.bf16.mxu0 0
        %7918 = vmatpush2.bf16.msra.mxu0 %v6895
        %7919 = vmatprep.subr.bf16.mxu0 0
        %7920 = vmatpush2.bf16.msra.mxu0 %v6894
        %7921 = vmatprep.subr.bf16.mxu0 0
        %7922 = vmatpush2.bf16.msra.mxu0 %v6893
        %7923 = vmatprep.subr.bf16.mxu0 0
        %7924 = vmatpush2.bf16.msra.mxu0 %v6892
        %7925 = vmatprep.subr.bf16.mxu0 0
        %7926 = vmatpush2.bf16.msra.mxu0 %v6891
        %7927 = vmatprep.subr.bf16.mxu0 0
        %7928 = vmatpush2.bf16.msra.mxu0 %v6890
        %7929 = vmatprep.subr.bf16.mxu0 0
        %7930 = vmatpush2.bf16.msra.mxu0 %v6889
        %7931 = vmatprep.mubr.bf16.mxu0 %v7807
        %7932 = vmatmul.mubr.bf16.gmra.mxu0 %v7806
        %v7933 = vpop.f32.mrf.mxu0
        %v7934 = vadd.f32 %v6807, %v7933
        %v7935 = vpop.f32.mrf.mxu0
        %v7936 = vpop.f32.mrf.mxu0
        %v7937 = vadd.f32 %v6807, %v7936
        %v7938 = vpop.f32.mrf.mxu0
        %7939 = vdwg.mxu0
        %7940 = vmatprep.subr.bf16.mxu0 0
        %7941 = vmatpush1.bf16.msra.mxu0 0
        %7942 = vmatprep.subr.bf16.mxu0 0
        %7943 = vmatpush1.bf16.msra.mxu0 0
        %7944 = vmatprep.subr.bf16.mxu0 0
        %7945 = vmatpush1.bf16.msra.mxu0 0
        %7946 = vmatprep.subr.bf16.mxu0 0
        %7947 = vmatpush1.bf16.msra.mxu0 0
        %7948 = vmatprep.subr.bf16.mxu0 0
        %7949 = vmatpush1.bf16.msra.mxu0 0
        %7950 = vmatprep.subr.bf16.mxu0 0
        %7951 = vmatpush1.bf16.msra.mxu0 0
        %7952 = vmatprep.subr.bf16.mxu0 0
        %7953 = vmatpush1.bf16.msra.mxu0 %v6898
        %7954 = vmatprep.subr.bf16.mxu0 0
        %7955 = vmatpush1.bf16.msra.mxu0 %v6897
        %7956 = vmatprep.subr.bf16.mxu0 0
        %7957 = vmatpush2.bf16.msra.mxu0 0
        %7958 = vmatprep.subr.bf16.mxu0 0
        %7959 = vmatpush2.bf16.msra.mxu0 0
        %7960 = vmatprep.subr.bf16.mxu0 0
        %7961 = vmatpush2.bf16.msra.mxu0 0
        %7962 = vmatprep.subr.bf16.mxu0 0
        %7963 = vmatpush2.bf16.msra.mxu0 0
        %7964 = vmatprep.subr.bf16.mxu0 0
        %7965 = vmatpush2.bf16.msra.mxu0 0
        %7966 = vmatprep.subr.bf16.mxu0 0
        %7967 = vmatpush2.bf16.msra.mxu0 0
        %7968 = vmatprep.subr.bf16.mxu0 0
        %7969 = vmatpush2.bf16.msra.mxu0 0
        %7970 = vmatprep.subr.bf16.mxu0 0
        %7971 = vmatpush2.bf16.msra.mxu0 0
        %7972 = vmatprep.mubr.bf16.mxu0 0
        %7973 = vmatmul.mubr.bf16.gmra.mxu0 %v7897
        %v7974 = vpop.f32.mrf.mxu0
        %v7975 = vadd.f32 %v7934, %v7974
        %v7976 = vpop.f32.mrf.mxu0
        %v7977 = vpop.f32.mrf.mxu0
        %v7978 = vadd.f32 %v7937, %v7977
        %v7979 = vpop.f32.mrf.mxu0
        %7980 = vdwg.mxu0
        %v7981 = vmax.f32 %v7975, 0.0
        %v7982 = vmax.f32 %v7978, 0.0
        %v7983 = vmax.f32 %v7894, %v7981
        %v7984 = vmax.f32 %v7895, %v7982
        %v7986 = vrot.slane %v7983, 1
        %v7988 = vmax.f32 %v7983, %v7986
        %7989 = vst.msk [vmem:[#allocation4 + $0x50] sm:$0x1] %vm7097, %v7988
        %v7991 = vrot.slane %v7988, 2
        %7992 = vrot.lane.b32.xlu0 %v7991, 64
        %v7993 = vpop.permute.xlu0 %7992
        %7995 = vst.msk [vmem:[#allocation4 + $0x50] sm:$0x1] %vm7104, %v7993
        %v7996 = vrot.slane %v7988, 4
        %7998 = vst.msk [vmem:[#allocation4 + $0x58] sm:$0x1] %vm7097, %v7996
        %v7999 = vrot.slane %v7988, 6
        %8000 = vrot.lane.b32.xlu0 %v7999, 64
        %v8001 = vpop.permute.xlu0 %8000
        %8003 = vst.msk [vmem:[#allocation4 + $0x58] sm:$0x1] %vm7104, %v8001
        %v8005 = vrot.slane %v7984, 1
        %v8007 = vmax.f32 %v7984, %v8005
        %8008 = vst.msk [vmem:[#allocation4 + $0x60] sm:$0x1] %vm7097, %v8007
        %v8009 = vld [vmem:[#allocation4] sm:$0xff]
        %v8010 = vld [vmem:[#allocation4 + $0x8] sm:$0xff]
        %v8011 = vld [vmem:[#allocation4 + $0x10] sm:$0xff]
        %v8012 = vld [vmem:[#allocation4 + $0x18] sm:$0xff]
        %v8013 = vld [vmem:[#allocation4 + $0x20] sm:$0xff]
        %v8014 = vld [vmem:[#allocation4 + $0x28] sm:$0xff]
        %v8015 = vld [vmem:[#allocation4 + $0x30] sm:$0xff]
        %v8016 = vld [vmem:[#allocation4 + $0x38] sm:$0xff]
        %v8017 = vld [vmem:[#allocation4 + $0x40] sm:$0xff]
        %v8018 = vld [vmem:[#allocation4 + $0x48] sm:$0xff]
        %v8019 = vld [vmem:[#allocation4 + $0x50] sm:$0xff]
        %v8020 = vld [vmem:[#allocation4 + $0x58] sm:$0xff]
        %v8021 = vld [vmem:[#allocation4 + $0x60] sm:$0xff]
        %v8022 = vpack.c.bf16 %v8009, %v8009
        %v8023 = vpack.c.bf16 %v8010, %v8010
        %v8024 = vpack.c.bf16 %v8011, %v8011
        %v8025 = vpack.c.bf16 %v8012, %v8012
        %v8026 = vpack.c.bf16 %v8013, %v8013
        %v8027 = vpack.c.bf16 %v8014, %v8014
        %v8028 = vpack.c.bf16 %v8015, %v8015
        %v8029 = vpack.c.bf16 %v8016, %v8016
        %v8030 = vpack.c.bf16 %v8017, %v8017
        %v8031 = vpack.c.bf16 %v8018, %v8018
        %v8032 = vpack.c.bf16 %v8019, %v8019
        %v8033 = vpack.c.bf16 %v8020, %v8020
        %v8034 = vpack.c.bf16 %v8021, %v8021
        %v8035 = vld [vmem:[%s5] sm:$0xf]
        %v8036 = vld [vmem:[%s5 + $0x4] sm:$0xf]
        %v8037 = vld [vmem:[%s5 + $0x8] sm:$0xf]
        %v8038 = vld [vmem:[%s5 + $0xc] sm:$0xf]
        %v8039 = vld [vmem:[%s5 + $0x10] sm:$0xf]
        %v8040 = vld [vmem:[%s5 + $0x14] sm:$0xf]
        %v8041 = vld [vmem:[%s5 + $0x18] sm:$0xf]
        %v8042 = vld [vmem:[%s5 + $0x1c] sm:$0xf]
        %v8043 = vld [vmem:[%s5 + $0x20] sm:$0xf]
        %v8044 = vld [vmem:[%s5 + $0x24] sm:$0xf]
        %v8045 = vld [vmem:[%s5 + $0x28] sm:$0xf]
        %v8046 = vld [vmem:[%s5 + $0x2c] sm:$0xf]
        %v8047 = vld [vmem:[%s5 + $0x30] sm:$0xf]
        %v8048 = vld [vmem:[%s5 + $0x34] sm:$0xf]
        %v8049 = vld [vmem:[%s5 + $0x38] sm:$0xf]
        %v8050 = vld [vmem:[%s5 + $0x3c] sm:$0xf]
        %v8051 = vld [vmem:[%s5 + $0x40] sm:$0xf]
        %v8052 = vld [vmem:[%s5 + $0x44] sm:$0xf]
        %v8053 = vld [vmem:[%s5 + $0x48] sm:$0xf]
        %v8054 = vld [vmem:[%s5 + $0x4c] sm:$0xf]
        %v8055 = vld [vmem:[%s5 + $0x50] sm:$0xf]
        %v8056 = vld [vmem:[%s5 + $0x54] sm:$0xf]
        %v8057 = vld [vmem:[%s5 + $0x58] sm:$0xf]
        %v8058 = vld [vmem:[%s5 + $0x5c] sm:$0xf]
        %v8059 = vld [vmem:[%s5 + $0x60] sm:$0xf]
        %v8060 = vld [vmem:[%s5 + $0x64] sm:$0xf]
        %v8061 = vld [vmem:[%s5 + $0x68] sm:$0xf]
        %v8062 = vld [vmem:[%s5 + $0x6c] sm:$0xf]
        %v8063 = vld [vmem:[%s5 + $0x70] sm:$0xf]
        %v8064 = vld [vmem:[%s5 + $0x74] sm:$0xf]
        %v8065 = vld [vmem:[%s5 + $0x78] sm:$0xf]
        %v8066 = vld [vmem:[%s5 + $0x7c] sm:$0xf]
        %v8067 = vld [vmem:[%s5 + $0x80] sm:$0xf]
        %v8068 = vld [vmem:[%s5 + $0x84] sm:$0xf]
        %v8069 = vld [vmem:[%s5 + $0x88] sm:$0xf]
        %v8070 = vld [vmem:[%s5 + $0x8c] sm:$0xf]
        %v8071 = vld [vmem:[%s5 + $0x90] sm:$0xf]
        %v8072 = vld [vmem:[%s5 + $0x94] sm:$0xf]
        %v8073 = vld [vmem:[%s5 + $0x98] sm:$0xf]
        %v8074 = vld [vmem:[%s5 + $0x9c] sm:$0xf]
        %v8075 = vld [vmem:[%s5 + $0xa0] sm:$0xf]
        %v8076 = vld [vmem:[%s5 + $0xa4] sm:$0xf]
        %v8077 = vld [vmem:[%s5 + $0xa8] sm:$0xf]
        %v8078 = vld [vmem:[%s5 + $0xac] sm:$0xf]
        %v8079 = vld [vmem:[%s5 + $0xb0] sm:$0xf]
        %v8080 = vld [vmem:[%s5 + $0xb4] sm:$0xf]
        %v8081 = vld [vmem:[%s5 + $0xb8] sm:$0xf]
        %v8082 = vld [vmem:[%s5 + $0xbc] sm:$0xf]
        %v8083 = vld [vmem:[%s5 + $0xc0] sm:$0xf]
        %v8084 = vld [vmem:[%s5 + $0xc4] sm:$0xf]
        %v8085 = vld [vmem:[%s5 + $0xc8] sm:$0xf]
        %v8086 = vld [vmem:[%s5 + $0xcc] sm:$0xf]
        %v8087 = vld [vmem:[%s5 + $0xd0] sm:$0xf]
        %v8088 = vld [vmem:[%s5 + $0xd4] sm:$0xf]
        %v8089 = vld [vmem:[%s5 + $0xd8] sm:$0xf]
        %v8090 = vld [vmem:[%s5 + $0xdc] sm:$0xf]
        %v8091 = vld [vmem:[%s5 + $0xe0] sm:$0xf]
        %v8092 = vld [vmem:[%s5 + $0xe4] sm:$0xf]
        %v8093 = vld [vmem:[%s5 + $0xe8] sm:$0xf]
        %v8094 = vld [vmem:[%s5 + $0xec] sm:$0xf]
        %v8095 = vld [vmem:[%s5 + $0xf0] sm:$0xf]
        %v8096 = vld [vmem:[%s5 + $0xf4] sm:$0xf]
        %v8097 = vld [vmem:[%s5 + $0xf8] sm:$0xf]
        %v8098 = vld [vmem:[%s5 + $0xfc] sm:$0xf]
        %v8099 = vld [vmem:[%s5 + $0x100] sm:$0xf]
        %v8100 = vld [vmem:[%s5 + $0x104] sm:$0xf]
        %v8101 = vld [vmem:[%s5 + $0x108] sm:$0xf]
        %v8102 = vld [vmem:[%s5 + $0x10c] sm:$0xf]
        %v8103 = vld [vmem:[%s5 + $0x110] sm:$0xf]
        %v8104 = vld [vmem:[%s5 + $0x114] sm:$0xf]
        %v8105 = vld [vmem:[%s5 + $0x118] sm:$0xf]
        %v8106 = vld [vmem:[%s5 + $0x11c] sm:$0xf]
        %v8107 = vld [vmem:[%s5 + $0x120] sm:$0xf]
        %v8108 = vld [vmem:[%s5 + $0x124] sm:$0xf]
        %v8109 = vld [vmem:[%s5 + $0x128] sm:$0xf]
        %v8110 = vld [vmem:[%s5 + $0x12c] sm:$0xf]
        %v8111 = vld [vmem:[%s5 + $0x130] sm:$0xf]
        %v8112 = vld [vmem:[%s5 + $0x134] sm:$0xf]
        %v8113 = vld [vmem:[%s5 + $0x138] sm:$0xf]
        %v8114 = vld [vmem:[%s5 + $0x13c] sm:$0xf]
        %v8115 = vld [vmem:[%s5 + $0x140] sm:$0xf]
        %v8116 = vld [vmem:[%s5 + $0x144] sm:$0xf]
        %v8117 = vld [vmem:[%s5 + $0x148] sm:$0xf]
        %v8118 = vld [vmem:[%s5 + $0x14c] sm:$0xf]
        %v8119 = vld [vmem:[%s5 + $0x150] sm:$0xf]
        %v8120 = vld [vmem:[%s5 + $0x154] sm:$0xf]
        %v8121 = vld [vmem:[%s5 + $0x158] sm:$0xf]
        %v8122 = vld [vmem:[%s5 + $0x15c] sm:$0xf]
        %v8123 = vld [vmem:[%s5 + $0x160] sm:$0xf]
        %v8124 = vld [vmem:[%s5 + $0x164] sm:$0xf]
        %v8125 = vld [vmem:[%s5 + $0x168] sm:$0xf]
        %v8126 = vld [vmem:[%s5 + $0x16c] sm:$0xf]
        %v8127 = vld [vmem:[%s5 + $0x170] sm:$0xf]
        %v8128 = vld [vmem:[%s5 + $0x174] sm:$0xf]
        %v8129 = vld [vmem:[%s5 + $0x178] sm:$0xf]
        %v8130 = vld [vmem:[%s5 + $0x17c] sm:$0xf]
        %v8131 = vld [vmem:[%s5 + $0x180] sm:$0xf]
        %v8132 = vld [vmem:[%s5 + $0x184] sm:$0xf]
        %v8133 = vld [vmem:[%s5 + $0x188] sm:$0xf]
        %v8134 = vld [vmem:[%s5 + $0x18c] sm:$0xf]
        %v8135 = vld [vmem:[%s5 + $0x190] sm:$0xf]
        %v8136 = vld [vmem:[%s5 + $0x194] sm:$0xf]
        %v8137 = vld [vmem:[%s5 + $0x198] sm:$0xf]
        %v8138 = vld [vmem:[%s5 + $0x19c] sm:$0xf]
        %v8139 = vld [vmem:[%s5 + $0x1a0] sm:$0xf]
        %v8140 = vld [vmem:[%s5 + $0x1a4] sm:$0xf]
        %v8141 = vld [vmem:[%s5 + $0x1a8] sm:$0xf]
        %v8142 = vld [vmem:[%s5 + $0x1ac] sm:$0xf]
        %v8143 = vld [vmem:[%s5 + $0x1b0] sm:$0xf]
        %v8144 = vld [vmem:[%s5 + $0x1b4] sm:$0xf]
        %v8145 = vld [vmem:[%s5 + $0x1b8] sm:$0xf]
        %v8146 = vld [vmem:[%s5 + $0x1bc] sm:$0xf]
        %v8147 = vld [vmem:[%s5 + $0x1c0] sm:$0xf]
        %v8148 = vld [vmem:[%s5 + $0x1c4] sm:$0xf]
        %v8149 = vld [vmem:[%s5 + $0x1c8] sm:$0xf]
        %v8150 = vld [vmem:[%s5 + $0x1cc] sm:$0xf]
        %v8151 = vld [vmem:[%s5 + $0x1d0] sm:$0xf]
        %v8152 = vld [vmem:[%s5 + $0x1d4] sm:$0xf]
        %v8153 = vld [vmem:[%s5 + $0x1d8] sm:$0xf]
        %v8154 = vld [vmem:[%s5 + $0x1dc] sm:$0xf]
        %v8155 = vld [vmem:[%s5 + $0x1e0] sm:$0xf]
        %v8156 = vld [vmem:[%s5 + $0x1e4] sm:$0xf]
        %v8157 = vld [vmem:[%s5 + $0x1e8] sm:$0xf]
        %v8158 = vld [vmem:[%s5 + $0x1ec] sm:$0xf]
        %v8159 = vld [vmem:[%s5 + $0x1f0] sm:$0xf]
        %v8160 = vld [vmem:[%s5 + $0x1f4] sm:$0xf]
        %v8161 = vld [vmem:[%s5 + $0x1f8] sm:$0xf]
        %v8162 = vld [vmem:[%s5 + $0x1fc] sm:$0xf]
        %v8163 = vld [vmem:[%s5 + $0x200] sm:$0xf]
        %v8164 = vld [vmem:[%s5 + $0x204] sm:$0xf]
        %v8165 = vld [vmem:[%s5 + $0x208] sm:$0xf]
        %v8166 = vld [vmem:[%s5 + $0x20c] sm:$0xf]
        %v8167 = vld [vmem:[%s5 + $0x210] sm:$0xf]
        %v8168 = vld [vmem:[%s5 + $0x214] sm:$0xf]
        %v8169 = vld [vmem:[%s5 + $0x218] sm:$0xf]
        %v8170 = vld [vmem:[%s5 + $0x21c] sm:$0xf]
        %v8171 = vld [vmem:[%s5 + $0x220] sm:$0xf]
        %v8172 = vld [vmem:[%s5 + $0x224] sm:$0xf]
        %v8173 = vld [vmem:[%s5 + $0x228] sm:$0xf]
        %v8174 = vld [vmem:[%s5 + $0x22c] sm:$0xf]
        %v8175 = vld [vmem:[%s5 + $0x230] sm:$0xf]
        %v8176 = vld [vmem:[%s5 + $0x234] sm:$0xf]
        %v8177 = vld [vmem:[%s5 + $0x238] sm:$0xf]
        %v8178 = vld [vmem:[%s5 + $0x23c] sm:$0xf]
        %v8179 = vld [vmem:[%s5 + $0x240] sm:$0xf]
        %v8180 = vld [vmem:[%s5 + $0x244] sm:$0xf]
        %v8181 = vld [vmem:[%s5 + $0x248] sm:$0xf]
        %v8182 = vld [vmem:[%s5 + $0x24c] sm:$0xf]
        %v8183 = vld [vmem:[%s5 + $0x250] sm:$0xf]
        %v8184 = vld [vmem:[%s5 + $0x254] sm:$0xf]
        %v8185 = vld [vmem:[%s5 + $0x258] sm:$0xf]
        %v8186 = vld [vmem:[%s5 + $0x25c] sm:$0xf]
        %v8187 = vld [vmem:[%s5 + $0x260] sm:$0xf]
        %v8188 = vld [vmem:[%s5 + $0x264] sm:$0xf]
        %v8189 = vld [vmem:[%s5 + $0x268] sm:$0xf]
        %v8190 = vld [vmem:[%s5 + $0x26c] sm:$0xf]
        %v8191 = vld [vmem:[%s5 + $0x270] sm:$0xf]
        %v8192 = vld [vmem:[%s5 + $0x274] sm:$0xf]
        %v8193 = vld [vmem:[%s5 + $0x278] sm:$0xf]
        %v8194 = vld [vmem:[%s5 + $0x27c] sm:$0xf]
        %v8195 = vld [vmem:[%s5 + $0x280] sm:$0xf]
        %v8196 = vld [vmem:[%s5 + $0x284] sm:$0xf]
        %v8197 = vld [vmem:[%s5 + $0x288] sm:$0xf]
        %v8198 = vld [vmem:[%s5 + $0x28c] sm:$0xf]
        %v8199 = vld [vmem:[%s5 + $0x290] sm:$0xf]
        %v8200 = vld [vmem:[%s5 + $0x294] sm:$0xf]
        %v8201 = vld [vmem:[%s5 + $0x298] sm:$0xf]
        %v8202 = vld [vmem:[%s5 + $0x29c] sm:$0xf]
        %v8203 = vld [vmem:[%s5 + $0x2a0] sm:$0xf]
        %v8204 = vld [vmem:[%s5 + $0x2a4] sm:$0xf]
        %v8205 = vld [vmem:[%s5 + $0x2a8] sm:$0xf]
        %v8206 = vld [vmem:[%s5 + $0x2ac] sm:$0xf]
        %v8207 = vld [vmem:[%s5 + $0x2b0] sm:$0xf]
        %v8208 = vld [vmem:[%s5 + $0x2b4] sm:$0xf]
        %v8209 = vld [vmem:[%s5 + $0x2b8] sm:$0xf]
        %v8210 = vld [vmem:[%s5 + $0x2bc] sm:$0xf]
        %v8211 = vld [vmem:[%s5 + $0x2c0] sm:$0xf]
        %v8212 = vld [vmem:[%s5 + $0x2c4] sm:$0xf]
        %v8213 = vld [vmem:[%s5 + $0x2c8] sm:$0xf]
        %v8214 = vld [vmem:[%s5 + $0x2cc] sm:$0xf]
        %v8215 = vld [vmem:[%s5 + $0x2d0] sm:$0xf]
        %v8216 = vld [vmem:[%s5 + $0x2d4] sm:$0xf]
        %v8217 = vld [vmem:[%s5 + $0x2d8] sm:$0xf]
        %v8218 = vld [vmem:[%s5 + $0x2dc] sm:$0xf]
        %v8219 = vld [vmem:[%s5 + $0x2e0] sm:$0xf]
        %v8220 = vld [vmem:[%s5 + $0x2e4] sm:$0xf]
        %v8221 = vld [vmem:[%s5 + $0x2e8] sm:$0xf]
        %v8222 = vld [vmem:[%s5 + $0x2ec] sm:$0xf]
        %v8223 = vld [vmem:[%s5 + $0x2f0] sm:$0xf]
        %v8224 = vld [vmem:[%s5 + $0x2f4] sm:$0xf]
        %v8225 = vld [vmem:[%s5 + $0x2f8] sm:$0xf]
        %v8226 = vld [vmem:[%s5 + $0x2fc] sm:$0xf]
        %v8227 = vld [vmem:[%s5 + $0x300] sm:$0xf]
        %v8228 = vld [vmem:[%s5 + $0x304] sm:$0xf]
        %v8229 = vld [vmem:[%s5 + $0x308] sm:$0xf]
        %v8230 = vld [vmem:[%s5 + $0x30c] sm:$0xf]
        %v8231 = vld [vmem:[%s5 + $0x310] sm:$0xf]
        %v8232 = vld [vmem:[%s5 + $0x314] sm:$0xf]
        %v8233 = vld [vmem:[%s5 + $0x318] sm:$0xf]
        %v8234 = vld [vmem:[%s5 + $0x31c] sm:$0xf]
        %v8235 = vld [vmem:[%s6] sm:$0x1]
        %v8237 = vlaneseq
        %v8238 = vshrl.u32 %v8237, 7
        %v8239 = vsub.s32 0, %v8238
        %v8240 = vrot.slane %v8235, %v8239
        %v8442 = vunpack.c.l.b16 %v8035
        %v8443 = vunpack.c.l.b16 %v8036
        %v8444 = vunpack.c.l.b16 %v8037
        %v8445 = vunpack.c.l.b16 %v8038
        %v8446 = vunpack.c.l.b16 %v8039
        %v8447 = vunpack.c.l.b16 %v8040
        %v8448 = vunpack.c.l.b16 %v8041
        %v8449 = vunpack.c.l.b16 %v8042
        %v8450 = vunpack.c.l.b16 %v8043
        %v8451 = vunpack.c.l.b16 %v8044
        %v8452 = vunpack.c.l.b16 %v8045
        %v8453 = vunpack.c.l.b16 %v8046
        %v8454 = vunpack.c.l.b16 %v8047
        %v8455 = vunpack.c.l.b16 %v8048
        %v8456 = vunpack.c.l.b16 %v8049
        %v8457 = vunpack.c.l.b16 %v8050
        %v8458 = vunpack.c.l.b16 %v8051
        %v8459 = vunpack.c.l.b16 %v8052
        %v8460 = vunpack.c.l.b16 %v8053
        %v8461 = vunpack.c.l.b16 %v8054
        %v8462 = vunpack.c.l.b16 %v8055
        %v8463 = vunpack.c.l.b16 %v8056
        %v8464 = vunpack.c.l.b16 %v8057
        %v8465 = vunpack.c.l.b16 %v8058
        %v8466 = vunpack.c.l.b16 %v8059
        %v8467 = vunpack.c.l.b16 %v8060
        %v8468 = vunpack.c.l.b16 %v8061
        %v8469 = vunpack.c.l.b16 %v8062
        %v8470 = vunpack.c.l.b16 %v8063
        %v8471 = vunpack.c.l.b16 %v8064
        %v8472 = vunpack.c.l.b16 %v8065
        %v8473 = vunpack.c.l.b16 %v8066
        %v8474 = vunpack.c.l.b16 %v8067
        %v8475 = vunpack.c.l.b16 %v8068
        %v8476 = vunpack.c.l.b16 %v8069
        %v8477 = vunpack.c.l.b16 %v8070
        %v8478 = vunpack.c.l.b16 %v8071
        %v8479 = vunpack.c.l.b16 %v8072
        %v8480 = vunpack.c.l.b16 %v8073
        %v8481 = vunpack.c.l.b16 %v8074
        %v8482 = vunpack.c.l.b16 %v8075
        %v8483 = vunpack.c.l.b16 %v8076
        %v8484 = vunpack.c.l.b16 %v8077
        %v8485 = vunpack.c.l.b16 %v8078
        %v8486 = vunpack.c.l.b16 %v8079
        %v8487 = vunpack.c.l.b16 %v8080
        %v8488 = vunpack.c.l.b16 %v8081
        %v8489 = vunpack.c.l.b16 %v8082
        %v8490 = vunpack.c.l.b16 %v8083
        %v8491 = vunpack.c.l.b16 %v8084
        %v8492 = vunpack.c.l.b16 %v8085
        %v8493 = vunpack.c.l.b16 %v8086
        %v8494 = vunpack.c.l.b16 %v8087
        %v8495 = vunpack.c.l.b16 %v8088
        %v8496 = vunpack.c.l.b16 %v8089
        %v8497 = vunpack.c.l.b16 %v8090
        %v8498 = vunpack.c.l.b16 %v8091
        %v8499 = vunpack.c.l.b16 %v8092
        %v8500 = vunpack.c.l.b16 %v8093
        %v8501 = vunpack.c.l.b16 %v8094
        %v8502 = vunpack.c.l.b16 %v8095
        %v8503 = vunpack.c.l.b16 %v8096
        %v8504 = vunpack.c.l.b16 %v8097
        %v8505 = vunpack.c.l.b16 %v8098
        %v8506 = vunpack.c.l.b16 %v8099
        %v8507 = vunpack.c.l.b16 %v8100
        %v8508 = vunpack.c.l.b16 %v8101
        %v8509 = vunpack.c.l.b16 %v8102
        %v8510 = vunpack.c.l.b16 %v8103
        %v8511 = vunpack.c.l.b16 %v8104
        %v8512 = vunpack.c.l.b16 %v8105
        %v8513 = vunpack.c.l.b16 %v8106
        %v8514 = vunpack.c.l.b16 %v8107
        %v8515 = vunpack.c.l.b16 %v8108
        %v8516 = vunpack.c.l.b16 %v8109
        %v8517 = vunpack.c.l.b16 %v8110
        %v8518 = vunpack.c.l.b16 %v8111
        %v8519 = vunpack.c.l.b16 %v8112
        %v8520 = vunpack.c.l.b16 %v8113
        %v8521 = vunpack.c.l.b16 %v8114
        %v8522 = vunpack.c.l.b16 %v8115
        %v8523 = vunpack.c.l.b16 %v8116
        %v8524 = vunpack.c.l.b16 %v8117
        %v8525 = vunpack.c.l.b16 %v8118
        %v8526 = vunpack.c.l.b16 %v8119
        %v8527 = vunpack.c.l.b16 %v8120
        %v8528 = vunpack.c.l.b16 %v8121
        %v8529 = vunpack.c.l.b16 %v8122
        %v8530 = vunpack.c.l.b16 %v8123
        %v8531 = vunpack.c.l.b16 %v8124
        %v8532 = vunpack.c.l.b16 %v8125
        %v8533 = vunpack.c.l.b16 %v8126
        %v8534 = vunpack.c.l.b16 %v8127
        %v8535 = vunpack.c.l.b16 %v8128
        %v8536 = vunpack.c.l.b16 %v8129
        %v8537 = vunpack.c.l.b16 %v8130
        %v8538 = vunpack.c.l.b16 %v8131
        %v8539 = vunpack.c.l.b16 %v8132
        %v8540 = vunpack.c.l.b16 %v8133
        %v8541 = vunpack.c.l.b16 %v8134
        %v8542 = vunpack.c.l.b16 %v8135
        %v8543 = vunpack.c.l.b16 %v8136
        %v8544 = vunpack.c.l.b16 %v8137
        %v8545 = vunpack.c.l.b16 %v8138
        %v8546 = vunpack.c.l.b16 %v8139
        %v8547 = vunpack.c.l.b16 %v8140
        %v8548 = vunpack.c.l.b16 %v8141
        %v8549 = vunpack.c.l.b16 %v8142
        %v8550 = vunpack.c.l.b16 %v8143
        %v8551 = vunpack.c.l.b16 %v8144
        %v8552 = vunpack.c.l.b16 %v8145
        %v8553 = vunpack.c.l.b16 %v8146
        %v8554 = vunpack.c.l.b16 %v8147
        %v8555 = vunpack.c.l.b16 %v8148
        %v8556 = vunpack.c.l.b16 %v8149
        %v8557 = vunpack.c.l.b16 %v8150
        %v8558 = vunpack.c.l.b16 %v8151
        %v8559 = vunpack.c.l.b16 %v8152
        %v8560 = vunpack.c.l.b16 %v8153
        %v8561 = vunpack.c.l.b16 %v8154
        %v8562 = vunpack.c.l.b16 %v8155
        %v8563 = vunpack.c.l.b16 %v8156
        %v8564 = vunpack.c.l.b16 %v8157
        %v8565 = vunpack.c.l.b16 %v8158
        %v8566 = vunpack.c.l.b16 %v8159
        %v8567 = vunpack.c.l.b16 %v8160
        %v8568 = vunpack.c.l.b16 %v8161
        %v8569 = vunpack.c.l.b16 %v8162
        %v8570 = vunpack.c.l.b16 %v8163
        %v8571 = vunpack.c.l.b16 %v8164
        %v8572 = vunpack.c.l.b16 %v8165
        %v8573 = vunpack.c.l.b16 %v8166
        %v8574 = vunpack.c.l.b16 %v8167
        %v8575 = vunpack.c.l.b16 %v8168
        %v8576 = vunpack.c.l.b16 %v8169
        %v8577 = vunpack.c.l.b16 %v8170
        %v8578 = vunpack.c.l.b16 %v8171
        %v8579 = vunpack.c.l.b16 %v8172
        %v8580 = vunpack.c.l.b16 %v8173
        %v8581 = vunpack.c.l.b16 %v8174
        %v8582 = vunpack.c.l.b16 %v8175
        %v8583 = vunpack.c.l.b16 %v8176
        %v8584 = vunpack.c.l.b16 %v8177
        %v8585 = vunpack.c.l.b16 %v8178
        %v8586 = vunpack.c.l.b16 %v8179
        %v8587 = vunpack.c.l.b16 %v8180
        %v8588 = vunpack.c.l.b16 %v8181
        %v8589 = vunpack.c.l.b16 %v8182
        %v8590 = vunpack.c.l.b16 %v8183
        %v8591 = vunpack.c.l.b16 %v8184
        %v8592 = vunpack.c.l.b16 %v8185
        %v8593 = vunpack.c.l.b16 %v8186
        %v8594 = vunpack.c.l.b16 %v8187
        %v8595 = vunpack.c.l.b16 %v8188
        %v8596 = vunpack.c.l.b16 %v8189
        %v8597 = vunpack.c.l.b16 %v8190
        %v8598 = vunpack.c.l.b16 %v8191
        %v8599 = vunpack.c.l.b16 %v8192
        %v8600 = vunpack.c.l.b16 %v8193
        %v8601 = vunpack.c.l.b16 %v8194
        %v8602 = vunpack.c.l.b16 %v8195
        %v8603 = vunpack.c.l.b16 %v8196
        %v8604 = vunpack.c.l.b16 %v8197
        %v8605 = vunpack.c.l.b16 %v8198
        %v8606 = vunpack.c.l.b16 %v8199
        %v8607 = vunpack.c.l.b16 %v8200
        %v8608 = vunpack.c.l.b16 %v8201
        %v8609 = vunpack.c.l.b16 %v8202
        %v8610 = vunpack.c.l.b16 %v8203
        %v8611 = vunpack.c.l.b16 %v8204
        %v8612 = vunpack.c.l.b16 %v8205
        %v8613 = vunpack.c.l.b16 %v8206
        %v8614 = vunpack.c.l.b16 %v8207
        %v8615 = vunpack.c.l.b16 %v8208
        %v8616 = vunpack.c.l.b16 %v8209
        %v8617 = vunpack.c.l.b16 %v8210
        %v8618 = vunpack.c.l.b16 %v8211
        %v8619 = vunpack.c.l.b16 %v8212
        %v8620 = vunpack.c.l.b16 %v8213
        %v8621 = vunpack.c.l.b16 %v8214
        %v8622 = vunpack.c.l.b16 %v8215
        %v8623 = vunpack.c.l.b16 %v8216
        %v8624 = vunpack.c.l.b16 %v8217
        %v8625 = vunpack.c.l.b16 %v8218
        %v8626 = vunpack.c.l.b16 %v8219
        %v8627 = vunpack.c.l.b16 %v8220
        %v8628 = vunpack.c.l.b16 %v8221
        %v8629 = vunpack.c.l.b16 %v8222
        %v8630 = vunpack.c.l.b16 %v8223
        %v8631 = vunpack.c.l.b16 %v8224
        %v8632 = vunpack.c.l.b16 %v8225
        %v8633 = vunpack.c.l.b16 %v8226
        %v8634 = vunpack.c.l.b16 %v8227
        %v8635 = vunpack.c.l.b16 %v8228
        %v8636 = vunpack.c.l.b16 %v8229
        %v8637 = vunpack.c.l.b16 %v8230
        %v8638 = vunpack.c.l.b16 %v8231
        %v8639 = vunpack.c.l.b16 %v8232
        %v8640 = vunpack.c.l.b16 %v8233
        %v8641 = vunpack.c.l.b16 %v8234
        %v8642 = vpack.c.b16 %v8443, %v8442
        %v8643 = vpack.c.b16 %v8445, %v8444
        %v8644 = vpack.c.b16 %v8447, %v8446
        %v8645 = vpack.c.b16 %v8449, %v8448
        %v8646 = vpack.c.b16 %v8451, %v8450
        %v8647 = vpack.c.b16 %v8453, %v8452
        %v8648 = vpack.c.b16 %v8455, %v8454
        %v8649 = vpack.c.b16 %v8457, %v8456
        %v8650 = vpack.c.b16 %v8459, %v8458
        %v8651 = vpack.c.b16 %v8461, %v8460
        %v8652 = vpack.c.b16 %v8463, %v8462
        %v8653 = vpack.c.b16 %v8465, %v8464
        %v8654 = vpack.c.b16 %v8467, %v8466
        %v8655 = vpack.c.b16 %v8469, %v8468
        %v8656 = vpack.c.b16 %v8471, %v8470
        %v8657 = vpack.c.b16 %v8473, %v8472
        %v8658 = vpack.c.b16 %v8475, %v8474
        %v8659 = vpack.c.b16 %v8477, %v8476
        %v8660 = vpack.c.b16 %v8479, %v8478
        %v8661 = vpack.c.b16 %v8481, %v8480
        %v8662 = vpack.c.b16 %v8483, %v8482
        %v8663 = vpack.c.b16 %v8485, %v8484
        %v8664 = vpack.c.b16 %v8487, %v8486
        %v8665 = vpack.c.b16 %v8489, %v8488
        %v8666 = vpack.c.b16 %v8491, %v8490
        %v8667 = vpack.c.b16 %v8493, %v8492
        %v8668 = vpack.c.b16 %v8495, %v8494
        %v8669 = vpack.c.b16 %v8497, %v8496
        %v8670 = vpack.c.b16 %v8499, %v8498
        %v8671 = vpack.c.b16 %v8501, %v8500
        %v8672 = vpack.c.b16 %v8503, %v8502
        %v8673 = vpack.c.b16 %v8505, %v8504
        %v8674 = vpack.c.b16 %v8507, %v8506
        %v8675 = vpack.c.b16 %v8509, %v8508
        %v8676 = vpack.c.b16 %v8511, %v8510
        %v8677 = vpack.c.b16 %v8513, %v8512
        %v8678 = vpack.c.b16 %v8515, %v8514
        %v8679 = vpack.c.b16 %v8517, %v8516
        %v8680 = vpack.c.b16 %v8519, %v8518
        %v8681 = vpack.c.b16 %v8521, %v8520
        %v8682 = vpack.c.b16 %v8523, %v8522
        %v8683 = vpack.c.b16 %v8525, %v8524
        %v8684 = vpack.c.b16 %v8527, %v8526
        %v8685 = vpack.c.b16 %v8529, %v8528
        %v8686 = vpack.c.b16 %v8531, %v8530
        %v8687 = vpack.c.b16 %v8533, %v8532
        %v8688 = vpack.c.b16 %v8535, %v8534
        %v8689 = vpack.c.b16 %v8537, %v8536
        %v8690 = vpack.c.b16 %v8539, %v8538
        %v8691 = vpack.c.b16 %v8541, %v8540
        %v8692 = vpack.c.b16 %v8543, %v8542
        %v8693 = vpack.c.b16 %v8545, %v8544
        %v8694 = vpack.c.b16 %v8547, %v8546
        %v8695 = vpack.c.b16 %v8549, %v8548
        %v8696 = vpack.c.b16 %v8551, %v8550
        %v8697 = vpack.c.b16 %v8553, %v8552
        %v8698 = vpack.c.b16 %v8555, %v8554
        %v8699 = vpack.c.b16 %v8557, %v8556
        %v8700 = vpack.c.b16 %v8559, %v8558
        %v8701 = vpack.c.b16 %v8561, %v8560
        %v8702 = vpack.c.b16 %v8563, %v8562
        %v8703 = vpack.c.b16 %v8565, %v8564
        %v8704 = vpack.c.b16 %v8567, %v8566
        %v8705 = vpack.c.b16 %v8569, %v8568
        %v8706 = vpack.c.b16 %v8571, %v8570
        %v8707 = vpack.c.b16 %v8573, %v8572
        %v8708 = vpack.c.b16 %v8575, %v8574
        %v8709 = vpack.c.b16 %v8577, %v8576
        %v8710 = vpack.c.b16 %v8579, %v8578
        %v8711 = vpack.c.b16 %v8581, %v8580
        %v8712 = vpack.c.b16 %v8583, %v8582
        %v8713 = vpack.c.b16 %v8585, %v8584
        %v8714 = vpack.c.b16 %v8587, %v8586
        %v8715 = vpack.c.b16 %v8589, %v8588
        %v8716 = vpack.c.b16 %v8591, %v8590
        %v8717 = vpack.c.b16 %v8593, %v8592
        %v8718 = vpack.c.b16 %v8595, %v8594
        %v8719 = vpack.c.b16 %v8597, %v8596
        %v8720 = vpack.c.b16 %v8599, %v8598
        %v8721 = vpack.c.b16 %v8601, %v8600
        %v8722 = vpack.c.b16 %v8603, %v8602
        %v8723 = vpack.c.b16 %v8605, %v8604
        %v8724 = vpack.c.b16 %v8607, %v8606
        %v8725 = vpack.c.b16 %v8609, %v8608
        %v8726 = vpack.c.b16 %v8611, %v8610
        %v8727 = vpack.c.b16 %v8613, %v8612
        %v8728 = vpack.c.b16 %v8615, %v8614
        %v8729 = vpack.c.b16 %v8617, %v8616
        %v8730 = vpack.c.b16 %v8619, %v8618
        %v8731 = vpack.c.b16 %v8621, %v8620
        %v8732 = vpack.c.b16 %v8623, %v8622
        %v8733 = vpack.c.b16 %v8625, %v8624
        %v8734 = vpack.c.b16 %v8627, %v8626
        %v8735 = vpack.c.b16 %v8629, %v8628
        %v8736 = vpack.c.b16 %v8631, %v8630
        %v8737 = vpack.c.b16 %v8633, %v8632
        %v8738 = vpack.c.b16 %v8635, %v8634
        %v8739 = vpack.c.b16 %v8637, %v8636
        %v8740 = vpack.c.b16 %v8639, %v8638
        %v8741 = vpack.c.b16 %v8641, %v8640
        %v8843 = vsel %vm6782, %v8034, 0
        %8845 = vmatprep.subr.bf16.mxu0 0
        %8846 = vmatpush1.bf16.msra.mxu0 %v8649
        %8847 = vmatprep.subr.bf16.mxu0 0
        %8848 = vmatpush1.bf16.msra.mxu0 %v8648
        %8849 = vmatprep.subr.bf16.mxu0 0
        %8850 = vmatpush1.bf16.msra.mxu0 %v8647
        %8851 = vmatprep.subr.bf16.mxu0 0
        %8852 = vmatpush1.bf16.msra.mxu0 %v8646
        %8853 = vmatprep.subr.bf16.mxu0 0
        %8854 = vmatpush1.bf16.msra.mxu0 %v8645
        %8855 = vmatprep.subr.bf16.mxu0 0
        %8856 = vmatpush1.bf16.msra.mxu0 %v8644
        %8857 = vmatprep.subr.bf16.mxu0 0
        %8858 = vmatpush1.bf16.msra.mxu0 %v8643
        %8859 = vmatprep.subr.bf16.mxu0 0
        %8860 = vmatpush1.bf16.msra.mxu0 %v8642
        %8861 = vmatprep.subr.bf16.mxu0 0
        %8862 = vmatpush2.bf16.msra.mxu0 %v8657
        %8863 = vmatprep.subr.bf16.mxu0 0
        %8864 = vmatpush2.bf16.msra.mxu0 %v8656
        %8865 = vmatprep.subr.bf16.mxu0 0
        %8866 = vmatpush2.bf16.msra.mxu0 %v8655
        %8867 = vmatprep.subr.bf16.mxu0 0
        %8868 = vmatpush2.bf16.msra.mxu0 %v8654
        %8869 = vmatprep.subr.bf16.mxu0 0
        %8870 = vmatpush2.bf16.msra.mxu0 %v8653
        %8871 = vmatprep.subr.bf16.mxu0 0
        %8872 = vmatpush2.bf16.msra.mxu0 %v8652
        %8873 = vmatprep.subr.bf16.mxu0 0
        %8874 = vmatpush2.bf16.msra.mxu0 %v8651
        %8875 = vmatprep.subr.bf16.mxu0 0
        %8876 = vmatpush2.bf16.msra.mxu0 %v8650
        %8877 = vmatprep.mubr.bf16.mxu0 %v8023
        %8878 = vmatmul.mubr.bf16.gmra.mxu0 %v8022
        %v8879 = vpop.f32.mrf.mxu0
        %v8880 = vadd.f32 %v8240, %v8879
        %v8881 = vpop.f32.mrf.mxu0
        %v8882 = vpop.f32.mrf.mxu0
        %v8883 = vpop.f32.mrf.mxu0
        %8884 = vdwg.mxu0
        %8885 = vmatprep.subr.bf16.mxu0 0
        %8886 = vmatpush1.bf16.msra.mxu0 %v8665
        %8887 = vmatprep.subr.bf16.mxu0 0
        %8888 = vmatpush1.bf16.msra.mxu0 %v8664
        %8889 = vmatprep.subr.bf16.mxu0 0
        %8890 = vmatpush1.bf16.msra.mxu0 %v8663
        %8891 = vmatprep.subr.bf16.mxu0 0
        %8892 = vmatpush1.bf16.msra.mxu0 %v8662
        %8893 = vmatprep.subr.bf16.mxu0 0
        %8894 = vmatpush1.bf16.msra.mxu0 %v8661
        %8895 = vmatprep.subr.bf16.mxu0 0
        %8896 = vmatpush1.bf16.msra.mxu0 %v8660
        %8897 = vmatprep.subr.bf16.mxu0 0
        %8898 = vmatpush1.bf16.msra.mxu0 %v8659
        %8899 = vmatprep.subr.bf16.mxu0 0
        %8900 = vmatpush1.bf16.msra.mxu0 %v8658
        %8901 = vmatprep.subr.bf16.mxu0 0
        %8902 = vmatpush2.bf16.msra.mxu0 %v8673
        %8903 = vmatprep.subr.bf16.mxu0 0
        %8904 = vmatpush2.bf16.msra.mxu0 %v8672
        %8905 = vmatprep.subr.bf16.mxu0 0
        %8906 = vmatpush2.bf16.msra.mxu0 %v8671
        %8907 = vmatprep.subr.bf16.mxu0 0
        %8908 = vmatpush2.bf16.msra.mxu0 %v8670
        %8909 = vmatprep.subr.bf16.mxu0 0
        %8910 = vmatpush2.bf16.msra.mxu0 %v8669
        %8911 = vmatprep.subr.bf16.mxu0 0
        %8912 = vmatpush2.bf16.msra.mxu0 %v8668
        %8913 = vmatprep.subr.bf16.mxu0 0
        %8914 = vmatpush2.bf16.msra.mxu0 %v8667
        %8915 = vmatprep.subr.bf16.mxu0 0
        %8916 = vmatpush2.bf16.msra.mxu0 %v8666
        %8917 = vmatprep.mubr.bf16.mxu0 %v8025
        %8918 = vmatmul.mubr.bf16.gmra.mxu0 %v8024
        %v8919 = vpop.f32.mrf.mxu0
        %v8920 = vadd.f32 %v8880, %v8919
        %v8921 = vpop.f32.mrf.mxu0
        %v8922 = vpop.f32.mrf.mxu0
        %v8923 = vpop.f32.mrf.mxu0
        %8924 = vdwg.mxu0
        %8925 = vmatprep.subr.bf16.mxu0 0
        %8926 = vmatpush1.bf16.msra.mxu0 %v8681
        %8927 = vmatprep.subr.bf16.mxu0 0
        %8928 = vmatpush1.bf16.msra.mxu0 %v8680
        %8929 = vmatprep.subr.bf16.mxu0 0
        %8930 = vmatpush1.bf16.msra.mxu0 %v8679
        %8931 = vmatprep.subr.bf16.mxu0 0
        %8932 = vmatpush1.bf16.msra.mxu0 %v8678
        %8933 = vmatprep.subr.bf16.mxu0 0
        %8934 = vmatpush1.bf16.msra.mxu0 %v8677
        %8935 = vmatprep.subr.bf16.mxu0 0
        %8936 = vmatpush1.bf16.msra.mxu0 %v8676
        %8937 = vmatprep.subr.bf16.mxu0 0
        %8938 = vmatpush1.bf16.msra.mxu0 %v8675
        %8939 = vmatprep.subr.bf16.mxu0 0
        %8940 = vmatpush1.bf16.msra.mxu0 %v8674
        %8941 = vmatprep.subr.bf16.mxu0 0
        %8942 = vmatpush2.bf16.msra.mxu0 %v8689
        %8943 = vmatprep.subr.bf16.mxu0 0
        %8944 = vmatpush2.bf16.msra.mxu0 %v8688
        %8945 = vmatprep.subr.bf16.mxu0 0
        %8946 = vmatpush2.bf16.msra.mxu0 %v8687
        %8947 = vmatprep.subr.bf16.mxu0 0
        %8948 = vmatpush2.bf16.msra.mxu0 %v8686
        %8949 = vmatprep.subr.bf16.mxu0 0
        %8950 = vmatpush2.bf16.msra.mxu0 %v8685
        %8951 = vmatprep.subr.bf16.mxu0 0
        %8952 = vmatpush2.bf16.msra.mxu0 %v8684
        %8953 = vmatprep.subr.bf16.mxu0 0
        %8954 = vmatpush2.bf16.msra.mxu0 %v8683
        %8955 = vmatprep.subr.bf16.mxu0 0
        %8956 = vmatpush2.bf16.msra.mxu0 %v8682
        %8957 = vmatprep.mubr.bf16.mxu0 %v8027
        %8958 = vmatmul.mubr.bf16.gmra.mxu0 %v8026
        %v8959 = vpop.f32.mrf.mxu0
        %v8960 = vadd.f32 %v8920, %v8959
        %v8961 = vpop.f32.mrf.mxu0
        %v8962 = vpop.f32.mrf.mxu0
        %v8963 = vpop.f32.mrf.mxu0
        %8964 = vdwg.mxu0
        %8965 = vmatprep.subr.bf16.mxu0 0
        %8966 = vmatpush1.bf16.msra.mxu0 %v8697
        %8967 = vmatprep.subr.bf16.mxu0 0
        %8968 = vmatpush1.bf16.msra.mxu0 %v8696
        %8969 = vmatprep.subr.bf16.mxu0 0
        %8970 = vmatpush1.bf16.msra.mxu0 %v8695
        %8971 = vmatprep.subr.bf16.mxu0 0
        %8972 = vmatpush1.bf16.msra.mxu0 %v8694
        %8973 = vmatprep.subr.bf16.mxu0 0
        %8974 = vmatpush1.bf16.msra.mxu0 %v8693
        %8975 = vmatprep.subr.bf16.mxu0 0
        %8976 = vmatpush1.bf16.msra.mxu0 %v8692
        %8977 = vmatprep.subr.bf16.mxu0 0
        %8978 = vmatpush1.bf16.msra.mxu0 %v8691
        %8979 = vmatprep.subr.bf16.mxu0 0
        %8980 = vmatpush1.bf16.msra.mxu0 %v8690
        %8981 = vmatprep.subr.bf16.mxu0 0
        %8982 = vmatpush2.bf16.msra.mxu0 %v8705
        %8983 = vmatprep.subr.bf16.mxu0 0
        %8984 = vmatpush2.bf16.msra.mxu0 %v8704
        %8985 = vmatprep.subr.bf16.mxu0 0
        %8986 = vmatpush2.bf16.msra.mxu0 %v8703
        %8987 = vmatprep.subr.bf16.mxu0 0
        %8988 = vmatpush2.bf16.msra.mxu0 %v8702
        %8989 = vmatprep.subr.bf16.mxu0 0
        %8990 = vmatpush2.bf16.msra.mxu0 %v8701
        %8991 = vmatprep.subr.bf16.mxu0 0
        %8992 = vmatpush2.bf16.msra.mxu0 %v8700
        %8993 = vmatprep.subr.bf16.mxu0 0
        %8994 = vmatpush2.bf16.msra.mxu0 %v8699
        %8995 = vmatprep.subr.bf16.mxu0 0
        %8996 = vmatpush2.bf16.msra.mxu0 %v8698
        %8997 = vmatprep.mubr.bf16.mxu0 %v8029
        %8998 = vmatmul.mubr.bf16.gmra.mxu0 %v8028
        %v8999 = vpop.f32.mrf.mxu0
        %v9000 = vadd.f32 %v8960, %v8999
        %v9001 = vpop.f32.mrf.mxu0
        %v9002 = vpop.f32.mrf.mxu0
        %v9003 = vpop.f32.mrf.mxu0
        %9004 = vdwg.mxu0
        %9005 = vmatprep.subr.bf16.mxu0 0
        %9006 = vmatpush1.bf16.msra.mxu0 %v8713
        %9007 = vmatprep.subr.bf16.mxu0 0
        %9008 = vmatpush1.bf16.msra.mxu0 %v8712
        %9009 = vmatprep.subr.bf16.mxu0 0
        %9010 = vmatpush1.bf16.msra.mxu0 %v8711
        %9011 = vmatprep.subr.bf16.mxu0 0
        %9012 = vmatpush1.bf16.msra.mxu0 %v8710
        %9013 = vmatprep.subr.bf16.mxu0 0
        %9014 = vmatpush1.bf16.msra.mxu0 %v8709
        %9015 = vmatprep.subr.bf16.mxu0 0
        %9016 = vmatpush1.bf16.msra.mxu0 %v8708
        %9017 = vmatprep.subr.bf16.mxu0 0
        %9018 = vmatpush1.bf16.msra.mxu0 %v8707
        %9019 = vmatprep.subr.bf16.mxu0 0
        %9020 = vmatpush1.bf16.msra.mxu0 %v8706
        %9021 = vmatprep.subr.bf16.mxu0 0
        %9022 = vmatpush2.bf16.msra.mxu0 %v8721
        %9023 = vmatprep.subr.bf16.mxu0 0
        %9024 = vmatpush2.bf16.msra.mxu0 %v8720
        %9025 = vmatprep.subr.bf16.mxu0 0
        %9026 = vmatpush2.bf16.msra.mxu0 %v8719
        %9027 = vmatprep.subr.bf16.mxu0 0
        %9028 = vmatpush2.bf16.msra.mxu0 %v8718
        %9029 = vmatprep.subr.bf16.mxu0 0
        %9030 = vmatpush2.bf16.msra.mxu0 %v8717
        %9031 = vmatprep.subr.bf16.mxu0 0
        %9032 = vmatpush2.bf16.msra.mxu0 %v8716
        %9033 = vmatprep.subr.bf16.mxu0 0
        %9034 = vmatpush2.bf16.msra.mxu0 %v8715
        %9035 = vmatprep.subr.bf16.mxu0 0
        %9036 = vmatpush2.bf16.msra.mxu0 %v8714
        %9037 = vmatprep.mubr.bf16.mxu0 %v8031
        %9038 = vmatmul.mubr.bf16.gmra.mxu0 %v8030
        %v9039 = vpop.f32.mrf.mxu0
        %v9040 = vadd.f32 %v9000, %v9039
        %v9041 = vpop.f32.mrf.mxu0
        %v9042 = vpop.f32.mrf.mxu0
        %v9043 = vpop.f32.mrf.mxu0
        %9044 = vdwg.mxu0
        %9045 = vmatprep.subr.bf16.mxu0 0
        %9046 = vmatpush1.bf16.msra.mxu0 %v8729
        %9047 = vmatprep.subr.bf16.mxu0 0
        %9048 = vmatpush1.bf16.msra.mxu0 %v8728
        %9049 = vmatprep.subr.bf16.mxu0 0
        %9050 = vmatpush1.bf16.msra.mxu0 %v8727
        %9051 = vmatprep.subr.bf16.mxu0 0
        %9052 = vmatpush1.bf16.msra.mxu0 %v8726
        %9053 = vmatprep.subr.bf16.mxu0 0
        %9054 = vmatpush1.bf16.msra.mxu0 %v8725
        %9055 = vmatprep.subr.bf16.mxu0 0
        %9056 = vmatpush1.bf16.msra.mxu0 %v8724
        %9057 = vmatprep.subr.bf16.mxu0 0
        %9058 = vmatpush1.bf16.msra.mxu0 %v8723
        %9059 = vmatprep.subr.bf16.mxu0 0
        %9060 = vmatpush1.bf16.msra.mxu0 %v8722
        %9061 = vmatprep.subr.bf16.mxu0 0
        %9062 = vmatpush2.bf16.msra.mxu0 %v8737
        %9063 = vmatprep.subr.bf16.mxu0 0
        %9064 = vmatpush2.bf16.msra.mxu0 %v8736
        %9065 = vmatprep.subr.bf16.mxu0 0
        %9066 = vmatpush2.bf16.msra.mxu0 %v8735
        %9067 = vmatprep.subr.bf16.mxu0 0
        %9068 = vmatpush2.bf16.msra.mxu0 %v8734
        %9069 = vmatprep.subr.bf16.mxu0 0
        %9070 = vmatpush2.bf16.msra.mxu0 %v8733
        %9071 = vmatprep.subr.bf16.mxu0 0
        %9072 = vmatpush2.bf16.msra.mxu0 %v8732
        %9073 = vmatprep.subr.bf16.mxu0 0
        %9074 = vmatpush2.bf16.msra.mxu0 %v8731
        %9075 = vmatprep.subr.bf16.mxu0 0
        %9076 = vmatpush2.bf16.msra.mxu0 %v8730
        %9077 = vmatprep.mubr.bf16.mxu0 %v8033
        %9078 = vmatmul.mubr.bf16.gmra.mxu0 %v8032
        %v9079 = vpop.f32.mrf.mxu0
        %v9080 = vadd.f32 %v9040, %v9079
        %v9081 = vpop.f32.mrf.mxu0
        %v9082 = vpop.f32.mrf.mxu0
        %v9083 = vpop.f32.mrf.mxu0
        %9084 = vdwg.mxu0
        %9085 = vmatprep.subr.bf16.mxu0 0
        %9086 = vmatpush1.bf16.msra.mxu0 0
        %9087 = vmatprep.subr.bf16.mxu0 0
        %9088 = vmatpush1.bf16.msra.mxu0 0
        %9089 = vmatprep.subr.bf16.mxu0 0
        %9090 = vmatpush1.bf16.msra.mxu0 0
        %9091 = vmatprep.subr.bf16.mxu0 0
        %9092 = vmatpush1.bf16.msra.mxu0 0
        %9093 = vmatprep.subr.bf16.mxu0 0
        %9094 = vmatpush1.bf16.msra.mxu0 %v8741
        %9095 = vmatprep.subr.bf16.mxu0 0
        %9096 = vmatpush1.bf16.msra.mxu0 %v8740
        %9097 = vmatprep.subr.bf16.mxu0 0
        %9098 = vmatpush1.bf16.msra.mxu0 %v8739
        %9099 = vmatprep.subr.bf16.mxu0 0
        %9100 = vmatpush1.bf16.msra.mxu0 %v8738
        %9101 = vmatprep.subr.bf16.mxu0 0
        %9102 = vmatpush2.bf16.msra.mxu0 0
        %9103 = vmatprep.subr.bf16.mxu0 0
        %9104 = vmatpush2.bf16.msra.mxu0 0
        %9105 = vmatprep.subr.bf16.mxu0 0
        %9106 = vmatpush2.bf16.msra.mxu0 0
        %9107 = vmatprep.subr.bf16.mxu0 0
        %9108 = vmatpush2.bf16.msra.mxu0 0
        %9109 = vmatprep.subr.bf16.mxu0 0
        %9110 = vmatpush2.bf16.msra.mxu0 0
        %9111 = vmatprep.subr.bf16.mxu0 0
        %9112 = vmatpush2.bf16.msra.mxu0 0
        %9113 = vmatprep.subr.bf16.mxu0 0
        %9114 = vmatpush2.bf16.msra.mxu0 0
        %9115 = vmatprep.subr.bf16.mxu0 0
        %9116 = vmatpush2.bf16.msra.mxu0 0
        %9117 = vmatprep.mubr.bf16.mxu0 0
        %9118 = vmatmul.mubr.bf16.gmra.mxu0 %v8843
        %v9119 = vpop.f32.mrf.mxu0
        %v9120 = vadd.f32 %v9080, %v9119
        %v9121 = vpop.f32.mrf.mxu0
        %v9122 = vpop.f32.mrf.mxu0
        %v9123 = vpop.f32.mrf.mxu0
        %9124 = vdwg.mxu0
        %v9125 = vmax.f32 %v9120, 0.0
        %v9126 = vpack.c.bf16 %v9125, %v9125
        %v9127 = vld [vmem:[%s7] sm:$0xf]
        %v9128 = vld [vmem:[%s7 + $0x4] sm:$0xf]
        %v9129 = vld [vmem:[%s7 + $0x8] sm:$0xf]
        %v9130 = vld [vmem:[%s7 + $0xc] sm:$0xf]
        %v9131 = vld [vmem:[%s7 + $0x10] sm:$0xf]
        %v9132 = vld [vmem:[%s7 + $0x14] sm:$0xf]
        %v9133 = vld [vmem:[%s7 + $0x18] sm:$0xf]
        %v9134 = vld [vmem:[%s7 + $0x1c] sm:$0xf]
        %v9135 = vld [vmem:[%s7 + $0x20] sm:$0xf]
        %v9136 = vld [vmem:[%s7 + $0x24] sm:$0xf]
        %v9137 = vld [vmem:[%s7 + $0x28] sm:$0xf]
        %v9138 = vld [vmem:[%s7 + $0x2c] sm:$0xf]
        %v9139 = vld [vmem:[%s7 + $0x30] sm:$0xf]
        %v9140 = vld [vmem:[%s7 + $0x34] sm:$0xf]
        %v9141 = vld [vmem:[%s7 + $0x38] sm:$0xf]
        %v9142 = vld [vmem:[%s7 + $0x3c] sm:$0xf]
        %v9159 = vunpack.c.l.b16 %v9127
        %v9160 = vunpack.c.l.b16 %v9128
        %v9161 = vunpack.c.l.b16 %v9129
        %v9162 = vunpack.c.l.b16 %v9130
        %v9163 = vunpack.c.l.b16 %v9131
        %v9164 = vunpack.c.l.b16 %v9132
        %v9165 = vunpack.c.l.b16 %v9133
        %v9166 = vunpack.c.l.b16 %v9134
        %v9167 = vunpack.c.l.b16 %v9135
        %v9168 = vunpack.c.l.b16 %v9136
        %v9169 = vunpack.c.l.b16 %v9137
        %v9170 = vunpack.c.l.b16 %v9138
        %v9171 = vunpack.c.l.b16 %v9139
        %v9172 = vunpack.c.l.b16 %v9140
        %v9173 = vunpack.c.l.b16 %v9141
        %v9174 = vunpack.c.l.b16 %v9142
        %v9175 = vpack.c.b16 %v9160, %v9159
        %v9176 = vpack.c.b16 %v9162, %v9161
        %v9177 = vpack.c.b16 %v9164, %v9163
        %v9178 = vpack.c.b16 %v9166, %v9165
        %v9179 = vpack.c.b16 %v9168, %v9167
        %v9180 = vpack.c.b16 %v9170, %v9169
        %v9181 = vpack.c.b16 %v9172, %v9171
        %v9182 = vpack.c.b16 %v9174, %v9173
        %9191 = vmatprep.subr.bf16.mxu0 0
        %9192 = vmatpush1.bf16.msra.mxu0 %v9182
        %9193 = vmatprep.subr.bf16.mxu0 0
        %9194 = vmatpush1.bf16.msra.mxu0 %v9181
        %9195 = vmatprep.subr.bf16.mxu0 0
        %9196 = vmatpush1.bf16.msra.mxu0 %v9180
        %9197 = vmatprep.subr.bf16.mxu0 0
        %9198 = vmatpush1.bf16.msra.mxu0 %v9179
        %9199 = vmatprep.subr.bf16.mxu0 0
        %9200 = vmatpush1.bf16.msra.mxu0 %v9178
        %9201 = vmatprep.subr.bf16.mxu0 0
        %9202 = vmatpush1.bf16.msra.mxu0 %v9177
        %9203 = vmatprep.subr.bf16.mxu0 0
        %9204 = vmatpush1.bf16.msra.mxu0 %v9176
        %9205 = vmatprep.subr.bf16.mxu0 0
        %9206 = vmatpush1.bf16.msra.mxu0 %v9175
        %9207 = vmatprep.subr.bf16.mxu0 0
        %9208 = vmatpush2.bf16.msra.mxu0 0
        %9209 = vmatprep.subr.bf16.mxu0 0
        %9210 = vmatpush2.bf16.msra.mxu0 0
        %9211 = vmatprep.subr.bf16.mxu0 0
        %9212 = vmatpush2.bf16.msra.mxu0 0
        %9213 = vmatprep.subr.bf16.mxu0 0
        %9214 = vmatpush2.bf16.msra.mxu0 0
        %9215 = vmatprep.subr.bf16.mxu0 0
        %9216 = vmatpush2.bf16.msra.mxu0 0
        %9217 = vmatprep.subr.bf16.mxu0 0
        %9218 = vmatpush2.bf16.msra.mxu0 0
        %9219 = vmatprep.subr.bf16.mxu0 0
        %9220 = vmatpush2.bf16.msra.mxu0 0
        %9221 = vmatprep.subr.bf16.mxu0 0
        %9222 = vmatpush2.bf16.msra.mxu0 0
        %9223 = vmatprep.mubr.bf16.mxu0 0
        %9224 = vmatmul.mubr.bf16.gmra.mxu0 %v9126
        %v9225 = vpop.f32.mrf.mxu0
        %v9226 = vadd.f32 0.0, %v9225
        %v9227 = vpop.f32.mrf.mxu0
        %v9228 = vpop.f32.mrf.mxu0
        %v9229 = vpop.f32.mrf.mxu0
        %9230 = vdwg.mxu0
        %v9231 = vld [vmem:[%s8] sm:$0x1]
        %v9232 = vadd.f32 %v9226, %v9231
        %vm9233 = vcmask 73728
        %9234 = vst.msk [vmem:[%s324] sm:$0x1] %vm9233, %v9232
        %s9235 = sand.u32 %s225, 1
        %s9236 = scalar_lea.sflag [#allocation6], %s9235
        %s9237 = sand.u32 %s225, 1
        %s9238 = scalar_lea.vmem [#allocation5], %s9237
        // Predicated region
        $region57: #{simple_cnn_forward.1} parent=55 // pred_check
          %p9239 = pneg %p235
        $region58: #{simple_cnn_forward.1} parent=55 // pred_check_branch
          %9241 = sbr.rel (%p9239) target = $region60
        $region59: #{simple_cnn_forward.1} parent=55 // pred_region
          %s9243 = ssub.s32 16, 16
          %9244 = vsyncadd %s9236, %s9243
          %s9245 = smul.addr %s23, 16
          %s9246 = scalar_lea.hbm %s9, %s9245
          %s9248 = sshll.u32 %s9238, 4
          %s9249 = int_to_ptr.vmem [resolvable:$true] %s9248
          %9251 = dma.vmem_to_hbm [thread:$0]  %s9249, 16, %s9246, %s9236
        $region60: #{simple_cnn_forward.1} parent=55 // pred_fallthru
          _
      $region56: #{simple_cnn_forward.1} parent=5 // pred_fallthru
        _
      %p9252 = scmp.le.s32.totalorder 2, %s18
      // Predicated region
      $region61: #{simple_cnn_forward.1} parent=5 // pred_check
        %p9253 = pneg %p9252
      $region62: #{simple_cnn_forward.1} parent=5 // pred_check_branch
        %9255 = sbr.rel (%p9253) target = $region64
      $region63: #{simple_cnn_forward.1} parent=5 // pred_region
        %s9256 = ssub.s32 %s18, 2
        // Predicated region
        $region65: #{simple_cnn_forward.1} parent=63 // pred_check
          %p9257 = pneg %p241
        $region66: #{simple_cnn_forward.1} parent=63 // pred_check_branch
          %9259 = sbr.rel (%p9257) target = $region68
        $region67: #{simple_cnn_forward.1} parent=63 // pred_region
          %s9260 = sand.u32 %s226, 1
          %s9261 = scalar_lea.sflag [#allocation6], %s9260
          %s9262 = sand.u32 %s226, 1
          %s9263 = scalar_lea.vmem [#allocation5], %s9262
          %9264 = dma.done %s9261, 16
        $region68: #{simple_cnn_forward.1} parent=63 // pred_fallthru
          _
      $region64: #{simple_cnn_forward.1} parent=5 // pred_fallthru
        _
    $region6: #{simple_cnn_forward.1} parent=1 // loop_footer
      %s22 = sadd.s32 1, %s18
    $region7: #{simple_cnn_forward.1} parent=1 // loop_footer_branch
      %17 = sbr.rel target = $region3
    $region8: #{simple_cnn_forward.1} parent=1 // loop_exit
      _
    %9265 = vsyncpa [#allocation6], 1
    %s9266 = scalar_lea.sflag [#allocation6], 1
    %9267 = vsyncpa %s9266, 1

</llo_original>
